<compile_context>
chip_gen: v5e
topology: v5e:2x2
jax: 0.10.0
libtpu: 0.0.40
codegen_flags: <defaults>
</compile_context>

<pallas_src>
import functools
import numpy as np

import jax
import jax.numpy as jnp
from jax.experimental import pallas as pl
from jax.experimental.pallas import tpu as pltpu


def _round_up(x, m):
    return ((x + m - 1) // m) * m


_VMEM_LIMIT = 48 * 1024 * 1024  # explicit, with headroom on v7x's 64 MiB


# ----------------------------- Pallas kernels -------------------------------

def _conv_matmul_kernel(w_ref, x_ref, b_ref, o_ref, acc_ref):
    # w_ref: (tco, tk) bf16   x_ref: (1, tk, thw) bf16
    # b_ref: (tco, 1) f32     o_ref: (1, tco, thw) f32   acc_ref: (tco, thw) f32
    k = pl.program_id(3)

    @pl.when(k == 0)
    def _():
        acc_ref[...] = jnp.zeros_like(acc_ref)

    acc_ref[...] += jnp.dot(w_ref[...], x_ref[0],
                            preferred_element_type=jnp.float32)

    @pl.when(k == pl.num_programs(3) - 1)
    def _():
        o_ref[...] = (acc_ref[...] + b_ref[...])[None]


def pallas_conv_matmul(wmat, cols, bias, *, tco=256, thw=512, tk=512):
    """out[n, co, hw] = sum_k wmat[co, k] * cols[n, k, hw] + bias[co].

    wmat: [Cout, K] f32, cols: [N, K, HW] f32, bias: [Cout] f32 -> [N, Cout, HW] f32.
    Tiled over (N, Cout, HW, K) with K as the accumulated (last) grid axis.
    """
    cout, kdim = wmat.shape
    n, _, hw = cols.shape

    tco_e = min(tco, _round_up(cout, 16))     # bf16 sublane packing
    thw_e = min(thw, _round_up(hw, 128))
    tk_e = min(tk, _round_up(kdim, 128))
    cout_p = _round_up(cout, tco_e)
    hw_p = _round_up(hw, thw_e)
    k_p = _round_up(kdim, tk_e)

    wmat_p = jnp.pad(wmat.astype(jnp.bfloat16),
                     ((0, cout_p - cout), (0, k_p - kdim)))
    cols_p = jnp.pad(cols.astype(jnp.bfloat16),
                     ((0, 0), (0, k_p - kdim), (0, hw_p - hw)))
    bias_p = jnp.pad(bias.astype(jnp.float32), (0, cout_p - cout)).reshape(cout_p, 1)

    grid = (n, cout_p // tco_e, hw_p // thw_e, k_p // tk_e)
    out = pl.pallas_call(
        _conv_matmul_kernel,
        grid=grid,
        in_specs=[
            pl.BlockSpec((tco_e, tk_e), lambda b, i, j, k: (i, k)),
            pl.BlockSpec((1, tk_e, thw_e), lambda b, i, j, k: (b, k, j)),
            pl.BlockSpec((tco_e, 1), lambda b, i, j, k: (i, 0)),
        ],
        out_specs=pl.BlockSpec((1, tco_e, thw_e), lambda b, i, j, k: (b, i, j)),
        out_shape=jax.ShapeDtypeStruct((n, cout_p, hw_p), jnp.float32),
        scratch_shapes=[pltpu.VMEM((tco_e, thw_e), jnp.float32)],
        compiler_params=pltpu.CompilerParams(
            dimension_semantics=("parallel", "parallel", "parallel", "arbitrary"),
            vmem_limit_bytes=_VMEM_LIMIT),
    )(wmat_p, cols_p, bias_p)
    return out[:, :cout, :hw]


def _feature_match_kernel(w_ref, q_ref, maps_ref, idx_ref, m_sc, i_sc, *, lk_actual):
    # w_ref: (1, D, lk_tile) f32 key patches, q_ref: (1, D, lq_tile) f32 query patches
    # maps_ref/idx_ref: (1, 1, lq_tile); scratch m_sc (1, lq_tile) f32, i_sc (1, lq_tile) i32
    k = pl.program_id(2)
    lk_tile = w_ref.shape[2]

    @pl.when(k == 0)
    def _():
        m_sc[...] = jnp.full_like(m_sc, -jnp.inf)
        i_sc[...] = jnp.zeros_like(i_sc)

    w = w_ref[0]                                     # [D, lk_tile]
    q = q_ref[0]                                     # [D, lq_tile]

    # F.normalize(key_patches) over D: rsqrt * mul (EUP), f32.
    w_ss = jnp.sum(w * w, axis=0, keepdims=True)     # [1, lk_tile]
    w_n = w * jax.lax.rsqrt(jnp.maximum(w_ss, 1e-24))

    # Correlation on the MXU: contract D (dim 0 of both), bf16 operands, f32 acc.
    y = jax.lax.dot_general(
        w_n.astype(jnp.bfloat16), q.astype(jnp.bfloat16),
        dimension_numbers=(((0,), (0,)), ((), ())),
        preferred_element_type=jnp.float32)          # [lk_tile, lq_tile]

    # Mask padded key positions so they never win the max.
    row = jax.lax.broadcasted_iota(jnp.int32, y.shape, 0) + k * lk_tile
    y = jnp.where(row < lk_actual, y, -jnp.inf)

    tile_max = jnp.max(y, axis=0, keepdims=True)     # [1, lq_tile]
    # First (global) index attaining the tile max — matches torch.max tie-break.
    tile_idx = jnp.min(jnp.where(y == tile_max, row, jnp.int32(2147483647)),
                       axis=0, keepdims=True)

    # Cross-tile merge: strict improvement only, so earlier tiles keep ties.
    better = tile_max > m_sc[...]
    i_sc[...] = jnp.where(better, tile_idx, i_sc[...])
    m_sc[...] = jnp.where(better, tile_max, m_sc[...])

    @pl.when(k == pl.num_programs(2) - 1)
    def _():
        # Deferred query normalization: scale only the final max by 1/||q||.
        q_ss = jnp.sum(q * q, axis=0, keepdims=True)       # [1, lq_tile]
        inv_qn = jax.lax.rsqrt(jnp.maximum(q_ss, 1e-24))
        maps_ref[...] = (m_sc[...] * inv_qn)[None]
        idx_ref[...] = i_sc[...][None]


def pallas_feature_match(k_patches, q_patches, *, lk_tile=512, lq_tile=256):
    """k_patches: [N, D, Lk] f32, q_patches: [N, D, Lq] f32
       -> (maps [N, 1, Lq] f32, idx [N, 1, Lq] i32)."""
    n, d, lk = k_patches.shape
    lq = q_patches.shape[2]

    lk_t = min(lk_tile, _round_up(lk, 128))
    lq_t = min(lq_tile, _round_up(lq, 128))
    lk_p = _round_up(lk, lk_t)
    lq_p = _round_up(lq, lq_t)

    w_p = jnp.pad(k_patches, ((0, 0), (0, 0), (0, lk_p - lk)))
    q_p = jnp.pad(q_patches, ((0, 0), (0, 0), (0, lq_p - lq)))

    grid = (n, lq_p // lq_t, lk_p // lk_t)
    kernel = functools.partial(_feature_match_kernel, lk_actual=lk)
    maps, idx = pl.pallas_call(
        kernel,
        grid=grid,
        in_specs=[
            pl.BlockSpec((1, d, lk_t), lambda b, j, k: (b, 0, k)),
            pl.BlockSpec((1, d, lq_t), lambda b, j, k: (b, 0, j)),
        ],
        out_specs=(
            pl.BlockSpec((1, 1, lq_t), lambda b, j, k: (b, 0, j)),
            pl.BlockSpec((1, 1, lq_t), lambda b, j, k: (b, 0, j)),
        ),
        out_shape=(
            jax.ShapeDtypeStruct((n, 1, lq_p), jnp.float32),
            jax.ShapeDtypeStruct((n, 1, lq_p), jnp.int32),
        ),
        scratch_shapes=[
            pltpu.VMEM((1, lq_t), jnp.float32),
            pltpu.VMEM((1, lq_t), jnp.int32),
        ],
        compiler_params=pltpu.CompilerParams(
            dimension_semantics=("parallel", "parallel", "arbitrary"),
            vmem_limit_bytes=_VMEM_LIMIT),
    )(w_p, q_p)
    return maps[:, :, :lq], idx[:, :, :lq]


# ------------------------------- JAX glue ------------------------------------

def im2col(x, ksize, pad):
    """[N, C, H, W] -> [N, C*k*k, H, W]; (C, kh, kw) ordering like torch.Unfold."""
    # TODO(synk): fold this gather into the matmul BlockSpec index_map so the
    # 9x-expanded cols tensor never hits HBM.
    n, c, h, w = x.shape
    xp = jnp.pad(x, ((0, 0), (0, 0), (pad, pad), (pad, pad)))
    cols = []
    for i in range(ksize):
        for j in range(ksize):
            cols.append(xp[:, :, i:i + h, j:j + w])
    cols = jnp.stack(cols, axis=2)                   # [N, C, k*k, H, W]
    return cols.reshape(n, c * ksize * ksize, h, w)


def conv2d(x, weight, bias):
    """NCHW conv, stride 1, padding k//2, via im2col + tiled Pallas matmul.

    Oriented as weight[Cout, K] @ cols[N, K, HW] — no HBM transposes needed."""
    n, cin, h, w = x.shape
    cout, _, k, _ = weight.shape
    cols = im2col(x, k, k // 2).reshape(n, cin * k * k, h * w)    # [N, K, HW]
    wmat = weight.reshape(cout, cin * k * k)                      # [Cout, K]
    out = pallas_conv_matmul(wmat, cols, bias)                    # [N, Cout, HW]
    return out.reshape(n, cout, h, w)


def leaky_relu(x, slope=0.2):
    return jnp.where(x >= 0, x, slope * x)


def maxpool2x2(x):
    n, c, h, w = x.shape
    return x.reshape(n, c, h // 2, 2, w // 2, 2).max(axis=(3, 5))


def avgpool(x, s):
    n, c, h, w = x.shape
    return x.reshape(n, c, h // s, s, w // s, s).mean(axis=(3, 5))


_VGG_MEAN = np.array([0.485, 0.456, 0.406], np.float32)
_VGG_STD = np.array([0.229, 0.224, 0.225], np.float32)


def sub_mean(x):
    # MeanShift(1, vgg_mean, vgg_std): 1x1 conv with eye/std weight, -mean/std bias
    mean = jnp.asarray(_VGG_MEAN).reshape(1, 3, 1, 1)
    std = jnp.asarray(_VGG_STD).reshape(1, 3, 1, 1)
    return (x - mean) / std


def _cubic1(t, A):
    return ((A + 2.0) * t - (A + 3.0)) * t * t + 1.0


def _cubic2(t, A):
    return ((A * t - 5.0 * A) * t + 8.0 * A) * t - 4.0 * A


def _bicubic_matrix(in_size, out_size, A=-0.75):
    """PyTorch F.interpolate(mode='bicubic', align_corners=True) as a matrix."""
    od = np.arange(out_size)
    scale = (in_size - 1) / (out_size - 1)
    x = od * scale
    x0 = np.floor(x).astype(np.int64)
    t = x - x0
    coeffs = np.stack(
        [_cubic2(t + 1.0, A), _cubic1(t, A), _cubic1(1.0 - t, A), _cubic2(2.0 - t, A)],
        axis=1,
    )
    m = np.zeros((out_size, in_size), np.float64)
    for k in range(4):
        idx = np.clip(x0 - 1 + k, 0, in_size - 1)
        np.add.at(m, (od, idx), coeffs[:, k])
    return jnp.asarray(m, jnp.float32)


def bicubic_upscale(x, scale):
    n, c, h, w = x.shape
    mh = _bicubic_matrix(h, h * scale)
    mw = _bicubic_matrix(w, w * scale)
    y = jnp.einsum("ph,nchw->ncpw", mh, x)
    y = jnp.einsum("qw,ncpw->ncpq", mw, y)
    return y


def feature_extract(x, p):
    # VGG19.features[0:12] (random weights) + BasicBlock(256->16, k=1, LeakyReLU 0.2)
    x = jnp.maximum(conv2d(x, p["conv0_w"], p["conv0_b"]), 0.0)
    x = jnp.maximum(conv2d(x, p["conv2_w"], p["conv2_b"]), 0.0)
    x = maxpool2x2(x)
    x = jnp.maximum(conv2d(x, p["conv5_w"], p["conv5_b"]), 0.0)
    x = jnp.maximum(conv2d(x, p["conv7_w"], p["conv7_b"]), 0.0)
    x = maxpool2x2(x)
    x = jnp.maximum(conv2d(x, p["conv10_w"], p["conv10_b"]), 0.0)
    x = leaky_relu(conv2d(x, p["map_w"], p["map_b"]), 0.2)
    return x


def init_params(key):
    # TODO(synk): VGG19 pretrained weights are replaced with deterministic random init.
    specs = [
        ("conv0", 3, 64, 3), ("conv2", 64, 64, 3),
        ("conv5", 64, 128, 3), ("conv7", 128, 128, 3),
        ("conv10", 128, 256, 3), ("map", 256, 16, 1),
    ]
    params = {}
    for name, cin, cout, k in specs:
        key, kw, kb = jax.random.split(key, 3)
        fan_in = cin * k * k
        params[name + "_w"] = jax.random.normal(
            kw, (cout, cin, k, k), jnp.float32) / np.sqrt(fan_in)
        params[name + "_b"] = 0.01 * jax.random.normal(kb, (cout,), jnp.float32)
    return params


def feature_matching_forward(params, query, key_img, flag_8k, ksize=3, scale=2):
    # ---- query branch ----
    query = sub_mean(query)
    if not flag_8k:
        query = bicubic_upscale(query, scale)
    query = feature_extract(query, params)
    nq, cq, hq, wq = query.shape
    q_patches = im2col(query, ksize, ksize // 2).reshape(
        nq, cq * ksize * ksize, hq * wq)                       # [N, D, Lq]

    # ---- key branch ----
    key_img = avgpool(key_img, scale)
    key_img = sub_mean(key_img)
    if not flag_8k:
        key_img = bicubic_upscale(key_img, scale)
    key_img = feature_extract(key_img, params)
    nk, ck, hk, wk = key_img.shape
    k_patches = im2col(key_img, ksize, ksize // 2).reshape(
        nk, ck * ksize * ksize, hk * wk)                       # [N, D, Lk] (no transpose)

    # ---- normalized correlation + online max/argmax over key positions ----
    maps, idx = pallas_feature_match(k_patches, q_patches)
    relevance_maps = maps.reshape(nq, 1, hq, wq)
    hard_indices = idx.reshape(nq, hq * wq)
    return relevance_maps, hard_indices


if __name__ == "__main__":
    root = jax.random.PRNGKey(0)
    kp, kq, kk = jax.random.split(root, 3)
    params = init_params(kp)

    query = jax.random.uniform(kq, (2, 3, 8, 8), jnp.float32)      # LR query image
    key_img = jax.random.uniform(kk, (2, 3, 16, 16), jnp.float32)  # reference image

    fwd = jax.jit(feature_matching_forward,
                  static_argnames=("flag_8k", "ksize", "scale"))
    rel, idx = fwd(params, query, key_img, flag_8k=False, ksize=3, scale=2)
    jax.block_until_ready((rel, idx))

    assert rel.shape == (2, 1, 4, 4) and rel.dtype == jnp.float32
    assert idx.shape == (2, 16) and idx.dtype == jnp.int32
    assert bool(jnp.all(jnp.isfinite(rel)))
    assert bool(jnp.all((idx >= 0) & (idx < 16)))
    print("KERNEL_OK")
</pallas_src>

<mosaic_0001>
module attributes {stable_mosaic.version = 11 : i64} {
  func.func @_conv_matmul_kernel(%arg0: i32, %arg1: i32, %arg2: i32, %arg3: i32, %arg4: memref<64x128xbf16, #tpu.memory_space<vmem>>, %arg5: memref<1x128x256xbf16, #tpu.memory_space<vmem>>, %arg6: memref<64x1xf32, #tpu.memory_space<vmem>>, %arg7: memref<1x64x256xf32, #tpu.memory_space<vmem>>, %arg8: memref<64x256xf32, #tpu.memory_space<vmem>>) attributes {dimension_semantics = [#tpu.dimension_semantics<parallel>, #tpu.dimension_semantics<parallel>, #tpu.dimension_semantics<parallel>, #tpu.dimension_semantics<arbitrary>], iteration_bounds = array<i64: 2, 1, 1, 1>, scalar_prefetch = 0 : i64, scratch_operands = 1 : i64, tpu.core_type = #tpu.core_type<tc>, window_params = [{transform_indices = @transform_0, window_bounds = array<i64: 64, 128>}, {transform_indices = @transform_1, window_bounds = array<i64: 1, 128, 256>}, {transform_indices = @transform_2, window_bounds = array<i64: 64, 1>}, {transform_indices = @transform_3, window_bounds = array<i64: 1, 64, 256>}]} {
    %c0_i32 = arith.constant 0 : i32
    %0 = arith.cmpi eq, %arg3, %c0_i32 : i32
    %1 = arith.extui %0 : i1 to i32
    %c0_i32_0 = arith.constant 0 : i32
    %2 = arith.cmpi ne, %1, %c0_i32_0 : i32
    scf.if %2 {
      %cst_11 = arith.constant 0.000000e+00 : f32
      %13 = vector.broadcast %cst_11 : f32 to vector<64x256xf32>
      %c0_12 = arith.constant 0 : index
      %c0_13 = arith.constant 0 : index
      %14 = vector.load %arg8[%c0_12, %c0_13] : memref<64x256xf32, #tpu.memory_space<vmem>>, vector<64x256xf32>
      tpu.vector_store %arg8[%c0_12, %c0_13], %13 {strides = array<i32>} : memref<64x256xf32, #tpu.memory_space<vmem>>, vector<64x256xf32>,
    } else {
    }
    %c0 = arith.constant 0 : index
    %c0_1 = arith.constant 0 : index
    %3 = vector.load %arg8[%c0, %c0_1] : memref<64x256xf32, #tpu.memory_space<vmem>>, vector<64x256xf32>
    %c0_2 = arith.constant 0 : index
    %c0_3 = arith.constant 0 : index
    %4 = vector.load %arg4[%c0_2, %c0_3] : memref<64x128xbf16, #tpu.memory_space<vmem>>, vector<64x128xbf16>
    %c0_4 = arith.constant 0 : index
    %c0_5 = arith.constant 0 : index
    %c0_6 = arith.constant 0 : index
    %5 = vector.load %arg5[%c0_4, %c0_5, %c0_6] : memref<1x128x256xbf16, #tpu.memory_space<vmem>>, vector<1x128x256xbf16>
    %6 = vector.shape_cast %5 : vector<1x128x256xbf16> to vector<128x256xbf16>
    %cst = arith.constant dense<0.000000e+00> : vector<64x256xf32>
    %7 = tpu.matmul %4, %6, %cst {dimension_numbers = #tpu.dot_dimension_numbers<[1], [0], [0], [1], [0, 0, 1, 1], [], []>} : vector<64x128xbf16>, vector<128x256xbf16>, vector<64x256xf32> -> vector<64x256xf32>
    %8 = arith.addf %3, %7 : vector<64x256xf32>
    %c0_7 = arith.constant 0 : index
    %c0_8 = arith.constant 0 : index
    %9 = vector.load %arg8[%c0_7, %c0_8] : memref<64x256xf32, #tpu.memory_space<vmem>>, vector<64x256xf32>
    tpu.vector_store %arg8[%c0_7, %c0_8], %8 {strides = array<i32>} : memref<64x256xf32, #tpu.memory_space<vmem>>, vector<64x256xf32>,
    %c0_i32_9 = arith.constant 0 : i32
    %10 = arith.cmpi eq, %arg3, %c0_i32_9 : i32
    %11 = arith.extui %10 : i1 to i32
    %c0_i32_10 = arith.constant 0 : i32
    %12 = arith.cmpi ne, %11, %c0_i32_10 : i32
    scf.if %12 {
      %c0_11 = arith.constant 0 : index
      %c0_12 = arith.constant 0 : index
      %13 = vector.load %arg8[%c0_11, %c0_12] : memref<64x256xf32, #tpu.memory_space<vmem>>, vector<64x256xf32>
      %c0_13 = arith.constant 0 : index
      %c0_14 = arith.constant 0 : index
      %14 = vector.load %arg6[%c0_13, %c0_14] : memref<64x1xf32, #tpu.memory_space<vmem>>, vector<64x1xf32>
      %15 = vector.broadcast %14 : vector<64x1xf32> to vector<64x256xf32>
      %16 = arith.addf %13, %15 : vector<64x256xf32>
      %17 = vector.shape_cast %16 : vector<64x256xf32> to vector<1x64x256xf32>
      %c0_15 = arith.constant 0 : index
      %c0_16 = arith.constant 0 : index
      %c0_17 = arith.constant 0 : index
      %18 = vector.load %arg7[%c0_15, %c0_16, %c0_17] : memref<1x64x256xf32, #tpu.memory_space<vmem>>, vector<1x64x256xf32>
      tpu.vector_store %arg7[%c0_15, %c0_16, %c0_17], %17 {strides = array<i32>} : memref<1x64x256xf32, #tpu.memory_space<vmem>>, vector<1x64x256xf32>,
    } else {
    }
    return
  }
  func.func @transform_0(%arg0: i32, %arg1: i32, %arg2: i32, %arg3: i32) -> (i32, i32) {
    %c0_i32 = arith.constant 0 : i32
    return %arg1, %arg3 : i32, i32
  }
  func.func @transform_1(%arg0: i32, %arg1: i32, %arg2: i32, %arg3: i32) -> (i32, i32, i32) {
    %c0_i32 = arith.constant 0 : i32
    return %arg0, %arg3, %arg2 : i32, i32, i32
  }
  func.func @transform_2(%arg0: i32, %arg1: i32, %arg2: i32, %arg3: i32) -> (i32, i32) {
    %c0_i32 = arith.constant 0 : i32
    %c0_i32_0 = arith.constant 0 : i32
    return %arg1, %c0_i32 : i32, i32
  }
  func.func @transform_3(%arg0: i32, %arg1: i32, %arg2: i32, %arg3: i32) -> (i32, i32, i32) {
    %c0_i32 = arith.constant 0 : i32
    return %arg0, %arg1, %arg2 : i32, i32, i32
  }
}

module attributes {stable_mosaic.version = 11 : i64} {
  func.func @_conv_matmul_kernel(%arg0: i32, %arg1: i32, %arg2: i32, %arg3: i32, %arg4: memref<64x512xbf16, #tpu.memory_space<vmem>>, %arg5: memref<1x512x256xbf16, #tpu.memory_space<vmem>>, %arg6: memref<64x1xf32, #tpu.memory_space<vmem>>, %arg7: memref<1x64x256xf32, #tpu.memory_space<vmem>>, %arg8: memref<64x256xf32, #tpu.memory_space<vmem>>) attributes {dimension_semantics = [#tpu.dimension_semantics<parallel>, #tpu.dimension_semantics<parallel>, #tpu.dimension_semantics<parallel>, #tpu.dimension_semantics<arbitrary>], iteration_bounds = array<i64: 2, 1, 1, 2>, scalar_prefetch = 0 : i64, scratch_operands = 1 : i64, tpu.core_type = #tpu.core_type<tc>, window_params = [{transform_indices = @transform_0, window_bounds = array<i64: 64, 512>}, {transform_indices = @transform_1, window_bounds = array<i64: 1, 512, 256>}, {transform_indices = @transform_2, window_bounds = array<i64: 64, 1>}, {transform_indices = @transform_3, window_bounds = array<i64: 1, 64, 256>}]} {
    %c0_i32 = arith.constant 0 : i32
    %0 = arith.cmpi eq, %arg3, %c0_i32 : i32
    %1 = arith.extui %0 : i1 to i32
    %c0_i32_0 = arith.constant 0 : i32
    %2 = arith.cmpi ne, %1, %c0_i32_0 : i32
    scf.if %2 {
      %cst_10 = arith.constant 0.000000e+00 : f32
      %13 = vector.broadcast %cst_10 : f32 to vector<64x256xf32>
      %c0_11 = arith.constant 0 : index
      %c0_12 = arith.constant 0 : index
      %14 = vector.load %arg8[%c0_11, %c0_12] : memref<64x256xf32, #tpu.memory_space<vmem>>, vector<64x256xf32>
      tpu.vector_store %arg8[%c0_11, %c0_12], %13 {strides = array<i32>} : memref<64x256xf32, #tpu.memory_space<vmem>>, vector<64x256xf32>,
    } else {
    }
    %c0 = arith.constant 0 : index
    %c0_1 = arith.constant 0 : index
    %3 = vector.load %arg8[%c0, %c0_1] : memref<64x256xf32, #tpu.memory_space<vmem>>, vector<64x256xf32>
    %c0_2 = arith.constant 0 : index
    %c0_3 = arith.constant 0 : index
    %4 = vector.load %arg4[%c0_2, %c0_3] : memref<64x512xbf16, #tpu.memory_space<vmem>>, vector<64x512xbf16>
    %c0_4 = arith.constant 0 : index
    %c0_5 = arith.constant 0 : index
    %c0_6 = arith.constant 0 : index
    %5 = vector.load %arg5[%c0_4, %c0_5, %c0_6] : memref<1x512x256xbf16, #tpu.memory_space<vmem>>, vector<1x512x256xbf16>
    %6 = vector.shape_cast %5 : vector<1x512x256xbf16> to vector<512x256xbf16>
    %cst = arith.constant dense<0.000000e+00> : vector<64x256xf32>
    %7 = tpu.matmul %4, %6, %cst {dimension_numbers = #tpu.dot_dimension_numbers<[1], [0], [0], [1], [0, 0, 1, 1], [], []>} : vector<64x512xbf16>, vector<512x256xbf16>, vector<64x256xf32> -> vector<64x256xf32>
    %8 = arith.addf %3, %7 : vector<64x256xf32>
    %c0_7 = arith.constant 0 : index
    %c0_8 = arith.constant 0 : index
    %9 = vector.load %arg8[%c0_7, %c0_8] : memref<64x256xf32, #tpu.memory_space<vmem>>, vector<64x256xf32>
    tpu.vector_store %arg8[%c0_7, %c0_8], %8 {strides = array<i32>} : memref<64x256xf32, #tpu.memory_space<vmem>>, vector<64x256xf32>,
    %c1_i32 = arith.constant 1 : i32
    %10 = arith.cmpi eq, %arg3, %c1_i32 : i32
    %11 = arith.extui %10 : i1 to i32
    %c0_i32_9 = arith.constant 0 : i32
    %12 = arith.cmpi ne, %11, %c0_i32_9 : i32
    scf.if %12 {
      %c0_10 = arith.constant 0 : index
      %c0_11 = arith.constant 0 : index
      %13 = vector.load %arg8[%c0_10, %c0_11] : memref<64x256xf32, #tpu.memory_space<vmem>>, vector<64x256xf32>
      %c0_12 = arith.constant 0 : index
      %c0_13 = arith.constant 0 : index
      %14 = vector.load %arg6[%c0_12, %c0_13] : memref<64x1xf32, #tpu.memory_space<vmem>>, vector<64x1xf32>
      %15 = vector.broadcast %14 : vector<64x1xf32> to vector<64x256xf32>
      %16 = arith.addf %13, %15 : vector<64x256xf32>
      %17 = vector.shape_cast %16 : vector<64x256xf32> to vector<1x64x256xf32>
      %c0_14 = arith.constant 0 : index
      %c0_15 = arith.constant 0 : index
      %c0_16 = arith.constant 0 : index
      %18 = vector.load %arg7[%c0_14, %c0_15, %c0_16] : memref<1x64x256xf32, #tpu.memory_space<vmem>>, vector<1x64x256xf32>
      tpu.vector_store %arg7[%c0_14, %c0_15, %c0_16], %17 {strides = array<i32>} : memref<1x64x256xf32, #tpu.memory_space<vmem>>, vector<1x64x256xf32>,
    } else {
    }
    return
  }
  func.func @transform_0(%arg0: i32, %arg1: i32, %arg2: i32, %arg3: i32) -> (i32, i32) {
    %c0_i32 = arith.constant 0 : i32
    return %arg1, %arg3 : i32, i32
  }
  func.func @transform_1(%arg0: i32, %arg1: i32, %arg2: i32, %arg3: i32) -> (i32, i32, i32) {
    %c0_i32 = arith.constant 0 : i32
    return %arg0, %arg3, %arg2 : i32, i32, i32
  }
  func.func @transform_2(%arg0: i32, %arg1: i32, %arg2: i32, %arg3: i32) -> (i32, i32) {
    %c0_i32 = arith.constant 0 : i32
    %c0_i32_0 = arith.constant 0 : i32
    return %arg1, %c0_i32 : i32, i32
  }
  func.func @transform_3(%arg0: i32, %arg1: i32, %arg2: i32, %arg3: i32) -> (i32, i32, i32) {
    %c0_i32 = arith.constant 0 : i32
    return %arg0, %arg1, %arg2 : i32, i32, i32
  }
}

module attributes {stable_mosaic.version = 11 : i64} {
  func.func @_conv_matmul_kernel(%arg0: i32, %arg1: i32, %arg2: i32, %arg3: i32, %arg4: memref<128x512xbf16, #tpu.memory_space<vmem>>, %arg5: memref<1x512x128xbf16, #tpu.memory_space<vmem>>, %arg6: memref<128x1xf32, #tpu.memory_space<vmem>>, %arg7: memref<1x128x128xf32, #tpu.memory_space<vmem>>, %arg8: memref<128x128xf32, #tpu.memory_space<vmem>>) attributes {dimension_semantics = [#tpu.dimension_semantics<parallel>, #tpu.dimension_semantics<parallel>, #tpu.dimension_semantics<parallel>, #tpu.dimension_semantics<arbitrary>], iteration_bounds = array<i64: 2, 1, 1, 2>, scalar_prefetch = 0 : i64, scratch_operands = 1 : i64, tpu.core_type = #tpu.core_type<tc>, window_params = [{transform_indices = @transform_0, window_bounds = array<i64: 128, 512>}, {transform_indices = @transform_1, window_bounds = array<i64: 1, 512, 128>}, {transform_indices = @transform_2, window_bounds = array<i64: 128, 1>}, {transform_indices = @transform_3, window_bounds = array<i64: 1, 128, 128>}]} {
    %c0_i32 = arith.constant 0 : i32
    %0 = arith.cmpi eq, %arg3, %c0_i32 : i32
    %1 = arith.extui %0 : i1 to i32
    %c0_i32_0 = arith.constant 0 : i32
    %2 = arith.cmpi ne, %1, %c0_i32_0 : i32
    scf.if %2 {
      %cst_10 = arith.constant 0.000000e+00 : f32
      %13 = vector.broadcast %cst_10 : f32 to vector<128x128xf32>
      %c0_11 = arith.constant 0 : index
      %c0_12 = arith.constant 0 : index
      %14 = vector.load %arg8[%c0_11, %c0_12] : memref<128x128xf32, #tpu.memory_space<vmem>>, vector<128x128xf32>
      tpu.vector_store %arg8[%c0_11, %c0_12], %13 {strides = array<i32>} : memref<128x128xf32, #tpu.memory_space<vmem>>, vector<128x128xf32>,
    } else {
    }
    %c0 = arith.constant 0 : index
    %c0_1 = arith.constant 0 : index
    %3 = vector.load %arg8[%c0, %c0_1] : memref<128x128xf32, #tpu.memory_space<vmem>>, vector<128x128xf32>
    %c0_2 = arith.constant 0 : index
    %c0_3 = arith.constant 0 : index
    %4 = vector.load %arg4[%c0_2, %c0_3] : memref<128x512xbf16, #tpu.memory_space<vmem>>, vector<128x512xbf16>
    %c0_4 = arith.constant 0 : index
    %c0_5 = arith.constant 0 : index
    %c0_6 = arith.constant 0 : index
    %5 = vector.load %arg5[%c0_4, %c0_5, %c0_6] : memref<1x512x128xbf16, #tpu.memory_space<vmem>>, vector<1x512x128xbf16>
    %6 = vector.shape_cast %5 : vector<1x512x128xbf16> to vector<512x128xbf16>
    %cst = arith.constant dense<0.000000e+00> : vector<128x128xf32>
    %7 = tpu.matmul %4, %6, %cst {dimension_numbers = #tpu.dot_dimension_numbers<[1], [0], [0], [1], [0, 0, 1, 1], [], []>} : vector<128x512xbf16>, vector<512x128xbf16>, vector<128x128xf32> -> vector<128x128xf32>
    %8 = arith.addf %3, %7 : vector<128x128xf32>
    %c0_7 = arith.constant 0 : index
    %c0_8 = arith.constant 0 : index
    %9 = vector.load %arg8[%c0_7, %c0_8] : memref<128x128xf32, #tpu.memory_space<vmem>>, vector<128x128xf32>
    tpu.vector_store %arg8[%c0_7, %c0_8], %8 {strides = array<i32>} : memref<128x128xf32, #tpu.memory_space<vmem>>, vector<128x128xf32>,
    %c1_i32 = arith.constant 1 : i32
    %10 = arith.cmpi eq, %arg3, %c1_i32 : i32
    %11 = arith.extui %10 : i1 to i32
    %c0_i32_9 = arith.constant 0 : i32
    %12 = arith.cmpi ne, %11, %c0_i32_9 : i32
    scf.if %12 {
      %c0_10 = arith.constant 0 : index
      %c0_11 = arith.constant 0 : index
      %13 = vector.load %arg8[%c0_10, %c0_11] : memref<128x128xf32, #tpu.memory_space<vmem>>, vector<128x128xf32>
      %c0_12 = arith.constant 0 : index
      %c0_13 = arith.constant 0 : index
      %14 = vector.load %arg6[%c0_12, %c0_13] : memref<128x1xf32, #tpu.memory_space<vmem>>, vector<128x1xf32>
      %15 = vector.broadcast %14 : vector<128x1xf32> to vector<128x128xf32>
      %16 = arith.addf %13, %15 : vector<128x128xf32>
      %17 = vector.shape_cast %16 : vector<128x128xf32> to vector<1x128x128xf32>
      %c0_14 = arith.constant 0 : index
      %c0_15 = arith.constant 0 : index
      %c0_16 = arith.constant 0 : index
      %18 = vector.load %arg7[%c0_14, %c0_15, %c0_16] : memref<1x128x128xf32, #tpu.memory_space<vmem>>, vector<1x128x128xf32>
      tpu.vector_store %arg7[%c0_14, %c0_15, %c0_16], %17 {strides = array<i32>} : memref<1x128x128xf32, #tpu.memory_space<vmem>>, vector<1x128x128xf32>,
    } else {
    }
    return
  }
  func.func @transform_0(%arg0: i32, %arg1: i32, %arg2: i32, %arg3: i32) -> (i32, i32) {
    %c0_i32 = arith.constant 0 : i32
    return %arg1, %arg3 : i32, i32
  }
  func.func @transform_1(%arg0: i32, %arg1: i32, %arg2: i32, %arg3: i32) -> (i32, i32, i32) {
    %c0_i32 = arith.constant 0 : i32
    return %arg0, %arg3, %arg2 : i32, i32, i32
  }
  func.func @transform_2(%arg0: i32, %arg1: i32, %arg2: i32, %arg3: i32) -> (i32, i32) {
    %c0_i32 = arith.constant 0 : i32
    %c0_i32_0 = arith.constant 0 : i32
    return %arg1, %c0_i32 : i32, i32
  }
  func.func @transform_3(%arg0: i32, %arg1: i32, %arg2: i32, %arg3: i32) -> (i32, i32, i32) {
    %c0_i32 = arith.constant 0 : i32
    return %arg0, %arg1, %arg2 : i32, i32, i32
  }
}

module attributes {stable_mosaic.version = 11 : i64} {
  func.func @_conv_matmul_kernel(%arg0: i32, %arg1: i32, %arg2: i32, %arg3: i32, %arg4: memref<128x512xbf16, #tpu.memory_space<vmem>>, %arg5: memref<1x512x128xbf16, #tpu.memory_space<vmem>>, %arg6: memref<128x1xf32, #tpu.memory_space<vmem>>, %arg7: memref<1x128x128xf32, #tpu.memory_space<vmem>>, %arg8: memref<128x128xf32, #tpu.memory_space<vmem>>) attributes {dimension_semantics = [#tpu.dimension_semantics<parallel>, #tpu.dimension_semantics<parallel>, #tpu.dimension_semantics<parallel>, #tpu.dimension_semantics<arbitrary>], iteration_bounds = array<i64: 2, 1, 1, 3>, scalar_prefetch = 0 : i64, scratch_operands = 1 : i64, tpu.core_type = #tpu.core_type<tc>, window_params = [{transform_indices = @transform_0, window_bounds = array<i64: 128, 512>}, {transform_indices = @transform_1, window_bounds = array<i64: 1, 512, 128>}, {transform_indices = @transform_2, window_bounds = array<i64: 128, 1>}, {transform_indices = @transform_3, window_bounds = array<i64: 1, 128, 128>}]} {
    %c0_i32 = arith.constant 0 : i32
    %0 = arith.cmpi eq, %arg3, %c0_i32 : i32
    %1 = arith.extui %0 : i1 to i32
    %c0_i32_0 = arith.constant 0 : i32
    %2 = arith.cmpi ne, %1, %c0_i32_0 : i32
    scf.if %2 {
      %cst_10 = arith.constant 0.000000e+00 : f32
      %13 = vector.broadcast %cst_10 : f32 to vector<128x128xf32>
      %c0_11 = arith.constant 0 : index
      %c0_12 = arith.constant 0 : index
      %14 = vector.load %arg8[%c0_11, %c0_12] : memref<128x128xf32, #tpu.memory_space<vmem>>, vector<128x128xf32>
      tpu.vector_store %arg8[%c0_11, %c0_12], %13 {strides = array<i32>} : memref<128x128xf32, #tpu.memory_space<vmem>>, vector<128x128xf32>,
    } else {
    }
    %c0 = arith.constant 0 : index
    %c0_1 = arith.constant 0 : index
    %3 = vector.load %arg8[%c0, %c0_1] : memref<128x128xf32, #tpu.memory_space<vmem>>, vector<128x128xf32>
    %c0_2 = arith.constant 0 : index
    %c0_3 = arith.constant 0 : index
    %4 = vector.load %arg4[%c0_2, %c0_3] : memref<128x512xbf16, #tpu.memory_space<vmem>>, vector<128x512xbf16>
    %c0_4 = arith.constant 0 : index
    %c0_5 = arith.constant 0 : index
    %c0_6 = arith.constant 0 : index
    %5 = vector.load %arg5[%c0_4, %c0_5, %c0_6] : memref<1x512x128xbf16, #tpu.memory_space<vmem>>, vector<1x512x128xbf16>
    %6 = vector.shape_cast %5 : vector<1x512x128xbf16> to vector<512x128xbf16>
    %cst = arith.constant dense<0.000000e+00> : vector<128x128xf32>
    %7 = tpu.matmul %4, %6, %cst {dimension_numbers = #tpu.dot_dimension_numbers<[1], [0], [0], [1], [0, 0, 1, 1], [], []>} : vector<128x512xbf16>, vector<512x128xbf16>, vector<128x128xf32> -> vector<128x128xf32>
    %8 = arith.addf %3, %7 : vector<128x128xf32>
    %c0_7 = arith.constant 0 : index
    %c0_8 = arith.constant 0 : index
    %9 = vector.load %arg8[%c0_7, %c0_8] : memref<128x128xf32, #tpu.memory_space<vmem>>, vector<128x128xf32>
    tpu.vector_store %arg8[%c0_7, %c0_8], %8 {strides = array<i32>} : memref<128x128xf32, #tpu.memory_space<vmem>>, vector<128x128xf32>,
    %c2_i32 = arith.constant 2 : i32
    %10 = arith.cmpi eq, %arg3, %c2_i32 : i32
    %11 = arith.extui %10 : i1 to i32
    %c0_i32_9 = arith.constant 0 : i32
    %12 = arith.cmpi ne, %11, %c0_i32_9 : i32
    scf.if %12 {
      %c0_10 = arith.constant 0 : index
      %c0_11 = arith.constant 0 : index
      %13 = vector.load %arg8[%c0_10, %c0_11] : memref<128x128xf32, #tpu.memory_space<vmem>>, vector<128x128xf32>
      %c0_12 = arith.constant 0 : index
      %c0_13 = arith.constant 0 : index
      %14 = vector.load %arg6[%c0_12, %c0_13] : memref<128x1xf32, #tpu.memory_space<vmem>>, vector<128x1xf32>
      %15 = vector.broadcast %14 : vector<128x1xf32> to vector<128x128xf32>
      %16 = arith.addf %13, %15 : vector<128x128xf32>
      %17 = vector.shape_cast %16 : vector<128x128xf32> to vector<1x128x128xf32>
      %c0_14 = arith.constant 0 : index
      %c0_15 = arith.constant 0 : index
      %c0_16 = arith.constant 0 : index
      %18 = vector.load %arg7[%c0_14, %c0_15, %c0_16] : memref<1x128x128xf32, #tpu.memory_space<vmem>>, vector<1x128x128xf32>
      tpu.vector_store %arg7[%c0_14, %c0_15, %c0_16], %17 {strides = array<i32>} : memref<1x128x128xf32, #tpu.memory_space<vmem>>, vector<1x128x128xf32>,
    } else {
    }
    return
  }
  func.func @transform_0(%arg0: i32, %arg1: i32, %arg2: i32, %arg3: i32) -> (i32, i32) {
    %c0_i32 = arith.constant 0 : i32
    return %arg1, %arg3 : i32, i32
  }
  func.func @transform_1(%arg0: i32, %arg1: i32, %arg2: i32, %arg3: i32) -> (i32, i32, i32) {
    %c0_i32 = arith.constant 0 : i32
    return %arg0, %arg3, %arg2 : i32, i32, i32
  }
  func.func @transform_2(%arg0: i32, %arg1: i32, %arg2: i32, %arg3: i32) -> (i32, i32) {
    %c0_i32 = arith.constant 0 : i32
    %c0_i32_0 = arith.constant 0 : i32
    return %arg1, %c0_i32 : i32, i32
  }
  func.func @transform_3(%arg0: i32, %arg1: i32, %arg2: i32, %arg3: i32) -> (i32, i32, i32) {
    %c0_i32 = arith.constant 0 : i32
    return %arg0, %arg1, %arg2 : i32, i32, i32
  }
}

module attributes {stable_mosaic.version = 11 : i64} {
  func.func @_conv_matmul_kernel(%arg0: i32, %arg1: i32, %arg2: i32, %arg3: i32, %arg4: memref<256x512xbf16, #tpu.memory_space<vmem>>, %arg5: memref<1x512x128xbf16, #tpu.memory_space<vmem>>, %arg6: memref<256x1xf32, #tpu.memory_space<vmem>>, %arg7: memref<1x256x128xf32, #tpu.memory_space<vmem>>, %arg8: memref<256x128xf32, #tpu.memory_space<vmem>>) attributes {dimension_semantics = [#tpu.dimension_semantics<parallel>, #tpu.dimension_semantics<parallel>, #tpu.dimension_semantics<parallel>, #tpu.dimension_semantics<arbitrary>], iteration_bounds = array<i64: 2, 1, 1, 3>, scalar_prefetch = 0 : i64, scratch_operands = 1 : i64, tpu.core_type = #tpu.core_type<tc>, window_params = [{transform_indices = @transform_0, window_bounds = array<i64: 256, 512>}, {transform_indices = @transform_1, window_bounds = array<i64: 1, 512, 128>}, {transform_indices = @transform_2, window_bounds = array<i64: 256, 1>}, {transform_indices = @transform_3, window_bounds = array<i64: 1, 256, 128>}]} {
    %c0_i32 = arith.constant 0 : i32
    %0 = arith.cmpi eq, %arg3, %c0_i32 : i32
    %1 = arith.extui %0 : i1 to i32
    %c0_i32_0 = arith.constant 0 : i32
    %2 = arith.cmpi ne, %1, %c0_i32_0 : i32
    scf.if %2 {
      %cst_10 = arith.constant 0.000000e+00 : f32
      %13 = vector.broadcast %cst_10 : f32 to vector<256x128xf32>
      %c0_11 = arith.constant 0 : index
      %c0_12 = arith.constant 0 : index
      %14 = vector.load %arg8[%c0_11, %c0_12] : memref<256x128xf32, #tpu.memory_space<vmem>>, vector<256x128xf32>
      tpu.vector_store %arg8[%c0_11, %c0_12], %13 {strides = array<i32>} : memref<256x128xf32, #tpu.memory_space<vmem>>, vector<256x128xf32>,
    } else {
    }
    %c0 = arith.constant 0 : index
    %c0_1 = arith.constant 0 : index
    %3 = vector.load %arg8[%c0, %c0_1] : memref<256x128xf32, #tpu.memory_space<vmem>>, vector<256x128xf32>
    %c0_2 = arith.constant 0 : index
    %c0_3 = arith.constant 0 : index
    %4 = vector.load %arg4[%c0_2, %c0_3] : memref<256x512xbf16, #tpu.memory_space<vmem>>, vector<256x512xbf16>
    %c0_4 = arith.constant 0 : index
    %c0_5 = arith.constant 0 : index
    %c0_6 = arith.constant 0 : index
    %5 = vector.load %arg5[%c0_4, %c0_5, %c0_6] : memref<1x512x128xbf16, #tpu.memory_space<vmem>>, vector<1x512x128xbf16>
    %6 = vector.shape_cast %5 : vector<1x512x128xbf16> to vector<512x128xbf16>
    %cst = arith.constant dense<0.000000e+00> : vector<256x128xf32>
    %7 = tpu.matmul %4, %6, %cst {dimension_numbers = #tpu.dot_dimension_numbers<[1], [0], [0], [1], [0, 0, 1, 1], [], []>} : vector<256x512xbf16>, vector<512x128xbf16>, vector<256x128xf32> -> vector<256x128xf32>
    %8 = arith.addf %3, %7 : vector<256x128xf32>
    %c0_7 = arith.constant 0 : index
    %c0_8 = arith.constant 0 : index
    %9 = vector.load %arg8[%c0_7, %c0_8] : memref<256x128xf32, #tpu.memory_space<vmem>>, vector<256x128xf32>
    tpu.vector_store %arg8[%c0_7, %c0_8], %8 {strides = array<i32>} : memref<256x128xf32, #tpu.memory_space<vmem>>, vector<256x128xf32>,
    %c2_i32 = arith.constant 2 : i32
    %10 = arith.cmpi eq, %arg3, %c2_i32 : i32
    %11 = arith.extui %10 : i1 to i32
    %c0_i32_9 = arith.constant 0 : i32
    %12 = arith.cmpi ne, %11, %c0_i32_9 : i32
    scf.if %12 {
      %c0_10 = arith.constant 0 : index
      %c0_11 = arith.constant 0 : index
      %13 = vector.load %arg8[%c0_10, %c0_11] : memref<256x128xf32, #tpu.memory_space<vmem>>, vector<256x128xf32>
      %c0_12 = arith.constant 0 : index
      %c0_13 = arith.constant 0 : index
      %14 = vector.load %arg6[%c0_12, %c0_13] : memref<256x1xf32, #tpu.memory_space<vmem>>, vector<256x1xf32>
      %15 = vector.broadcast %14 : vector<256x1xf32> to vector<256x128xf32>
      %16 = arith.addf %13, %15 : vector<256x128xf32>
      %17 = vector.shape_cast %16 : vector<256x128xf32> to vector<1x256x128xf32>
      %c0_14 = arith.constant 0 : index
      %c0_15 = arith.constant 0 : index
      %c0_16 = arith.constant 0 : index
      %18 = vector.load %arg7[%c0_14, %c0_15, %c0_16] : memref<1x256x128xf32, #tpu.memory_space<vmem>>, vector<1x256x128xf32>
      tpu.vector_store %arg7[%c0_14, %c0_15, %c0_16], %17 {strides = array<i32>} : memref<1x256x128xf32, #tpu.memory_space<vmem>>, vector<1x256x128xf32>,
    } else {
    }
    return
  }
  func.func @transform_0(%arg0: i32, %arg1: i32, %arg2: i32, %arg3: i32) -> (i32, i32) {
    %c0_i32 = arith.constant 0 : i32
    return %arg1, %arg3 : i32, i32
  }
  func.func @transform_1(%arg0: i32, %arg1: i32, %arg2: i32, %arg3: i32) -> (i32, i32, i32) {
    %c0_i32 = arith.constant 0 : i32
    return %arg0, %arg3, %arg2 : i32, i32, i32
  }
  func.func @transform_2(%arg0: i32, %arg1: i32, %arg2: i32, %arg3: i32) -> (i32, i32) {
    %c0_i32 = arith.constant 0 : i32
    %c0_i32_0 = arith.constant 0 : i32
    return %arg1, %c0_i32 : i32, i32
  }
  func.func @transform_3(%arg0: i32, %arg1: i32, %arg2: i32, %arg3: i32) -> (i32, i32, i32) {
    %c0_i32 = arith.constant 0 : i32
    return %arg0, %arg1, %arg2 : i32, i32, i32
  }
}

module attributes {stable_mosaic.version = 11 : i64} {
  func.func @_conv_matmul_kernel(%arg0: i32, %arg1: i32, %arg2: i32, %arg3: i32, %arg4: memref<16x256xbf16, #tpu.memory_space<vmem>>, %arg5: memref<1x256x128xbf16, #tpu.memory_space<vmem>>, %arg6: memref<16x1xf32, #tpu.memory_space<vmem>>, %arg7: memref<1x16x128xf32, #tpu.memory_space<vmem>>, %arg8: memref<16x128xf32, #tpu.memory_space<vmem>>) attributes {dimension_semantics = [#tpu.dimension_semantics<parallel>, #tpu.dimension_semantics<parallel>, #tpu.dimension_semantics<parallel>, #tpu.dimension_semantics<arbitrary>], iteration_bounds = array<i64: 2, 1, 1, 1>, scalar_prefetch = 0 : i64, scratch_operands = 1 : i64, tpu.core_type = #tpu.core_type<tc>, window_params = [{transform_indices = @transform_0, window_bounds = array<i64: 16, 256>}, {transform_indices = @transform_1, window_bounds = array<i64: 1, 256, 128>}, {transform_indices = @transform_2, window_bounds = array<i64: 16, 1>}, {transform_indices = @transform_3, window_bounds = array<i64: 1, 16, 128>}]} {
    %c0_i32 = arith.constant 0 : i32
    %0 = arith.cmpi eq, %arg3, %c0_i32 : i32
    %1 = arith.extui %0 : i1 to i32
    %c0_i32_0 = arith.constant 0 : i32
    %2 = arith.cmpi ne, %1, %c0_i32_0 : i32
    scf.if %2 {
      %cst_11 = arith.constant 0.000000e+00 : f32
      %13 = vector.broadcast %cst_11 : f32 to vector<16x128xf32>
      %c0_12 = arith.constant 0 : index
      %c0_13 = arith.constant 0 : index
      %14 = vector.load %arg8[%c0_12, %c0_13] : memref<16x128xf32, #tpu.memory_space<vmem>>, vector<16x128xf32>
      tpu.vector_store %arg8[%c0_12, %c0_13], %13 {strides = array<i32>} : memref<16x128xf32, #tpu.memory_space<vmem>>, vector<16x128xf32>,
    } else {
    }
    %c0 = arith.constant 0 : index
    %c0_1 = arith.constant 0 : index
    %3 = vector.load %arg8[%c0, %c0_1] : memref<16x128xf32, #tpu.memory_space<vmem>>, vector<16x128xf32>
    %c0_2 = arith.constant 0 : index
    %c0_3 = arith.constant 0 : index
    %4 = vector.load %arg4[%c0_2, %c0_3] : memref<16x256xbf16, #tpu.memory_space<vmem>>, vector<16x256xbf16>
    %c0_4 = arith.constant 0 : index
    %c0_5 = arith.constant 0 : index
    %c0_6 = arith.constant 0 : index
    %5 = vector.load %arg5[%c0_4, %c0_5, %c0_6] : memref<1x256x128xbf16, #tpu.memory_space<vmem>>, vector<1x256x128xbf16>
    %6 = vector.shape_cast %5 : vector<1x256x128xbf16> to vector<256x128xbf16>
    %cst = arith.constant dense<0.000000e+00> : vector<16x128xf32>
    %7 = tpu.matmul %4, %6, %cst {dimension_numbers = #tpu.dot_dimension_numbers<[1], [0], [0], [1], [0, 0, 1, 1], [], []>} : vector<16x256xbf16>, vector<256x128xbf16>, vector<16x128xf32> -> vector<16x128xf32>
    %8 = arith.addf %3, %7 : vector<16x128xf32>
    %c0_7 = arith.constant 0 : index
    %c0_8 = arith.constant 0 : index
    %9 = vector.load %arg8[%c0_7, %c0_8] : memref<16x128xf32, #tpu.memory_space<vmem>>, vector<16x128xf32>
    tpu.vector_store %arg8[%c0_7, %c0_8], %8 {strides = array<i32>} : memref<16x128xf32, #tpu.memory_space<vmem>>, vector<16x128xf32>,
    %c0_i32_9 = arith.constant 0 : i32
    %10 = arith.cmpi eq, %arg3, %c0_i32_9 : i32
    %11 = arith.extui %10 : i1 to i32
    %c0_i32_10 = arith.constant 0 : i32
    %12 = arith.cmpi ne, %11, %c0_i32_10 : i32
    scf.if %12 {
      %c0_11 = arith.constant 0 : index
      %c0_12 = arith.constant 0 : index
      %13 = vector.load %arg8[%c0_11, %c0_12] : memref<16x128xf32, #tpu.memory_space<vmem>>, vector<16x128xf32>
      %c0_13 = arith.constant 0 : index
      %c0_14 = arith.constant 0 : index
      %14 = vector.load %arg6[%c0_13, %c0_14] : memref<16x1xf32, #tpu.memory_space<vmem>>, vector<16x1xf32>
      %15 = vector.broadcast %14 : vector<16x1xf32> to vector<16x128xf32>
      %16 = arith.addf %13, %15 : vector<16x128xf32>
      %17 = vector.shape_cast %16 : vector<16x128xf32> to vector<1x16x128xf32>
      %c0_15 = arith.constant 0 : index
      %c0_16 = arith.constant 0 : index
      %c0_17 = arith.constant 0 : index
      %18 = vector.load %arg7[%c0_15, %c0_16, %c0_17] : memref<1x16x128xf32, #tpu.memory_space<vmem>>, vector<1x16x128xf32>
      tpu.vector_store %arg7[%c0_15, %c0_16, %c0_17], %17 {strides = array<i32>} : memref<1x16x128xf32, #tpu.memory_space<vmem>>, vector<1x16x128xf32>,
    } else {
    }
    return
  }
  func.func @transform_0(%arg0: i32, %arg1: i32, %arg2: i32, %arg3: i32) -> (i32, i32) {
    %c0_i32 = arith.constant 0 : i32
    return %arg1, %arg3 : i32, i32
  }
  func.func @transform_1(%arg0: i32, %arg1: i32, %arg2: i32, %arg3: i32) -> (i32, i32, i32) {
    %c0_i32 = arith.constant 0 : i32
    return %arg0, %arg3, %arg2 : i32, i32, i32
  }
  func.func @transform_2(%arg0: i32, %arg1: i32, %arg2: i32, %arg3: i32) -> (i32, i32) {
    %c0_i32 = arith.constant 0 : i32
    %c0_i32_0 = arith.constant 0 : i32
    return %arg1, %c0_i32 : i32, i32
  }
  func.func @transform_3(%arg0: i32, %arg1: i32, %arg2: i32, %arg3: i32) -> (i32, i32, i32) {
    %c0_i32 = arith.constant 0 : i32
    return %arg0, %arg1, %arg2 : i32, i32, i32
  }
}

module attributes {stable_mosaic.version = 11 : i64} {
  func.func @_feature_match_kernel(%arg0: i32, %arg1: i32, %arg2: i32, %arg3: memref<1x144x128xf32, #tpu.memory_space<vmem>>, %arg4: memref<1x144x128xf32, #tpu.memory_space<vmem>>, %arg5: memref<1x1x128xf32, #tpu.memory_space<vmem>>, %arg6: memref<1x1x128xi32, #tpu.memory_space<vmem>>, %arg7: memref<1x128xf32, #tpu.memory_space<vmem>>, %arg8: memref<1x128xi32, #tpu.memory_space<vmem>>) attributes {dimension_semantics = [#tpu.dimension_semantics<parallel>, #tpu.dimension_semantics<parallel>, #tpu.dimension_semantics<arbitrary>], iteration_bounds = array<i64: 2, 1, 1>, scalar_prefetch = 0 : i64, scratch_operands = 2 : i64, tpu.core_type = #tpu.core_type<tc>, window_params = [{transform_indices = @transform_0, window_bounds = array<i64: 1, 144, 128>}, {transform_indices = @transform_1, window_bounds = array<i64: 1, 144, 128>}, {transform_indices = @transform_2, window_bounds = array<i64: 1, 1, 128>}, {transform_indices = @transform_3, window_bounds = array<i64: 1, 1, 128>}]} {
    %c0_i32 = arith.constant 0 : i32
    %0 = arith.cmpi eq, %arg2, %c0_i32 : i32
    %1 = arith.extui %0 : i1 to i32
    %c0_i32_0 = arith.constant 0 : i32
    %2 = arith.cmpi ne, %1, %c0_i32_0 : i32
    scf.if %2 {
      %cst_23 = arith.constant 0xFF800000 : f32
      %45 = vector.broadcast %cst_23 : f32 to vector<1x128xf32>
      %c0_24 = arith.constant 0 : index
      %c0_25 = arith.constant 0 : index
      %46 = vector.load %arg7[%c0_24, %c0_25] : memref<1x128xf32, #tpu.memory_space<vmem>>, vector<1x128xf32>
      tpu.vector_store %arg7[%c0_24, %c0_25], %45 {strides = array<i32>} : memref<1x128xf32, #tpu.memory_space<vmem>>, vector<1x128xf32>,
      %c0_i32_26 = arith.constant 0 : i32
      %47 = vector.broadcast %c0_i32_26 : i32 to vector<1x128xi32>
      %c0_27 = arith.constant 0 : index
      %c0_28 = arith.constant 0 : index
      %48 = vector.load %arg8[%c0_27, %c0_28] : memref<1x128xi32, #tpu.memory_space<vmem>>, vector<1x128xi32>
      tpu.vector_store %arg8[%c0_27, %c0_28], %47 {strides = array<i32>} : memref<1x128xi32, #tpu.memory_space<vmem>>, vector<1x128xi32>,
    } else {
    }
    %c0 = arith.constant 0 : index
    %c0_1 = arith.constant 0 : index
    %c0_2 = arith.constant 0 : index
    %3 = vector.load %arg3[%c0, %c0_1, %c0_2] : memref<1x144x128xf32, #tpu.memory_space<vmem>>, vector<1x144x128xf32>
    %4 = vector.shape_cast %3 : vector<1x144x128xf32> to vector<144x128xf32>
    %c0_3 = arith.constant 0 : index
    %c0_4 = arith.constant 0 : index
    %c0_5 = arith.constant 0 : index
    %5 = vector.load %arg4[%c0_3, %c0_4, %c0_5] : memref<1x144x128xf32, #tpu.memory_space<vmem>>, vector<1x144x128xf32>
    %6 = vector.shape_cast %5 : vector<1x144x128xf32> to vector<144x128xf32>
    %7 = arith.mulf %4, %4 : vector<144x128xf32>
    %cst = arith.constant dense<0.000000e+00> : vector<128xf32>
    %8 = vector.multi_reduction <add>, %7, %cst [0] : vector<144x128xf32> to vector<128xf32>
    %9 = vector.shape_cast %8 : vector<128xf32> to vector<1x128xf32>
    %cst_6 = arith.constant 1.000000e-24 : f32
    %10 = vector.broadcast %cst_6 : f32 to vector<1x128xf32>
    %11 = arith.maximumf %9, %10 : vector<1x128xf32>
    %12 = math.rsqrt %11 : vector<1x128xf32>
    %13 = vector.broadcast %12 : vector<1x128xf32> to vector<144x128xf32>
    %14 = arith.mulf %4, %13 : vector<144x128xf32>
    %15 = arith.truncf %14 : vector<144x128xf32> to vector<144x128xbf16>
    %16 = arith.truncf %6 : vector<144x128xf32> to vector<144x128xbf16>
    %cst_7 = arith.constant dense<0.000000e+00> : vector<128x128xf32>
    %17 = tpu.matmul %15, %16, %cst_7 {dimension_numbers = #tpu.dot_dimension_numbers<[0], [0], [1], [1], [0, 1, 1, 1], [], []>} : vector<144x128xbf16>, vector<144x128xbf16>, vector<128x128xf32> -> vector<128x128xf32>
    %18 = tpu.iota {dimensions = array<i32: 0>} : vector<128x128xi32>
    %c128_i32 = arith.constant 128 : i32
    %19 = arith.muli %arg2, %c128_i32 : i32
    %20 = vector.broadcast %19 : i32 to vector<128x128xi32>
    %21 = arith.addi %18, %20 : vector<128x128xi32>
    %c16_i32 = arith.constant 16 : i32
    %22 = vector.broadcast %c16_i32 : i32 to vector<128x128xi32>
    %23 = arith.cmpi slt, %21, %22 : vector<128x128xi32>
    %cst_8 = arith.constant 0xFF800000 : f32
    %24 = vector.broadcast %cst_8 : f32 to vector<128x128xf32>
    %25 = arith.select %23, %17, %24 : vector<128x128xi1>, vector<128x128xf32>
    %cst_9 = arith.constant dense<0xFF800000> : vector<128xf32>
    %26 = vector.multi_reduction <maximumf>, %25, %cst_9 [0] : vector<128x128xf32> to vector<128xf32>
    %27 = vector.shape_cast %26 : vector<128xf32> to vector<1x128xf32>
    %28 = vector.broadcast %27 : vector<1x128xf32> to vector<128x128xf32>
    %29 = arith.cmpf oeq, %25, %28 : vector<128x128xf32>
    %c2147483647_i32 = arith.constant 2147483647 : i32
    %30 = vector.broadcast %c2147483647_i32 : i32 to vector<128x128xi32>
    %31 = arith.select %29, %21, %30 : vector<128x128xi1>, vector<128x128xi32>
    %cst_10 = arith.constant dense<2147483647> : vector<128xi32>
    %32 = vector.multi_reduction <minsi>, %31, %cst_10 [0] : vector<128x128xi32> to vector<128xi32>
    %33 = vector.shape_cast %32 : vector<128xi32> to vector<1x128xi32>
    %c0_11 = arith.constant 0 : index
    %c0_12 = arith.constant 0 : index
    %34 = vector.load %arg7[%c0_11, %c0_12] : memref<1x128xf32, #tpu.memory_space<vmem>>, vector<1x128xf32>
    %35 = arith.cmpf ogt, %27, %34 : vector<1x128xf32>
    %c0_13 = arith.constant 0 : index
    %c0_14 = arith.constant 0 : index
    %36 = vector.load %arg8[%c0_13, %c0_14] : memref<1x128xi32, #tpu.memory_space<vmem>>, vector<1x128xi32>
    %37 = arith.select %35, %33, %36 : vector<1x128xi1>, vector<1x128xi32>
    %c0_15 = arith.constant 0 : index
    %c0_16 = arith.constant 0 : index
    %38 = vector.load %arg8[%c0_15, %c0_16] : memref<1x128xi32, #tpu.memory_space<vmem>>, vector<1x128xi32>
    tpu.vector_store %arg8[%c0_15, %c0_16], %37 {strides = array<i32>} : memref<1x128xi32, #tpu.memory_space<vmem>>, vector<1x128xi32>,
    %c0_17 = arith.constant 0 : index
    %c0_18 = arith.constant 0 : index
    %39 = vector.load %arg7[%c0_17, %c0_18] : memref<1x128xf32, #tpu.memory_space<vmem>>, vector<1x128xf32>
    %40 = arith.select %35, %27, %39 : vector<1x128xi1>, vector<1x128xf32>
    %c0_19 = arith.constant 0 : index
    %c0_20 = arith.constant 0 : index
    %41 = vector.load %arg7[%c0_19, %c0_20] : memref<1x128xf32, #tpu.memory_space<vmem>>, vector<1x128xf32>
    tpu.vector_store %arg7[%c0_19, %c0_20], %40 {strides = array<i32>} : memref<1x128xf32, #tpu.memory_space<vmem>>, vector<1x128xf32>,
    %c0_i32_21 = arith.constant 0 : i32
    %42 = arith.cmpi eq, %arg2, %c0_i32_21 : i32
    %43 = arith.extui %42 : i1 to i32
    %c0_i32_22 = arith.constant 0 : i32
    %44 = arith.cmpi ne, %43, %c0_i32_22 : i32
    scf.if %44 {
      %45 = arith.mulf %6, %6 : vector<144x128xf32>
      %cst_23 = arith.constant dense<0.000000e+00> : vector<128xf32>
      %46 = vector.multi_reduction <add>, %45, %cst_23 [0] : vector<144x128xf32> to vector<128xf32>
      %47 = vector.shape_cast %46 : vector<128xf32> to vector<1x128xf32>
      %cst_24 = arith.constant 1.000000e-24 : f32
      %48 = vector.broadcast %cst_24 : f32 to vector<1x128xf32>
      %49 = arith.maximumf %47, %48 : vector<1x128xf32>
      %50 = math.rsqrt %49 : vector<1x128xf32>
      %c0_25 = arith.constant 0 : index
      %c0_26 = arith.constant 0 : index
      %51 = vector.load %arg7[%c0_25, %c0_26] : memref<1x128xf32, #tpu.memory_space<vmem>>, vector<1x128xf32>
      %52 = arith.mulf %51, %50 : vector<1x128xf32>
      %53 = vector.shape_cast %52 : vector<1x128xf32> to vector<1x1x128xf32>
      %c0_27 = arith.constant 0 : index
      %c0_28 = arith.constant 0 : index
      %c0_29 = arith.constant 0 : index
      %54 = vector.load %arg5[%c0_27, %c0_28, %c0_29] : memref<1x1x128xf32, #tpu.memory_space<vmem>>, vector<1x1x128xf32>
      tpu.vector_store %arg5[%c0_27, %c0_28, %c0_29], %53 {strides = array<i32>} : memref<1x1x128xf32, #tpu.memory_space<vmem>>, vector<1x1x128xf32>,
      %c0_30 = arith.constant 0 : index
      %c0_31 = arith.constant 0 : index
      %55 = vector.load %arg8[%c0_30, %c0_31] : memref<1x128xi32, #tpu.memory_space<vmem>>, vector<1x128xi32>
      %56 = vector.shape_cast %55 : vector<1x128xi32> to vector<1x1x128xi32>
      %c0_32 = arith.constant 0 : index
      %c0_33 = arith.constant 0 : index
      %c0_34 = arith.constant 0 : index
      %57 = vector.load %arg6[%c0_32, %c0_33, %c0_34] : memref<1x1x128xi32, #tpu.memory_space<vmem>>, vector<1x1x128xi32>
      tpu.vector_store %arg6[%c0_32, %c0_33, %c0_34], %56 {strides = array<i32>} : memref<1x1x128xi32, #tpu.memory_space<vmem>>, vector<1x1x128xi32>,
    } else {
    }
    return
  }
  func.func @transform_0(%arg0: i32, %arg1: i32, %arg2: i32) -> (i32, i32, i32) {
    %c0_i32 = arith.constant 0 : i32
    %c0_i32_0 = arith.constant 0 : i32
    return %arg0, %c0_i32, %arg2 : i32, i32, i32
  }
  func.func @transform_1(%arg0: i32, %arg1: i32, %arg2: i32) -> (i32, i32, i32) {
    %c0_i32 = arith.constant 0 : i32
    %c0_i32_0 = arith.constant 0 : i32
    return %arg0, %c0_i32, %arg1 : i32, i32, i32
  }
  func.func @transform_2(%arg0: i32, %arg1: i32, %arg2: i32) -> (i32, i32, i32) {
    %c0_i32 = arith.constant 0 : i32
    %c0_i32_0 = arith.constant 0 : i32
    return %arg0, %c0_i32, %arg1 : i32, i32, i32
  }
  func.func @transform_3(%arg0: i32, %arg1: i32, %arg2: i32) -> (i32, i32, i32) {
    %c0_i32 = arith.constant 0 : i32
    %c0_i32_0 = arith.constant 0 : i32
    return %arg0, %c0_i32, %arg1 : i32, i32, i32
  }
}

</mosaic_0001>

<llo_original>
// kernel: feature_matching_forward.13
$region0: #{feature_matching_forward.13}
  #allocation0 [shape = 'u32[]', space=smem, size = 0x4, offset = 0x4, fixed_abs, tag = 'smem constant byte address 0x4 - core index']
  #allocation1 [shape = 'u32[72,128]{1,0:T(1,128)}', space=vmem, size = 0x9000, scoped, tag = 'internal scratch']
  #allocation2 [shape = 'f32[64,256]{1,0:T(8,128)}', space=vmem, size = 0x10000, scoped, tag = 'scratch operand']
  %s0 = inlined_call_operand.vmem [shape: bf16[64,128], index: 0, kind: input, shape index: {}]
  %s1 = inlined_call_operand.vmem [shape: bf16[2,128,256], index: 1, kind: input, shape index: {}]
  %s2 = inlined_call_operand.vmem [shape: f32[64,1], index: 2, kind: input, shape index: {}]
  %s3 = inlined_call_operand.vmem [shape: f32[2,64,256], index: 3, kind: output, shape index: {}]
  %s4 = sld [smem:[#allocation0]]
  $region53: #{feature_matching_forward.13} parent=0
    _
  %s6 = ssub.s32 1, %s4
  %s7 = scalar_select 0, %s6, %s4
  loop: start=0, step=1, limit=4
  $region2: #{feature_matching_forward.13} parent=0 // loop_pre_header
    _
  $region3: #{feature_matching_forward.13} parent=0 // loop_header
    %s9 = sphi 0, %s13
    %p10 = scmp.ge.s32.totalorder %s9, 4
    %s16 = sphi 0, %s42
    %s17 = sphi 0, %s38
    %s18 = sphi 0, %s34
    %s19 = sphi 0, %s30
    %s20 = sphi 0, %s16
    %s21 = sphi 0, %s17
    %s22 = sphi 0, %s18
    %s23 = sphi 0, %s19
    %s24 = sphi 0, %s20
    %s25 = sphi 0, %s21
    %s26 = sphi 0, %s22
    %s27 = sphi 0, %s23
    %s47 = sphi 0, %s49
    %s50 = sphi 0, %s47
    %s51 = sphi 0, %s50
    %s67 = sphi 0, %s51
    %s77 = sphi 0, %s79
    %s80 = sphi 0, %s77
    %s81 = sphi 0, %s80
    %s97 = sphi 0, %s81
    %s103 = sphi 0, %s105
    %s106 = sphi 0, %s103
    %s107 = sphi 0, %s106
    %s123 = sphi 0, %s107
    %s133 = sphi 0, %s135
    %s136 = sphi 0, %s133
    %s137 = sphi 0, %s136
    %s153 = sphi 0, %s137
  $region4: #{feature_matching_forward.13} parent=0 // loop_header_branch
    %12 = sbr.rel (%p10) target = $region8
  $region5: #{feature_matching_forward.13} parent=0 // loop_body
    %s14 = ssub.s32 %s9, 1
    %s15 = ssub.s32 %s9, 2
    %s28 = sadd.s32 1, %s19
    %p29 = scmp.ge.s32.totalorder %s28, 1
    %s30 = scalar_select %p29, 0, %s28
    %s31 = sadd.s32 1, %s18
    %s32 = scalar_select %p29, %s31, %s18
    %p33 = scmp.ge.s32.totalorder %s32, 1
    %s34 = scalar_select %p33, 0, %s32
    %s35 = sadd.s32 1, %s17
    %s36 = scalar_select %p33, %s35, %s17
    %p37 = scmp.ge.s32.totalorder %s36, 1
    %s38 = scalar_select %p37, 0, %s36
    %s39 = sadd.s32 1, %s16
    %s40 = scalar_select %p37, %s39, %s16
    %p41 = scmp.ge.s32.totalorder %s40, 2
    %s42 = scalar_select %p41, 0, %s40
    %s43 = ssub.s32 %s17, %s38
    %s44 = ssub.s32 %s19, %s30
    %s45 = sor.u32 %s43, %s44
    %p46 = scmp.eq.s32.totalorder %s45, 0
    %s48 = sadd.s32 %s47, 1
    %s49 = scalar_select %p46, %s47, %s48
    %p52 = pneg %p46
    %p53 = scmp.eq.s32.totalorder %s9, 1
    %p54 = por %p52, %p53
    %p55 = scmp.ne.s32.totalorder %s47, %s50
    %p56 = scmp.eq.s32.totalorder %s9, 0
    %p57 = por %p55, %p56
    %p58 = scmp.ne.s32.totalorder %s47, %s50
    %p59 = scmp.eq.s32.totalorder %s14, 1
    %p60 = por %p58, %p59
    %p61 = scmp.ne.s32.totalorder %s50, %s51
    %p62 = scmp.eq.s32.totalorder %s14, 0
    %p63 = por %p61, %p62
    %p64 = scmp.ne.s32.totalorder %s50, %s51
    %p65 = scmp.eq.s32.totalorder %s15, 1
    %p66 = por %p64, %p65
    %p68 = scmp.ne.s32.totalorder %s51, %s67
    %p69 = scmp.eq.s32.totalorder %s15, 0
    %p70 = por %p68, %p69
    %s71 = ssub.s32 %s16, %s42
    %s72 = ssub.s32 %s19, %s30
    %s73 = sor.u32 %s71, %s72
    %s74 = ssub.s32 %s18, %s34
    %s75 = sor.u32 %s73, %s74
    %p76 = scmp.eq.s32.totalorder %s75, 0
    %s78 = sadd.s32 %s77, 1
    %s79 = scalar_select %p76, %s77, %s78
    %p82 = pneg %p76
    %p83 = scmp.eq.s32.totalorder %s9, 1
    %p84 = por %p82, %p83
    %p85 = scmp.ne.s32.totalorder %s77, %s80
    %p86 = scmp.eq.s32.totalorder %s9, 0
    %p87 = por %p85, %p86
    %p88 = scmp.ne.s32.totalorder %s77, %s80
    %p89 = scmp.eq.s32.totalorder %s14, 1
    %p90 = por %p88, %p89
    %p91 = scmp.ne.s32.totalorder %s80, %s81
    %p92 = scmp.eq.s32.totalorder %s14, 0
    %p93 = por %p91, %p92
    %p94 = scmp.ne.s32.totalorder %s80, %s81
    %p95 = scmp.eq.s32.totalorder %s15, 1
    %p96 = por %p94, %p95
    %p98 = scmp.ne.s32.totalorder %s81, %s97
    %p99 = scmp.eq.s32.totalorder %s15, 0
    %p100 = por %p98, %p99
    %s101 = ssub.s32 %s17, %s38
    %p102 = scmp.eq.s32.totalorder %s101, 0
    %s104 = sadd.s32 %s103, 1
    %s105 = scalar_select %p102, %s103, %s104
    %p108 = pneg %p102
    %p109 = scmp.eq.s32.totalorder %s9, 1
    %p110 = por %p108, %p109
    %p111 = scmp.ne.s32.totalorder %s103, %s106
    %p112 = scmp.eq.s32.totalorder %s9, 0
    %p113 = por %p111, %p112
    %p114 = scmp.ne.s32.totalorder %s103, %s106
    %p115 = scmp.eq.s32.totalorder %s14, 1
    %p116 = por %p114, %p115
    %p117 = scmp.ne.s32.totalorder %s106, %s107
    %p118 = scmp.eq.s32.totalorder %s14, 0
    %p119 = por %p117, %p118
    %p120 = scmp.ne.s32.totalorder %s106, %s107
    %p121 = scmp.eq.s32.totalorder %s15, 1
    %p122 = por %p120, %p121
    %p124 = scmp.ne.s32.totalorder %s107, %s123
    %p125 = scmp.eq.s32.totalorder %s15, 0
    %p126 = por %p124, %p125
    %s127 = ssub.s32 %s16, %s42
    %s128 = ssub.s32 %s17, %s38
    %s129 = sor.u32 %s127, %s128
    %s130 = ssub.s32 %s18, %s34
    %s131 = sor.u32 %s129, %s130
    %p132 = scmp.eq.s32.totalorder %s131, 0
    %s134 = sadd.s32 %s133, 1
    %s135 = scalar_select %p132, %s133, %s134
    %p138 = pneg %p132
    %p139 = scmp.eq.s32.totalorder %s9, 1
    %p140 = por %p138, %p139
    %p141 = scmp.ne.s32.totalorder %s133, %s136
    %p142 = scmp.eq.s32.totalorder %s9, 0
    %p143 = por %p141, %p142
    %p144 = scmp.ne.s32.totalorder %s133, %s136
    %p145 = scmp.eq.s32.totalorder %s14, 1
    %p146 = por %p144, %p145
    %p147 = scmp.ne.s32.totalorder %s136, %s137
    %p148 = scmp.eq.s32.totalorder %s14, 0
    %p149 = por %p147, %p148
    %p150 = scmp.ne.s32.totalorder %s136, %s137
    %p151 = scmp.eq.s32.totalorder %s15, 1
    %p152 = por %p150, %p151
    %p154 = scmp.ne.s32.totalorder %s137, %s153
    %p155 = scmp.eq.s32.totalorder %s15, 0
    %p156 = por %p154, %p155
    %p157 = scmp.le.s32.totalorder 1, %s9
    %p158 = scmp.lt.s32.totalorder %s9, 3
    %p159 = pnand %p157, %p158
    %p160 = pneg %p159
    // Predicated region
    $region9: #{feature_matching_forward.13} parent=5 // pred_check
      _
    $region10: #{feature_matching_forward.13} parent=5 // pred_check_branch
      %162 = sbr.rel (%p159) target = $region12
    $region11: #{feature_matching_forward.13} parent=5 // pred_region
      %s163 = ssub.s32 %s9, 1
      // Predicated region
      $region13: #{feature_matching_forward.13} parent=11 // pred_check
        %p164 = pneg %p63
      $region14: #{feature_matching_forward.13} parent=11 // pred_check_branch
        %166 = sbr.rel (%p164) target = $region16
      $region15: #{feature_matching_forward.13} parent=11 // pred_region
        %s167 = smul.u32 8, %s21
        %p168 = scmp.lt.s32.totalorder %s167, 7
        %s169 = scalar_select %p168, %s167, 7
        %p170 = scmp.lt.s32.totalorder %s23, 0
        %s171 = scalar_select %p170, %s23, 0
        %s172 = sadd.s32 %s171, %s169
        %s173 = smul.addr %s172, 4
        %s174 = scalar_lea.vmem %s0, %s173
        %s175 = smul.u32 8, %s21
      $region16: #{feature_matching_forward.13} parent=11 // pred_fallthru
        _
      // Predicated region
      $region17: #{feature_matching_forward.13} parent=11 // pred_check
        %p176 = pneg %p119
      $region18: #{feature_matching_forward.13} parent=11 // pred_check_branch
        %178 = sbr.rel (%p176) target = $region20
      $region19: #{feature_matching_forward.13} parent=11 // pred_region
        %s179 = smul.u32 8, %s21
        %p180 = scmp.lt.s32.totalorder %s179, 7
        %s181 = scalar_select %p180, %s179, 7
        %s182 = smul.addr %s181, 8
        %s183 = scalar_lea.vmem %s2, %s182
        %s184 = smul.u32 8, %s21
      $region20: #{feature_matching_forward.13} parent=11 // pred_fallthru
        _
    $region12: #{feature_matching_forward.13} parent=5 // pred_fallthru
      _
    %p185 = scmp.lt.s32.totalorder %s9, 2
    // Predicated region
    $region21: #{feature_matching_forward.13} parent=5 // pred_check
      %p186 = pneg %p185
    $region22: #{feature_matching_forward.13} parent=5 // pred_check_branch
      %188 = sbr.rel (%p186) target = $region24
    $region23: #{feature_matching_forward.13} parent=5 // pred_region
      // Predicated region
      $region25: #{feature_matching_forward.13} parent=23 // pred_check
        %p189 = pneg %p87
      $region26: #{feature_matching_forward.13} parent=23 // pred_check_branch
        %191 = sbr.rel (%p189) target = $region28
      $region27: #{feature_matching_forward.13} parent=23 // pred_region
        %s192 = smul.u32 16, %s19
        %s193 = smul.u32 2, %s18
        %p194 = scmp.lt.s32.totalorder %s16, 1
        %s195 = scalar_select %p194, %s16, 1
        %p196 = scmp.lt.s32.totalorder %s192, 15
        %s197 = scalar_select %p196, %s192, 15
        %p198 = scmp.lt.s32.totalorder %s193, 1
        %s199 = scalar_select %p198, %s193, 1
        %s200 = smul.addr %s197, 2
        %s201 = sadd.s32 %s199, %s200
        %s202 = smul.addr %s195, 32
        %s203 = sadd.s32 %s201, %s202
        %s204 = smul.addr %s203, 4
        %s205 = scalar_lea.vmem %s1, %s204
        %s206 = smul.u32 16, %s19
        %s207 = smul.u32 2, %s18
      $region28: #{feature_matching_forward.13} parent=23 // pred_fallthru
        _
    $region24: #{feature_matching_forward.13} parent=5 // pred_fallthru
      _
    %p208 = scmp.le.s32.totalorder 1, %s9
    %p209 = scmp.lt.s32.totalorder %s9, 3
    %p210 = pnand %p208, %p209
    %p211 = pneg %p210
    // Predicated region
    $region29: #{feature_matching_forward.13} parent=5 // pred_check
      _
    $region30: #{feature_matching_forward.13} parent=5 // pred_check_branch
      %213 = sbr.rel (%p210) target = $region32
    $region31: #{feature_matching_forward.13} parent=5 // pred_region
      %s214 = ssub.s32 %s9, 1
      %s215 = smul.u32 8, %s21
      %p216 = scmp.lt.s32.totalorder %s215, 7
      %s217 = scalar_select %p216, %s215, 7
      %p218 = scmp.lt.s32.totalorder %s23, 0
      %s219 = scalar_select %p218, %s23, 0
      %s220 = sadd.s32 %s219, %s217
      %s221 = smul.addr %s220, 4
      %s222 = scalar_lea.vmem %s0, %s221
      %p223 = pneg %p63
      %p224 = pneg %p60
      %s225 = smul.u32 16, %s23
      %s226 = smul.u32 2, %s22
      %p227 = scmp.lt.s32.totalorder %s20, 1
      %s228 = scalar_select %p227, %s20, 1
      %p229 = scmp.lt.s32.totalorder %s225, 15
      %s230 = scalar_select %p229, %s225, 15
      %p231 = scmp.lt.s32.totalorder %s226, 1
      %s232 = scalar_select %p231, %s226, 1
      %s233 = smul.addr %s230, 2
      %s234 = sadd.s32 %s232, %s233
      %s235 = smul.addr %s228, 32
      %s236 = sadd.s32 %s234, %s235
      %s237 = smul.addr %s236, 4
      %s238 = scalar_lea.vmem %s1, %s237
      %p239 = pneg %p93
      %p240 = pneg %p90
      %s241 = smul.u32 8, %s21
      %p242 = scmp.lt.s32.totalorder %s241, 7
      %s243 = scalar_select %p242, %s241, 7
      %s244 = smul.addr %s243, 8
      %s245 = scalar_lea.vmem %s2, %s244
      %p246 = pneg %p119
      %p247 = pneg %p116
      %p248 = pneg %p149
      %p249 = pneg %p146
      %s250 = smul.u32 8, %s21
      %s251 = smul.u32 2, %s22
      %p252 = scmp.lt.s32.totalorder %s20, 1
      %s253 = scalar_select %p252, %s20, 1
      %p254 = scmp.lt.s32.totalorder %s250, 7
      %s255 = scalar_select %p254, %s250, 7
      %p256 = scmp.lt.s32.totalorder %s251, 1
      %s257 = scalar_select %p256, %s251, 1
      %s258 = smul.addr %s255, 2
      %s259 = sadd.s32 %s257, %s258
      %s260 = smul.addr %s253, 16
      %s261 = sadd.s32 %s259, %s260
      %s262 = smul.addr %s261, 8
      %s263 = scalar_lea.vmem %s3, %s262
      %s264 = smul.u32 8, %s21
      %p265 = scmp.lt.s32.totalorder %s264, 7
      %s266 = scalar_select %p265, %s264, 7
      %p267 = scmp.lt.s32.totalorder %s23, 0
      %s268 = scalar_select %p267, %s23, 0
      %s269 = sadd.s32 %s268, %s266
      %s270 = smul.addr %s269, 4
      %s271 = scalar_lea.vmem %s0, %s270
      %s272 = smul.u32 8, %s21
      %s273 = smul.u32 16, %s23
      %s274 = smul.u32 2, %s22
      %p275 = scmp.lt.s32.totalorder %s20, 1
      %s276 = scalar_select %p275, %s20, 1
      %p277 = scmp.lt.s32.totalorder %s273, 15
      %s278 = scalar_select %p277, %s273, 15
      %p279 = scmp.lt.s32.totalorder %s274, 1
      %s280 = scalar_select %p279, %s274, 1
      %s281 = smul.addr %s278, 2
      %s282 = sadd.s32 %s280, %s281
      %s283 = smul.addr %s276, 32
      %s284 = sadd.s32 %s282, %s283
      %s285 = smul.addr %s284, 4
      %s286 = scalar_lea.vmem %s1, %s285
      %s287 = smul.u32 16, %s23
      %s288 = smul.u32 2, %s22
      %s289 = smul.u32 8, %s21
      %p290 = scmp.lt.s32.totalorder %s289, 7
      %s291 = scalar_select %p290, %s289, 7
      %s292 = smul.addr %s291, 8
      %s293 = scalar_lea.vmem %s2, %s292
      %s294 = smul.u32 8, %s21
      %s295 = smul.u32 8, %s21
      %s296 = smul.u32 2, %s22
      %p297 = scmp.lt.s32.totalorder %s20, 1
      %s298 = scalar_select %p297, %s20, 1
      %p299 = scmp.lt.s32.totalorder %s295, 7
      %s300 = scalar_select %p299, %s295, 7
      %p301 = scmp.lt.s32.totalorder %s296, 1
      %s302 = scalar_select %p301, %s296, 1
      %s303 = smul.addr %s300, 2
      %s304 = sadd.s32 %s302, %s303
      %s305 = smul.addr %s298, 16
      %s306 = sadd.s32 %s304, %s305
      %s307 = smul.addr %s306, 8
      %s308 = scalar_lea.vmem %s3, %s307
      %s309 = smul.u32 8, %s21
      %s310 = smul.u32 2, %s22
      %p311 = scmp.eq.s32.totalorder %s23, 0
      // Predicated region
      $region33: #{feature_matching_forward.13} parent=31 // pred_check
        %p312 = pneg %p311
      $region34: #{feature_matching_forward.13} parent=31 // pred_check_branch
        %314 = sbr.rel (%p312) target = $region36
      $region35: #{feature_matching_forward.13} parent=31 // pred_region
        %315 = vst [vmem:[#allocation2] sm:$0xff] 0.0
        %316 = vst [vmem:[#allocation2 + $0x8] sm:$0xff] 0.0
        %317 = vst [vmem:[#allocation2 + $0x10] sm:$0xff] 0.0
        %318 = vst [vmem:[#allocation2 + $0x18] sm:$0xff] 0.0
        %319 = vst [vmem:[#allocation2 + $0x20] sm:$0xff] 0.0
        %320 = vst [vmem:[#allocation2 + $0x28] sm:$0xff] 0.0
        %321 = vst [vmem:[#allocation2 + $0x30] sm:$0xff] 0.0
        %322 = vst [vmem:[#allocation2 + $0x38] sm:$0xff] 0.0
        %323 = vst [vmem:[#allocation2 + $0x40] sm:$0xff] 0.0
        %324 = vst [vmem:[#allocation2 + $0x48] sm:$0xff] 0.0
        %325 = vst [vmem:[#allocation2 + $0x50] sm:$0xff] 0.0
        %326 = vst [vmem:[#allocation2 + $0x58] sm:$0xff] 0.0
        %327 = vst [vmem:[#allocation2 + $0x60] sm:$0xff] 0.0
        %328 = vst [vmem:[#allocation2 + $0x68] sm:$0xff] 0.0
        %329 = vst [vmem:[#allocation2 + $0x70] sm:$0xff] 0.0
        %330 = vst [vmem:[#allocation2 + $0x78] sm:$0xff] 0.0
      $region36: #{feature_matching_forward.13} parent=31 // pred_fallthru
        _
      %v331 = vld [vmem:[#allocation2] sm:$0xff]
      %v332 = vld [vmem:[#allocation2 + $0x8] sm:$0xff]
      %v333 = vld [vmem:[#allocation2 + $0x10] sm:$0xff]
      %v334 = vld [vmem:[#allocation2 + $0x18] sm:$0xff]
      %v335 = vld [vmem:[#allocation2 + $0x20] sm:$0xff]
      %v336 = vld [vmem:[#allocation2 + $0x28] sm:$0xff]
      %v337 = vld [vmem:[#allocation2 + $0x30] sm:$0xff]
      %v338 = vld [vmem:[#allocation2 + $0x38] sm:$0xff]
      %v339 = vld [vmem:[#allocation2 + $0x40] sm:$0xff]
      %v340 = vld [vmem:[#allocation2 + $0x48] sm:$0xff]
      %v341 = vld [vmem:[#allocation2 + $0x50] sm:$0xff]
      %v342 = vld [vmem:[#allocation2 + $0x58] sm:$0xff]
      %v343 = vld [vmem:[#allocation2 + $0x60] sm:$0xff]
      %v344 = vld [vmem:[#allocation2 + $0x68] sm:$0xff]
      %v345 = vld [vmem:[#allocation2 + $0x70] sm:$0xff]
      %v346 = vld [vmem:[#allocation2 + $0x78] sm:$0xff]
      %v347 = vld [vmem:[%s271] sm:$0xf]
      %v348 = vld [vmem:[%s271 + $0x4] sm:$0xf]
      %v349 = vld [vmem:[%s271 + $0x8] sm:$0xf]
      %v350 = vld [vmem:[%s271 + $0xc] sm:$0xf]
      %v351 = vld [vmem:[%s271 + $0x10] sm:$0xf]
      %v352 = vld [vmem:[%s271 + $0x14] sm:$0xf]
      %v353 = vld [vmem:[%s271 + $0x18] sm:$0xf]
      %v354 = vld [vmem:[%s271 + $0x1c] sm:$0xf]
      %v355 = vld [vmem:[%s286] sm:$0xff]
      %v356 = vld [vmem:[%s286 + $0x8] sm:$0xff]
      %v357 = vld [vmem:[%s286 + $0x10] sm:$0xff]
      %v358 = vld [vmem:[%s286 + $0x18] sm:$0xff]
      %v359 = vld [vmem:[%s286 + $0x20] sm:$0xff]
      %v360 = vld [vmem:[%s286 + $0x28] sm:$0xff]
      %v361 = vld [vmem:[%s286 + $0x30] sm:$0xff]
      %v362 = vld [vmem:[%s286 + $0x38] sm:$0xff]
      %v363 = vld [vmem:[%s286 + $0x40] sm:$0xff]
      %v364 = vld [vmem:[%s286 + $0x48] sm:$0xff]
      %v365 = vld [vmem:[%s286 + $0x50] sm:$0xff]
      %v366 = vld [vmem:[%s286 + $0x58] sm:$0xff]
      %v367 = vld [vmem:[%s286 + $0x60] sm:$0xff]
      %v368 = vld [vmem:[%s286 + $0x68] sm:$0xff]
      %v369 = vld [vmem:[%s286 + $0x70] sm:$0xff]
      %v370 = vld [vmem:[%s286 + $0x78] sm:$0xff]
      %v379 = vunpack.c.l.b16 %v347
      %v380 = vunpack.c.l.b16 %v348
      %v381 = vunpack.c.l.b16 %v349
      %v382 = vunpack.c.l.b16 %v350
      %v383 = vunpack.c.l.b16 %v351
      %v384 = vunpack.c.l.b16 %v352
      %v385 = vunpack.c.l.b16 %v353
      %v386 = vunpack.c.l.b16 %v354
      %v387 = vpack.c.b16 %v380, %v379
      %v388 = vpack.c.b16 %v382, %v381
      %v389 = vpack.c.b16 %v384, %v383
      %v390 = vpack.c.b16 %v386, %v385
      %v411 = vunpack.c.l.b16 %v355
      %v412 = vunpack.c.h.b16 %v355
      %v413 = vunpack.c.l.b16 %v356
      %v414 = vunpack.c.h.b16 %v356
      %v415 = vunpack.c.l.b16 %v357
      %v416 = vunpack.c.h.b16 %v357
      %v417 = vunpack.c.l.b16 %v358
      %v418 = vunpack.c.h.b16 %v358
      %v419 = vunpack.c.l.b16 %v359
      %v420 = vunpack.c.h.b16 %v359
      %v421 = vunpack.c.l.b16 %v360
      %v422 = vunpack.c.h.b16 %v360
      %v423 = vunpack.c.l.b16 %v361
      %v424 = vunpack.c.h.b16 %v361
      %v425 = vunpack.c.l.b16 %v362
      %v426 = vunpack.c.h.b16 %v362
      %v427 = vunpack.c.l.b16 %v363
      %v428 = vunpack.c.h.b16 %v363
      %v429 = vunpack.c.l.b16 %v364
      %v430 = vunpack.c.h.b16 %v364
      %v431 = vunpack.c.l.b16 %v365
      %v432 = vunpack.c.h.b16 %v365
      %v433 = vunpack.c.l.b16 %v366
      %v434 = vunpack.c.h.b16 %v366
      %v435 = vunpack.c.l.b16 %v367
      %v436 = vunpack.c.h.b16 %v367
      %v437 = vunpack.c.l.b16 %v368
      %v438 = vunpack.c.h.b16 %v368
      %v439 = vunpack.c.l.b16 %v369
      %v440 = vunpack.c.h.b16 %v369
      %v441 = vunpack.c.l.b16 %v370
      %v442 = vunpack.c.h.b16 %v370
      %v443 = vpack.c.b16 %v413, %v411
      %v444 = vpack.c.b16 %v414, %v412
      %v445 = vpack.c.b16 %v417, %v415
      %v446 = vpack.c.b16 %v418, %v416
      %v447 = vpack.c.b16 %v421, %v419
      %v448 = vpack.c.b16 %v422, %v420
      %v449 = vpack.c.b16 %v425, %v423
      %v450 = vpack.c.b16 %v426, %v424
      %v451 = vpack.c.b16 %v429, %v427
      %v452 = vpack.c.b16 %v430, %v428
      %v453 = vpack.c.b16 %v433, %v431
      %v454 = vpack.c.b16 %v434, %v432
      %v455 = vpack.c.b16 %v437, %v435
      %v456 = vpack.c.b16 %v438, %v436
      %v457 = vpack.c.b16 %v441, %v439
      %v458 = vpack.c.b16 %v442, %v440
      %475 = vmatpush.bf16.msra.mxu0 %v457
      %476 = vmatpush.bf16.msra.mxu0 %v455
      %477 = vmatpush.bf16.msra.mxu0 %v453
      %478 = vmatpush.bf16.msra.mxu0 %v451
      %479 = vmatpush.bf16.msra.mxu0 %v449
      %480 = vmatpush.bf16.msra.mxu0 %v447
      %481 = vmatpush.bf16.msra.mxu0 %v445
      %482 = vmatpush.bf16.msra.mxu0 %v443
      %483 = vmatmul.bf16.gmra.mxu0 %v387
      %v484 = vpop.f32.mrf.mxu0
      %v485 = vadd.f32 0.0, %v484
      %v486 = vpop.f32.mrf.mxu0
      %v487 = vadd.f32 0.0, %v486
      %488 = vmatmul.bf16.gmra.mxu0 %v388
      %v489 = vpop.f32.mrf.mxu0
      %v490 = vadd.f32 0.0, %v489
      %v491 = vpop.f32.mrf.mxu0
      %v492 = vadd.f32 0.0, %v491
      %493 = vmatmul.bf16.gmra.mxu0 %v389
      %v494 = vpop.f32.mrf.mxu0
      %v495 = vadd.f32 0.0, %v494
      %v496 = vpop.f32.mrf.mxu0
      %v497 = vadd.f32 0.0, %v496
      %498 = vmatmul.bf16.gmra.mxu0 %v390
      %v499 = vpop.f32.mrf.mxu0
      %v500 = vadd.f32 0.0, %v499
      %v501 = vpop.f32.mrf.mxu0
      %v502 = vadd.f32 0.0, %v501
      %503 = vdwg.mxu0
      %504 = vmatpush.bf16.msra.mxu0 %v458
      %505 = vmatpush.bf16.msra.mxu0 %v456
      %506 = vmatpush.bf16.msra.mxu0 %v454
      %507 = vmatpush.bf16.msra.mxu0 %v452
      %508 = vmatpush.bf16.msra.mxu0 %v450
      %509 = vmatpush.bf16.msra.mxu0 %v448
      %510 = vmatpush.bf16.msra.mxu0 %v446
      %511 = vmatpush.bf16.msra.mxu0 %v444
      %512 = vmatmul.bf16.gmra.mxu0 %v387
      %v513 = vpop.f32.mrf.mxu0
      %v514 = vadd.f32 0.0, %v513
      %v515 = vpop.f32.mrf.mxu0
      %v516 = vadd.f32 0.0, %v515
      %517 = vmatmul.bf16.gmra.mxu0 %v388
      %v518 = vpop.f32.mrf.mxu0
      %v519 = vadd.f32 0.0, %v518
      %v520 = vpop.f32.mrf.mxu0
      %v521 = vadd.f32 0.0, %v520
      %522 = vmatmul.bf16.gmra.mxu0 %v389
      %v523 = vpop.f32.mrf.mxu0
      %v524 = vadd.f32 0.0, %v523
      %v525 = vpop.f32.mrf.mxu0
      %v526 = vadd.f32 0.0, %v525
      %527 = vmatmul.bf16.gmra.mxu0 %v390
      %v528 = vpop.f32.mrf.mxu0
      %v529 = vadd.f32 0.0, %v528
      %v530 = vpop.f32.mrf.mxu0
      %v531 = vadd.f32 0.0, %v530
      %532 = vdwg.mxu0
      %v533 = vadd.f32 %v331, %v485
      %v534 = vadd.f32 %v332, %v514
      %v535 = vadd.f32 %v333, %v487
      %v536 = vadd.f32 %v334, %v516
      %v537 = vadd.f32 %v335, %v490
      %v538 = vadd.f32 %v336, %v519
      %v539 = vadd.f32 %v337, %v492
      %v540 = vadd.f32 %v338, %v521
      %v541 = vadd.f32 %v339, %v495
      %v542 = vadd.f32 %v340, %v524
      %v543 = vadd.f32 %v341, %v497
      %v544 = vadd.f32 %v342, %v526
      %v545 = vadd.f32 %v343, %v500
      %v546 = vadd.f32 %v344, %v529
      %v547 = vadd.f32 %v345, %v502
      %v548 = vadd.f32 %v346, %v531
      %549 = vst [vmem:[#allocation2] sm:$0xff] %v533
      %550 = vst [vmem:[#allocation2 + $0x8] sm:$0xff] %v534
      %551 = vst [vmem:[#allocation2 + $0x10] sm:$0xff] %v535
      %552 = vst [vmem:[#allocation2 + $0x18] sm:$0xff] %v536
      %553 = vst [vmem:[#allocation2 + $0x20] sm:$0xff] %v537
      %554 = vst [vmem:[#allocation2 + $0x28] sm:$0xff] %v538
      %555 = vst [vmem:[#allocation2 + $0x30] sm:$0xff] %v539
      %556 = vst [vmem:[#allocation2 + $0x38] sm:$0xff] %v540
      %557 = vst [vmem:[#allocation2 + $0x40] sm:$0xff] %v541
      %558 = vst [vmem:[#allocation2 + $0x48] sm:$0xff] %v542
      %559 = vst [vmem:[#allocation2 + $0x50] sm:$0xff] %v543
      %560 = vst [vmem:[#allocation2 + $0x58] sm:$0xff] %v544
      %561 = vst [vmem:[#allocation2 + $0x60] sm:$0xff] %v545
      %562 = vst [vmem:[#allocation2 + $0x68] sm:$0xff] %v546
      %563 = vst [vmem:[#allocation2 + $0x70] sm:$0xff] %v547
      %564 = vst [vmem:[#allocation2 + $0x78] sm:$0xff] %v548
      // Predicated region
      $region37: #{feature_matching_forward.13} parent=31 // pred_check
        %p565 = pneg %p311
      $region38: #{feature_matching_forward.13} parent=31 // pred_check_branch
        %567 = sbr.rel (%p565) target = $region40
      $region39: #{feature_matching_forward.13} parent=31 // pred_region
        %v568 = vld [vmem:[#allocation2] sm:$0xff]
        %v569 = vld [vmem:[#allocation2 + $0x8] sm:$0xff]
        %v570 = vld [vmem:[#allocation2 + $0x10] sm:$0xff]
        %v571 = vld [vmem:[#allocation2 + $0x18] sm:$0xff]
        %v572 = vld [vmem:[#allocation2 + $0x20] sm:$0xff]
        %v573 = vld [vmem:[#allocation2 + $0x28] sm:$0xff]
        %v574 = vld [vmem:[#allocation2 + $0x30] sm:$0xff]
        %v575 = vld [vmem:[#allocation2 + $0x38] sm:$0xff]
        %v576 = vld [vmem:[#allocation2 + $0x40] sm:$0xff]
        %v577 = vld [vmem:[#allocation2 + $0x48] sm:$0xff]
        %v578 = vld [vmem:[#allocation2 + $0x50] sm:$0xff]
        %v579 = vld [vmem:[#allocation2 + $0x58] sm:$0xff]
        %v580 = vld [vmem:[#allocation2 + $0x60] sm:$0xff]
        %v581 = vld [vmem:[#allocation2 + $0x68] sm:$0xff]
        %v582 = vld [vmem:[#allocation2 + $0x70] sm:$0xff]
        %v583 = vld [vmem:[#allocation2 + $0x78] sm:$0xff]
        %v584 = vld [vmem:[%s293] sm:$0xff]
        %v585 = vld [vmem:[%s293 + $0x8] sm:$0xff]
        %v586 = vld [vmem:[%s293 + $0x10] sm:$0xff]
        %v587 = vld [vmem:[%s293 + $0x18] sm:$0xff]
        %v588 = vld [vmem:[%s293 + $0x20] sm:$0xff]
        %v589 = vld [vmem:[%s293 + $0x28] sm:$0xff]
        %v590 = vld [vmem:[%s293 + $0x30] sm:$0xff]
        %v591 = vld [vmem:[%s293 + $0x38] sm:$0xff]
        %593 = vset.pattern.permute.xlu0 0
        %594 = vperm.xlu0 %593, %v584
        %v595 = vpop.permute.xlu0 %594
        %598 = vset.pattern.permute.xlu0 0
        %599 = vperm.xlu0 %598, %v585
        %v600 = vpop.permute.xlu0 %599
        %603 = vset.pattern.permute.xlu0 0
        %604 = vperm.xlu0 %603, %v586
        %v605 = vpop.permute.xlu0 %604
        %608 = vset.pattern.permute.xlu0 0
        %609 = vperm.xlu0 %608, %v587
        %v610 = vpop.permute.xlu0 %609
        %613 = vset.pattern.permute.xlu0 0
        %614 = vperm.xlu0 %613, %v588
        %v615 = vpop.permute.xlu0 %614
        %618 = vset.pattern.permute.xlu0 0
        %619 = vperm.xlu0 %618, %v589
        %v620 = vpop.permute.xlu0 %619
        %623 = vset.pattern.permute.xlu0 0
        %624 = vperm.xlu0 %623, %v590
        %v625 = vpop.permute.xlu0 %624
        %628 = vset.pattern.permute.xlu0 0
        %629 = vperm.xlu0 %628, %v591
        %v630 = vpop.permute.xlu0 %629
        %v632 = vadd.f32 %v568, %v595
        %v633 = vadd.f32 %v569, %v595
        %v634 = vadd.f32 %v570, %v600
        %v635 = vadd.f32 %v571, %v600
        %v636 = vadd.f32 %v572, %v605
        %v637 = vadd.f32 %v573, %v605
        %v638 = vadd.f32 %v574, %v610
        %v639 = vadd.f32 %v575, %v610
        %v640 = vadd.f32 %v576, %v615
        %v641 = vadd.f32 %v577, %v615
        %v642 = vadd.f32 %v578, %v620
        %v643 = vadd.f32 %v579, %v620
        %v644 = vadd.f32 %v580, %v625
        %v645 = vadd.f32 %v581, %v625
        %v646 = vadd.f32 %v582, %v630
        %v647 = vadd.f32 %v583, %v630
        %648 = vst [vmem:[%s308] sm:$0xff] %v632
        %649 = vst [vmem:[%s308 + $0x8] sm:$0xff] %v633
        %650 = vst [vmem:[%s308 + $0x10] sm:$0xff] %v634
        %651 = vst [vmem:[%s308 + $0x18] sm:$0xff] %v635
        %652 = vst [vmem:[%s308 + $0x20] sm:$0xff] %v636
        %653 = vst [vmem:[%s308 + $0x28] sm:$0xff] %v637
        %654 = vst [vmem:[%s308 + $0x30] sm:$0xff] %v638
        %655 = vst [vmem:[%s308 + $0x38] sm:$0xff] %v639
        %656 = vst [vmem:[%s308 + $0x40] sm:$0xff] %v640
        %657 = vst [vmem:[%s308 + $0x48] sm:$0xff] %v641
        %658 = vst [vmem:[%s308 + $0x50] sm:$0xff] %v642
        %659 = vst [vmem:[%s308 + $0x58] sm:$0xff] %v643
        %660 = vst [vmem:[%s308 + $0x60] sm:$0xff] %v644
        %661 = vst [vmem:[%s308 + $0x68] sm:$0xff] %v645
        %662 = vst [vmem:[%s308 + $0x70] sm:$0xff] %v646
        %663 = vst [vmem:[%s308 + $0x78] sm:$0xff] %v647
      $region40: #{feature_matching_forward.13} parent=31 // pred_fallthru
        _
      %s664 = smul.u32 8, %s21
      %s665 = smul.u32 2, %s22
      %p666 = scmp.lt.s32.totalorder %s20, 1
      %s667 = scalar_select %p666, %s20, 1
      %p668 = scmp.lt.s32.totalorder %s664, 7
      %s669 = scalar_select %p668, %s664, 7
      %p670 = scmp.lt.s32.totalorder %s665, 1
      %s671 = scalar_select %p670, %s665, 1
      %s672 = smul.addr %s669, 2
      %s673 = sadd.s32 %s671, %s672
      %s674 = smul.addr %s667, 16
      %s675 = sadd.s32 %s673, %s674
      %s676 = smul.addr %s675, 8
      %s677 = scalar_lea.vmem %s3, %s676
      // Predicated region
      $region41: #{feature_matching_forward.13} parent=31 // pred_check
        %p678 = pneg %p146
      $region42: #{feature_matching_forward.13} parent=31 // pred_check_branch
        %680 = sbr.rel (%p678) target = $region44
      $region43: #{feature_matching_forward.13} parent=31 // pred_region
        %s681 = smul.u32 8, %s21
        %s682 = smul.u32 2, %s22
      $region44: #{feature_matching_forward.13} parent=31 // pred_fallthru
        _
    $region32: #{feature_matching_forward.13} parent=5 // pred_fallthru
      _
    %p683 = scmp.le.s32.totalorder 2, %s9
    // Predicated region
    $region45: #{feature_matching_forward.13} parent=5 // pred_check
      %p684 = pneg %p683
    $region46: #{feature_matching_forward.13} parent=5 // pred_check_branch
      %686 = sbr.rel (%p684) target = $region48
    $region47: #{feature_matching_forward.13} parent=5 // pred_region
      %s687 = ssub.s32 %s9, 2
      // Predicated region
      $region49: #{feature_matching_forward.13} parent=47 // pred_check
        %p688 = pneg %p152
      $region50: #{feature_matching_forward.13} parent=47 // pred_check_branch
        %690 = sbr.rel (%p688) target = $region52
      $region51: #{feature_matching_forward.13} parent=47 // pred_region
        %s691 = smul.u32 8, %s25
        %s692 = smul.u32 2, %s26
        %p693 = scmp.lt.s32.totalorder %s24, 1
        %s694 = scalar_select %p693, %s24, 1
        %p695 = scmp.lt.s32.totalorder %s691, 7
        %s696 = scalar_select %p695, %s691, 7
        %p697 = scmp.lt.s32.totalorder %s692, 1
        %s698 = scalar_select %p697, %s692, 1
        %s699 = smul.addr %s696, 2
        %s700 = sadd.s32 %s698, %s699
        %s701 = smul.addr %s694, 16
        %s702 = sadd.s32 %s700, %s701
        %s703 = smul.addr %s702, 8
        %s704 = scalar_lea.vmem %s3, %s703
      $region52: #{feature_matching_forward.13} parent=47 // pred_fallthru
        _
    $region48: #{feature_matching_forward.13} parent=5 // pred_fallthru
      _
  $region6: #{feature_matching_forward.13} parent=0 // loop_footer
    %s13 = sadd.s32 1, %s9
  $region7: #{feature_matching_forward.13} parent=0 // loop_footer_branch
    %8 = sbr.rel target = $region3
  $region8: #{feature_matching_forward.13} parent=0 // loop_exit
    _

// kernel: feature_matching_forward.14
$region0: #{feature_matching_forward.14}
  #allocation0 [shape = 'u32[]', space=smem, size = 0x4, offset = 0x4, fixed_abs, tag = 'smem constant byte address 0x4 - core index']
  #allocation1 [shape = 'u32[72,128]{1,0:T(1,128)}', space=vmem, size = 0x9000, scoped, tag = 'internal scratch']
  #allocation2 [shape = 'f32[64,256]{1,0:T(8,128)}', space=vmem, size = 0x10000, scoped, tag = 'scratch operand']
  %s0 = inlined_call_operand.vmem [shape: bf16[64,1024], index: 0, kind: input, shape index: {}]
  %s1 = inlined_call_operand.vmem [shape: bf16[2,1024,256], index: 1, kind: input, shape index: {}]
  %s2 = inlined_call_operand.vmem [shape: f32[64,1], index: 2, kind: input, shape index: {}]
  %s3 = inlined_call_operand.vmem [shape: f32[2,64,256], index: 3, kind: output, shape index: {}]
  %s4 = sld [smem:[#allocation0]]
  $region76: #{feature_matching_forward.14} parent=0
    _
  %s6 = ssub.s32 1, %s4
  %s7 = scalar_select 0, %s6, %s4
  $region1: #{feature_matching_forward.14} parent=0
    #allocation3 [shape = 'u8[131072]{0}', space=vmem, size = 0x20000, scoped, tag = 'input window, operand 0']
    loop: start=0, step=1, limit=6
    $region2: #{feature_matching_forward.14} parent=1 // loop_pre_header
      _
    $region3: #{feature_matching_forward.14} parent=1 // loop_header
      %s9 = sphi 0, %s13
      %p10 = scmp.ge.s32.totalorder %s9, 6
      %s16 = sphi 0, %s42
      %s17 = sphi 0, %s38
      %s18 = sphi 0, %s34
      %s19 = sphi 0, %s30
      %s20 = sphi 0, %s16
      %s21 = sphi 0, %s17
      %s22 = sphi 0, %s18
      %s23 = sphi 0, %s19
      %s24 = sphi 0, %s20
      %s25 = sphi 0, %s21
      %s26 = sphi 0, %s22
      %s27 = sphi 0, %s23
      %s47 = sphi 0, %s49
      %s50 = sphi 0, %s47
      %s51 = sphi 0, %s50
      %s67 = sphi 0, %s51
      %s77 = sphi 0, %s79
      %s80 = sphi 0, %s77
      %s81 = sphi 0, %s80
      %s97 = sphi 0, %s81
      %s103 = sphi 0, %s105
      %s106 = sphi 0, %s103
      %s107 = sphi 0, %s106
      %s123 = sphi 0, %s107
      %s133 = sphi 0, %s135
      %s136 = sphi 0, %s133
      %s137 = sphi 0, %s136
      %s153 = sphi 0, %s137
    $region4: #{feature_matching_forward.14} parent=1 // loop_header_branch
      %12 = sbr.rel (%p10) target = $region8
    $region5: #{feature_matching_forward.14} parent=1 // loop_body
      %s14 = ssub.s32 %s9, 1
      %s15 = ssub.s32 %s9, 2
      %s28 = sadd.s32 1, %s19
      %p29 = scmp.ge.s32.totalorder %s28, 2
      %s30 = scalar_select %p29, 0, %s28
      %s31 = sadd.s32 1, %s18
      %s32 = scalar_select %p29, %s31, %s18
      %p33 = scmp.ge.s32.totalorder %s32, 1
      %s34 = scalar_select %p33, 0, %s32
      %s35 = sadd.s32 1, %s17
      %s36 = scalar_select %p33, %s35, %s17
      %p37 = scmp.ge.s32.totalorder %s36, 1
      %s38 = scalar_select %p37, 0, %s36
      %s39 = sadd.s32 1, %s16
      %s40 = scalar_select %p37, %s39, %s16
      %p41 = scmp.ge.s32.totalorder %s40, 2
      %s42 = scalar_select %p41, 0, %s40
      %s43 = ssub.s32 %s17, %s38
      %s44 = ssub.s32 %s19, %s30
      %s45 = sor.u32 %s43, %s44
      %p46 = scmp.eq.s32.totalorder %s45, 0
      %s48 = sadd.s32 %s47, 1
      %s49 = scalar_select %p46, %s47, %s48
      %p52 = pneg %p46
      %p53 = scmp.eq.s32.totalorder %s9, 3
      %p54 = por %p52, %p53
      %p55 = scmp.ne.s32.totalorder %s47, %s50
      %p56 = scmp.eq.s32.totalorder %s9, 0
      %p57 = por %p55, %p56
      %p58 = scmp.ne.s32.totalorder %s47, %s50
      %p59 = scmp.eq.s32.totalorder %s14, 3
      %p60 = por %p58, %p59
      %p61 = scmp.ne.s32.totalorder %s50, %s51
      %p62 = scmp.eq.s32.totalorder %s14, 0
      %p63 = por %p61, %p62
      %p64 = scmp.ne.s32.totalorder %s50, %s51
      %p65 = scmp.eq.s32.totalorder %s15, 3
      %p66 = por %p64, %p65
      %p68 = scmp.ne.s32.totalorder %s51, %s67
      %p69 = scmp.eq.s32.totalorder %s15, 0
      %p70 = por %p68, %p69
      %s71 = ssub.s32 %s16, %s42
      %s72 = ssub.s32 %s19, %s30
      %s73 = sor.u32 %s71, %s72
      %s74 = ssub.s32 %s18, %s34
      %s75 = sor.u32 %s73, %s74
      %p76 = scmp.eq.s32.totalorder %s75, 0
      %s78 = sadd.s32 %s77, 1
      %s79 = scalar_select %p76, %s77, %s78
      %p82 = pneg %p76
      %p83 = scmp.eq.s32.totalorder %s9, 3
      %p84 = por %p82, %p83
      %p85 = scmp.ne.s32.totalorder %s77, %s80
      %p86 = scmp.eq.s32.totalorder %s9, 0
      %p87 = por %p85, %p86
      %p88 = scmp.ne.s32.totalorder %s77, %s80
      %p89 = scmp.eq.s32.totalorder %s14, 3
      %p90 = por %p88, %p89
      %p91 = scmp.ne.s32.totalorder %s80, %s81
      %p92 = scmp.eq.s32.totalorder %s14, 0
      %p93 = por %p91, %p92
      %p94 = scmp.ne.s32.totalorder %s80, %s81
      %p95 = scmp.eq.s32.totalorder %s15, 3
      %p96 = por %p94, %p95
      %p98 = scmp.ne.s32.totalorder %s81, %s97
      %p99 = scmp.eq.s32.totalorder %s15, 0
      %p100 = por %p98, %p99
      %s101 = ssub.s32 %s17, %s38
      %p102 = scmp.eq.s32.totalorder %s101, 0
      %s104 = sadd.s32 %s103, 1
      %s105 = scalar_select %p102, %s103, %s104
      %p108 = pneg %p102
      %p109 = scmp.eq.s32.totalorder %s9, 3
      %p110 = por %p108, %p109
      %p111 = scmp.ne.s32.totalorder %s103, %s106
      %p112 = scmp.eq.s32.totalorder %s9, 0
      %p113 = por %p111, %p112
      %p114 = scmp.ne.s32.totalorder %s103, %s106
      %p115 = scmp.eq.s32.totalorder %s14, 3
      %p116 = por %p114, %p115
      %p117 = scmp.ne.s32.totalorder %s106, %s107
      %p118 = scmp.eq.s32.totalorder %s14, 0
      %p119 = por %p117, %p118
      %p120 = scmp.ne.s32.totalorder %s106, %s107
      %p121 = scmp.eq.s32.totalorder %s15, 3
      %p122 = por %p120, %p121
      %p124 = scmp.ne.s32.totalorder %s107, %s123
      %p125 = scmp.eq.s32.totalorder %s15, 0
      %p126 = por %p124, %p125
      %s127 = ssub.s32 %s16, %s42
      %s128 = ssub.s32 %s17, %s38
      %s129 = sor.u32 %s127, %s128
      %s130 = ssub.s32 %s18, %s34
      %s131 = sor.u32 %s129, %s130
      %p132 = scmp.eq.s32.totalorder %s131, 0
      %s134 = sadd.s32 %s133, 1
      %s135 = scalar_select %p132, %s133, %s134
      %p138 = pneg %p132
      %p139 = scmp.eq.s32.totalorder %s9, 3
      %p140 = por %p138, %p139
      %p141 = scmp.ne.s32.totalorder %s133, %s136
      %p142 = scmp.eq.s32.totalorder %s9, 0
      %p143 = por %p141, %p142
      %p144 = scmp.ne.s32.totalorder %s133, %s136
      %p145 = scmp.eq.s32.totalorder %s14, 3
      %p146 = por %p144, %p145
      %p147 = scmp.ne.s32.totalorder %s136, %s137
      %p148 = scmp.eq.s32.totalorder %s14, 0
      %p149 = por %p147, %p148
      %p150 = scmp.ne.s32.totalorder %s136, %s137
      %p151 = scmp.eq.s32.totalorder %s15, 3
      %p152 = por %p150, %p151
      %p154 = scmp.ne.s32.totalorder %s137, %s153
      %p155 = scmp.eq.s32.totalorder %s15, 0
      %p156 = por %p154, %p155
      %p157 = scmp.le.s32.totalorder 1, %s9
      %p158 = scmp.lt.s32.totalorder %s9, 5
      %p159 = pnand %p157, %p158
      %p160 = pneg %p159
      // Predicated region
      $region9: #{feature_matching_forward.14} parent=5 // pred_check
        _
      $region10: #{feature_matching_forward.14} parent=5 // pred_check_branch
        %162 = sbr.rel (%p159) target = $region12
      $region11: #{feature_matching_forward.14} parent=5 // pred_region
        %s163 = ssub.s32 %s9, 1
        // Predicated region
        $region13: #{feature_matching_forward.14} parent=11 // pred_check
          %p164 = pneg %p119
        $region14: #{feature_matching_forward.14} parent=11 // pred_check_branch
          %166 = sbr.rel (%p164) target = $region16
        $region15: #{feature_matching_forward.14} parent=11 // pred_region
          %s167 = smul.u32 8, %s21
          %p168 = scmp.lt.s32.totalorder %s167, 7
          %s169 = scalar_select %p168, %s167, 7
          %s170 = smul.addr %s169, 8
          %s171 = scalar_lea.vmem %s2, %s170
          %s172 = smul.u32 8, %s21
        $region16: #{feature_matching_forward.14} parent=11 // pred_fallthru
          _
      $region12: #{feature_matching_forward.14} parent=5 // pred_fallthru
        _
      %p173 = scmp.lt.s32.totalorder %s9, 4
      // Predicated region
      $region17: #{feature_matching_forward.14} parent=5 // pred_check
        %p174 = pneg %p173
      $region18: #{feature_matching_forward.14} parent=5 // pred_check_branch
        %176 = sbr.rel (%p174) target = $region20
      $region19: #{feature_matching_forward.14} parent=5 // pred_region
        // Predicated region
        $region21: #{feature_matching_forward.14} parent=19 // pred_check
          %p177 = pneg %p57
        $region22: #{feature_matching_forward.14} parent=19 // pred_check_branch
          %179 = sbr.rel (%p177) target = $region24
        $region23: #{feature_matching_forward.14} parent=19 // pred_region
          %s180 = sand.u32 %s47, 1
          %s181 = sand.u32 %s47, 1
          %s182 = smul.addr %s181, 128
          %s183 = scalar_lea.vmem [#allocation3], %s182
          %s184 = smul.u32 8, %s17
          %s185 = smul.u32 4, %s19
          %s186 = smul.addr %s184, 8
          %s187 = sadd.s32 %s185, %s186
          %s188 = smul.addr %s187, 4
          %s189 = scalar_lea.vmem %s0, %s188
          // Predicated region
          $region25: #{feature_matching_forward.14} parent=23 // pred_check
            _
          $region26: #{feature_matching_forward.14} parent=23 // pred_check_branch
            %191 = sbr.rel (0) target = $region28
          $region27: #{feature_matching_forward.14} parent=23 // pred_region
            // Predicated region
            $region29: #{feature_matching_forward.14} parent=27 // pred_check
              _
            $region30: #{feature_matching_forward.14} parent=27 // pred_check_branch
              %193 = sbr.rel (0) target = $region32
            $region31: #{feature_matching_forward.14} parent=27 // pred_region
              loop: start=0, step=1, limit=1
              $region33: #{feature_matching_forward.14} parent=31 // loop_pre_header
                _
              $region34: #{feature_matching_forward.14} parent=31 // loop_header
                %s195 = sphi 0, %s199
                %p196 = scmp.ge.s32.totalorder %s195, 1
                %s200 = sphi %s189, %s189
                %s201 = sphi %s183, %s183
              $region35: #{feature_matching_forward.14} parent=31 // loop_header_branch
                %198 = sbr.rel (%p196) target = $region39
              $region36: #{feature_matching_forward.14} parent=31 // loop_body
                %v202 = vld [vmem:[%s200] sm:$0xff]
                %203 = vst [vmem:[%s201] sm:$0xff] %v202
                %v204 = vld [vmem:[%s200 + $0x8] sm:$0xff]
                %205 = vst [vmem:[%s201 + $0x8] sm:$0xff] %v204
                %v206 = vld [vmem:[%s200 + $0x20] sm:$0xff]
                %207 = vst [vmem:[%s201 + $0x10] sm:$0xff] %v206
                %v208 = vld [vmem:[%s200 + $0x28] sm:$0xff]
                %209 = vst [vmem:[%s201 + $0x18] sm:$0xff] %v208
                %v210 = vld [vmem:[%s200 + $0x40] sm:$0xff]
                %211 = vst [vmem:[%s201 + $0x20] sm:$0xff] %v210
                %v212 = vld [vmem:[%s200 + $0x48] sm:$0xff]
                %213 = vst [vmem:[%s201 + $0x28] sm:$0xff] %v212
                %v214 = vld [vmem:[%s200 + $0x60] sm:$0xff]
                %215 = vst [vmem:[%s201 + $0x30] sm:$0xff] %v214
                %v216 = vld [vmem:[%s200 + $0x68] sm:$0xff]
                %217 = vst [vmem:[%s201 + $0x38] sm:$0xff] %v216
                %v218 = vld [vmem:[%s200 + $0x80] sm:$0xff]
                %219 = vst [vmem:[%s201 + $0x40] sm:$0xff] %v218
                %v220 = vld [vmem:[%s200 + $0x88] sm:$0xff]
                %221 = vst [vmem:[%s201 + $0x48] sm:$0xff] %v220
                %v222 = vld [vmem:[%s200 + $0xa0] sm:$0xff]
                %223 = vst [vmem:[%s201 + $0x50] sm:$0xff] %v222
                %v224 = vld [vmem:[%s200 + $0xa8] sm:$0xff]
                %225 = vst [vmem:[%s201 + $0x58] sm:$0xff] %v224
                %v226 = vld [vmem:[%s200 + $0xc0] sm:$0xff]
                %227 = vst [vmem:[%s201 + $0x60] sm:$0xff] %v226
                %v228 = vld [vmem:[%s200 + $0xc8] sm:$0xff]
                %229 = vst [vmem:[%s201 + $0x68] sm:$0xff] %v228
                %v230 = vld [vmem:[%s200 + $0xe0] sm:$0xff]
                %231 = vst [vmem:[%s201 + $0x70] sm:$0xff] %v230
                %v232 = vld [vmem:[%s200 + $0xe8] sm:$0xff]
                %233 = vst [vmem:[%s201 + $0x78] sm:$0xff] %v232
              $region37: #{feature_matching_forward.14} parent=31 // loop_footer
                %s199 = sadd.s32 1, %s195
              $region38: #{feature_matching_forward.14} parent=31 // loop_footer_branch
                %194 = sbr.rel target = $region34
              $region39: #{feature_matching_forward.14} parent=31 // loop_exit
                _
            $region32: #{feature_matching_forward.14} parent=27 // pred_fallthru
              _
            // Predicated region
            $region40: #{feature_matching_forward.14} parent=27 // pred_check
              _
            $region41: #{feature_matching_forward.14} parent=27 // pred_check_branch
              %235 = sbr.rel target = $region43
            $region42: #{feature_matching_forward.14} parent=27 // pred_region
              _
            $region43: #{feature_matching_forward.14} parent=27 // pred_fallthru
              _
          $region28: #{feature_matching_forward.14} parent=23 // pred_fallthru
            _
          %236 = vnop
        $region24: #{feature_matching_forward.14} parent=19 // pred_fallthru
          _
        // Predicated region
        $region44: #{feature_matching_forward.14} parent=19 // pred_check
          %p237 = pneg %p87
        $region45: #{feature_matching_forward.14} parent=19 // pred_check_branch
          %239 = sbr.rel (%p237) target = $region47
        $region46: #{feature_matching_forward.14} parent=19 // pred_region
          %s240 = smul.u32 64, %s19
          %s241 = smul.u32 2, %s18
          %p242 = scmp.lt.s32.totalorder %s16, 1
          %s243 = scalar_select %p242, %s16, 1
          %p244 = scmp.lt.s32.totalorder %s240, 127
          %s245 = scalar_select %p244, %s240, 127
          %p246 = scmp.lt.s32.totalorder %s241, 1
          %s247 = scalar_select %p246, %s241, 1
          %s248 = smul.addr %s245, 2
          %s249 = sadd.s32 %s247, %s248
          %s250 = smul.addr %s243, 256
          %s251 = sadd.s32 %s249, %s250
          %s252 = smul.addr %s251, 4
          %s253 = scalar_lea.vmem %s1, %s252
          %s254 = smul.u32 64, %s19
          %s255 = smul.u32 2, %s18
        $region47: #{feature_matching_forward.14} parent=19 // pred_fallthru
          _
      $region20: #{feature_matching_forward.14} parent=5 // pred_fallthru
        _
      %p256 = scmp.le.s32.totalorder 1, %s9
      %p257 = scmp.lt.s32.totalorder %s9, 5
      %p258 = pnand %p256, %p257
      %p259 = pneg %p258
      // Predicated region
      $region48: #{feature_matching_forward.14} parent=5 // pred_check
        _
      $region49: #{feature_matching_forward.14} parent=5 // pred_check_branch
        %261 = sbr.rel (%p258) target = $region51
      $region50: #{feature_matching_forward.14} parent=5 // pred_region
        %s262 = ssub.s32 %s9, 1
        %s263 = sand.u32 %s50, 1
        %s264 = sand.u32 %s50, 1
        %s265 = smul.addr %s264, 128
        %s266 = scalar_lea.vmem [#allocation3], %s265
        // Predicated region
        $region52: #{feature_matching_forward.14} parent=50 // pred_check
          %p267 = pneg %p63
        $region53: #{feature_matching_forward.14} parent=50 // pred_check_branch
          %269 = sbr.rel (%p267) target = $region55
        $region54: #{feature_matching_forward.14} parent=50 // pred_region
          _
        $region55: #{feature_matching_forward.14} parent=50 // pred_fallthru
          _
        %s270 = sand.u32 %s50, 1
        %s271 = sand.u32 %s50, 1
        %s272 = smul.addr %s271, 128
        %s273 = scalar_lea.vmem [#allocation3], %s272
        %p274 = pneg %p63
        %p275 = pneg %p60
        %s276 = smul.u32 64, %s23
        %s277 = smul.u32 2, %s22
        %p278 = scmp.lt.s32.totalorder %s20, 1
        %s279 = scalar_select %p278, %s20, 1
        %p280 = scmp.lt.s32.totalorder %s276, 127
        %s281 = scalar_select %p280, %s276, 127
        %p282 = scmp.lt.s32.totalorder %s277, 1
        %s283 = scalar_select %p282, %s277, 1
        %s284 = smul.addr %s281, 2
        %s285 = sadd.s32 %s283, %s284
        %s286 = smul.addr %s279, 256
        %s287 = sadd.s32 %s285, %s286
        %s288 = smul.addr %s287, 4
        %s289 = scalar_lea.vmem %s1, %s288
        %p290 = pneg %p93
        %p291 = pneg %p90
        %s292 = smul.u32 8, %s21
        %p293 = scmp.lt.s32.totalorder %s292, 7
        %s294 = scalar_select %p293, %s292, 7
        %s295 = smul.addr %s294, 8
        %s296 = scalar_lea.vmem %s2, %s295
        %p297 = pneg %p119
        %p298 = pneg %p116
        %p299 = pneg %p149
        %p300 = pneg %p146
        %s301 = smul.u32 8, %s21
        %s302 = smul.u32 2, %s22
        %p303 = scmp.lt.s32.totalorder %s20, 1
        %s304 = scalar_select %p303, %s20, 1
        %p305 = scmp.lt.s32.totalorder %s301, 7
        %s306 = scalar_select %p305, %s301, 7
        %p307 = scmp.lt.s32.totalorder %s302, 1
        %s308 = scalar_select %p307, %s302, 1
        %s309 = smul.addr %s306, 2
        %s310 = sadd.s32 %s308, %s309
        %s311 = smul.addr %s304, 16
        %s312 = sadd.s32 %s310, %s311
        %s313 = smul.addr %s312, 8
        %s314 = scalar_lea.vmem %s3, %s313
        %s315 = smul.u32 8, %s21
        %s316 = smul.u32 4, %s23
        %s317 = smul.u32 64, %s23
        %s318 = smul.u32 2, %s22
        %p319 = scmp.lt.s32.totalorder %s20, 1
        %s320 = scalar_select %p319, %s20, 1
        %p321 = scmp.lt.s32.totalorder %s317, 127
        %s322 = scalar_select %p321, %s317, 127
        %p323 = scmp.lt.s32.totalorder %s318, 1
        %s324 = scalar_select %p323, %s318, 1
        %s325 = smul.addr %s322, 2
        %s326 = sadd.s32 %s324, %s325
        %s327 = smul.addr %s320, 256
        %s328 = sadd.s32 %s326, %s327
        %s329 = smul.addr %s328, 4
        %s330 = scalar_lea.vmem %s1, %s329
        %s331 = smul.u32 64, %s23
        %s332 = smul.u32 2, %s22
        %s333 = smul.u32 8, %s21
        %p334 = scmp.lt.s32.totalorder %s333, 7
        %s335 = scalar_select %p334, %s333, 7
        %s336 = smul.addr %s335, 8
        %s337 = scalar_lea.vmem %s2, %s336
        %s338 = smul.u32 8, %s21
        %s339 = smul.u32 8, %s21
        %s340 = smul.u32 2, %s22
        %p341 = scmp.lt.s32.totalorder %s20, 1
        %s342 = scalar_select %p341, %s20, 1
        %p343 = scmp.lt.s32.totalorder %s339, 7
        %s344 = scalar_select %p343, %s339, 7
        %p345 = scmp.lt.s32.totalorder %s340, 1
        %s346 = scalar_select %p345, %s340, 1
        %s347 = smul.addr %s344, 2
        %s348 = sadd.s32 %s346, %s347
        %s349 = smul.addr %s342, 16
        %s350 = sadd.s32 %s348, %s349
        %s351 = smul.addr %s350, 8
        %s352 = scalar_lea.vmem %s3, %s351
        %s353 = smul.u32 8, %s21
        %s354 = smul.u32 2, %s22
        %p355 = scmp.eq.s32.totalorder %s23, 0
        // Predicated region
        $region56: #{feature_matching_forward.14} parent=50 // pred_check
          %p356 = pneg %p355
        $region57: #{feature_matching_forward.14} parent=50 // pred_check_branch
          %358 = sbr.rel (%p356) target = $region59
        $region58: #{feature_matching_forward.14} parent=50 // pred_region
          %359 = vst [vmem:[#allocation2] sm:$0xff] 0.0
          %360 = vst [vmem:[#allocation2 + $0x8] sm:$0xff] 0.0
          %361 = vst [vmem:[#allocation2 + $0x10] sm:$0xff] 0.0
          %362 = vst [vmem:[#allocation2 + $0x18] sm:$0xff] 0.0
          %363 = vst [vmem:[#allocation2 + $0x20] sm:$0xff] 0.0
          %364 = vst [vmem:[#allocation2 + $0x28] sm:$0xff] 0.0
          %365 = vst [vmem:[#allocation2 + $0x30] sm:$0xff] 0.0
          %366 = vst [vmem:[#allocation2 + $0x38] sm:$0xff] 0.0
          %367 = vst [vmem:[#allocation2 + $0x40] sm:$0xff] 0.0
          %368 = vst [vmem:[#allocation2 + $0x48] sm:$0xff] 0.0
          %369 = vst [vmem:[#allocation2 + $0x50] sm:$0xff] 0.0
          %370 = vst [vmem:[#allocation2 + $0x58] sm:$0xff] 0.0
          %371 = vst [vmem:[#allocation2 + $0x60] sm:$0xff] 0.0
          %372 = vst [vmem:[#allocation2 + $0x68] sm:$0xff] 0.0
          %373 = vst [vmem:[#allocation2 + $0x70] sm:$0xff] 0.0
          %374 = vst [vmem:[#allocation2 + $0x78] sm:$0xff] 0.0
        $region59: #{feature_matching_forward.14} parent=50 // pred_fallthru
          _
        %v375 = vld [vmem:[#allocation2] sm:$0xff]
        %v376 = vld [vmem:[#allocation2 + $0x8] sm:$0xff]
        %v377 = vld [vmem:[#allocation2 + $0x10] sm:$0xff]
        %v378 = vld [vmem:[#allocation2 + $0x18] sm:$0xff]
        %v379 = vld [vmem:[#allocation2 + $0x20] sm:$0xff]
        %v380 = vld [vmem:[#allocation2 + $0x28] sm:$0xff]
        %v381 = vld [vmem:[#allocation2 + $0x30] sm:$0xff]
        %v382 = vld [vmem:[#allocation2 + $0x38] sm:$0xff]
        %v383 = vld [vmem:[#allocation2 + $0x40] sm:$0xff]
        %v384 = vld [vmem:[#allocation2 + $0x48] sm:$0xff]
        %v385 = vld [vmem:[#allocation2 + $0x50] sm:$0xff]
        %v386 = vld [vmem:[#allocation2 + $0x58] sm:$0xff]
        %v387 = vld [vmem:[#allocation2 + $0x60] sm:$0xff]
        %v388 = vld [vmem:[#allocation2 + $0x68] sm:$0xff]
        %v389 = vld [vmem:[#allocation2 + $0x70] sm:$0xff]
        %v390 = vld [vmem:[#allocation2 + $0x78] sm:$0xff]
        %v391 = vld [vmem:[%s266] sm:$0xff]
        %v392 = vld [vmem:[%s266 + $0x8] sm:$0xff]
        %v393 = vld [vmem:[%s266 + $0x10] sm:$0xff]
        %v394 = vld [vmem:[%s266 + $0x18] sm:$0xff]
        %v395 = vld [vmem:[%s266 + $0x20] sm:$0xff]
        %v396 = vld [vmem:[%s266 + $0x28] sm:$0xff]
        %v397 = vld [vmem:[%s266 + $0x30] sm:$0xff]
        %v398 = vld [vmem:[%s266 + $0x38] sm:$0xff]
        %v399 = vld [vmem:[%s266 + $0x40] sm:$0xff]
        %v400 = vld [vmem:[%s266 + $0x48] sm:$0xff]
        %v401 = vld [vmem:[%s266 + $0x50] sm:$0xff]
        %v402 = vld [vmem:[%s266 + $0x58] sm:$0xff]
        %v403 = vld [vmem:[%s266 + $0x60] sm:$0xff]
        %v404 = vld [vmem:[%s266 + $0x68] sm:$0xff]
        %v405 = vld [vmem:[%s266 + $0x70] sm:$0xff]
        %v406 = vld [vmem:[%s266 + $0x78] sm:$0xff]
        %v407 = vld [vmem:[%s330] sm:$0xff]
        %v408 = vld [vmem:[%s330 + $0x8] sm:$0xff]
        %v409 = vld [vmem:[%s330 + $0x10] sm:$0xff]
        %v410 = vld [vmem:[%s330 + $0x18] sm:$0xff]
        %v411 = vld [vmem:[%s330 + $0x20] sm:$0xff]
        %v412 = vld [vmem:[%s330 + $0x28] sm:$0xff]
        %v413 = vld [vmem:[%s330 + $0x30] sm:$0xff]
        %v414 = vld [vmem:[%s330 + $0x38] sm:$0xff]
        %v415 = vld [vmem:[%s330 + $0x40] sm:$0xff]
        %v416 = vld [vmem:[%s330 + $0x48] sm:$0xff]
        %v417 = vld [vmem:[%s330 + $0x50] sm:$0xff]
        %v418 = vld [vmem:[%s330 + $0x58] sm:$0xff]
        %v419 = vld [vmem:[%s330 + $0x60] sm:$0xff]
        %v420 = vld [vmem:[%s330 + $0x68] sm:$0xff]
        %v421 = vld [vmem:[%s330 + $0x70] sm:$0xff]
        %v422 = vld [vmem:[%s330 + $0x78] sm:$0xff]
        %v423 = vld [vmem:[%s330 + $0x80] sm:$0xff]
        %v424 = vld [vmem:[%s330 + $0x88] sm:$0xff]
        %v425 = vld [vmem:[%s330 + $0x90] sm:$0xff]
        %v426 = vld [vmem:[%s330 + $0x98] sm:$0xff]
        %v427 = vld [vmem:[%s330 + $0xa0] sm:$0xff]
        %v428 = vld [vmem:[%s330 + $0xa8] sm:$0xff]
        %v429 = vld [vmem:[%s330 + $0xb0] sm:$0xff]
        %v430 = vld [vmem:[%s330 + $0xb8] sm:$0xff]
        %v431 = vld [vmem:[%s330 + $0xc0] sm:$0xff]
        %v432 = vld [vmem:[%s330 + $0xc8] sm:$0xff]
        %v433 = vld [vmem:[%s330 + $0xd0] sm:$0xff]
        %v434 = vld [vmem:[%s330 + $0xd8] sm:$0xff]
        %v435 = vld [vmem:[%s330 + $0xe0] sm:$0xff]
        %v436 = vld [vmem:[%s330 + $0xe8] sm:$0xff]
        %v437 = vld [vmem:[%s330 + $0xf0] sm:$0xff]
        %v438 = vld [vmem:[%s330 + $0xf8] sm:$0xff]
        %v439 = vld [vmem:[%s330 + $0x100] sm:$0xff]
        %v440 = vld [vmem:[%s330 + $0x108] sm:$0xff]
        %v441 = vld [vmem:[%s330 + $0x110] sm:$0xff]
        %v442 = vld [vmem:[%s330 + $0x118] sm:$0xff]
        %v443 = vld [vmem:[%s330 + $0x120] sm:$0xff]
        %v444 = vld [vmem:[%s330 + $0x128] sm:$0xff]
        %v445 = vld [vmem:[%s330 + $0x130] sm:$0xff]
        %v446 = vld [vmem:[%s330 + $0x138] sm:$0xff]
        %v447 = vld [vmem:[%s330 + $0x140] sm:$0xff]
        %v448 = vld [vmem:[%s330 + $0x148] sm:$0xff]
        %v449 = vld [vmem:[%s330 + $0x150] sm:$0xff]
        %v450 = vld [vmem:[%s330 + $0x158] sm:$0xff]
        %v451 = vld [vmem:[%s330 + $0x160] sm:$0xff]
        %v452 = vld [vmem:[%s330 + $0x168] sm:$0xff]
        %v453 = vld [vmem:[%s330 + $0x170] sm:$0xff]
        %v454 = vld [vmem:[%s330 + $0x178] sm:$0xff]
        %v455 = vld [vmem:[%s330 + $0x180] sm:$0xff]
        %v456 = vld [vmem:[%s330 + $0x188] sm:$0xff]
        %v457 = vld [vmem:[%s330 + $0x190] sm:$0xff]
        %v458 = vld [vmem:[%s330 + $0x198] sm:$0xff]
        %v459 = vld [vmem:[%s330 + $0x1a0] sm:$0xff]
        %v460 = vld [vmem:[%s330 + $0x1a8] sm:$0xff]
        %v461 = vld [vmem:[%s330 + $0x1b0] sm:$0xff]
        %v462 = vld [vmem:[%s330 + $0x1b8] sm:$0xff]
        %v463 = vld [vmem:[%s330 + $0x1c0] sm:$0xff]
        %v464 = vld [vmem:[%s330 + $0x1c8] sm:$0xff]
        %v465 = vld [vmem:[%s330 + $0x1d0] sm:$0xff]
        %v466 = vld [vmem:[%s330 + $0x1d8] sm:$0xff]
        %v467 = vld [vmem:[%s330 + $0x1e0] sm:$0xff]
        %v468 = vld [vmem:[%s330 + $0x1e8] sm:$0xff]
        %v469 = vld [vmem:[%s330 + $0x1f0] sm:$0xff]
        %v470 = vld [vmem:[%s330 + $0x1f8] sm:$0xff]
        %v487 = vunpack.c.l.b16 %v391
        %v488 = vunpack.c.h.b16 %v391
        %v489 = vunpack.c.l.b16 %v392
        %v490 = vunpack.c.h.b16 %v392
        %v491 = vunpack.c.l.b16 %v393
        %v492 = vunpack.c.h.b16 %v393
        %v493 = vunpack.c.l.b16 %v394
        %v494 = vunpack.c.h.b16 %v394
        %v495 = vunpack.c.l.b16 %v395
        %v496 = vunpack.c.h.b16 %v395
        %v497 = vunpack.c.l.b16 %v396
        %v498 = vunpack.c.h.b16 %v396
        %v499 = vunpack.c.l.b16 %v397
        %v500 = vunpack.c.h.b16 %v397
        %v501 = vunpack.c.l.b16 %v398
        %v502 = vunpack.c.h.b16 %v398
        %v503 = vunpack.c.l.b16 %v399
        %v504 = vunpack.c.h.b16 %v399
        %v505 = vunpack.c.l.b16 %v400
        %v506 = vunpack.c.h.b16 %v400
        %v507 = vunpack.c.l.b16 %v401
        %v508 = vunpack.c.h.b16 %v401
        %v509 = vunpack.c.l.b16 %v402
        %v510 = vunpack.c.h.b16 %v402
        %v511 = vunpack.c.l.b16 %v403
        %v512 = vunpack.c.h.b16 %v403
        %v513 = vunpack.c.l.b16 %v404
        %v514 = vunpack.c.h.b16 %v404
        %v515 = vunpack.c.l.b16 %v405
        %v516 = vunpack.c.h.b16 %v405
        %v517 = vunpack.c.l.b16 %v406
        %v518 = vunpack.c.h.b16 %v406
        %v519 = vpack.c.b16 %v491, %v487
        %v520 = vpack.c.b16 %v492, %v488
        %v521 = vpack.c.b16 %v493, %v489
        %v522 = vpack.c.b16 %v494, %v490
        %v523 = vpack.c.b16 %v499, %v495
        %v524 = vpack.c.b16 %v500, %v496
        %v525 = vpack.c.b16 %v501, %v497
        %v526 = vpack.c.b16 %v502, %v498
        %v527 = vpack.c.b16 %v507, %v503
        %v528 = vpack.c.b16 %v508, %v504
        %v529 = vpack.c.b16 %v509, %v505
        %v530 = vpack.c.b16 %v510, %v506
        %v531 = vpack.c.b16 %v515, %v511
        %v532 = vpack.c.b16 %v516, %v512
        %v533 = vpack.c.b16 %v517, %v513
        %v534 = vpack.c.b16 %v518, %v514
        %v615 = vunpack.c.l.b16 %v407
        %v616 = vunpack.c.h.b16 %v407
        %v617 = vunpack.c.l.b16 %v408
        %v618 = vunpack.c.h.b16 %v408
        %v619 = vunpack.c.l.b16 %v409
        %v620 = vunpack.c.h.b16 %v409
        %v621 = vunpack.c.l.b16 %v410
        %v622 = vunpack.c.h.b16 %v410
        %v623 = vunpack.c.l.b16 %v411
        %v624 = vunpack.c.h.b16 %v411
        %v625 = vunpack.c.l.b16 %v412
        %v626 = vunpack.c.h.b16 %v412
        %v627 = vunpack.c.l.b16 %v413
        %v628 = vunpack.c.h.b16 %v413
        %v629 = vunpack.c.l.b16 %v414
        %v630 = vunpack.c.h.b16 %v414
        %v631 = vunpack.c.l.b16 %v415
        %v632 = vunpack.c.h.b16 %v415
        %v633 = vunpack.c.l.b16 %v416
        %v634 = vunpack.c.h.b16 %v416
        %v635 = vunpack.c.l.b16 %v417
        %v636 = vunpack.c.h.b16 %v417
        %v637 = vunpack.c.l.b16 %v418
        %v638 = vunpack.c.h.b16 %v418
        %v639 = vunpack.c.l.b16 %v419
        %v640 = vunpack.c.h.b16 %v419
        %v641 = vunpack.c.l.b16 %v420
        %v642 = vunpack.c.h.b16 %v420
        %v643 = vunpack.c.l.b16 %v421
        %v644 = vunpack.c.h.b16 %v421
        %v645 = vunpack.c.l.b16 %v422
        %v646 = vunpack.c.h.b16 %v422
        %v647 = vunpack.c.l.b16 %v423
        %v648 = vunpack.c.h.b16 %v423
        %v649 = vunpack.c.l.b16 %v424
        %v650 = vunpack.c.h.b16 %v424
        %v651 = vunpack.c.l.b16 %v425
        %v652 = vunpack.c.h.b16 %v425
        %v653 = vunpack.c.l.b16 %v426
        %v654 = vunpack.c.h.b16 %v426
        %v655 = vunpack.c.l.b16 %v427
        %v656 = vunpack.c.h.b16 %v427
        %v657 = vunpack.c.l.b16 %v428
        %v658 = vunpack.c.h.b16 %v428
        %v659 = vunpack.c.l.b16 %v429
        %v660 = vunpack.c.h.b16 %v429
        %v661 = vunpack.c.l.b16 %v430
        %v662 = vunpack.c.h.b16 %v430
        %v663 = vunpack.c.l.b16 %v431
        %v664 = vunpack.c.h.b16 %v431
        %v665 = vunpack.c.l.b16 %v432
        %v666 = vunpack.c.h.b16 %v432
        %v667 = vunpack.c.l.b16 %v433
        %v668 = vunpack.c.h.b16 %v433
        %v669 = vunpack.c.l.b16 %v434
        %v670 = vunpack.c.h.b16 %v434
        %v671 = vunpack.c.l.b16 %v435
        %v672 = vunpack.c.h.b16 %v435
        %v673 = vunpack.c.l.b16 %v436
        %v674 = vunpack.c.h.b16 %v436
        %v675 = vunpack.c.l.b16 %v437
        %v676 = vunpack.c.h.b16 %v437
        %v677 = vunpack.c.l.b16 %v438
        %v678 = vunpack.c.h.b16 %v438
        %v679 = vunpack.c.l.b16 %v439
        %v680 = vunpack.c.h.b16 %v439
        %v681 = vunpack.c.l.b16 %v440
        %v682 = vunpack.c.h.b16 %v440
        %v683 = vunpack.c.l.b16 %v441
        %v684 = vunpack.c.h.b16 %v441
        %v685 = vunpack.c.l.b16 %v442
        %v686 = vunpack.c.h.b16 %v442
        %v687 = vunpack.c.l.b16 %v443
        %v688 = vunpack.c.h.b16 %v443
        %v689 = vunpack.c.l.b16 %v444
        %v690 = vunpack.c.h.b16 %v444
        %v691 = vunpack.c.l.b16 %v445
        %v692 = vunpack.c.h.b16 %v445
        %v693 = vunpack.c.l.b16 %v446
        %v694 = vunpack.c.h.b16 %v446
        %v695 = vunpack.c.l.b16 %v447
        %v696 = vunpack.c.h.b16 %v447
        %v697 = vunpack.c.l.b16 %v448
        %v698 = vunpack.c.h.b16 %v448
        %v699 = vunpack.c.l.b16 %v449
        %v700 = vunpack.c.h.b16 %v449
        %v701 = vunpack.c.l.b16 %v450
        %v702 = vunpack.c.h.b16 %v450
        %v703 = vunpack.c.l.b16 %v451
        %v704 = vunpack.c.h.b16 %v451
        %v705 = vunpack.c.l.b16 %v452
        %v706 = vunpack.c.h.b16 %v452
        %v707 = vunpack.c.l.b16 %v453
        %v708 = vunpack.c.h.b16 %v453
        %v709 = vunpack.c.l.b16 %v454
        %v710 = vunpack.c.h.b16 %v454
        %v711 = vunpack.c.l.b16 %v455
        %v712 = vunpack.c.h.b16 %v455
        %v713 = vunpack.c.l.b16 %v456
        %v714 = vunpack.c.h.b16 %v456
        %v715 = vunpack.c.l.b16 %v457
        %v716 = vunpack.c.h.b16 %v457
        %v717 = vunpack.c.l.b16 %v458
        %v718 = vunpack.c.h.b16 %v458
        %v719 = vunpack.c.l.b16 %v459
        %v720 = vunpack.c.h.b16 %v459
        %v721 = vunpack.c.l.b16 %v460
        %v722 = vunpack.c.h.b16 %v460
        %v723 = vunpack.c.l.b16 %v461
        %v724 = vunpack.c.h.b16 %v461
        %v725 = vunpack.c.l.b16 %v462
        %v726 = vunpack.c.h.b16 %v462
        %v727 = vunpack.c.l.b16 %v463
        %v728 = vunpack.c.h.b16 %v463
        %v729 = vunpack.c.l.b16 %v464
        %v730 = vunpack.c.h.b16 %v464
        %v731 = vunpack.c.l.b16 %v465
        %v732 = vunpack.c.h.b16 %v465
        %v733 = vunpack.c.l.b16 %v466
        %v734 = vunpack.c.h.b16 %v466
        %v735 = vunpack.c.l.b16 %v467
        %v736 = vunpack.c.h.b16 %v467
        %v737 = vunpack.c.l.b16 %v468
        %v738 = vunpack.c.h.b16 %v468
        %v739 = vunpack.c.l.b16 %v469
        %v740 = vunpack.c.h.b16 %v469
        %v741 = vunpack.c.l.b16 %v470
        %v742 = vunpack.c.h.b16 %v470
        %v743 = vpack.c.b16 %v617, %v615
        %v744 = vpack.c.b16 %v618, %v616
        %v745 = vpack.c.b16 %v621, %v619
        %v746 = vpack.c.b16 %v622, %v620
        %v747 = vpack.c.b16 %v625, %v623
        %v748 = vpack.c.b16 %v626, %v624
        %v749 = vpack.c.b16 %v629, %v627
        %v750 = vpack.c.b16 %v630, %v628
        %v751 = vpack.c.b16 %v633, %v631
        %v752 = vpack.c.b16 %v634, %v632
        %v753 = vpack.c.b16 %v637, %v635
        %v754 = vpack.c.b16 %v638, %v636
        %v755 = vpack.c.b16 %v641, %v639
        %v756 = vpack.c.b16 %v642, %v640
        %v757 = vpack.c.b16 %v645, %v643
        %v758 = vpack.c.b16 %v646, %v644
        %v759 = vpack.c.b16 %v649, %v647
        %v760 = vpack.c.b16 %v650, %v648
        %v761 = vpack.c.b16 %v653, %v651
        %v762 = vpack.c.b16 %v654, %v652
        %v763 = vpack.c.b16 %v657, %v655
        %v764 = vpack.c.b16 %v658, %v656
        %v765 = vpack.c.b16 %v661, %v659
        %v766 = vpack.c.b16 %v662, %v660
        %v767 = vpack.c.b16 %v665, %v663
        %v768 = vpack.c.b16 %v666, %v664
        %v769 = vpack.c.b16 %v669, %v667
        %v770 = vpack.c.b16 %v670, %v668
        %v771 = vpack.c.b16 %v673, %v671
        %v772 = vpack.c.b16 %v674, %v672
        %v773 = vpack.c.b16 %v677, %v675
        %v774 = vpack.c.b16 %v678, %v676
        %v775 = vpack.c.b16 %v681, %v679
        %v776 = vpack.c.b16 %v682, %v680
        %v777 = vpack.c.b16 %v685, %v683
        %v778 = vpack.c.b16 %v686, %v684
        %v779 = vpack.c.b16 %v689, %v687
        %v780 = vpack.c.b16 %v690, %v688
        %v781 = vpack.c.b16 %v693, %v691
        %v782 = vpack.c.b16 %v694, %v692
        %v783 = vpack.c.b16 %v697, %v695
        %v784 = vpack.c.b16 %v698, %v696
        %v785 = vpack.c.b16 %v701, %v699
        %v786 = vpack.c.b16 %v702, %v700
        %v787 = vpack.c.b16 %v705, %v703
        %v788 = vpack.c.b16 %v706, %v704
        %v789 = vpack.c.b16 %v709, %v707
        %v790 = vpack.c.b16 %v710, %v708
        %v791 = vpack.c.b16 %v713, %v711
        %v792 = vpack.c.b16 %v714, %v712
        %v793 = vpack.c.b16 %v717, %v715
        %v794 = vpack.c.b16 %v718, %v716
        %v795 = vpack.c.b16 %v721, %v719
        %v796 = vpack.c.b16 %v722, %v720
        %v797 = vpack.c.b16 %v725, %v723
        %v798 = vpack.c.b16 %v726, %v724
        %v799 = vpack.c.b16 %v729, %v727
        %v800 = vpack.c.b16 %v730, %v728
        %v801 = vpack.c.b16 %v733, %v731
        %v802 = vpack.c.b16 %v734, %v732
        %v803 = vpack.c.b16 %v737, %v735
        %v804 = vpack.c.b16 %v738, %v736
        %v805 = vpack.c.b16 %v741, %v739
        %v806 = vpack.c.b16 %v742, %v740
        %871 = vmatpush.bf16.msra.mxu0 %v757
        %872 = vmatpush.bf16.msra.mxu0 %v755
        %873 = vmatpush.bf16.msra.mxu0 %v753
        %874 = vmatpush.bf16.msra.mxu0 %v751
        %875 = vmatpush.bf16.msra.mxu0 %v749
        %876 = vmatpush.bf16.msra.mxu0 %v747
        %877 = vmatpush.bf16.msra.mxu0 %v745
        %878 = vmatpush.bf16.msra.mxu0 %v743
        %879 = vmatmul.bf16.gmra.mxu0 %v519
        %v880 = vpop.f32.mrf.mxu0
        %v881 = vadd.f32 0.0, %v880
        %v882 = vpop.f32.mrf.mxu0
        %v883 = vadd.f32 0.0, %v882
        %884 = vmatmul.bf16.gmra.mxu0 %v523
        %v885 = vpop.f32.mrf.mxu0
        %v886 = vadd.f32 0.0, %v885
        %v887 = vpop.f32.mrf.mxu0
        %v888 = vadd.f32 0.0, %v887
        %889 = vmatmul.bf16.gmra.mxu0 %v527
        %v890 = vpop.f32.mrf.mxu0
        %v891 = vadd.f32 0.0, %v890
        %v892 = vpop.f32.mrf.mxu0
        %v893 = vadd.f32 0.0, %v892
        %894 = vmatmul.bf16.gmra.mxu0 %v531
        %v895 = vpop.f32.mrf.mxu0
        %v896 = vadd.f32 0.0, %v895
        %v897 = vpop.f32.mrf.mxu0
        %v898 = vadd.f32 0.0, %v897
        %899 = vdwg.mxu0
        %900 = vmatpush.bf16.msra.mxu0 %v773
        %901 = vmatpush.bf16.msra.mxu0 %v771
        %902 = vmatpush.bf16.msra.mxu0 %v769
        %903 = vmatpush.bf16.msra.mxu0 %v767
        %904 = vmatpush.bf16.msra.mxu0 %v765
        %905 = vmatpush.bf16.msra.mxu0 %v763
        %906 = vmatpush.bf16.msra.mxu0 %v761
        %907 = vmatpush.bf16.msra.mxu0 %v759
        %908 = vmatmul.bf16.gmra.mxu0 %v520
        %v909 = vpop.f32.mrf.mxu0
        %v910 = vadd.f32 %v881, %v909
        %v911 = vpop.f32.mrf.mxu0
        %v912 = vadd.f32 %v883, %v911
        %913 = vmatmul.bf16.gmra.mxu0 %v524
        %v914 = vpop.f32.mrf.mxu0
        %v915 = vadd.f32 %v886, %v914
        %v916 = vpop.f32.mrf.mxu0
        %v917 = vadd.f32 %v888, %v916
        %918 = vmatmul.bf16.gmra.mxu0 %v528
        %v919 = vpop.f32.mrf.mxu0
        %v920 = vadd.f32 %v891, %v919
        %v921 = vpop.f32.mrf.mxu0
        %v922 = vadd.f32 %v893, %v921
        %923 = vmatmul.bf16.gmra.mxu0 %v532
        %v924 = vpop.f32.mrf.mxu0
        %v925 = vadd.f32 %v896, %v924
        %v926 = vpop.f32.mrf.mxu0
        %v927 = vadd.f32 %v898, %v926
        %928 = vdwg.mxu0
        %929 = vmatpush.bf16.msra.mxu0 %v789
        %930 = vmatpush.bf16.msra.mxu0 %v787
        %931 = vmatpush.bf16.msra.mxu0 %v785
        %932 = vmatpush.bf16.msra.mxu0 %v783
        %933 = vmatpush.bf16.msra.mxu0 %v781
        %934 = vmatpush.bf16.msra.mxu0 %v779
        %935 = vmatpush.bf16.msra.mxu0 %v777
        %936 = vmatpush.bf16.msra.mxu0 %v775
        %937 = vmatmul.bf16.gmra.mxu0 %v521
        %v938 = vpop.f32.mrf.mxu0
        %v939 = vadd.f32 %v910, %v938
        %v940 = vpop.f32.mrf.mxu0
        %v941 = vadd.f32 %v912, %v940
        %942 = vmatmul.bf16.gmra.mxu0 %v525
        %v943 = vpop.f32.mrf.mxu0
        %v944 = vadd.f32 %v915, %v943
        %v945 = vpop.f32.mrf.mxu0
        %v946 = vadd.f32 %v917, %v945
        %947 = vmatmul.bf16.gmra.mxu0 %v529
        %v948 = vpop.f32.mrf.mxu0
        %v949 = vadd.f32 %v920, %v948
        %v950 = vpop.f32.mrf.mxu0
        %v951 = vadd.f32 %v922, %v950
        %952 = vmatmul.bf16.gmra.mxu0 %v533
        %v953 = vpop.f32.mrf.mxu0
        %v954 = vadd.f32 %v925, %v953
        %v955 = vpop.f32.mrf.mxu0
        %v956 = vadd.f32 %v927, %v955
        %957 = vdwg.mxu0
        %958 = vmatpush.bf16.msra.mxu0 %v805
        %959 = vmatpush.bf16.msra.mxu0 %v803
        %960 = vmatpush.bf16.msra.mxu0 %v801
        %961 = vmatpush.bf16.msra.mxu0 %v799
        %962 = vmatpush.bf16.msra.mxu0 %v797
        %963 = vmatpush.bf16.msra.mxu0 %v795
        %964 = vmatpush.bf16.msra.mxu0 %v793
        %965 = vmatpush.bf16.msra.mxu0 %v791
        %966 = vmatmul.bf16.gmra.mxu0 %v522
        %v967 = vpop.f32.mrf.mxu0
        %v968 = vadd.f32 %v939, %v967
        %v969 = vpop.f32.mrf.mxu0
        %v970 = vadd.f32 %v941, %v969
        %971 = vmatmul.bf16.gmra.mxu0 %v526
        %v972 = vpop.f32.mrf.mxu0
        %v973 = vadd.f32 %v944, %v972
        %v974 = vpop.f32.mrf.mxu0
        %v975 = vadd.f32 %v946, %v974
        %976 = vmatmul.bf16.gmra.mxu0 %v530
        %v977 = vpop.f32.mrf.mxu0
        %v978 = vadd.f32 %v949, %v977
        %v979 = vpop.f32.mrf.mxu0
        %v980 = vadd.f32 %v951, %v979
        %981 = vmatmul.bf16.gmra.mxu0 %v534
        %v982 = vpop.f32.mrf.mxu0
        %v983 = vadd.f32 %v954, %v982
        %v984 = vpop.f32.mrf.mxu0
        %v985 = vadd.f32 %v956, %v984
        %986 = vdwg.mxu0
        %987 = vmatpush.bf16.msra.mxu0 %v758
        %988 = vmatpush.bf16.msra.mxu0 %v756
        %989 = vmatpush.bf16.msra.mxu0 %v754
        %990 = vmatpush.bf16.msra.mxu0 %v752
        %991 = vmatpush.bf16.msra.mxu0 %v750
        %992 = vmatpush.bf16.msra.mxu0 %v748
        %993 = vmatpush.bf16.msra.mxu0 %v746
        %994 = vmatpush.bf16.msra.mxu0 %v744
        %995 = vmatmul.bf16.gmra.mxu0 %v519
        %v996 = vpop.f32.mrf.mxu0
        %v997 = vadd.f32 0.0, %v996
        %v998 = vpop.f32.mrf.mxu0
        %v999 = vadd.f32 0.0, %v998
        %1000 = vmatmul.bf16.gmra.mxu0 %v523
        %v1001 = vpop.f32.mrf.mxu0
        %v1002 = vadd.f32 0.0, %v1001
        %v1003 = vpop.f32.mrf.mxu0
        %v1004 = vadd.f32 0.0, %v1003
        %1005 = vmatmul.bf16.gmra.mxu0 %v527
        %v1006 = vpop.f32.mrf.mxu0
        %v1007 = vadd.f32 0.0, %v1006
        %v1008 = vpop.f32.mrf.mxu0
        %v1009 = vadd.f32 0.0, %v1008
        %1010 = vmatmul.bf16.gmra.mxu0 %v531
        %v1011 = vpop.f32.mrf.mxu0
        %v1012 = vadd.f32 0.0, %v1011
        %v1013 = vpop.f32.mrf.mxu0
        %v1014 = vadd.f32 0.0, %v1013
        %1015 = vdwg.mxu0
        %1016 = vmatpush.bf16.msra.mxu0 %v774
        %1017 = vmatpush.bf16.msra.mxu0 %v772
        %1018 = vmatpush.bf16.msra.mxu0 %v770
        %1019 = vmatpush.bf16.msra.mxu0 %v768
        %1020 = vmatpush.bf16.msra.mxu0 %v766
        %1021 = vmatpush.bf16.msra.mxu0 %v764
        %1022 = vmatpush.bf16.msra.mxu0 %v762
        %1023 = vmatpush.bf16.msra.mxu0 %v760
        %1024 = vmatmul.bf16.gmra.mxu0 %v520
        %v1025 = vpop.f32.mrf.mxu0
        %v1026 = vadd.f32 %v997, %v1025
        %v1027 = vpop.f32.mrf.mxu0
        %v1028 = vadd.f32 %v999, %v1027
        %1029 = vmatmul.bf16.gmra.mxu0 %v524
        %v1030 = vpop.f32.mrf.mxu0
        %v1031 = vadd.f32 %v1002, %v1030
        %v1032 = vpop.f32.mrf.mxu0
        %v1033 = vadd.f32 %v1004, %v1032
        %1034 = vmatmul.bf16.gmra.mxu0 %v528
        %v1035 = vpop.f32.mrf.mxu0
        %v1036 = vadd.f32 %v1007, %v1035
        %v1037 = vpop.f32.mrf.mxu0
        %v1038 = vadd.f32 %v1009, %v1037
        %1039 = vmatmul.bf16.gmra.mxu0 %v532
        %v1040 = vpop.f32.mrf.mxu0
        %v1041 = vadd.f32 %v1012, %v1040
        %v1042 = vpop.f32.mrf.mxu0
        %v1043 = vadd.f32 %v1014, %v1042
        %1044 = vdwg.mxu0
        %1045 = vmatpush.bf16.msra.mxu0 %v790
        %1046 = vmatpush.bf16.msra.mxu0 %v788
        %1047 = vmatpush.bf16.msra.mxu0 %v786
        %1048 = vmatpush.bf16.msra.mxu0 %v784
        %1049 = vmatpush.bf16.msra.mxu0 %v782
        %1050 = vmatpush.bf16.msra.mxu0 %v780
        %1051 = vmatpush.bf16.msra.mxu0 %v778
        %1052 = vmatpush.bf16.msra.mxu0 %v776
        %1053 = vmatmul.bf16.gmra.mxu0 %v521
        %v1054 = vpop.f32.mrf.mxu0
        %v1055 = vadd.f32 %v1026, %v1054
        %v1056 = vpop.f32.mrf.mxu0
        %v1057 = vadd.f32 %v1028, %v1056
        %1058 = vmatmul.bf16.gmra.mxu0 %v525
        %v1059 = vpop.f32.mrf.mxu0
        %v1060 = vadd.f32 %v1031, %v1059
        %v1061 = vpop.f32.mrf.mxu0
        %v1062 = vadd.f32 %v1033, %v1061
        %1063 = vmatmul.bf16.gmra.mxu0 %v529
        %v1064 = vpop.f32.mrf.mxu0
        %v1065 = vadd.f32 %v1036, %v1064
        %v1066 = vpop.f32.mrf.mxu0
        %v1067 = vadd.f32 %v1038, %v1066
        %1068 = vmatmul.bf16.gmra.mxu0 %v533
        %v1069 = vpop.f32.mrf.mxu0
        %v1070 = vadd.f32 %v1041, %v1069
        %v1071 = vpop.f32.mrf.mxu0
        %v1072 = vadd.f32 %v1043, %v1071
        %1073 = vdwg.mxu0
        %1074 = vmatpush.bf16.msra.mxu0 %v806
        %1075 = vmatpush.bf16.msra.mxu0 %v804
        %1076 = vmatpush.bf16.msra.mxu0 %v802
        %1077 = vmatpush.bf16.msra.mxu0 %v800
        %1078 = vmatpush.bf16.msra.mxu0 %v798
        %1079 = vmatpush.bf16.msra.mxu0 %v796
        %1080 = vmatpush.bf16.msra.mxu0 %v794
        %1081 = vmatpush.bf16.msra.mxu0 %v792
        %1082 = vmatmul.bf16.gmra.mxu0 %v522
        %v1083 = vpop.f32.mrf.mxu0
        %v1084 = vadd.f32 %v1055, %v1083
        %v1085 = vpop.f32.mrf.mxu0
        %v1086 = vadd.f32 %v1057, %v1085
        %1087 = vmatmul.bf16.gmra.mxu0 %v526
        %v1088 = vpop.f32.mrf.mxu0
        %v1089 = vadd.f32 %v1060, %v1088
        %v1090 = vpop.f32.mrf.mxu0
        %v1091 = vadd.f32 %v1062, %v1090
        %1092 = vmatmul.bf16.gmra.mxu0 %v530
        %v1093 = vpop.f32.mrf.mxu0
        %v1094 = vadd.f32 %v1065, %v1093
        %v1095 = vpop.f32.mrf.mxu0
        %v1096 = vadd.f32 %v1067, %v1095
        %1097 = vmatmul.bf16.gmra.mxu0 %v534
        %v1098 = vpop.f32.mrf.mxu0
        %v1099 = vadd.f32 %v1070, %v1098
        %v1100 = vpop.f32.mrf.mxu0
        %v1101 = vadd.f32 %v1072, %v1100
        %1102 = vdwg.mxu0
        %v1103 = vadd.f32 %v375, %v968
        %v1104 = vadd.f32 %v376, %v1084
        %v1105 = vadd.f32 %v377, %v970
        %v1106 = vadd.f32 %v378, %v1086
        %v1107 = vadd.f32 %v379, %v973
        %v1108 = vadd.f32 %v380, %v1089
        %v1109 = vadd.f32 %v381, %v975
        %v1110 = vadd.f32 %v382, %v1091
        %v1111 = vadd.f32 %v383, %v978
        %v1112 = vadd.f32 %v384, %v1094
        %v1113 = vadd.f32 %v385, %v980
        %v1114 = vadd.f32 %v386, %v1096
        %v1115 = vadd.f32 %v387, %v983
        %v1116 = vadd.f32 %v388, %v1099
        %v1117 = vadd.f32 %v389, %v985
        %v1118 = vadd.f32 %v390, %v1101
        %1119 = vst [vmem:[#allocation2] sm:$0xff] %v1103
        %1120 = vst [vmem:[#allocation2 + $0x8] sm:$0xff] %v1104
        %1121 = vst [vmem:[#allocation2 + $0x10] sm:$0xff] %v1105
        %1122 = vst [vmem:[#allocation2 + $0x18] sm:$0xff] %v1106
        %1123 = vst [vmem:[#allocation2 + $0x20] sm:$0xff] %v1107
        %1124 = vst [vmem:[#allocation2 + $0x28] sm:$0xff] %v1108
        %1125 = vst [vmem:[#allocation2 + $0x30] sm:$0xff] %v1109
        %1126 = vst [vmem:[#allocation2 + $0x38] sm:$0xff] %v1110
        %1127 = vst [vmem:[#allocation2 + $0x40] sm:$0xff] %v1111
        %1128 = vst [vmem:[#allocation2 + $0x48] sm:$0xff] %v1112
        %1129 = vst [vmem:[#allocation2 + $0x50] sm:$0xff] %v1113
        %1130 = vst [vmem:[#allocation2 + $0x58] sm:$0xff] %v1114
        %1131 = vst [vmem:[#allocation2 + $0x60] sm:$0xff] %v1115
        %1132 = vst [vmem:[#allocation2 + $0x68] sm:$0xff] %v1116
        %1133 = vst [vmem:[#allocation2 + $0x70] sm:$0xff] %v1117
        %1134 = vst [vmem:[#allocation2 + $0x78] sm:$0xff] %v1118
        %p1135 = scmp.eq.s32.totalorder %s23, 1
        // Predicated region
        $region60: #{feature_matching_forward.14} parent=50 // pred_check
          %p1136 = pneg %p1135
        $region61: #{feature_matching_forward.14} parent=50 // pred_check_branch
          %1138 = sbr.rel (%p1136) target = $region63
        $region62: #{feature_matching_forward.14} parent=50 // pred_region
          %v1139 = vld [vmem:[#allocation2] sm:$0xff]
          %v1140 = vld [vmem:[#allocation2 + $0x8] sm:$0xff]
          %v1141 = vld [vmem:[#allocation2 + $0x10] sm:$0xff]
          %v1142 = vld [vmem:[#allocation2 + $0x18] sm:$0xff]
          %v1143 = vld [vmem:[#allocation2 + $0x20] sm:$0xff]
          %v1144 = vld [vmem:[#allocation2 + $0x28] sm:$0xff]
          %v1145 = vld [vmem:[#allocation2 + $0x30] sm:$0xff]
          %v1146 = vld [vmem:[#allocation2 + $0x38] sm:$0xff]
          %v1147 = vld [vmem:[#allocation2 + $0x40] sm:$0xff]
          %v1148 = vld [vmem:[#allocation2 + $0x48] sm:$0xff]
          %v1149 = vld [vmem:[#allocation2 + $0x50] sm:$0xff]
          %v1150 = vld [vmem:[#allocation2 + $0x58] sm:$0xff]
          %v1151 = vld [vmem:[#allocation2 + $0x60] sm:$0xff]
          %v1152 = vld [vmem:[#allocation2 + $0x68] sm:$0xff]
          %v1153 = vld [vmem:[#allocation2 + $0x70] sm:$0xff]
          %v1154 = vld [vmem:[#allocation2 + $0x78] sm:$0xff]
          %v1155 = vld [vmem:[%s337] sm:$0xff]
          %v1156 = vld [vmem:[%s337 + $0x8] sm:$0xff]
          %v1157 = vld [vmem:[%s337 + $0x10] sm:$0xff]
          %v1158 = vld [vmem:[%s337 + $0x18] sm:$0xff]
          %v1159 = vld [vmem:[%s337 + $0x20] sm:$0xff]
          %v1160 = vld [vmem:[%s337 + $0x28] sm:$0xff]
          %v1161 = vld [vmem:[%s337 + $0x30] sm:$0xff]
          %v1162 = vld [vmem:[%s337 + $0x38] sm:$0xff]
          %1164 = vset.pattern.permute.xlu0 0
          %1165 = vperm.xlu0 %1164, %v1155
          %v1166 = vpop.permute.xlu0 %1165
          %1169 = vset.pattern.permute.xlu0 0
          %1170 = vperm.xlu0 %1169, %v1156
          %v1171 = vpop.permute.xlu0 %1170
          %1174 = vset.pattern.permute.xlu0 0
          %1175 = vperm.xlu0 %1174, %v1157
          %v1176 = vpop.permute.xlu0 %1175
          %1179 = vset.pattern.permute.xlu0 0
          %1180 = vperm.xlu0 %1179, %v1158
          %v1181 = vpop.permute.xlu0 %1180
          %1184 = vset.pattern.permute.xlu0 0
          %1185 = vperm.xlu0 %1184, %v1159
          %v1186 = vpop.permute.xlu0 %1185
          %1189 = vset.pattern.permute.xlu0 0
          %1190 = vperm.xlu0 %1189, %v1160
          %v1191 = vpop.permute.xlu0 %1190
          %1194 = vset.pattern.permute.xlu0 0
          %1195 = vperm.xlu0 %1194, %v1161
          %v1196 = vpop.permute.xlu0 %1195
          %1199 = vset.pattern.permute.xlu0 0
          %1200 = vperm.xlu0 %1199, %v1162
          %v1201 = vpop.permute.xlu0 %1200
          %v1203 = vadd.f32 %v1139, %v1166
          %v1204 = vadd.f32 %v1140, %v1166
          %v1205 = vadd.f32 %v1141, %v1171
          %v1206 = vadd.f32 %v1142, %v1171
          %v1207 = vadd.f32 %v1143, %v1176
          %v1208 = vadd.f32 %v1144, %v1176
          %v1209 = vadd.f32 %v1145, %v1181
          %v1210 = vadd.f32 %v1146, %v1181
          %v1211 = vadd.f32 %v1147, %v1186
          %v1212 = vadd.f32 %v1148, %v1186
          %v1213 = vadd.f32 %v1149, %v1191
          %v1214 = vadd.f32 %v1150, %v1191
          %v1215 = vadd.f32 %v1151, %v1196
          %v1216 = vadd.f32 %v1152, %v1196
          %v1217 = vadd.f32 %v1153, %v1201
          %v1218 = vadd.f32 %v1154, %v1201
          %1219 = vst [vmem:[%s352] sm:$0xff] %v1203
          %1220 = vst [vmem:[%s352 + $0x8] sm:$0xff] %v1204
          %1221 = vst [vmem:[%s352 + $0x10] sm:$0xff] %v1205
          %1222 = vst [vmem:[%s352 + $0x18] sm:$0xff] %v1206
          %1223 = vst [vmem:[%s352 + $0x20] sm:$0xff] %v1207
          %1224 = vst [vmem:[%s352 + $0x28] sm:$0xff] %v1208
          %1225 = vst [vmem:[%s352 + $0x30] sm:$0xff] %v1209
          %1226 = vst [vmem:[%s352 + $0x38] sm:$0xff] %v1210
          %1227 = vst [vmem:[%s352 + $0x40] sm:$0xff] %v1211
          %1228 = vst [vmem:[%s352 + $0x48] sm:$0xff] %v1212
          %1229 = vst [vmem:[%s352 + $0x50] sm:$0xff] %v1213
          %1230 = vst [vmem:[%s352 + $0x58] sm:$0xff] %v1214
          %1231 = vst [vmem:[%s352 + $0x60] sm:$0xff] %v1215
          %1232 = vst [vmem:[%s352 + $0x68] sm:$0xff] %v1216
          %1233 = vst [vmem:[%s352 + $0x70] sm:$0xff] %v1217
          %1234 = vst [vmem:[%s352 + $0x78] sm:$0xff] %v1218
        $region63: #{feature_matching_forward.14} parent=50 // pred_fallthru
          _
        %s1235 = smul.u32 8, %s21
        %s1236 = smul.u32 2, %s22
        %p1237 = scmp.lt.s32.totalorder %s20, 1
        %s1238 = scalar_select %p1237, %s20, 1
        %p1239 = scmp.lt.s32.totalorder %s1235, 7
        %s1240 = scalar_select %p1239, %s1235, 7
        %p1241 = scmp.lt.s32.totalorder %s1236, 1
        %s1242 = scalar_select %p1241, %s1236, 1
        %s1243 = smul.addr %s1240, 2
        %s1244 = sadd.s32 %s1242, %s1243
        %s1245 = smul.addr %s1238, 16
        %s1246 = sadd.s32 %s1244, %s1245
        %s1247 = smul.addr %s1246, 8
        %s1248 = scalar_lea.vmem %s3, %s1247
        // Predicated region
        $region64: #{feature_matching_forward.14} parent=50 // pred_check
          %p1249 = pneg %p146
        $region65: #{feature_matching_forward.14} parent=50 // pred_check_branch
          %1251 = sbr.rel (%p1249) target = $region67
        $region66: #{feature_matching_forward.14} parent=50 // pred_region
          %s1252 = smul.u32 8, %s21
          %s1253 = smul.u32 2, %s22
        $region67: #{feature_matching_forward.14} parent=50 // pred_fallthru
          _
      $region51: #{feature_matching_forward.14} parent=5 // pred_fallthru
        _
      %p1254 = scmp.le.s32.totalorder 2, %s9
      // Predicated region
      $region68: #{feature_matching_forward.14} parent=5 // pred_check
        %p1255 = pneg %p1254
      $region69: #{feature_matching_forward.14} parent=5 // pred_check_branch
        %1257 = sbr.rel (%p1255) target = $region71
      $region70: #{feature_matching_forward.14} parent=5 // pred_region
        %s1258 = ssub.s32 %s9, 2
        // Predicated region
        $region72: #{feature_matching_forward.14} parent=70 // pred_check
          %p1259 = pneg %p152
        $region73: #{feature_matching_forward.14} parent=70 // pred_check_branch
          %1261 = sbr.rel (%p1259) target = $region75
        $region74: #{feature_matching_forward.14} parent=70 // pred_region
          %s1262 = smul.u32 8, %s25
          %s1263 = smul.u32 2, %s26
          %p1264 = scmp.lt.s32.totalorder %s24, 1
          %s1265 = scalar_select %p1264, %s24, 1
          %p1266 = scmp.lt.s32.totalorder %s1262, 7
          %s1267 = scalar_select %p1266, %s1262, 7
          %p1268 = scmp.lt.s32.totalorder %s1263, 1
          %s1269 = scalar_select %p1268, %s1263, 1
          %s1270 = smul.addr %s1267, 2
          %s1271 = sadd.s32 %s1269, %s1270
          %s1272 = smul.addr %s1265, 16
          %s1273 = sadd.s32 %s1271, %s1272
          %s1274 = smul.addr %s1273, 8
          %s1275 = scalar_lea.vmem %s3, %s1274
        $region75: #{feature_matching_forward.14} parent=70 // pred_fallthru
          _
      $region71: #{feature_matching_forward.14} parent=5 // pred_fallthru
        _
    $region6: #{feature_matching_forward.14} parent=1 // loop_footer
      %s13 = sadd.s32 1, %s9
    $region7: #{feature_matching_forward.14} parent=1 // loop_footer_branch
      %8 = sbr.rel target = $region3
    $region8: #{feature_matching_forward.14} parent=1 // loop_exit
      _

// kernel: feature_matching_forward.15
$region0: #{feature_matching_forward.15}
  #allocation0 [shape = 'u32[]', space=smem, size = 0x4, offset = 0x4, fixed_abs, tag = 'smem constant byte address 0x4 - core index']
  #allocation1 [shape = 'u32[72,128]{1,0:T(1,128)}', space=vmem, size = 0x9000, scoped, tag = 'internal scratch']
  #allocation2 [shape = 'f32[128,128]{1,0:T(8,128)}', space=vmem, size = 0x10000, scoped, tag = 'scratch operand']
  %s0 = inlined_call_operand.vmem [shape: bf16[128,1024], index: 0, kind: input, shape index: {}]
  %s1 = inlined_call_operand.vmem [shape: bf16[2,1024,128], index: 1, kind: input, shape index: {}]
  %s2 = inlined_call_operand.vmem [shape: f32[128,1], index: 2, kind: input, shape index: {}]
  %s3 = inlined_call_operand.vmem [shape: f32[2,128,128], index: 3, kind: output, shape index: {}]
  %s4 = sld [smem:[#allocation0]]
  $region76: #{feature_matching_forward.15} parent=0
    _
  %s6 = ssub.s32 1, %s4
  %s7 = scalar_select 0, %s6, %s4
  $region1: #{feature_matching_forward.15} parent=0
    #allocation3 [shape = 'u8[262144]{0}', space=vmem, size = 0x40000, scoped, tag = 'input window, operand 0']
    loop: start=0, step=1, limit=6
    $region2: #{feature_matching_forward.15} parent=1 // loop_pre_header
      _
    $region3: #{feature_matching_forward.15} parent=1 // loop_header
      %s9 = sphi 0, %s13
      %p10 = scmp.ge.s32.totalorder %s9, 6
      %s16 = sphi 0, %s42
      %s17 = sphi 0, %s38
      %s18 = sphi 0, %s34
      %s19 = sphi 0, %s30
      %s20 = sphi 0, %s16
      %s21 = sphi 0, %s17
      %s22 = sphi 0, %s18
      %s23 = sphi 0, %s19
      %s24 = sphi 0, %s20
      %s25 = sphi 0, %s21
      %s26 = sphi 0, %s22
      %s27 = sphi 0, %s23
      %s47 = sphi 0, %s49
      %s50 = sphi 0, %s47
      %s51 = sphi 0, %s50
      %s67 = sphi 0, %s51
      %s77 = sphi 0, %s79
      %s80 = sphi 0, %s77
      %s81 = sphi 0, %s80
      %s97 = sphi 0, %s81
      %s103 = sphi 0, %s105
      %s106 = sphi 0, %s103
      %s107 = sphi 0, %s106
      %s123 = sphi 0, %s107
      %s133 = sphi 0, %s135
      %s136 = sphi 0, %s133
      %s137 = sphi 0, %s136
      %s153 = sphi 0, %s137
    $region4: #{feature_matching_forward.15} parent=1 // loop_header_branch
      %12 = sbr.rel (%p10) target = $region8
    $region5: #{feature_matching_forward.15} parent=1 // loop_body
      %s14 = ssub.s32 %s9, 1
      %s15 = ssub.s32 %s9, 2
      %s28 = sadd.s32 1, %s19
      %p29 = scmp.ge.s32.totalorder %s28, 2
      %s30 = scalar_select %p29, 0, %s28
      %s31 = sadd.s32 1, %s18
      %s32 = scalar_select %p29, %s31, %s18
      %p33 = scmp.ge.s32.totalorder %s32, 1
      %s34 = scalar_select %p33, 0, %s32
      %s35 = sadd.s32 1, %s17
      %s36 = scalar_select %p33, %s35, %s17
      %p37 = scmp.ge.s32.totalorder %s36, 1
      %s38 = scalar_select %p37, 0, %s36
      %s39 = sadd.s32 1, %s16
      %s40 = scalar_select %p37, %s39, %s16
      %p41 = scmp.ge.s32.totalorder %s40, 2
      %s42 = scalar_select %p41, 0, %s40
      %s43 = ssub.s32 %s17, %s38
      %s44 = ssub.s32 %s19, %s30
      %s45 = sor.u32 %s43, %s44
      %p46 = scmp.eq.s32.totalorder %s45, 0
      %s48 = sadd.s32 %s47, 1
      %s49 = scalar_select %p46, %s47, %s48
      %p52 = pneg %p46
      %p53 = scmp.eq.s32.totalorder %s9, 3
      %p54 = por %p52, %p53
      %p55 = scmp.ne.s32.totalorder %s47, %s50
      %p56 = scmp.eq.s32.totalorder %s9, 0
      %p57 = por %p55, %p56
      %p58 = scmp.ne.s32.totalorder %s47, %s50
      %p59 = scmp.eq.s32.totalorder %s14, 3
      %p60 = por %p58, %p59
      %p61 = scmp.ne.s32.totalorder %s50, %s51
      %p62 = scmp.eq.s32.totalorder %s14, 0
      %p63 = por %p61, %p62
      %p64 = scmp.ne.s32.totalorder %s50, %s51
      %p65 = scmp.eq.s32.totalorder %s15, 3
      %p66 = por %p64, %p65
      %p68 = scmp.ne.s32.totalorder %s51, %s67
      %p69 = scmp.eq.s32.totalorder %s15, 0
      %p70 = por %p68, %p69
      %s71 = ssub.s32 %s16, %s42
      %s72 = ssub.s32 %s19, %s30
      %s73 = sor.u32 %s71, %s72
      %s74 = ssub.s32 %s18, %s34
      %s75 = sor.u32 %s73, %s74
      %p76 = scmp.eq.s32.totalorder %s75, 0
      %s78 = sadd.s32 %s77, 1
      %s79 = scalar_select %p76, %s77, %s78
      %p82 = pneg %p76
      %p83 = scmp.eq.s32.totalorder %s9, 3
      %p84 = por %p82, %p83
      %p85 = scmp.ne.s32.totalorder %s77, %s80
      %p86 = scmp.eq.s32.totalorder %s9, 0
      %p87 = por %p85, %p86
      %p88 = scmp.ne.s32.totalorder %s77, %s80
      %p89 = scmp.eq.s32.totalorder %s14, 3
      %p90 = por %p88, %p89
      %p91 = scmp.ne.s32.totalorder %s80, %s81
      %p92 = scmp.eq.s32.totalorder %s14, 0
      %p93 = por %p91, %p92
      %p94 = scmp.ne.s32.totalorder %s80, %s81
      %p95 = scmp.eq.s32.totalorder %s15, 3
      %p96 = por %p94, %p95
      %p98 = scmp.ne.s32.totalorder %s81, %s97
      %p99 = scmp.eq.s32.totalorder %s15, 0
      %p100 = por %p98, %p99
      %s101 = ssub.s32 %s17, %s38
      %p102 = scmp.eq.s32.totalorder %s101, 0
      %s104 = sadd.s32 %s103, 1
      %s105 = scalar_select %p102, %s103, %s104
      %p108 = pneg %p102
      %p109 = scmp.eq.s32.totalorder %s9, 3
      %p110 = por %p108, %p109
      %p111 = scmp.ne.s32.totalorder %s103, %s106
      %p112 = scmp.eq.s32.totalorder %s9, 0
      %p113 = por %p111, %p112
      %p114 = scmp.ne.s32.totalorder %s103, %s106
      %p115 = scmp.eq.s32.totalorder %s14, 3
      %p116 = por %p114, %p115
      %p117 = scmp.ne.s32.totalorder %s106, %s107
      %p118 = scmp.eq.s32.totalorder %s14, 0
      %p119 = por %p117, %p118
      %p120 = scmp.ne.s32.totalorder %s106, %s107
      %p121 = scmp.eq.s32.totalorder %s15, 3
      %p122 = por %p120, %p121
      %p124 = scmp.ne.s32.totalorder %s107, %s123
      %p125 = scmp.eq.s32.totalorder %s15, 0
      %p126 = por %p124, %p125
      %s127 = ssub.s32 %s16, %s42
      %s128 = ssub.s32 %s17, %s38
      %s129 = sor.u32 %s127, %s128
      %s130 = ssub.s32 %s18, %s34
      %s131 = sor.u32 %s129, %s130
      %p132 = scmp.eq.s32.totalorder %s131, 0
      %s134 = sadd.s32 %s133, 1
      %s135 = scalar_select %p132, %s133, %s134
      %p138 = pneg %p132
      %p139 = scmp.eq.s32.totalorder %s9, 3
      %p140 = por %p138, %p139
      %p141 = scmp.ne.s32.totalorder %s133, %s136
      %p142 = scmp.eq.s32.totalorder %s9, 0
      %p143 = por %p141, %p142
      %p144 = scmp.ne.s32.totalorder %s133, %s136
      %p145 = scmp.eq.s32.totalorder %s14, 3
      %p146 = por %p144, %p145
      %p147 = scmp.ne.s32.totalorder %s136, %s137
      %p148 = scmp.eq.s32.totalorder %s14, 0
      %p149 = por %p147, %p148
      %p150 = scmp.ne.s32.totalorder %s136, %s137
      %p151 = scmp.eq.s32.totalorder %s15, 3
      %p152 = por %p150, %p151
      %p154 = scmp.ne.s32.totalorder %s137, %s153
      %p155 = scmp.eq.s32.totalorder %s15, 0
      %p156 = por %p154, %p155
      %p157 = scmp.le.s32.totalorder 1, %s9
      %p158 = scmp.lt.s32.totalorder %s9, 5
      %p159 = pnand %p157, %p158
      %p160 = pneg %p159
      // Predicated region
      $region9: #{feature_matching_forward.15} parent=5 // pred_check
        _
      $region10: #{feature_matching_forward.15} parent=5 // pred_check_branch
        %162 = sbr.rel (%p159) target = $region12
      $region11: #{feature_matching_forward.15} parent=5 // pred_region
        %s163 = ssub.s32 %s9, 1
        // Predicated region
        $region13: #{feature_matching_forward.15} parent=11 // pred_check
          %p164 = pneg %p119
        $region14: #{feature_matching_forward.15} parent=11 // pred_check_branch
          %166 = sbr.rel (%p164) target = $region16
        $region15: #{feature_matching_forward.15} parent=11 // pred_region
          %s167 = smul.u32 16, %s21
          %p168 = scmp.lt.s32.totalorder %s167, 15
          %s169 = scalar_select %p168, %s167, 15
          %s170 = smul.addr %s169, 8
          %s171 = scalar_lea.vmem %s2, %s170
          %s172 = smul.u32 16, %s21
        $region16: #{feature_matching_forward.15} parent=11 // pred_fallthru
          _
      $region12: #{feature_matching_forward.15} parent=5 // pred_fallthru
        _
      %p173 = scmp.lt.s32.totalorder %s9, 4
      // Predicated region
      $region17: #{feature_matching_forward.15} parent=5 // pred_check
        %p174 = pneg %p173
      $region18: #{feature_matching_forward.15} parent=5 // pred_check_branch
        %176 = sbr.rel (%p174) target = $region20
      $region19: #{feature_matching_forward.15} parent=5 // pred_region
        // Predicated region
        $region21: #{feature_matching_forward.15} parent=19 // pred_check
          %p177 = pneg %p57
        $region22: #{feature_matching_forward.15} parent=19 // pred_check_branch
          %179 = sbr.rel (%p177) target = $region24
        $region23: #{feature_matching_forward.15} parent=19 // pred_region
          %s180 = sand.u32 %s47, 1
          %s181 = sand.u32 %s47, 1
          %s182 = smul.addr %s181, 256
          %s183 = scalar_lea.vmem [#allocation3], %s182
          %s184 = smul.u32 16, %s17
          %s185 = smul.u32 4, %s19
          %s186 = smul.addr %s184, 8
          %s187 = sadd.s32 %s185, %s186
          %s188 = smul.addr %s187, 4
          %s189 = scalar_lea.vmem %s0, %s188
          // Predicated region
          $region25: #{feature_matching_forward.15} parent=23 // pred_check
            _
          $region26: #{feature_matching_forward.15} parent=23 // pred_check_branch
            %191 = sbr.rel (0) target = $region28
          $region27: #{feature_matching_forward.15} parent=23 // pred_region
            // Predicated region
            $region29: #{feature_matching_forward.15} parent=27 // pred_check
              _
            $region30: #{feature_matching_forward.15} parent=27 // pred_check_branch
              %193 = sbr.rel (0) target = $region32
            $region31: #{feature_matching_forward.15} parent=27 // pred_region
              loop: start=0, step=1, limit=1
              $region33: #{feature_matching_forward.15} parent=31 // loop_pre_header
                _
              $region34: #{feature_matching_forward.15} parent=31 // loop_header
                %s195 = sphi 0, %s199
                %p196 = scmp.ge.s32.totalorder %s195, 1
                %s200 = sphi %s189, %s189
                %s201 = sphi %s183, %s183
              $region35: #{feature_matching_forward.15} parent=31 // loop_header_branch
                %198 = sbr.rel (%p196) target = $region39
              $region36: #{feature_matching_forward.15} parent=31 // loop_body
                %v202 = vld [vmem:[%s200] sm:$0xff]
                %203 = vst [vmem:[%s201] sm:$0xff] %v202
                %v204 = vld [vmem:[%s200 + $0x8] sm:$0xff]
                %205 = vst [vmem:[%s201 + $0x8] sm:$0xff] %v204
                %v206 = vld [vmem:[%s200 + $0x20] sm:$0xff]
                %207 = vst [vmem:[%s201 + $0x10] sm:$0xff] %v206
                %v208 = vld [vmem:[%s200 + $0x28] sm:$0xff]
                %209 = vst [vmem:[%s201 + $0x18] sm:$0xff] %v208
                %v210 = vld [vmem:[%s200 + $0x40] sm:$0xff]
                %211 = vst [vmem:[%s201 + $0x20] sm:$0xff] %v210
                %v212 = vld [vmem:[%s200 + $0x48] sm:$0xff]
                %213 = vst [vmem:[%s201 + $0x28] sm:$0xff] %v212
                %v214 = vld [vmem:[%s200 + $0x60] sm:$0xff]
                %215 = vst [vmem:[%s201 + $0x30] sm:$0xff] %v214
                %v216 = vld [vmem:[%s200 + $0x68] sm:$0xff]
                %217 = vst [vmem:[%s201 + $0x38] sm:$0xff] %v216
                %v218 = vld [vmem:[%s200 + $0x80] sm:$0xff]
                %219 = vst [vmem:[%s201 + $0x40] sm:$0xff] %v218
                %v220 = vld [vmem:[%s200 + $0x88] sm:$0xff]
                %221 = vst [vmem:[%s201 + $0x48] sm:$0xff] %v220
                %v222 = vld [vmem:[%s200 + $0xa0] sm:$0xff]
                %223 = vst [vmem:[%s201 + $0x50] sm:$0xff] %v222
                %v224 = vld [vmem:[%s200 + $0xa8] sm:$0xff]
                %225 = vst [vmem:[%s201 + $0x58] sm:$0xff] %v224
                %v226 = vld [vmem:[%s200 + $0xc0] sm:$0xff]
                %227 = vst [vmem:[%s201 + $0x60] sm:$0xff] %v226
                %v228 = vld [vmem:[%s200 + $0xc8] sm:$0xff]
                %229 = vst [vmem:[%s201 + $0x68] sm:$0xff] %v228
                %v230 = vld [vmem:[%s200 + $0xe0] sm:$0xff]
                %231 = vst [vmem:[%s201 + $0x70] sm:$0xff] %v230
                %v232 = vld [vmem:[%s200 + $0xe8] sm:$0xff]
                %233 = vst [vmem:[%s201 + $0x78] sm:$0xff] %v232
                %v234 = vld [vmem:[%s200 + $0x100] sm:$0xff]
                %235 = vst [vmem:[%s201 + $0x80] sm:$0xff] %v234
                %v236 = vld [vmem:[%s200 + $0x108] sm:$0xff]
                %237 = vst [vmem:[%s201 + $0x88] sm:$0xff] %v236
                %v238 = vld [vmem:[%s200 + $0x120] sm:$0xff]
                %239 = vst [vmem:[%s201 + $0x90] sm:$0xff] %v238
                %v240 = vld [vmem:[%s200 + $0x128] sm:$0xff]
                %241 = vst [vmem:[%s201 + $0x98] sm:$0xff] %v240
                %v242 = vld [vmem:[%s200 + $0x140] sm:$0xff]
                %243 = vst [vmem:[%s201 + $0xa0] sm:$0xff] %v242
                %v244 = vld [vmem:[%s200 + $0x148] sm:$0xff]
                %245 = vst [vmem:[%s201 + $0xa8] sm:$0xff] %v244
                %v246 = vld [vmem:[%s200 + $0x160] sm:$0xff]
                %247 = vst [vmem:[%s201 + $0xb0] sm:$0xff] %v246
                %v248 = vld [vmem:[%s200 + $0x168] sm:$0xff]
                %249 = vst [vmem:[%s201 + $0xb8] sm:$0xff] %v248
                %v250 = vld [vmem:[%s200 + $0x180] sm:$0xff]
                %251 = vst [vmem:[%s201 + $0xc0] sm:$0xff] %v250
                %v252 = vld [vmem:[%s200 + $0x188] sm:$0xff]
                %253 = vst [vmem:[%s201 + $0xc8] sm:$0xff] %v252
                %v254 = vld [vmem:[%s200 + $0x1a0] sm:$0xff]
                %255 = vst [vmem:[%s201 + $0xd0] sm:$0xff] %v254
                %v256 = vld [vmem:[%s200 + $0x1a8] sm:$0xff]
                %257 = vst [vmem:[%s201 + $0xd8] sm:$0xff] %v256
                %v258 = vld [vmem:[%s200 + $0x1c0] sm:$0xff]
                %259 = vst [vmem:[%s201 + $0xe0] sm:$0xff] %v258
                %v260 = vld [vmem:[%s200 + $0x1c8] sm:$0xff]
                %261 = vst [vmem:[%s201 + $0xe8] sm:$0xff] %v260
                %v262 = vld [vmem:[%s200 + $0x1e0] sm:$0xff]
                %263 = vst [vmem:[%s201 + $0xf0] sm:$0xff] %v262
                %v264 = vld [vmem:[%s200 + $0x1e8] sm:$0xff]
                %265 = vst [vmem:[%s201 + $0xf8] sm:$0xff] %v264
              $region37: #{feature_matching_forward.15} parent=31 // loop_footer
                %s199 = sadd.s32 1, %s195
              $region38: #{feature_matching_forward.15} parent=31 // loop_footer_branch
                %194 = sbr.rel target = $region34
              $region39: #{feature_matching_forward.15} parent=31 // loop_exit
                _
            $region32: #{feature_matching_forward.15} parent=27 // pred_fallthru
              _
            // Predicated region
            $region40: #{feature_matching_forward.15} parent=27 // pred_check
              _
            $region41: #{feature_matching_forward.15} parent=27 // pred_check_branch
              %267 = sbr.rel target = $region43
            $region42: #{feature_matching_forward.15} parent=27 // pred_region
              _
            $region43: #{feature_matching_forward.15} parent=27 // pred_fallthru
              _
          $region28: #{feature_matching_forward.15} parent=23 // pred_fallthru
            _
          %268 = vnop
        $region24: #{feature_matching_forward.15} parent=19 // pred_fallthru
          _
        // Predicated region
        $region44: #{feature_matching_forward.15} parent=19 // pred_check
          %p269 = pneg %p87
        $region45: #{feature_matching_forward.15} parent=19 // pred_check_branch
          %271 = sbr.rel (%p269) target = $region47
        $region46: #{feature_matching_forward.15} parent=19 // pred_region
          %s272 = smul.u32 64, %s19
          %p273 = scmp.lt.s32.totalorder %s16, 1
          %s274 = scalar_select %p273, %s16, 1
          %p275 = scmp.lt.s32.totalorder %s272, 127
          %s276 = scalar_select %p275, %s272, 127
          %p277 = scmp.lt.s32.totalorder %s18, 0
          %s278 = scalar_select %p277, %s18, 0
          %s279 = sadd.s32 %s278, %s276
          %s280 = smul.addr %s274, 128
          %s281 = sadd.s32 %s279, %s280
          %s282 = smul.addr %s281, 4
          %s283 = scalar_lea.vmem %s1, %s282
          %s284 = smul.u32 64, %s19
        $region47: #{feature_matching_forward.15} parent=19 // pred_fallthru
          _
      $region20: #{feature_matching_forward.15} parent=5 // pred_fallthru
        _
      %p285 = scmp.le.s32.totalorder 1, %s9
      %p286 = scmp.lt.s32.totalorder %s9, 5
      %p287 = pnand %p285, %p286
      %p288 = pneg %p287
      // Predicated region
      $region48: #{feature_matching_forward.15} parent=5 // pred_check
        _
      $region49: #{feature_matching_forward.15} parent=5 // pred_check_branch
        %290 = sbr.rel (%p287) target = $region51
      $region50: #{feature_matching_forward.15} parent=5 // pred_region
        %s291 = ssub.s32 %s9, 1
        %s292 = sand.u32 %s50, 1
        %s293 = sand.u32 %s50, 1
        %s294 = smul.addr %s293, 256
        %s295 = scalar_lea.vmem [#allocation3], %s294
        // Predicated region
        $region52: #{feature_matching_forward.15} parent=50 // pred_check
          %p296 = pneg %p63
        $region53: #{feature_matching_forward.15} parent=50 // pred_check_branch
          %298 = sbr.rel (%p296) target = $region55
        $region54: #{feature_matching_forward.15} parent=50 // pred_region
          _
        $region55: #{feature_matching_forward.15} parent=50 // pred_fallthru
          _
        %s299 = sand.u32 %s50, 1
        %s300 = sand.u32 %s50, 1
        %s301 = smul.addr %s300, 256
        %s302 = scalar_lea.vmem [#allocation3], %s301
        %p303 = pneg %p63
        %p304 = pneg %p60
        %s305 = smul.u32 64, %s23
        %p306 = scmp.lt.s32.totalorder %s20, 1
        %s307 = scalar_select %p306, %s20, 1
        %p308 = scmp.lt.s32.totalorder %s305, 127
        %s309 = scalar_select %p308, %s305, 127
        %p310 = scmp.lt.s32.totalorder %s22, 0
        %s311 = scalar_select %p310, %s22, 0
        %s312 = sadd.s32 %s311, %s309
        %s313 = smul.addr %s307, 128
        %s314 = sadd.s32 %s312, %s313
        %s315 = smul.addr %s314, 4
        %s316 = scalar_lea.vmem %s1, %s315
        %p317 = pneg %p93
        %p318 = pneg %p90
        %s319 = smul.u32 16, %s21
        %p320 = scmp.lt.s32.totalorder %s319, 15
        %s321 = scalar_select %p320, %s319, 15
        %s322 = smul.addr %s321, 8
        %s323 = scalar_lea.vmem %s2, %s322
        %p324 = pneg %p119
        %p325 = pneg %p116
        %p326 = pneg %p149
        %p327 = pneg %p146
        %s328 = smul.u32 16, %s21
        %p329 = scmp.lt.s32.totalorder %s20, 1
        %s330 = scalar_select %p329, %s20, 1
        %p331 = scmp.lt.s32.totalorder %s328, 15
        %s332 = scalar_select %p331, %s328, 15
        %p333 = scmp.lt.s32.totalorder %s22, 0
        %s334 = scalar_select %p333, %s22, 0
        %s335 = sadd.s32 %s334, %s332
        %s336 = smul.addr %s330, 16
        %s337 = sadd.s32 %s335, %s336
        %s338 = smul.addr %s337, 8
        %s339 = scalar_lea.vmem %s3, %s338
        %s340 = smul.u32 16, %s21
        %s341 = smul.u32 4, %s23
        %s342 = smul.u32 64, %s23
        %p343 = scmp.lt.s32.totalorder %s20, 1
        %s344 = scalar_select %p343, %s20, 1
        %p345 = scmp.lt.s32.totalorder %s342, 127
        %s346 = scalar_select %p345, %s342, 127
        %p347 = scmp.lt.s32.totalorder %s22, 0
        %s348 = scalar_select %p347, %s22, 0
        %s349 = sadd.s32 %s348, %s346
        %s350 = smul.addr %s344, 128
        %s351 = sadd.s32 %s349, %s350
        %s352 = smul.addr %s351, 4
        %s353 = scalar_lea.vmem %s1, %s352
        %s354 = smul.u32 64, %s23
        %s355 = smul.u32 16, %s21
        %p356 = scmp.lt.s32.totalorder %s355, 15
        %s357 = scalar_select %p356, %s355, 15
        %s358 = smul.addr %s357, 8
        %s359 = scalar_lea.vmem %s2, %s358
        %s360 = smul.u32 16, %s21
        %s361 = smul.u32 16, %s21
        %p362 = scmp.lt.s32.totalorder %s20, 1
        %s363 = scalar_select %p362, %s20, 1
        %p364 = scmp.lt.s32.totalorder %s361, 15
        %s365 = scalar_select %p364, %s361, 15
        %p366 = scmp.lt.s32.totalorder %s22, 0
        %s367 = scalar_select %p366, %s22, 0
        %s368 = sadd.s32 %s367, %s365
        %s369 = smul.addr %s363, 16
        %s370 = sadd.s32 %s368, %s369
        %s371 = smul.addr %s370, 8
        %s372 = scalar_lea.vmem %s3, %s371
        %s373 = smul.u32 16, %s21
        %p374 = scmp.eq.s32.totalorder %s23, 0
        // Predicated region
        $region56: #{feature_matching_forward.15} parent=50 // pred_check
          %p375 = pneg %p374
        $region57: #{feature_matching_forward.15} parent=50 // pred_check_branch
          %377 = sbr.rel (%p375) target = $region59
        $region58: #{feature_matching_forward.15} parent=50 // pred_region
          %378 = vst [vmem:[#allocation2] sm:$0xff] 0.0
          %379 = vst [vmem:[#allocation2 + $0x8] sm:$0xff] 0.0
          %380 = vst [vmem:[#allocation2 + $0x10] sm:$0xff] 0.0
          %381 = vst [vmem:[#allocation2 + $0x18] sm:$0xff] 0.0
          %382 = vst [vmem:[#allocation2 + $0x20] sm:$0xff] 0.0
          %383 = vst [vmem:[#allocation2 + $0x28] sm:$0xff] 0.0
          %384 = vst [vmem:[#allocation2 + $0x30] sm:$0xff] 0.0
          %385 = vst [vmem:[#allocation2 + $0x38] sm:$0xff] 0.0
          %386 = vst [vmem:[#allocation2 + $0x40] sm:$0xff] 0.0
          %387 = vst [vmem:[#allocation2 + $0x48] sm:$0xff] 0.0
          %388 = vst [vmem:[#allocation2 + $0x50] sm:$0xff] 0.0
          %389 = vst [vmem:[#allocation2 + $0x58] sm:$0xff] 0.0
          %390 = vst [vmem:[#allocation2 + $0x60] sm:$0xff] 0.0
          %391 = vst [vmem:[#allocation2 + $0x68] sm:$0xff] 0.0
          %392 = vst [vmem:[#allocation2 + $0x70] sm:$0xff] 0.0
          %393 = vst [vmem:[#allocation2 + $0x78] sm:$0xff] 0.0
        $region59: #{feature_matching_forward.15} parent=50 // pred_fallthru
          _
        %v394 = vld [vmem:[#allocation2] sm:$0xff]
        %v395 = vld [vmem:[#allocation2 + $0x8] sm:$0xff]
        %v396 = vld [vmem:[#allocation2 + $0x10] sm:$0xff]
        %v397 = vld [vmem:[#allocation2 + $0x18] sm:$0xff]
        %v398 = vld [vmem:[#allocation2 + $0x20] sm:$0xff]
        %v399 = vld [vmem:[#allocation2 + $0x28] sm:$0xff]
        %v400 = vld [vmem:[#allocation2 + $0x30] sm:$0xff]
        %v401 = vld [vmem:[#allocation2 + $0x38] sm:$0xff]
        %v402 = vld [vmem:[#allocation2 + $0x40] sm:$0xff]
        %v403 = vld [vmem:[#allocation2 + $0x48] sm:$0xff]
        %v404 = vld [vmem:[#allocation2 + $0x50] sm:$0xff]
        %v405 = vld [vmem:[#allocation2 + $0x58] sm:$0xff]
        %v406 = vld [vmem:[#allocation2 + $0x60] sm:$0xff]
        %v407 = vld [vmem:[#allocation2 + $0x68] sm:$0xff]
        %v408 = vld [vmem:[#allocation2 + $0x70] sm:$0xff]
        %v409 = vld [vmem:[#allocation2 + $0x78] sm:$0xff]
        %v410 = vld [vmem:[%s295] sm:$0xff]
        %v411 = vld [vmem:[%s295 + $0x8] sm:$0xff]
        %v412 = vld [vmem:[%s295 + $0x10] sm:$0xff]
        %v413 = vld [vmem:[%s295 + $0x18] sm:$0xff]
        %v414 = vld [vmem:[%s295 + $0x20] sm:$0xff]
        %v415 = vld [vmem:[%s295 + $0x28] sm:$0xff]
        %v416 = vld [vmem:[%s295 + $0x30] sm:$0xff]
        %v417 = vld [vmem:[%s295 + $0x38] sm:$0xff]
        %v418 = vld [vmem:[%s295 + $0x40] sm:$0xff]
        %v419 = vld [vmem:[%s295 + $0x48] sm:$0xff]
        %v420 = vld [vmem:[%s295 + $0x50] sm:$0xff]
        %v421 = vld [vmem:[%s295 + $0x58] sm:$0xff]
        %v422 = vld [vmem:[%s295 + $0x60] sm:$0xff]
        %v423 = vld [vmem:[%s295 + $0x68] sm:$0xff]
        %v424 = vld [vmem:[%s295 + $0x70] sm:$0xff]
        %v425 = vld [vmem:[%s295 + $0x78] sm:$0xff]
        %v426 = vld [vmem:[%s295 + $0x80] sm:$0xff]
        %v427 = vld [vmem:[%s295 + $0x88] sm:$0xff]
        %v428 = vld [vmem:[%s295 + $0x90] sm:$0xff]
        %v429 = vld [vmem:[%s295 + $0x98] sm:$0xff]
        %v430 = vld [vmem:[%s295 + $0xa0] sm:$0xff]
        %v431 = vld [vmem:[%s295 + $0xa8] sm:$0xff]
        %v432 = vld [vmem:[%s295 + $0xb0] sm:$0xff]
        %v433 = vld [vmem:[%s295 + $0xb8] sm:$0xff]
        %v434 = vld [vmem:[%s295 + $0xc0] sm:$0xff]
        %v435 = vld [vmem:[%s295 + $0xc8] sm:$0xff]
        %v436 = vld [vmem:[%s295 + $0xd0] sm:$0xff]
        %v437 = vld [vmem:[%s295 + $0xd8] sm:$0xff]
        %v438 = vld [vmem:[%s295 + $0xe0] sm:$0xff]
        %v439 = vld [vmem:[%s295 + $0xe8] sm:$0xff]
        %v440 = vld [vmem:[%s295 + $0xf0] sm:$0xff]
        %v441 = vld [vmem:[%s295 + $0xf8] sm:$0xff]
        %v442 = vld [vmem:[%s353] sm:$0xf]
        %v443 = vld [vmem:[%s353 + $0x4] sm:$0xf]
        %v444 = vld [vmem:[%s353 + $0x8] sm:$0xf]
        %v445 = vld [vmem:[%s353 + $0xc] sm:$0xf]
        %v446 = vld [vmem:[%s353 + $0x10] sm:$0xf]
        %v447 = vld [vmem:[%s353 + $0x14] sm:$0xf]
        %v448 = vld [vmem:[%s353 + $0x18] sm:$0xf]
        %v449 = vld [vmem:[%s353 + $0x1c] sm:$0xf]
        %v450 = vld [vmem:[%s353 + $0x20] sm:$0xf]
        %v451 = vld [vmem:[%s353 + $0x24] sm:$0xf]
        %v452 = vld [vmem:[%s353 + $0x28] sm:$0xf]
        %v453 = vld [vmem:[%s353 + $0x2c] sm:$0xf]
        %v454 = vld [vmem:[%s353 + $0x30] sm:$0xf]
        %v455 = vld [vmem:[%s353 + $0x34] sm:$0xf]
        %v456 = vld [vmem:[%s353 + $0x38] sm:$0xf]
        %v457 = vld [vmem:[%s353 + $0x3c] sm:$0xf]
        %v458 = vld [vmem:[%s353 + $0x40] sm:$0xf]
        %v459 = vld [vmem:[%s353 + $0x44] sm:$0xf]
        %v460 = vld [vmem:[%s353 + $0x48] sm:$0xf]
        %v461 = vld [vmem:[%s353 + $0x4c] sm:$0xf]
        %v462 = vld [vmem:[%s353 + $0x50] sm:$0xf]
        %v463 = vld [vmem:[%s353 + $0x54] sm:$0xf]
        %v464 = vld [vmem:[%s353 + $0x58] sm:$0xf]
        %v465 = vld [vmem:[%s353 + $0x5c] sm:$0xf]
        %v466 = vld [vmem:[%s353 + $0x60] sm:$0xf]
        %v467 = vld [vmem:[%s353 + $0x64] sm:$0xf]
        %v468 = vld [vmem:[%s353 + $0x68] sm:$0xf]
        %v469 = vld [vmem:[%s353 + $0x6c] sm:$0xf]
        %v470 = vld [vmem:[%s353 + $0x70] sm:$0xf]
        %v471 = vld [vmem:[%s353 + $0x74] sm:$0xf]
        %v472 = vld [vmem:[%s353 + $0x78] sm:$0xf]
        %v473 = vld [vmem:[%s353 + $0x7c] sm:$0xf]
        %v474 = vld [vmem:[%s353 + $0x80] sm:$0xf]
        %v475 = vld [vmem:[%s353 + $0x84] sm:$0xf]
        %v476 = vld [vmem:[%s353 + $0x88] sm:$0xf]
        %v477 = vld [vmem:[%s353 + $0x8c] sm:$0xf]
        %v478 = vld [vmem:[%s353 + $0x90] sm:$0xf]
        %v479 = vld [vmem:[%s353 + $0x94] sm:$0xf]
        %v480 = vld [vmem:[%s353 + $0x98] sm:$0xf]
        %v481 = vld [vmem:[%s353 + $0x9c] sm:$0xf]
        %v482 = vld [vmem:[%s353 + $0xa0] sm:$0xf]
        %v483 = vld [vmem:[%s353 + $0xa4] sm:$0xf]
        %v484 = vld [vmem:[%s353 + $0xa8] sm:$0xf]
        %v485 = vld [vmem:[%s353 + $0xac] sm:$0xf]
        %v486 = vld [vmem:[%s353 + $0xb0] sm:$0xf]
        %v487 = vld [vmem:[%s353 + $0xb4] sm:$0xf]
        %v488 = vld [vmem:[%s353 + $0xb8] sm:$0xf]
        %v489 = vld [vmem:[%s353 + $0xbc] sm:$0xf]
        %v490 = vld [vmem:[%s353 + $0xc0] sm:$0xf]
        %v491 = vld [vmem:[%s353 + $0xc4] sm:$0xf]
        %v492 = vld [vmem:[%s353 + $0xc8] sm:$0xf]
        %v493 = vld [vmem:[%s353 + $0xcc] sm:$0xf]
        %v494 = vld [vmem:[%s353 + $0xd0] sm:$0xf]
        %v495 = vld [vmem:[%s353 + $0xd4] sm:$0xf]
        %v496 = vld [vmem:[%s353 + $0xd8] sm:$0xf]
        %v497 = vld [vmem:[%s353 + $0xdc] sm:$0xf]
        %v498 = vld [vmem:[%s353 + $0xe0] sm:$0xf]
        %v499 = vld [vmem:[%s353 + $0xe4] sm:$0xf]
        %v500 = vld [vmem:[%s353 + $0xe8] sm:$0xf]
        %v501 = vld [vmem:[%s353 + $0xec] sm:$0xf]
        %v502 = vld [vmem:[%s353 + $0xf0] sm:$0xf]
        %v503 = vld [vmem:[%s353 + $0xf4] sm:$0xf]
        %v504 = vld [vmem:[%s353 + $0xf8] sm:$0xf]
        %v505 = vld [vmem:[%s353 + $0xfc] sm:$0xf]
        %v538 = vunpack.c.l.b16 %v410
        %v539 = vunpack.c.h.b16 %v410
        %v540 = vunpack.c.l.b16 %v411
        %v541 = vunpack.c.h.b16 %v411
        %v542 = vunpack.c.l.b16 %v412
        %v543 = vunpack.c.h.b16 %v412
        %v544 = vunpack.c.l.b16 %v413
        %v545 = vunpack.c.h.b16 %v413
        %v546 = vunpack.c.l.b16 %v414
        %v547 = vunpack.c.h.b16 %v414
        %v548 = vunpack.c.l.b16 %v415
        %v549 = vunpack.c.h.b16 %v415
        %v550 = vunpack.c.l.b16 %v416
        %v551 = vunpack.c.h.b16 %v416
        %v552 = vunpack.c.l.b16 %v417
        %v553 = vunpack.c.h.b16 %v417
        %v554 = vunpack.c.l.b16 %v418
        %v555 = vunpack.c.h.b16 %v418
        %v556 = vunpack.c.l.b16 %v419
        %v557 = vunpack.c.h.b16 %v419
        %v558 = vunpack.c.l.b16 %v420
        %v559 = vunpack.c.h.b16 %v420
        %v560 = vunpack.c.l.b16 %v421
        %v561 = vunpack.c.h.b16 %v421
        %v562 = vunpack.c.l.b16 %v422
        %v563 = vunpack.c.h.b16 %v422
        %v564 = vunpack.c.l.b16 %v423
        %v565 = vunpack.c.h.b16 %v423
        %v566 = vunpack.c.l.b16 %v424
        %v567 = vunpack.c.h.b16 %v424
        %v568 = vunpack.c.l.b16 %v425
        %v569 = vunpack.c.h.b16 %v425
        %v570 = vunpack.c.l.b16 %v426
        %v571 = vunpack.c.h.b16 %v426
        %v572 = vunpack.c.l.b16 %v427
        %v573 = vunpack.c.h.b16 %v427
        %v574 = vunpack.c.l.b16 %v428
        %v575 = vunpack.c.h.b16 %v428
        %v576 = vunpack.c.l.b16 %v429
        %v577 = vunpack.c.h.b16 %v429
        %v578 = vunpack.c.l.b16 %v430
        %v579 = vunpack.c.h.b16 %v430
        %v580 = vunpack.c.l.b16 %v431
        %v581 = vunpack.c.h.b16 %v431
        %v582 = vunpack.c.l.b16 %v432
        %v583 = vunpack.c.h.b16 %v432
        %v584 = vunpack.c.l.b16 %v433
        %v585 = vunpack.c.h.b16 %v433
        %v586 = vunpack.c.l.b16 %v434
        %v587 = vunpack.c.h.b16 %v434
        %v588 = vunpack.c.l.b16 %v435
        %v589 = vunpack.c.h.b16 %v435
        %v590 = vunpack.c.l.b16 %v436
        %v591 = vunpack.c.h.b16 %v436
        %v592 = vunpack.c.l.b16 %v437
        %v593 = vunpack.c.h.b16 %v437
        %v594 = vunpack.c.l.b16 %v438
        %v595 = vunpack.c.h.b16 %v438
        %v596 = vunpack.c.l.b16 %v439
        %v597 = vunpack.c.h.b16 %v439
        %v598 = vunpack.c.l.b16 %v440
        %v599 = vunpack.c.h.b16 %v440
        %v600 = vunpack.c.l.b16 %v441
        %v601 = vunpack.c.h.b16 %v441
        %v602 = vpack.c.b16 %v542, %v538
        %v603 = vpack.c.b16 %v543, %v539
        %v604 = vpack.c.b16 %v544, %v540
        %v605 = vpack.c.b16 %v545, %v541
        %v606 = vpack.c.b16 %v550, %v546
        %v607 = vpack.c.b16 %v551, %v547
        %v608 = vpack.c.b16 %v552, %v548
        %v609 = vpack.c.b16 %v553, %v549
        %v610 = vpack.c.b16 %v558, %v554
        %v611 = vpack.c.b16 %v559, %v555
        %v612 = vpack.c.b16 %v560, %v556
        %v613 = vpack.c.b16 %v561, %v557
        %v614 = vpack.c.b16 %v566, %v562
        %v615 = vpack.c.b16 %v567, %v563
        %v616 = vpack.c.b16 %v568, %v564
        %v617 = vpack.c.b16 %v569, %v565
        %v618 = vpack.c.b16 %v574, %v570
        %v619 = vpack.c.b16 %v575, %v571
        %v620 = vpack.c.b16 %v576, %v572
        %v621 = vpack.c.b16 %v577, %v573
        %v622 = vpack.c.b16 %v582, %v578
        %v623 = vpack.c.b16 %v583, %v579
        %v624 = vpack.c.b16 %v584, %v580
        %v625 = vpack.c.b16 %v585, %v581
        %v626 = vpack.c.b16 %v590, %v586
        %v627 = vpack.c.b16 %v591, %v587
        %v628 = vpack.c.b16 %v592, %v588
        %v629 = vpack.c.b16 %v593, %v589
        %v630 = vpack.c.b16 %v598, %v594
        %v631 = vpack.c.b16 %v599, %v595
        %v632 = vpack.c.b16 %v600, %v596
        %v633 = vpack.c.b16 %v601, %v597
        %v730 = vunpack.c.l.b16 %v442
        %v731 = vunpack.c.l.b16 %v443
        %v732 = vunpack.c.l.b16 %v444
        %v733 = vunpack.c.l.b16 %v445
        %v734 = vunpack.c.l.b16 %v446
        %v735 = vunpack.c.l.b16 %v447
        %v736 = vunpack.c.l.b16 %v448
        %v737 = vunpack.c.l.b16 %v449
        %v738 = vunpack.c.l.b16 %v450
        %v739 = vunpack.c.l.b16 %v451
        %v740 = vunpack.c.l.b16 %v452
        %v741 = vunpack.c.l.b16 %v453
        %v742 = vunpack.c.l.b16 %v454
        %v743 = vunpack.c.l.b16 %v455
        %v744 = vunpack.c.l.b16 %v456
        %v745 = vunpack.c.l.b16 %v457
        %v746 = vunpack.c.l.b16 %v458
        %v747 = vunpack.c.l.b16 %v459
        %v748 = vunpack.c.l.b16 %v460
        %v749 = vunpack.c.l.b16 %v461
        %v750 = vunpack.c.l.b16 %v462
        %v751 = vunpack.c.l.b16 %v463
        %v752 = vunpack.c.l.b16 %v464
        %v753 = vunpack.c.l.b16 %v465
        %v754 = vunpack.c.l.b16 %v466
        %v755 = vunpack.c.l.b16 %v467
        %v756 = vunpack.c.l.b16 %v468
        %v757 = vunpack.c.l.b16 %v469
        %v758 = vunpack.c.l.b16 %v470
        %v759 = vunpack.c.l.b16 %v471
        %v760 = vunpack.c.l.b16 %v472
        %v761 = vunpack.c.l.b16 %v473
        %v762 = vunpack.c.l.b16 %v474
        %v763 = vunpack.c.l.b16 %v475
        %v764 = vunpack.c.l.b16 %v476
        %v765 = vunpack.c.l.b16 %v477
        %v766 = vunpack.c.l.b16 %v478
        %v767 = vunpack.c.l.b16 %v479
        %v768 = vunpack.c.l.b16 %v480
        %v769 = vunpack.c.l.b16 %v481
        %v770 = vunpack.c.l.b16 %v482
        %v771 = vunpack.c.l.b16 %v483
        %v772 = vunpack.c.l.b16 %v484
        %v773 = vunpack.c.l.b16 %v485
        %v774 = vunpack.c.l.b16 %v486
        %v775 = vunpack.c.l.b16 %v487
        %v776 = vunpack.c.l.b16 %v488
        %v777 = vunpack.c.l.b16 %v489
        %v778 = vunpack.c.l.b16 %v490
        %v779 = vunpack.c.l.b16 %v491
        %v780 = vunpack.c.l.b16 %v492
        %v781 = vunpack.c.l.b16 %v493
        %v782 = vunpack.c.l.b16 %v494
        %v783 = vunpack.c.l.b16 %v495
        %v784 = vunpack.c.l.b16 %v496
        %v785 = vunpack.c.l.b16 %v497
        %v786 = vunpack.c.l.b16 %v498
        %v787 = vunpack.c.l.b16 %v499
        %v788 = vunpack.c.l.b16 %v500
        %v789 = vunpack.c.l.b16 %v501
        %v790 = vunpack.c.l.b16 %v502
        %v791 = vunpack.c.l.b16 %v503
        %v792 = vunpack.c.l.b16 %v504
        %v793 = vunpack.c.l.b16 %v505
        %v794 = vpack.c.b16 %v731, %v730
        %v795 = vpack.c.b16 %v733, %v732
        %v796 = vpack.c.b16 %v735, %v734
        %v797 = vpack.c.b16 %v737, %v736
        %v798 = vpack.c.b16 %v739, %v738
        %v799 = vpack.c.b16 %v741, %v740
        %v800 = vpack.c.b16 %v743, %v742
        %v801 = vpack.c.b16 %v745, %v744
        %v802 = vpack.c.b16 %v747, %v746
        %v803 = vpack.c.b16 %v749, %v748
        %v804 = vpack.c.b16 %v751, %v750
        %v805 = vpack.c.b16 %v753, %v752
        %v806 = vpack.c.b16 %v755, %v754
        %v807 = vpack.c.b16 %v757, %v756
        %v808 = vpack.c.b16 %v759, %v758
        %v809 = vpack.c.b16 %v761, %v760
        %v810 = vpack.c.b16 %v763, %v762
        %v811 = vpack.c.b16 %v765, %v764
        %v812 = vpack.c.b16 %v767, %v766
        %v813 = vpack.c.b16 %v769, %v768
        %v814 = vpack.c.b16 %v771, %v770
        %v815 = vpack.c.b16 %v773, %v772
        %v816 = vpack.c.b16 %v775, %v774
        %v817 = vpack.c.b16 %v777, %v776
        %v818 = vpack.c.b16 %v779, %v778
        %v819 = vpack.c.b16 %v781, %v780
        %v820 = vpack.c.b16 %v783, %v782
        %v821 = vpack.c.b16 %v785, %v784
        %v822 = vpack.c.b16 %v787, %v786
        %v823 = vpack.c.b16 %v789, %v788
        %v824 = vpack.c.b16 %v791, %v790
        %v825 = vpack.c.b16 %v793, %v792
        %858 = vmatpush.bf16.msra.mxu0 %v801
        %859 = vmatpush.bf16.msra.mxu0 %v800
        %860 = vmatpush.bf16.msra.mxu0 %v799
        %861 = vmatpush.bf16.msra.mxu0 %v798
        %862 = vmatpush.bf16.msra.mxu0 %v797
        %863 = vmatpush.bf16.msra.mxu0 %v796
        %864 = vmatpush.bf16.msra.mxu0 %v795
        %865 = vmatpush.bf16.msra.mxu0 %v794
        %866 = vmatmul.bf16.gmra.mxu0 %v602
        %v867 = vpop.f32.mrf.mxu0
        %v868 = vadd.f32 0.0, %v867
        %v869 = vpop.f32.mrf.mxu0
        %v870 = vadd.f32 0.0, %v869
        %871 = vmatmul.bf16.gmra.mxu0 %v606
        %v872 = vpop.f32.mrf.mxu0
        %v873 = vadd.f32 0.0, %v872
        %v874 = vpop.f32.mrf.mxu0
        %v875 = vadd.f32 0.0, %v874
        %876 = vmatmul.bf16.gmra.mxu0 %v610
        %v877 = vpop.f32.mrf.mxu0
        %v878 = vadd.f32 0.0, %v877
        %v879 = vpop.f32.mrf.mxu0
        %v880 = vadd.f32 0.0, %v879
        %881 = vmatmul.bf16.gmra.mxu0 %v614
        %v882 = vpop.f32.mrf.mxu0
        %v883 = vadd.f32 0.0, %v882
        %v884 = vpop.f32.mrf.mxu0
        %v885 = vadd.f32 0.0, %v884
        %886 = vmatmul.bf16.gmra.mxu0 %v618
        %v887 = vpop.f32.mrf.mxu0
        %v888 = vadd.f32 0.0, %v887
        %v889 = vpop.f32.mrf.mxu0
        %v890 = vadd.f32 0.0, %v889
        %891 = vmatmul.bf16.gmra.mxu0 %v622
        %v892 = vpop.f32.mrf.mxu0
        %v893 = vadd.f32 0.0, %v892
        %v894 = vpop.f32.mrf.mxu0
        %v895 = vadd.f32 0.0, %v894
        %896 = vmatmul.bf16.gmra.mxu0 %v626
        %v897 = vpop.f32.mrf.mxu0
        %v898 = vadd.f32 0.0, %v897
        %v899 = vpop.f32.mrf.mxu0
        %v900 = vadd.f32 0.0, %v899
        %901 = vmatmul.bf16.gmra.mxu0 %v630
        %v902 = vpop.f32.mrf.mxu0
        %v903 = vadd.f32 0.0, %v902
        %v904 = vpop.f32.mrf.mxu0
        %v905 = vadd.f32 0.0, %v904
        %906 = vdwg.mxu0
        %907 = vmatpush.bf16.msra.mxu0 %v809
        %908 = vmatpush.bf16.msra.mxu0 %v808
        %909 = vmatpush.bf16.msra.mxu0 %v807
        %910 = vmatpush.bf16.msra.mxu0 %v806
        %911 = vmatpush.bf16.msra.mxu0 %v805
        %912 = vmatpush.bf16.msra.mxu0 %v804
        %913 = vmatpush.bf16.msra.mxu0 %v803
        %914 = vmatpush.bf16.msra.mxu0 %v802
        %915 = vmatmul.bf16.gmra.mxu0 %v603
        %v916 = vpop.f32.mrf.mxu0
        %v917 = vadd.f32 %v868, %v916
        %v918 = vpop.f32.mrf.mxu0
        %v919 = vadd.f32 %v870, %v918
        %920 = vmatmul.bf16.gmra.mxu0 %v607
        %v921 = vpop.f32.mrf.mxu0
        %v922 = vadd.f32 %v873, %v921
        %v923 = vpop.f32.mrf.mxu0
        %v924 = vadd.f32 %v875, %v923
        %925 = vmatmul.bf16.gmra.mxu0 %v611
        %v926 = vpop.f32.mrf.mxu0
        %v927 = vadd.f32 %v878, %v926
        %v928 = vpop.f32.mrf.mxu0
        %v929 = vadd.f32 %v880, %v928
        %930 = vmatmul.bf16.gmra.mxu0 %v615
        %v931 = vpop.f32.mrf.mxu0
        %v932 = vadd.f32 %v883, %v931
        %v933 = vpop.f32.mrf.mxu0
        %v934 = vadd.f32 %v885, %v933
        %935 = vmatmul.bf16.gmra.mxu0 %v619
        %v936 = vpop.f32.mrf.mxu0
        %v937 = vadd.f32 %v888, %v936
        %v938 = vpop.f32.mrf.mxu0
        %v939 = vadd.f32 %v890, %v938
        %940 = vmatmul.bf16.gmra.mxu0 %v623
        %v941 = vpop.f32.mrf.mxu0
        %v942 = vadd.f32 %v893, %v941
        %v943 = vpop.f32.mrf.mxu0
        %v944 = vadd.f32 %v895, %v943
        %945 = vmatmul.bf16.gmra.mxu0 %v627
        %v946 = vpop.f32.mrf.mxu0
        %v947 = vadd.f32 %v898, %v946
        %v948 = vpop.f32.mrf.mxu0
        %v949 = vadd.f32 %v900, %v948
        %950 = vmatmul.bf16.gmra.mxu0 %v631
        %v951 = vpop.f32.mrf.mxu0
        %v952 = vadd.f32 %v903, %v951
        %v953 = vpop.f32.mrf.mxu0
        %v954 = vadd.f32 %v905, %v953
        %955 = vdwg.mxu0
        %956 = vmatpush.bf16.msra.mxu0 %v817
        %957 = vmatpush.bf16.msra.mxu0 %v816
        %958 = vmatpush.bf16.msra.mxu0 %v815
        %959 = vmatpush.bf16.msra.mxu0 %v814
        %960 = vmatpush.bf16.msra.mxu0 %v813
        %961 = vmatpush.bf16.msra.mxu0 %v812
        %962 = vmatpush.bf16.msra.mxu0 %v811
        %963 = vmatpush.bf16.msra.mxu0 %v810
        %964 = vmatmul.bf16.gmra.mxu0 %v604
        %v965 = vpop.f32.mrf.mxu0
        %v966 = vadd.f32 %v917, %v965
        %v967 = vpop.f32.mrf.mxu0
        %v968 = vadd.f32 %v919, %v967
        %969 = vmatmul.bf16.gmra.mxu0 %v608
        %v970 = vpop.f32.mrf.mxu0
        %v971 = vadd.f32 %v922, %v970
        %v972 = vpop.f32.mrf.mxu0
        %v973 = vadd.f32 %v924, %v972
        %974 = vmatmul.bf16.gmra.mxu0 %v612
        %v975 = vpop.f32.mrf.mxu0
        %v976 = vadd.f32 %v927, %v975
        %v977 = vpop.f32.mrf.mxu0
        %v978 = vadd.f32 %v929, %v977
        %979 = vmatmul.bf16.gmra.mxu0 %v616
        %v980 = vpop.f32.mrf.mxu0
        %v981 = vadd.f32 %v932, %v980
        %v982 = vpop.f32.mrf.mxu0
        %v983 = vadd.f32 %v934, %v982
        %984 = vmatmul.bf16.gmra.mxu0 %v620
        %v985 = vpop.f32.mrf.mxu0
        %v986 = vadd.f32 %v937, %v985
        %v987 = vpop.f32.mrf.mxu0
        %v988 = vadd.f32 %v939, %v987
        %989 = vmatmul.bf16.gmra.mxu0 %v624
        %v990 = vpop.f32.mrf.mxu0
        %v991 = vadd.f32 %v942, %v990
        %v992 = vpop.f32.mrf.mxu0
        %v993 = vadd.f32 %v944, %v992
        %994 = vmatmul.bf16.gmra.mxu0 %v628
        %v995 = vpop.f32.mrf.mxu0
        %v996 = vadd.f32 %v947, %v995
        %v997 = vpop.f32.mrf.mxu0
        %v998 = vadd.f32 %v949, %v997
        %999 = vmatmul.bf16.gmra.mxu0 %v632
        %v1000 = vpop.f32.mrf.mxu0
        %v1001 = vadd.f32 %v952, %v1000
        %v1002 = vpop.f32.mrf.mxu0
        %v1003 = vadd.f32 %v954, %v1002
        %1004 = vdwg.mxu0
        %1005 = vmatpush.bf16.msra.mxu0 %v825
        %1006 = vmatpush.bf16.msra.mxu0 %v824
        %1007 = vmatpush.bf16.msra.mxu0 %v823
        %1008 = vmatpush.bf16.msra.mxu0 %v822
        %1009 = vmatpush.bf16.msra.mxu0 %v821
        %1010 = vmatpush.bf16.msra.mxu0 %v820
        %1011 = vmatpush.bf16.msra.mxu0 %v819
        %1012 = vmatpush.bf16.msra.mxu0 %v818
        %1013 = vmatmul.bf16.gmra.mxu0 %v605
        %v1014 = vpop.f32.mrf.mxu0
        %v1015 = vadd.f32 %v966, %v1014
        %v1016 = vpop.f32.mrf.mxu0
        %v1017 = vadd.f32 %v968, %v1016
        %1018 = vmatmul.bf16.gmra.mxu0 %v609
        %v1019 = vpop.f32.mrf.mxu0
        %v1020 = vadd.f32 %v971, %v1019
        %v1021 = vpop.f32.mrf.mxu0
        %v1022 = vadd.f32 %v973, %v1021
        %1023 = vmatmul.bf16.gmra.mxu0 %v613
        %v1024 = vpop.f32.mrf.mxu0
        %v1025 = vadd.f32 %v976, %v1024
        %v1026 = vpop.f32.mrf.mxu0
        %v1027 = vadd.f32 %v978, %v1026
        %1028 = vmatmul.bf16.gmra.mxu0 %v617
        %v1029 = vpop.f32.mrf.mxu0
        %v1030 = vadd.f32 %v981, %v1029
        %v1031 = vpop.f32.mrf.mxu0
        %v1032 = vadd.f32 %v983, %v1031
        %1033 = vmatmul.bf16.gmra.mxu0 %v621
        %v1034 = vpop.f32.mrf.mxu0
        %v1035 = vadd.f32 %v986, %v1034
        %v1036 = vpop.f32.mrf.mxu0
        %v1037 = vadd.f32 %v988, %v1036
        %1038 = vmatmul.bf16.gmra.mxu0 %v625
        %v1039 = vpop.f32.mrf.mxu0
        %v1040 = vadd.f32 %v991, %v1039
        %v1041 = vpop.f32.mrf.mxu0
        %v1042 = vadd.f32 %v993, %v1041
        %1043 = vmatmul.bf16.gmra.mxu0 %v629
        %v1044 = vpop.f32.mrf.mxu0
        %v1045 = vadd.f32 %v996, %v1044
        %v1046 = vpop.f32.mrf.mxu0
        %v1047 = vadd.f32 %v998, %v1046
        %1048 = vmatmul.bf16.gmra.mxu0 %v633
        %v1049 = vpop.f32.mrf.mxu0
        %v1050 = vadd.f32 %v1001, %v1049
        %v1051 = vpop.f32.mrf.mxu0
        %v1052 = vadd.f32 %v1003, %v1051
        %1053 = vdwg.mxu0
        %v1054 = vadd.f32 %v394, %v1015
        %v1055 = vadd.f32 %v395, %v1017
        %v1056 = vadd.f32 %v396, %v1020
        %v1057 = vadd.f32 %v397, %v1022
        %v1058 = vadd.f32 %v398, %v1025
        %v1059 = vadd.f32 %v399, %v1027
        %v1060 = vadd.f32 %v400, %v1030
        %v1061 = vadd.f32 %v401, %v1032
        %v1062 = vadd.f32 %v402, %v1035
        %v1063 = vadd.f32 %v403, %v1037
        %v1064 = vadd.f32 %v404, %v1040
        %v1065 = vadd.f32 %v405, %v1042
        %v1066 = vadd.f32 %v406, %v1045
        %v1067 = vadd.f32 %v407, %v1047
        %v1068 = vadd.f32 %v408, %v1050
        %v1069 = vadd.f32 %v409, %v1052
        %1070 = vst [vmem:[#allocation2] sm:$0xff] %v1054
        %1071 = vst [vmem:[#allocation2 + $0x8] sm:$0xff] %v1055
        %1072 = vst [vmem:[#allocation2 + $0x10] sm:$0xff] %v1056
        %1073 = vst [vmem:[#allocation2 + $0x18] sm:$0xff] %v1057
        %1074 = vst [vmem:[#allocation2 + $0x20] sm:$0xff] %v1058
        %1075 = vst [vmem:[#allocation2 + $0x28] sm:$0xff] %v1059
        %1076 = vst [vmem:[#allocation2 + $0x30] sm:$0xff] %v1060
        %1077 = vst [vmem:[#allocation2 + $0x38] sm:$0xff] %v1061
        %1078 = vst [vmem:[#allocation2 + $0x40] sm:$0xff] %v1062
        %1079 = vst [vmem:[#allocation2 + $0x48] sm:$0xff] %v1063
        %1080 = vst [vmem:[#allocation2 + $0x50] sm:$0xff] %v1064
        %1081 = vst [vmem:[#allocation2 + $0x58] sm:$0xff] %v1065
        %1082 = vst [vmem:[#allocation2 + $0x60] sm:$0xff] %v1066
        %1083 = vst [vmem:[#allocation2 + $0x68] sm:$0xff] %v1067
        %1084 = vst [vmem:[#allocation2 + $0x70] sm:$0xff] %v1068
        %1085 = vst [vmem:[#allocation2 + $0x78] sm:$0xff] %v1069
        %p1086 = scmp.eq.s32.totalorder %s23, 1
        // Predicated region
        $region60: #{feature_matching_forward.15} parent=50 // pred_check
          %p1087 = pneg %p1086
        $region61: #{feature_matching_forward.15} parent=50 // pred_check_branch
          %1089 = sbr.rel (%p1087) target = $region63
        $region62: #{feature_matching_forward.15} parent=50 // pred_region
          %v1090 = vld [vmem:[#allocation2] sm:$0xff]
          %v1091 = vld [vmem:[#allocation2 + $0x8] sm:$0xff]
          %v1092 = vld [vmem:[#allocation2 + $0x10] sm:$0xff]
          %v1093 = vld [vmem:[#allocation2 + $0x18] sm:$0xff]
          %v1094 = vld [vmem:[#allocation2 + $0x20] sm:$0xff]
          %v1095 = vld [vmem:[#allocation2 + $0x28] sm:$0xff]
          %v1096 = vld [vmem:[#allocation2 + $0x30] sm:$0xff]
          %v1097 = vld [vmem:[#allocation2 + $0x38] sm:$0xff]
          %v1098 = vld [vmem:[#allocation2 + $0x40] sm:$0xff]
          %v1099 = vld [vmem:[#allocation2 + $0x48] sm:$0xff]
          %v1100 = vld [vmem:[#allocation2 + $0x50] sm:$0xff]
          %v1101 = vld [vmem:[#allocation2 + $0x58] sm:$0xff]
          %v1102 = vld [vmem:[#allocation2 + $0x60] sm:$0xff]
          %v1103 = vld [vmem:[#allocation2 + $0x68] sm:$0xff]
          %v1104 = vld [vmem:[#allocation2 + $0x70] sm:$0xff]
          %v1105 = vld [vmem:[#allocation2 + $0x78] sm:$0xff]
          %v1106 = vld [vmem:[%s359] sm:$0xff]
          %v1107 = vld [vmem:[%s359 + $0x8] sm:$0xff]
          %v1108 = vld [vmem:[%s359 + $0x10] sm:$0xff]
          %v1109 = vld [vmem:[%s359 + $0x18] sm:$0xff]
          %v1110 = vld [vmem:[%s359 + $0x20] sm:$0xff]
          %v1111 = vld [vmem:[%s359 + $0x28] sm:$0xff]
          %v1112 = vld [vmem:[%s359 + $0x30] sm:$0xff]
          %v1113 = vld [vmem:[%s359 + $0x38] sm:$0xff]
          %v1114 = vld [vmem:[%s359 + $0x40] sm:$0xff]
          %v1115 = vld [vmem:[%s359 + $0x48] sm:$0xff]
          %v1116 = vld [vmem:[%s359 + $0x50] sm:$0xff]
          %v1117 = vld [vmem:[%s359 + $0x58] sm:$0xff]
          %v1118 = vld [vmem:[%s359 + $0x60] sm:$0xff]
          %v1119 = vld [vmem:[%s359 + $0x68] sm:$0xff]
          %v1120 = vld [vmem:[%s359 + $0x70] sm:$0xff]
          %v1121 = vld [vmem:[%s359 + $0x78] sm:$0xff]
          %1123 = vset.pattern.permute.xlu0 0
          %1124 = vperm.xlu0 %1123, %v1106
          %v1125 = vpop.permute.xlu0 %1124
          %1128 = vset.pattern.permute.xlu0 0
          %1129 = vperm.xlu0 %1128, %v1107
          %v1130 = vpop.permute.xlu0 %1129
          %1133 = vset.pattern.permute.xlu0 0
          %1134 = vperm.xlu0 %1133, %v1108
          %v1135 = vpop.permute.xlu0 %1134
          %1138 = vset.pattern.permute.xlu0 0
          %1139 = vperm.xlu0 %1138, %v1109
          %v1140 = vpop.permute.xlu0 %1139
          %1143 = vset.pattern.permute.xlu0 0
          %1144 = vperm.xlu0 %1143, %v1110
          %v1145 = vpop.permute.xlu0 %1144
          %1148 = vset.pattern.permute.xlu0 0
          %1149 = vperm.xlu0 %1148, %v1111
          %v1150 = vpop.permute.xlu0 %1149
          %1153 = vset.pattern.permute.xlu0 0
          %1154 = vperm.xlu0 %1153, %v1112
          %v1155 = vpop.permute.xlu0 %1154
          %1158 = vset.pattern.permute.xlu0 0
          %1159 = vperm.xlu0 %1158, %v1113
          %v1160 = vpop.permute.xlu0 %1159
          %1163 = vset.pattern.permute.xlu0 0
          %1164 = vperm.xlu0 %1163, %v1114
          %v1165 = vpop.permute.xlu0 %1164
          %1168 = vset.pattern.permute.xlu0 0
          %1169 = vperm.xlu0 %1168, %v1115
          %v1170 = vpop.permute.xlu0 %1169
          %1173 = vset.pattern.permute.xlu0 0
          %1174 = vperm.xlu0 %1173, %v1116
          %v1175 = vpop.permute.xlu0 %1174
          %1178 = vset.pattern.permute.xlu0 0
          %1179 = vperm.xlu0 %1178, %v1117
          %v1180 = vpop.permute.xlu0 %1179
          %1183 = vset.pattern.permute.xlu0 0
          %1184 = vperm.xlu0 %1183, %v1118
          %v1185 = vpop.permute.xlu0 %1184
          %1188 = vset.pattern.permute.xlu0 0
          %1189 = vperm.xlu0 %1188, %v1119
          %v1190 = vpop.permute.xlu0 %1189
          %1193 = vset.pattern.permute.xlu0 0
          %1194 = vperm.xlu0 %1193, %v1120
          %v1195 = vpop.permute.xlu0 %1194
          %1198 = vset.pattern.permute.xlu0 0
          %1199 = vperm.xlu0 %1198, %v1121
          %v1200 = vpop.permute.xlu0 %1199
          %v1202 = vadd.f32 %v1090, %v1125
          %v1203 = vadd.f32 %v1091, %v1130
          %v1204 = vadd.f32 %v1092, %v1135
          %v1205 = vadd.f32 %v1093, %v1140
          %v1206 = vadd.f32 %v1094, %v1145
          %v1207 = vadd.f32 %v1095, %v1150
          %v1208 = vadd.f32 %v1096, %v1155
          %v1209 = vadd.f32 %v1097, %v1160
          %v1210 = vadd.f32 %v1098, %v1165
          %v1211 = vadd.f32 %v1099, %v1170
          %v1212 = vadd.f32 %v1100, %v1175
          %v1213 = vadd.f32 %v1101, %v1180
          %v1214 = vadd.f32 %v1102, %v1185
          %v1215 = vadd.f32 %v1103, %v1190
          %v1216 = vadd.f32 %v1104, %v1195
          %v1217 = vadd.f32 %v1105, %v1200
          %1218 = vst [vmem:[%s372] sm:$0xff] %v1202
          %1219 = vst [vmem:[%s372 + $0x8] sm:$0xff] %v1203
          %1220 = vst [vmem:[%s372 + $0x10] sm:$0xff] %v1204
          %1221 = vst [vmem:[%s372 + $0x18] sm:$0xff] %v1205
          %1222 = vst [vmem:[%s372 + $0x20] sm:$0xff] %v1206
          %1223 = vst [vmem:[%s372 + $0x28] sm:$0xff] %v1207
          %1224 = vst [vmem:[%s372 + $0x30] sm:$0xff] %v1208
          %1225 = vst [vmem:[%s372 + $0x38] sm:$0xff] %v1209
          %1226 = vst [vmem:[%s372 + $0x40] sm:$0xff] %v1210
          %1227 = vst [vmem:[%s372 + $0x48] sm:$0xff] %v1211
          %1228 = vst [vmem:[%s372 + $0x50] sm:$0xff] %v1212
          %1229 = vst [vmem:[%s372 + $0x58] sm:$0xff] %v1213
          %1230 = vst [vmem:[%s372 + $0x60] sm:$0xff] %v1214
          %1231 = vst [vmem:[%s372 + $0x68] sm:$0xff] %v1215
          %1232 = vst [vmem:[%s372 + $0x70] sm:$0xff] %v1216
          %1233 = vst [vmem:[%s372 + $0x78] sm:$0xff] %v1217
        $region63: #{feature_matching_forward.15} parent=50 // pred_fallthru
          _
        %s1234 = smul.u32 16, %s21
        %p1235 = scmp.lt.s32.totalorder %s20, 1
        %s1236 = scalar_select %p1235, %s20, 1
        %p1237 = scmp.lt.s32.totalorder %s1234, 15
        %s1238 = scalar_select %p1237, %s1234, 15
        %p1239 = scmp.lt.s32.totalorder %s22, 0
        %s1240 = scalar_select %p1239, %s22, 0
        %s1241 = sadd.s32 %s1240, %s1238
        %s1242 = smul.addr %s1236, 16
        %s1243 = sadd.s32 %s1241, %s1242
        %s1244 = smul.addr %s1243, 8
        %s1245 = scalar_lea.vmem %s3, %s1244
        // Predicated region
        $region64: #{feature_matching_forward.15} parent=50 // pred_check
          %p1246 = pneg %p146
        $region65: #{feature_matching_forward.15} parent=50 // pred_check_branch
          %1248 = sbr.rel (%p1246) target = $region67
        $region66: #{feature_matching_forward.15} parent=50 // pred_region
          %s1249 = smul.u32 16, %s21
        $region67: #{feature_matching_forward.15} parent=50 // pred_fallthru
          _
      $region51: #{feature_matching_forward.15} parent=5 // pred_fallthru
        _
      %p1250 = scmp.le.s32.totalorder 2, %s9
      // Predicated region
      $region68: #{feature_matching_forward.15} parent=5 // pred_check
        %p1251 = pneg %p1250
      $region69: #{feature_matching_forward.15} parent=5 // pred_check_branch
        %1253 = sbr.rel (%p1251) target = $region71
      $region70: #{feature_matching_forward.15} parent=5 // pred_region
        %s1254 = ssub.s32 %s9, 2
        // Predicated region
        $region72: #{feature_matching_forward.15} parent=70 // pred_check
          %p1255 = pneg %p152
        $region73: #{feature_matching_forward.15} parent=70 // pred_check_branch
          %1257 = sbr.rel (%p1255) target = $region75
        $region74: #{feature_matching_forward.15} parent=70 // pred_region
          %s1258 = smul.u32 16, %s25
          %p1259 = scmp.lt.s32.totalorder %s24, 1
          %s1260 = scalar_select %p1259, %s24, 1
          %p1261 = scmp.lt.s32.totalorder %s1258, 15
          %s1262 = scalar_select %p1261, %s1258, 15
          %p1263 = scmp.lt.s32.totalorder %s26, 0
          %s1264 = scalar_select %p1263, %s26, 0
          %s1265 = sadd.s32 %s1264, %s1262
          %s1266 = smul.addr %s1260, 16
          %s1267 = sadd.s32 %s1265, %s1266
          %s1268 = smul.addr %s1267, 8
          %s1269 = scalar_lea.vmem %s3, %s1268
        $region75: #{feature_matching_forward.15} parent=70 // pred_fallthru
          _
      $region71: #{feature_matching_forward.15} parent=5 // pred_fallthru
        _
    $region6: #{feature_matching_forward.15} parent=1 // loop_footer
      %s13 = sadd.s32 1, %s9
    $region7: #{feature_matching_forward.15} parent=1 // loop_footer_branch
      %8 = sbr.rel target = $region3
    $region8: #{feature_matching_forward.15} parent=1 // loop_exit
      _

// kernel: feature_matching_forward.16
$region0: #{feature_matching_forward.16}
  #allocation0 [shape = 'u32[]', space=smem, size = 0x4, offset = 0x4, fixed_abs, tag = 'smem constant byte address 0x4 - core index']
  #allocation1 [shape = 'u32[72,128]{1,0:T(1,128)}', space=vmem, size = 0x9000, scoped, tag = 'internal scratch']
  #allocation2 [shape = 'f32[128,128]{1,0:T(8,128)}', space=vmem, size = 0x10000, scoped, tag = 'scratch operand']
  %s0 = inlined_call_operand.vmem [shape: bf16[128,1536], index: 0, kind: input, shape index: {}]
  %s1 = inlined_call_operand.vmem [shape: bf16[2,1536,128], index: 1, kind: input, shape index: {}]
  %s2 = inlined_call_operand.vmem [shape: f32[128,1], index: 2, kind: input, shape index: {}]
  %s3 = inlined_call_operand.vmem [shape: f32[2,128,128], index: 3, kind: output, shape index: {}]
  %s4 = sld [smem:[#allocation0]]
  $region76: #{feature_matching_forward.16} parent=0
    _
  %s6 = ssub.s32 1, %s4
  %s7 = scalar_select 0, %s6, %s4
  $region1: #{feature_matching_forward.16} parent=0
    #allocation3 [shape = 'u8[262144]{0}', space=vmem, size = 0x40000, scoped, tag = 'input window, operand 0']
    loop: start=0, step=1, limit=8
    $region2: #{feature_matching_forward.16} parent=1 // loop_pre_header
      _
    $region3: #{feature_matching_forward.16} parent=1 // loop_header
      %s9 = sphi 0, %s13
      %p10 = scmp.ge.s32.totalorder %s9, 8
      %s16 = sphi 0, %s42
      %s17 = sphi 0, %s38
      %s18 = sphi 0, %s34
      %s19 = sphi 0, %s30
      %s20 = sphi 0, %s16
      %s21 = sphi 0, %s17
      %s22 = sphi 0, %s18
      %s23 = sphi 0, %s19
      %s24 = sphi 0, %s20
      %s25 = sphi 0, %s21
      %s26 = sphi 0, %s22
      %s27 = sphi 0, %s23
      %s47 = sphi 0, %s49
      %s50 = sphi 0, %s47
      %s51 = sphi 0, %s50
      %s67 = sphi 0, %s51
      %s77 = sphi 0, %s79
      %s80 = sphi 0, %s77
      %s81 = sphi 0, %s80
      %s97 = sphi 0, %s81
      %s103 = sphi 0, %s105
      %s106 = sphi 0, %s103
      %s107 = sphi 0, %s106
      %s123 = sphi 0, %s107
      %s133 = sphi 0, %s135
      %s136 = sphi 0, %s133
      %s137 = sphi 0, %s136
      %s153 = sphi 0, %s137
    $region4: #{feature_matching_forward.16} parent=1 // loop_header_branch
      %12 = sbr.rel (%p10) target = $region8
    $region5: #{feature_matching_forward.16} parent=1 // loop_body
      %s14 = ssub.s32 %s9, 1
      %s15 = ssub.s32 %s9, 2
      %s28 = sadd.s32 1, %s19
      %p29 = scmp.ge.s32.totalorder %s28, 3
      %s30 = scalar_select %p29, 0, %s28
      %s31 = sadd.s32 1, %s18
      %s32 = scalar_select %p29, %s31, %s18
      %p33 = scmp.ge.s32.totalorder %s32, 1
      %s34 = scalar_select %p33, 0, %s32
      %s35 = sadd.s32 1, %s17
      %s36 = scalar_select %p33, %s35, %s17
      %p37 = scmp.ge.s32.totalorder %s36, 1
      %s38 = scalar_select %p37, 0, %s36
      %s39 = sadd.s32 1, %s16
      %s40 = scalar_select %p37, %s39, %s16
      %p41 = scmp.ge.s32.totalorder %s40, 2
      %s42 = scalar_select %p41, 0, %s40
      %s43 = ssub.s32 %s17, %s38
      %s44 = ssub.s32 %s19, %s30
      %s45 = sor.u32 %s43, %s44
      %p46 = scmp.eq.s32.totalorder %s45, 0
      %s48 = sadd.s32 %s47, 1
      %s49 = scalar_select %p46, %s47, %s48
      %p52 = pneg %p46
      %p53 = scmp.eq.s32.totalorder %s9, 5
      %p54 = por %p52, %p53
      %p55 = scmp.ne.s32.totalorder %s47, %s50
      %p56 = scmp.eq.s32.totalorder %s9, 0
      %p57 = por %p55, %p56
      %p58 = scmp.ne.s32.totalorder %s47, %s50
      %p59 = scmp.eq.s32.totalorder %s14, 5
      %p60 = por %p58, %p59
      %p61 = scmp.ne.s32.totalorder %s50, %s51
      %p62 = scmp.eq.s32.totalorder %s14, 0
      %p63 = por %p61, %p62
      %p64 = scmp.ne.s32.totalorder %s50, %s51
      %p65 = scmp.eq.s32.totalorder %s15, 5
      %p66 = por %p64, %p65
      %p68 = scmp.ne.s32.totalorder %s51, %s67
      %p69 = scmp.eq.s32.totalorder %s15, 0
      %p70 = por %p68, %p69
      %s71 = ssub.s32 %s16, %s42
      %s72 = ssub.s32 %s19, %s30
      %s73 = sor.u32 %s71, %s72
      %s74 = ssub.s32 %s18, %s34
      %s75 = sor.u32 %s73, %s74
      %p76 = scmp.eq.s32.totalorder %s75, 0
      %s78 = sadd.s32 %s77, 1
      %s79 = scalar_select %p76, %s77, %s78
      %p82 = pneg %p76
      %p83 = scmp.eq.s32.totalorder %s9, 5
      %p84 = por %p82, %p83
      %p85 = scmp.ne.s32.totalorder %s77, %s80
      %p86 = scmp.eq.s32.totalorder %s9, 0
      %p87 = por %p85, %p86
      %p88 = scmp.ne.s32.totalorder %s77, %s80
      %p89 = scmp.eq.s32.totalorder %s14, 5
      %p90 = por %p88, %p89
      %p91 = scmp.ne.s32.totalorder %s80, %s81
      %p92 = scmp.eq.s32.totalorder %s14, 0
      %p93 = por %p91, %p92
      %p94 = scmp.ne.s32.totalorder %s80, %s81
      %p95 = scmp.eq.s32.totalorder %s15, 5
      %p96 = por %p94, %p95
      %p98 = scmp.ne.s32.totalorder %s81, %s97
      %p99 = scmp.eq.s32.totalorder %s15, 0
      %p100 = por %p98, %p99
      %s101 = ssub.s32 %s17, %s38
      %p102 = scmp.eq.s32.totalorder %s101, 0
      %s104 = sadd.s32 %s103, 1
      %s105 = scalar_select %p102, %s103, %s104
      %p108 = pneg %p102
      %p109 = scmp.eq.s32.totalorder %s9, 5
      %p110 = por %p108, %p109
      %p111 = scmp.ne.s32.totalorder %s103, %s106
      %p112 = scmp.eq.s32.totalorder %s9, 0
      %p113 = por %p111, %p112
      %p114 = scmp.ne.s32.totalorder %s103, %s106
      %p115 = scmp.eq.s32.totalorder %s14, 5
      %p116 = por %p114, %p115
      %p117 = scmp.ne.s32.totalorder %s106, %s107
      %p118 = scmp.eq.s32.totalorder %s14, 0
      %p119 = por %p117, %p118
      %p120 = scmp.ne.s32.totalorder %s106, %s107
      %p121 = scmp.eq.s32.totalorder %s15, 5
      %p122 = por %p120, %p121
      %p124 = scmp.ne.s32.totalorder %s107, %s123
      %p125 = scmp.eq.s32.totalorder %s15, 0
      %p126 = por %p124, %p125
      %s127 = ssub.s32 %s16, %s42
      %s128 = ssub.s32 %s17, %s38
      %s129 = sor.u32 %s127, %s128
      %s130 = ssub.s32 %s18, %s34
      %s131 = sor.u32 %s129, %s130
      %p132 = scmp.eq.s32.totalorder %s131, 0
      %s134 = sadd.s32 %s133, 1
      %s135 = scalar_select %p132, %s133, %s134
      %p138 = pneg %p132
      %p139 = scmp.eq.s32.totalorder %s9, 5
      %p140 = por %p138, %p139
      %p141 = scmp.ne.s32.totalorder %s133, %s136
      %p142 = scmp.eq.s32.totalorder %s9, 0
      %p143 = por %p141, %p142
      %p144 = scmp.ne.s32.totalorder %s133, %s136
      %p145 = scmp.eq.s32.totalorder %s14, 5
      %p146 = por %p144, %p145
      %p147 = scmp.ne.s32.totalorder %s136, %s137
      %p148 = scmp.eq.s32.totalorder %s14, 0
      %p149 = por %p147, %p148
      %p150 = scmp.ne.s32.totalorder %s136, %s137
      %p151 = scmp.eq.s32.totalorder %s15, 5
      %p152 = por %p150, %p151
      %p154 = scmp.ne.s32.totalorder %s137, %s153
      %p155 = scmp.eq.s32.totalorder %s15, 0
      %p156 = por %p154, %p155
      %p157 = scmp.le.s32.totalorder 1, %s9
      %p158 = scmp.lt.s32.totalorder %s9, 7
      %p159 = pnand %p157, %p158
      %p160 = pneg %p159
      // Predicated region
      $region9: #{feature_matching_forward.16} parent=5 // pred_check
        _
      $region10: #{feature_matching_forward.16} parent=5 // pred_check_branch
        %162 = sbr.rel (%p159) target = $region12
      $region11: #{feature_matching_forward.16} parent=5 // pred_region
        %s163 = ssub.s32 %s9, 1
        // Predicated region
        $region13: #{feature_matching_forward.16} parent=11 // pred_check
          %p164 = pneg %p119
        $region14: #{feature_matching_forward.16} parent=11 // pred_check_branch
          %166 = sbr.rel (%p164) target = $region16
        $region15: #{feature_matching_forward.16} parent=11 // pred_region
          %s167 = smul.u32 16, %s21
          %p168 = scmp.lt.s32.totalorder %s167, 15
          %s169 = scalar_select %p168, %s167, 15
          %s170 = smul.addr %s169, 8
          %s171 = scalar_lea.vmem %s2, %s170
          %s172 = smul.u32 16, %s21
        $region16: #{feature_matching_forward.16} parent=11 // pred_fallthru
          _
      $region12: #{feature_matching_forward.16} parent=5 // pred_fallthru
        _
      %p173 = scmp.lt.s32.totalorder %s9, 6
      // Predicated region
      $region17: #{feature_matching_forward.16} parent=5 // pred_check
        %p174 = pneg %p173
      $region18: #{feature_matching_forward.16} parent=5 // pred_check_branch
        %176 = sbr.rel (%p174) target = $region20
      $region19: #{feature_matching_forward.16} parent=5 // pred_region
        // Predicated region
        $region21: #{feature_matching_forward.16} parent=19 // pred_check
          %p177 = pneg %p57
        $region22: #{feature_matching_forward.16} parent=19 // pred_check_branch
          %179 = sbr.rel (%p177) target = $region24
        $region23: #{feature_matching_forward.16} parent=19 // pred_region
          %s180 = sand.u32 %s47, 1
          %s181 = sand.u32 %s47, 1
          %s182 = smul.addr %s181, 256
          %s183 = scalar_lea.vmem [#allocation3], %s182
          %s184 = smul.u32 16, %s17
          %s185 = smul.u32 4, %s19
          %s186 = smul.addr %s184, 12
          %s187 = sadd.s32 %s185, %s186
          %s188 = smul.addr %s187, 4
          %s189 = scalar_lea.vmem %s0, %s188
          // Predicated region
          $region25: #{feature_matching_forward.16} parent=23 // pred_check
            _
          $region26: #{feature_matching_forward.16} parent=23 // pred_check_branch
            %191 = sbr.rel (0) target = $region28
          $region27: #{feature_matching_forward.16} parent=23 // pred_region
            // Predicated region
            $region29: #{feature_matching_forward.16} parent=27 // pred_check
              _
            $region30: #{feature_matching_forward.16} parent=27 // pred_check_branch
              %193 = sbr.rel (0) target = $region32
            $region31: #{feature_matching_forward.16} parent=27 // pred_region
              loop: start=0, step=1, limit=1
              $region33: #{feature_matching_forward.16} parent=31 // loop_pre_header
                _
              $region34: #{feature_matching_forward.16} parent=31 // loop_header
                %s195 = sphi 0, %s199
                %p196 = scmp.ge.s32.totalorder %s195, 1
                %s200 = sphi %s189, %s189
                %s201 = sphi %s183, %s183
              $region35: #{feature_matching_forward.16} parent=31 // loop_header_branch
                %198 = sbr.rel (%p196) target = $region39
              $region36: #{feature_matching_forward.16} parent=31 // loop_body
                %v202 = vld [vmem:[%s200] sm:$0xff]
                %203 = vst [vmem:[%s201] sm:$0xff] %v202
                %v204 = vld [vmem:[%s200 + $0x8] sm:$0xff]
                %205 = vst [vmem:[%s201 + $0x8] sm:$0xff] %v204
                %v206 = vld [vmem:[%s200 + $0x30] sm:$0xff]
                %207 = vst [vmem:[%s201 + $0x10] sm:$0xff] %v206
                %v208 = vld [vmem:[%s200 + $0x38] sm:$0xff]
                %209 = vst [vmem:[%s201 + $0x18] sm:$0xff] %v208
                %v210 = vld [vmem:[%s200 + $0x60] sm:$0xff]
                %211 = vst [vmem:[%s201 + $0x20] sm:$0xff] %v210
                %v212 = vld [vmem:[%s200 + $0x68] sm:$0xff]
                %213 = vst [vmem:[%s201 + $0x28] sm:$0xff] %v212
                %v214 = vld [vmem:[%s200 + $0x90] sm:$0xff]
                %215 = vst [vmem:[%s201 + $0x30] sm:$0xff] %v214
                %v216 = vld [vmem:[%s200 + $0x98] sm:$0xff]
                %217 = vst [vmem:[%s201 + $0x38] sm:$0xff] %v216
                %v218 = vld [vmem:[%s200 + $0xc0] sm:$0xff]
                %219 = vst [vmem:[%s201 + $0x40] sm:$0xff] %v218
                %v220 = vld [vmem:[%s200 + $0xc8] sm:$0xff]
                %221 = vst [vmem:[%s201 + $0x48] sm:$0xff] %v220
                %v222 = vld [vmem:[%s200 + $0xf0] sm:$0xff]
                %223 = vst [vmem:[%s201 + $0x50] sm:$0xff] %v222
                %v224 = vld [vmem:[%s200 + $0xf8] sm:$0xff]
                %225 = vst [vmem:[%s201 + $0x58] sm:$0xff] %v224
                %v226 = vld [vmem:[%s200 + $0x120] sm:$0xff]
                %227 = vst [vmem:[%s201 + $0x60] sm:$0xff] %v226
                %v228 = vld [vmem:[%s200 + $0x128] sm:$0xff]
                %229 = vst [vmem:[%s201 + $0x68] sm:$0xff] %v228
                %v230 = vld [vmem:[%s200 + $0x150] sm:$0xff]
                %231 = vst [vmem:[%s201 + $0x70] sm:$0xff] %v230
                %v232 = vld [vmem:[%s200 + $0x158] sm:$0xff]
                %233 = vst [vmem:[%s201 + $0x78] sm:$0xff] %v232
                %v234 = vld [vmem:[%s200 + $0x180] sm:$0xff]
                %235 = vst [vmem:[%s201 + $0x80] sm:$0xff] %v234
                %v236 = vld [vmem:[%s200 + $0x188] sm:$0xff]
                %237 = vst [vmem:[%s201 + $0x88] sm:$0xff] %v236
                %v238 = vld [vmem:[%s200 + $0x1b0] sm:$0xff]
                %239 = vst [vmem:[%s201 + $0x90] sm:$0xff] %v238
                %v240 = vld [vmem:[%s200 + $0x1b8] sm:$0xff]
                %241 = vst [vmem:[%s201 + $0x98] sm:$0xff] %v240
                %v242 = vld [vmem:[%s200 + $0x1e0] sm:$0xff]
                %243 = vst [vmem:[%s201 + $0xa0] sm:$0xff] %v242
                %v244 = vld [vmem:[%s200 + $0x1e8] sm:$0xff]
                %245 = vst [vmem:[%s201 + $0xa8] sm:$0xff] %v244
                %v246 = vld [vmem:[%s200 + $0x210] sm:$0xff]
                %247 = vst [vmem:[%s201 + $0xb0] sm:$0xff] %v246
                %v248 = vld [vmem:[%s200 + $0x218] sm:$0xff]
                %249 = vst [vmem:[%s201 + $0xb8] sm:$0xff] %v248
                %v250 = vld [vmem:[%s200 + $0x240] sm:$0xff]
                %251 = vst [vmem:[%s201 + $0xc0] sm:$0xff] %v250
                %v252 = vld [vmem:[%s200 + $0x248] sm:$0xff]
                %253 = vst [vmem:[%s201 + $0xc8] sm:$0xff] %v252
                %v254 = vld [vmem:[%s200 + $0x270] sm:$0xff]
                %255 = vst [vmem:[%s201 + $0xd0] sm:$0xff] %v254
                %v256 = vld [vmem:[%s200 + $0x278] sm:$0xff]
                %257 = vst [vmem:[%s201 + $0xd8] sm:$0xff] %v256
                %v258 = vld [vmem:[%s200 + $0x2a0] sm:$0xff]
                %259 = vst [vmem:[%s201 + $0xe0] sm:$0xff] %v258
                %v260 = vld [vmem:[%s200 + $0x2a8] sm:$0xff]
                %261 = vst [vmem:[%s201 + $0xe8] sm:$0xff] %v260
                %v262 = vld [vmem:[%s200 + $0x2d0] sm:$0xff]
                %263 = vst [vmem:[%s201 + $0xf0] sm:$0xff] %v262
                %v264 = vld [vmem:[%s200 + $0x2d8] sm:$0xff]
                %265 = vst [vmem:[%s201 + $0xf8] sm:$0xff] %v264
              $region37: #{feature_matching_forward.16} parent=31 // loop_footer
                %s199 = sadd.s32 1, %s195
              $region38: #{feature_matching_forward.16} parent=31 // loop_footer_branch
                %194 = sbr.rel target = $region34
              $region39: #{feature_matching_forward.16} parent=31 // loop_exit
                _
            $region32: #{feature_matching_forward.16} parent=27 // pred_fallthru
              _
            // Predicated region
            $region40: #{feature_matching_forward.16} parent=27 // pred_check
              _
            $region41: #{feature_matching_forward.16} parent=27 // pred_check_branch
              %267 = sbr.rel target = $region43
            $region42: #{feature_matching_forward.16} parent=27 // pred_region
              _
            $region43: #{feature_matching_forward.16} parent=27 // pred_fallthru
              _
          $region28: #{feature_matching_forward.16} parent=23 // pred_fallthru
            _
          %268 = vnop
        $region24: #{feature_matching_forward.16} parent=19 // pred_fallthru
          _
        // Predicated region
        $region44: #{feature_matching_forward.16} parent=19 // pred_check
          %p269 = pneg %p87
        $region45: #{feature_matching_forward.16} parent=19 // pred_check_branch
          %271 = sbr.rel (%p269) target = $region47
        $region46: #{feature_matching_forward.16} parent=19 // pred_region
          %s272 = smul.u32 64, %s19
          %p273 = scmp.lt.s32.totalorder %s16, 1
          %s274 = scalar_select %p273, %s16, 1
          %p275 = scmp.lt.s32.totalorder %s272, 191
          %s276 = scalar_select %p275, %s272, 191
          %p277 = scmp.lt.s32.totalorder %s18, 0
          %s278 = scalar_select %p277, %s18, 0
          %s279 = sadd.s32 %s278, %s276
          %s280 = smul.addr %s274, 192
          %s281 = sadd.s32 %s279, %s280
          %s282 = smul.addr %s281, 4
          %s283 = scalar_lea.vmem %s1, %s282
          %s284 = smul.u32 64, %s19
        $region47: #{feature_matching_forward.16} parent=19 // pred_fallthru
          _
      $region20: #{feature_matching_forward.16} parent=5 // pred_fallthru
        _
      %p285 = scmp.le.s32.totalorder 1, %s9
      %p286 = scmp.lt.s32.totalorder %s9, 7
      %p287 = pnand %p285, %p286
      %p288 = pneg %p287
      // Predicated region
      $region48: #{feature_matching_forward.16} parent=5 // pred_check
        _
      $region49: #{feature_matching_forward.16} parent=5 // pred_check_branch
        %290 = sbr.rel (%p287) target = $region51
      $region50: #{feature_matching_forward.16} parent=5 // pred_region
        %s291 = ssub.s32 %s9, 1
        %s292 = sand.u32 %s50, 1
        %s293 = sand.u32 %s50, 1
        %s294 = smul.addr %s293, 256
        %s295 = scalar_lea.vmem [#allocation3], %s294
        // Predicated region
        $region52: #{feature_matching_forward.16} parent=50 // pred_check
          %p296 = pneg %p63
        $region53: #{feature_matching_forward.16} parent=50 // pred_check_branch
          %298 = sbr.rel (%p296) target = $region55
        $region54: #{feature_matching_forward.16} parent=50 // pred_region
          _
        $region55: #{feature_matching_forward.16} parent=50 // pred_fallthru
          _
        %s299 = sand.u32 %s50, 1
        %s300 = sand.u32 %s50, 1
        %s301 = smul.addr %s300, 256
        %s302 = scalar_lea.vmem [#allocation3], %s301
        %p303 = pneg %p63
        %p304 = pneg %p60
        %s305 = smul.u32 64, %s23
        %p306 = scmp.lt.s32.totalorder %s20, 1
        %s307 = scalar_select %p306, %s20, 1
        %p308 = scmp.lt.s32.totalorder %s305, 191
        %s309 = scalar_select %p308, %s305, 191
        %p310 = scmp.lt.s32.totalorder %s22, 0
        %s311 = scalar_select %p310, %s22, 0
        %s312 = sadd.s32 %s311, %s309
        %s313 = smul.addr %s307, 192
        %s314 = sadd.s32 %s312, %s313
        %s315 = smul.addr %s314, 4
        %s316 = scalar_lea.vmem %s1, %s315
        %p317 = pneg %p93
        %p318 = pneg %p90
        %s319 = smul.u32 16, %s21
        %p320 = scmp.lt.s32.totalorder %s319, 15
        %s321 = scalar_select %p320, %s319, 15
        %s322 = smul.addr %s321, 8
        %s323 = scalar_lea.vmem %s2, %s322
        %p324 = pneg %p119
        %p325 = pneg %p116
        %p326 = pneg %p149
        %p327 = pneg %p146
        %s328 = smul.u32 16, %s21
        %p329 = scmp.lt.s32.totalorder %s20, 1
        %s330 = scalar_select %p329, %s20, 1
        %p331 = scmp.lt.s32.totalorder %s328, 15
        %s332 = scalar_select %p331, %s328, 15
        %p333 = scmp.lt.s32.totalorder %s22, 0
        %s334 = scalar_select %p333, %s22, 0
        %s335 = sadd.s32 %s334, %s332
        %s336 = smul.addr %s330, 16
        %s337 = sadd.s32 %s335, %s336
        %s338 = smul.addr %s337, 8
        %s339 = scalar_lea.vmem %s3, %s338
        %s340 = smul.u32 16, %s21
        %s341 = smul.u32 4, %s23
        %s342 = smul.u32 64, %s23
        %p343 = scmp.lt.s32.totalorder %s20, 1
        %s344 = scalar_select %p343, %s20, 1
        %p345 = scmp.lt.s32.totalorder %s342, 191
        %s346 = scalar_select %p345, %s342, 191
        %p347 = scmp.lt.s32.totalorder %s22, 0
        %s348 = scalar_select %p347, %s22, 0
        %s349 = sadd.s32 %s348, %s346
        %s350 = smul.addr %s344, 192
        %s351 = sadd.s32 %s349, %s350
        %s352 = smul.addr %s351, 4
        %s353 = scalar_lea.vmem %s1, %s352
        %s354 = smul.u32 64, %s23
        %s355 = smul.u32 16, %s21
        %p356 = scmp.lt.s32.totalorder %s355, 15
        %s357 = scalar_select %p356, %s355, 15
        %s358 = smul.addr %s357, 8
        %s359 = scalar_lea.vmem %s2, %s358
        %s360 = smul.u32 16, %s21
        %s361 = smul.u32 16, %s21
        %p362 = scmp.lt.s32.totalorder %s20, 1
        %s363 = scalar_select %p362, %s20, 1
        %p364 = scmp.lt.s32.totalorder %s361, 15
        %s365 = scalar_select %p364, %s361, 15
        %p366 = scmp.lt.s32.totalorder %s22, 0
        %s367 = scalar_select %p366, %s22, 0
        %s368 = sadd.s32 %s367, %s365
        %s369 = smul.addr %s363, 16
        %s370 = sadd.s32 %s368, %s369
        %s371 = smul.addr %s370, 8
        %s372 = scalar_lea.vmem %s3, %s371
        %s373 = smul.u32 16, %s21
        %p374 = scmp.eq.s32.totalorder %s23, 0
        // Predicated region
        $region56: #{feature_matching_forward.16} parent=50 // pred_check
          %p375 = pneg %p374
        $region57: #{feature_matching_forward.16} parent=50 // pred_check_branch
          %377 = sbr.rel (%p375) target = $region59
        $region58: #{feature_matching_forward.16} parent=50 // pred_region
          %378 = vst [vmem:[#allocation2] sm:$0xff] 0.0
          %379 = vst [vmem:[#allocation2 + $0x8] sm:$0xff] 0.0
          %380 = vst [vmem:[#allocation2 + $0x10] sm:$0xff] 0.0
          %381 = vst [vmem:[#allocation2 + $0x18] sm:$0xff] 0.0
          %382 = vst [vmem:[#allocation2 + $0x20] sm:$0xff] 0.0
          %383 = vst [vmem:[#allocation2 + $0x28] sm:$0xff] 0.0
          %384 = vst [vmem:[#allocation2 + $0x30] sm:$0xff] 0.0
          %385 = vst [vmem:[#allocation2 + $0x38] sm:$0xff] 0.0
          %386 = vst [vmem:[#allocation2 + $0x40] sm:$0xff] 0.0
          %387 = vst [vmem:[#allocation2 + $0x48] sm:$0xff] 0.0
          %388 = vst [vmem:[#allocation2 + $0x50] sm:$0xff] 0.0
          %389 = vst [vmem:[#allocation2 + $0x58] sm:$0xff] 0.0
          %390 = vst [vmem:[#allocation2 + $0x60] sm:$0xff] 0.0
          %391 = vst [vmem:[#allocation2 + $0x68] sm:$0xff] 0.0
          %392 = vst [vmem:[#allocation2 + $0x70] sm:$0xff] 0.0
          %393 = vst [vmem:[#allocation2 + $0x78] sm:$0xff] 0.0
        $region59: #{feature_matching_forward.16} parent=50 // pred_fallthru
          _
        %v394 = vld [vmem:[#allocation2] sm:$0xff]
        %v395 = vld [vmem:[#allocation2 + $0x8] sm:$0xff]
        %v396 = vld [vmem:[#allocation2 + $0x10] sm:$0xff]
        %v397 = vld [vmem:[#allocation2 + $0x18] sm:$0xff]
        %v398 = vld [vmem:[#allocation2 + $0x20] sm:$0xff]
        %v399 = vld [vmem:[#allocation2 + $0x28] sm:$0xff]
        %v400 = vld [vmem:[#allocation2 + $0x30] sm:$0xff]
        %v401 = vld [vmem:[#allocation2 + $0x38] sm:$0xff]
        %v402 = vld [vmem:[#allocation2 + $0x40] sm:$0xff]
        %v403 = vld [vmem:[#allocation2 + $0x48] sm:$0xff]
        %v404 = vld [vmem:[#allocation2 + $0x50] sm:$0xff]
        %v405 = vld [vmem:[#allocation2 + $0x58] sm:$0xff]
        %v406 = vld [vmem:[#allocation2 + $0x60] sm:$0xff]
        %v407 = vld [vmem:[#allocation2 + $0x68] sm:$0xff]
        %v408 = vld [vmem:[#allocation2 + $0x70] sm:$0xff]
        %v409 = vld [vmem:[#allocation2 + $0x78] sm:$0xff]
        %v410 = vld [vmem:[%s295] sm:$0xff]
        %v411 = vld [vmem:[%s295 + $0x8] sm:$0xff]
        %v412 = vld [vmem:[%s295 + $0x10] sm:$0xff]
        %v413 = vld [vmem:[%s295 + $0x18] sm:$0xff]
        %v414 = vld [vmem:[%s295 + $0x20] sm:$0xff]
        %v415 = vld [vmem:[%s295 + $0x28] sm:$0xff]
        %v416 = vld [vmem:[%s295 + $0x30] sm:$0xff]
        %v417 = vld [vmem:[%s295 + $0x38] sm:$0xff]
        %v418 = vld [vmem:[%s295 + $0x40] sm:$0xff]
        %v419 = vld [vmem:[%s295 + $0x48] sm:$0xff]
        %v420 = vld [vmem:[%s295 + $0x50] sm:$0xff]
        %v421 = vld [vmem:[%s295 + $0x58] sm:$0xff]
        %v422 = vld [vmem:[%s295 + $0x60] sm:$0xff]
        %v423 = vld [vmem:[%s295 + $0x68] sm:$0xff]
        %v424 = vld [vmem:[%s295 + $0x70] sm:$0xff]
        %v425 = vld [vmem:[%s295 + $0x78] sm:$0xff]
        %v426 = vld [vmem:[%s295 + $0x80] sm:$0xff]
        %v427 = vld [vmem:[%s295 + $0x88] sm:$0xff]
        %v428 = vld [vmem:[%s295 + $0x90] sm:$0xff]
        %v429 = vld [vmem:[%s295 + $0x98] sm:$0xff]
        %v430 = vld [vmem:[%s295 + $0xa0] sm:$0xff]
        %v431 = vld [vmem:[%s295 + $0xa8] sm:$0xff]
        %v432 = vld [vmem:[%s295 + $0xb0] sm:$0xff]
        %v433 = vld [vmem:[%s295 + $0xb8] sm:$0xff]
        %v434 = vld [vmem:[%s295 + $0xc0] sm:$0xff]
        %v435 = vld [vmem:[%s295 + $0xc8] sm:$0xff]
        %v436 = vld [vmem:[%s295 + $0xd0] sm:$0xff]
        %v437 = vld [vmem:[%s295 + $0xd8] sm:$0xff]
        %v438 = vld [vmem:[%s295 + $0xe0] sm:$0xff]
        %v439 = vld [vmem:[%s295 + $0xe8] sm:$0xff]
        %v440 = vld [vmem:[%s295 + $0xf0] sm:$0xff]
        %v441 = vld [vmem:[%s295 + $0xf8] sm:$0xff]
        %v442 = vld [vmem:[%s353] sm:$0xf]
        %v443 = vld [vmem:[%s353 + $0x4] sm:$0xf]
        %v444 = vld [vmem:[%s353 + $0x8] sm:$0xf]
        %v445 = vld [vmem:[%s353 + $0xc] sm:$0xf]
        %v446 = vld [vmem:[%s353 + $0x10] sm:$0xf]
        %v447 = vld [vmem:[%s353 + $0x14] sm:$0xf]
        %v448 = vld [vmem:[%s353 + $0x18] sm:$0xf]
        %v449 = vld [vmem:[%s353 + $0x1c] sm:$0xf]
        %v450 = vld [vmem:[%s353 + $0x20] sm:$0xf]
        %v451 = vld [vmem:[%s353 + $0x24] sm:$0xf]
        %v452 = vld [vmem:[%s353 + $0x28] sm:$0xf]
        %v453 = vld [vmem:[%s353 + $0x2c] sm:$0xf]
        %v454 = vld [vmem:[%s353 + $0x30] sm:$0xf]
        %v455 = vld [vmem:[%s353 + $0x34] sm:$0xf]
        %v456 = vld [vmem:[%s353 + $0x38] sm:$0xf]
        %v457 = vld [vmem:[%s353 + $0x3c] sm:$0xf]
        %v458 = vld [vmem:[%s353 + $0x40] sm:$0xf]
        %v459 = vld [vmem:[%s353 + $0x44] sm:$0xf]
        %v460 = vld [vmem:[%s353 + $0x48] sm:$0xf]
        %v461 = vld [vmem:[%s353 + $0x4c] sm:$0xf]
        %v462 = vld [vmem:[%s353 + $0x50] sm:$0xf]
        %v463 = vld [vmem:[%s353 + $0x54] sm:$0xf]
        %v464 = vld [vmem:[%s353 + $0x58] sm:$0xf]
        %v465 = vld [vmem:[%s353 + $0x5c] sm:$0xf]
        %v466 = vld [vmem:[%s353 + $0x60] sm:$0xf]
        %v467 = vld [vmem:[%s353 + $0x64] sm:$0xf]
        %v468 = vld [vmem:[%s353 + $0x68] sm:$0xf]
        %v469 = vld [vmem:[%s353 + $0x6c] sm:$0xf]
        %v470 = vld [vmem:[%s353 + $0x70] sm:$0xf]
        %v471 = vld [vmem:[%s353 + $0x74] sm:$0xf]
        %v472 = vld [vmem:[%s353 + $0x78] sm:$0xf]
        %v473 = vld [vmem:[%s353 + $0x7c] sm:$0xf]
        %v474 = vld [vmem:[%s353 + $0x80] sm:$0xf]
        %v475 = vld [vmem:[%s353 + $0x84] sm:$0xf]
        %v476 = vld [vmem:[%s353 + $0x88] sm:$0xf]
        %v477 = vld [vmem:[%s353 + $0x8c] sm:$0xf]
        %v478 = vld [vmem:[%s353 + $0x90] sm:$0xf]
        %v479 = vld [vmem:[%s353 + $0x94] sm:$0xf]
        %v480 = vld [vmem:[%s353 + $0x98] sm:$0xf]
        %v481 = vld [vmem:[%s353 + $0x9c] sm:$0xf]
        %v482 = vld [vmem:[%s353 + $0xa0] sm:$0xf]
        %v483 = vld [vmem:[%s353 + $0xa4] sm:$0xf]
        %v484 = vld [vmem:[%s353 + $0xa8] sm:$0xf]
        %v485 = vld [vmem:[%s353 + $0xac] sm:$0xf]
        %v486 = vld [vmem:[%s353 + $0xb0] sm:$0xf]
        %v487 = vld [vmem:[%s353 + $0xb4] sm:$0xf]
        %v488 = vld [vmem:[%s353 + $0xb8] sm:$0xf]
        %v489 = vld [vmem:[%s353 + $0xbc] sm:$0xf]
        %v490 = vld [vmem:[%s353 + $0xc0] sm:$0xf]
        %v491 = vld [vmem:[%s353 + $0xc4] sm:$0xf]
        %v492 = vld [vmem:[%s353 + $0xc8] sm:$0xf]
        %v493 = vld [vmem:[%s353 + $0xcc] sm:$0xf]
        %v494 = vld [vmem:[%s353 + $0xd0] sm:$0xf]
        %v495 = vld [vmem:[%s353 + $0xd4] sm:$0xf]
        %v496 = vld [vmem:[%s353 + $0xd8] sm:$0xf]
        %v497 = vld [vmem:[%s353 + $0xdc] sm:$0xf]
        %v498 = vld [vmem:[%s353 + $0xe0] sm:$0xf]
        %v499 = vld [vmem:[%s353 + $0xe4] sm:$0xf]
        %v500 = vld [vmem:[%s353 + $0xe8] sm:$0xf]
        %v501 = vld [vmem:[%s353 + $0xec] sm:$0xf]
        %v502 = vld [vmem:[%s353 + $0xf0] sm:$0xf]
        %v503 = vld [vmem:[%s353 + $0xf4] sm:$0xf]
        %v504 = vld [vmem:[%s353 + $0xf8] sm:$0xf]
        %v505 = vld [vmem:[%s353 + $0xfc] sm:$0xf]
        %v538 = vunpack.c.l.b16 %v410
        %v539 = vunpack.c.h.b16 %v410
        %v540 = vunpack.c.l.b16 %v411
        %v541 = vunpack.c.h.b16 %v411
        %v542 = vunpack.c.l.b16 %v412
        %v543 = vunpack.c.h.b16 %v412
        %v544 = vunpack.c.l.b16 %v413
        %v545 = vunpack.c.h.b16 %v413
        %v546 = vunpack.c.l.b16 %v414
        %v547 = vunpack.c.h.b16 %v414
        %v548 = vunpack.c.l.b16 %v415
        %v549 = vunpack.c.h.b16 %v415
        %v550 = vunpack.c.l.b16 %v416
        %v551 = vunpack.c.h.b16 %v416
        %v552 = vunpack.c.l.b16 %v417
        %v553 = vunpack.c.h.b16 %v417
        %v554 = vunpack.c.l.b16 %v418
        %v555 = vunpack.c.h.b16 %v418
        %v556 = vunpack.c.l.b16 %v419
        %v557 = vunpack.c.h.b16 %v419
        %v558 = vunpack.c.l.b16 %v420
        %v559 = vunpack.c.h.b16 %v420
        %v560 = vunpack.c.l.b16 %v421
        %v561 = vunpack.c.h.b16 %v421
        %v562 = vunpack.c.l.b16 %v422
        %v563 = vunpack.c.h.b16 %v422
        %v564 = vunpack.c.l.b16 %v423
        %v565 = vunpack.c.h.b16 %v423
        %v566 = vunpack.c.l.b16 %v424
        %v567 = vunpack.c.h.b16 %v424
        %v568 = vunpack.c.l.b16 %v425
        %v569 = vunpack.c.h.b16 %v425
        %v570 = vunpack.c.l.b16 %v426
        %v571 = vunpack.c.h.b16 %v426
        %v572 = vunpack.c.l.b16 %v427
        %v573 = vunpack.c.h.b16 %v427
        %v574 = vunpack.c.l.b16 %v428
        %v575 = vunpack.c.h.b16 %v428
        %v576 = vunpack.c.l.b16 %v429
        %v577 = vunpack.c.h.b16 %v429
        %v578 = vunpack.c.l.b16 %v430
        %v579 = vunpack.c.h.b16 %v430
        %v580 = vunpack.c.l.b16 %v431
        %v581 = vunpack.c.h.b16 %v431
        %v582 = vunpack.c.l.b16 %v432
        %v583 = vunpack.c.h.b16 %v432
        %v584 = vunpack.c.l.b16 %v433
        %v585 = vunpack.c.h.b16 %v433
        %v586 = vunpack.c.l.b16 %v434
        %v587 = vunpack.c.h.b16 %v434
        %v588 = vunpack.c.l.b16 %v435
        %v589 = vunpack.c.h.b16 %v435
        %v590 = vunpack.c.l.b16 %v436
        %v591 = vunpack.c.h.b16 %v436
        %v592 = vunpack.c.l.b16 %v437
        %v593 = vunpack.c.h.b16 %v437
        %v594 = vunpack.c.l.b16 %v438
        %v595 = vunpack.c.h.b16 %v438
        %v596 = vunpack.c.l.b16 %v439
        %v597 = vunpack.c.h.b16 %v439
        %v598 = vunpack.c.l.b16 %v440
        %v599 = vunpack.c.h.b16 %v440
        %v600 = vunpack.c.l.b16 %v441
        %v601 = vunpack.c.h.b16 %v441
        %v602 = vpack.c.b16 %v542, %v538
        %v603 = vpack.c.b16 %v543, %v539
        %v604 = vpack.c.b16 %v544, %v540
        %v605 = vpack.c.b16 %v545, %v541
        %v606 = vpack.c.b16 %v550, %v546
        %v607 = vpack.c.b16 %v551, %v547
        %v608 = vpack.c.b16 %v552, %v548
        %v609 = vpack.c.b16 %v553, %v549
        %v610 = vpack.c.b16 %v558, %v554
        %v611 = vpack.c.b16 %v559, %v555
        %v612 = vpack.c.b16 %v560, %v556
        %v613 = vpack.c.b16 %v561, %v557
        %v614 = vpack.c.b16 %v566, %v562
        %v615 = vpack.c.b16 %v567, %v563
        %v616 = vpack.c.b16 %v568, %v564
        %v617 = vpack.c.b16 %v569, %v565
        %v618 = vpack.c.b16 %v574, %v570
        %v619 = vpack.c.b16 %v575, %v571
        %v620 = vpack.c.b16 %v576, %v572
        %v621 = vpack.c.b16 %v577, %v573
        %v622 = vpack.c.b16 %v582, %v578
        %v623 = vpack.c.b16 %v583, %v579
        %v624 = vpack.c.b16 %v584, %v580
        %v625 = vpack.c.b16 %v585, %v581
        %v626 = vpack.c.b16 %v590, %v586
        %v627 = vpack.c.b16 %v591, %v587
        %v628 = vpack.c.b16 %v592, %v588
        %v629 = vpack.c.b16 %v593, %v589
        %v630 = vpack.c.b16 %v598, %v594
        %v631 = vpack.c.b16 %v599, %v595
        %v632 = vpack.c.b16 %v600, %v596
        %v633 = vpack.c.b16 %v601, %v597
        %v730 = vunpack.c.l.b16 %v442
        %v731 = vunpack.c.l.b16 %v443
        %v732 = vunpack.c.l.b16 %v444
        %v733 = vunpack.c.l.b16 %v445
        %v734 = vunpack.c.l.b16 %v446
        %v735 = vunpack.c.l.b16 %v447
        %v736 = vunpack.c.l.b16 %v448
        %v737 = vunpack.c.l.b16 %v449
        %v738 = vunpack.c.l.b16 %v450
        %v739 = vunpack.c.l.b16 %v451
        %v740 = vunpack.c.l.b16 %v452
        %v741 = vunpack.c.l.b16 %v453
        %v742 = vunpack.c.l.b16 %v454
        %v743 = vunpack.c.l.b16 %v455
        %v744 = vunpack.c.l.b16 %v456
        %v745 = vunpack.c.l.b16 %v457
        %v746 = vunpack.c.l.b16 %v458
        %v747 = vunpack.c.l.b16 %v459
        %v748 = vunpack.c.l.b16 %v460
        %v749 = vunpack.c.l.b16 %v461
        %v750 = vunpack.c.l.b16 %v462
        %v751 = vunpack.c.l.b16 %v463
        %v752 = vunpack.c.l.b16 %v464
        %v753 = vunpack.c.l.b16 %v465
        %v754 = vunpack.c.l.b16 %v466
        %v755 = vunpack.c.l.b16 %v467
        %v756 = vunpack.c.l.b16 %v468
        %v757 = vunpack.c.l.b16 %v469
        %v758 = vunpack.c.l.b16 %v470
        %v759 = vunpack.c.l.b16 %v471
        %v760 = vunpack.c.l.b16 %v472
        %v761 = vunpack.c.l.b16 %v473
        %v762 = vunpack.c.l.b16 %v474
        %v763 = vunpack.c.l.b16 %v475
        %v764 = vunpack.c.l.b16 %v476
        %v765 = vunpack.c.l.b16 %v477
        %v766 = vunpack.c.l.b16 %v478
        %v767 = vunpack.c.l.b16 %v479
        %v768 = vunpack.c.l.b16 %v480
        %v769 = vunpack.c.l.b16 %v481
        %v770 = vunpack.c.l.b16 %v482
        %v771 = vunpack.c.l.b16 %v483
        %v772 = vunpack.c.l.b16 %v484
        %v773 = vunpack.c.l.b16 %v485
        %v774 = vunpack.c.l.b16 %v486
        %v775 = vunpack.c.l.b16 %v487
        %v776 = vunpack.c.l.b16 %v488
        %v777 = vunpack.c.l.b16 %v489
        %v778 = vunpack.c.l.b16 %v490
        %v779 = vunpack.c.l.b16 %v491
        %v780 = vunpack.c.l.b16 %v492
        %v781 = vunpack.c.l.b16 %v493
        %v782 = vunpack.c.l.b16 %v494
        %v783 = vunpack.c.l.b16 %v495
        %v784 = vunpack.c.l.b16 %v496
        %v785 = vunpack.c.l.b16 %v497
        %v786 = vunpack.c.l.b16 %v498
        %v787 = vunpack.c.l.b16 %v499
        %v788 = vunpack.c.l.b16 %v500
        %v789 = vunpack.c.l.b16 %v501
        %v790 = vunpack.c.l.b16 %v502
        %v791 = vunpack.c.l.b16 %v503
        %v792 = vunpack.c.l.b16 %v504
        %v793 = vunpack.c.l.b16 %v505
        %v794 = vpack.c.b16 %v731, %v730
        %v795 = vpack.c.b16 %v733, %v732
        %v796 = vpack.c.b16 %v735, %v734
        %v797 = vpack.c.b16 %v737, %v736
        %v798 = vpack.c.b16 %v739, %v738
        %v799 = vpack.c.b16 %v741, %v740
        %v800 = vpack.c.b16 %v743, %v742
        %v801 = vpack.c.b16 %v745, %v744
        %v802 = vpack.c.b16 %v747, %v746
        %v803 = vpack.c.b16 %v749, %v748
        %v804 = vpack.c.b16 %v751, %v750
        %v805 = vpack.c.b16 %v753, %v752
        %v806 = vpack.c.b16 %v755, %v754
        %v807 = vpack.c.b16 %v757, %v756
        %v808 = vpack.c.b16 %v759, %v758
        %v809 = vpack.c.b16 %v761, %v760
        %v810 = vpack.c.b16 %v763, %v762
        %v811 = vpack.c.b16 %v765, %v764
        %v812 = vpack.c.b16 %v767, %v766
        %v813 = vpack.c.b16 %v769, %v768
        %v814 = vpack.c.b16 %v771, %v770
        %v815 = vpack.c.b16 %v773, %v772
        %v816 = vpack.c.b16 %v775, %v774
        %v817 = vpack.c.b16 %v777, %v776
        %v818 = vpack.c.b16 %v779, %v778
        %v819 = vpack.c.b16 %v781, %v780
        %v820 = vpack.c.b16 %v783, %v782
        %v821 = vpack.c.b16 %v785, %v784
        %v822 = vpack.c.b16 %v787, %v786
        %v823 = vpack.c.b16 %v789, %v788
        %v824 = vpack.c.b16 %v791, %v790
        %v825 = vpack.c.b16 %v793, %v792
        %858 = vmatpush.bf16.msra.mxu0 %v801
        %859 = vmatpush.bf16.msra.mxu0 %v800
        %860 = vmatpush.bf16.msra.mxu0 %v799
        %861 = vmatpush.bf16.msra.mxu0 %v798
        %862 = vmatpush.bf16.msra.mxu0 %v797
        %863 = vmatpush.bf16.msra.mxu0 %v796
        %864 = vmatpush.bf16.msra.mxu0 %v795
        %865 = vmatpush.bf16.msra.mxu0 %v794
        %866 = vmatmul.bf16.gmra.mxu0 %v602
        %v867 = vpop.f32.mrf.mxu0
        %v868 = vadd.f32 0.0, %v867
        %v869 = vpop.f32.mrf.mxu0
        %v870 = vadd.f32 0.0, %v869
        %871 = vmatmul.bf16.gmra.mxu0 %v606
        %v872 = vpop.f32.mrf.mxu0
        %v873 = vadd.f32 0.0, %v872
        %v874 = vpop.f32.mrf.mxu0
        %v875 = vadd.f32 0.0, %v874
        %876 = vmatmul.bf16.gmra.mxu0 %v610
        %v877 = vpop.f32.mrf.mxu0
        %v878 = vadd.f32 0.0, %v877
        %v879 = vpop.f32.mrf.mxu0
        %v880 = vadd.f32 0.0, %v879
        %881 = vmatmul.bf16.gmra.mxu0 %v614
        %v882 = vpop.f32.mrf.mxu0
        %v883 = vadd.f32 0.0, %v882
        %v884 = vpop.f32.mrf.mxu0
        %v885 = vadd.f32 0.0, %v884
        %886 = vmatmul.bf16.gmra.mxu0 %v618
        %v887 = vpop.f32.mrf.mxu0
        %v888 = vadd.f32 0.0, %v887
        %v889 = vpop.f32.mrf.mxu0
        %v890 = vadd.f32 0.0, %v889
        %891 = vmatmul.bf16.gmra.mxu0 %v622
        %v892 = vpop.f32.mrf.mxu0
        %v893 = vadd.f32 0.0, %v892
        %v894 = vpop.f32.mrf.mxu0
        %v895 = vadd.f32 0.0, %v894
        %896 = vmatmul.bf16.gmra.mxu0 %v626
        %v897 = vpop.f32.mrf.mxu0
        %v898 = vadd.f32 0.0, %v897
        %v899 = vpop.f32.mrf.mxu0
        %v900 = vadd.f32 0.0, %v899
        %901 = vmatmul.bf16.gmra.mxu0 %v630
        %v902 = vpop.f32.mrf.mxu0
        %v903 = vadd.f32 0.0, %v902
        %v904 = vpop.f32.mrf.mxu0
        %v905 = vadd.f32 0.0, %v904
        %906 = vdwg.mxu0
        %907 = vmatpush.bf16.msra.mxu0 %v809
        %908 = vmatpush.bf16.msra.mxu0 %v808
        %909 = vmatpush.bf16.msra.mxu0 %v807
        %910 = vmatpush.bf16.msra.mxu0 %v806
        %911 = vmatpush.bf16.msra.mxu0 %v805
        %912 = vmatpush.bf16.msra.mxu0 %v804
        %913 = vmatpush.bf16.msra.mxu0 %v803
        %914 = vmatpush.bf16.msra.mxu0 %v802
        %915 = vmatmul.bf16.gmra.mxu0 %v603
        %v916 = vpop.f32.mrf.mxu0
        %v917 = vadd.f32 %v868, %v916
        %v918 = vpop.f32.mrf.mxu0
        %v919 = vadd.f32 %v870, %v918
        %920 = vmatmul.bf16.gmra.mxu0 %v607
        %v921 = vpop.f32.mrf.mxu0
        %v922 = vadd.f32 %v873, %v921
        %v923 = vpop.f32.mrf.mxu0
        %v924 = vadd.f32 %v875, %v923
        %925 = vmatmul.bf16.gmra.mxu0 %v611
        %v926 = vpop.f32.mrf.mxu0
        %v927 = vadd.f32 %v878, %v926
        %v928 = vpop.f32.mrf.mxu0
        %v929 = vadd.f32 %v880, %v928
        %930 = vmatmul.bf16.gmra.mxu0 %v615
        %v931 = vpop.f32.mrf.mxu0
        %v932 = vadd.f32 %v883, %v931
        %v933 = vpop.f32.mrf.mxu0
        %v934 = vadd.f32 %v885, %v933
        %935 = vmatmul.bf16.gmra.mxu0 %v619
        %v936 = vpop.f32.mrf.mxu0
        %v937 = vadd.f32 %v888, %v936
        %v938 = vpop.f32.mrf.mxu0
        %v939 = vadd.f32 %v890, %v938
        %940 = vmatmul.bf16.gmra.mxu0 %v623
        %v941 = vpop.f32.mrf.mxu0
        %v942 = vadd.f32 %v893, %v941
        %v943 = vpop.f32.mrf.mxu0
        %v944 = vadd.f32 %v895, %v943
        %945 = vmatmul.bf16.gmra.mxu0 %v627
        %v946 = vpop.f32.mrf.mxu0
        %v947 = vadd.f32 %v898, %v946
        %v948 = vpop.f32.mrf.mxu0
        %v949 = vadd.f32 %v900, %v948
        %950 = vmatmul.bf16.gmra.mxu0 %v631
        %v951 = vpop.f32.mrf.mxu0
        %v952 = vadd.f32 %v903, %v951
        %v953 = vpop.f32.mrf.mxu0
        %v954 = vadd.f32 %v905, %v953
        %955 = vdwg.mxu0
        %956 = vmatpush.bf16.msra.mxu0 %v817
        %957 = vmatpush.bf16.msra.mxu0 %v816
        %958 = vmatpush.bf16.msra.mxu0 %v815
        %959 = vmatpush.bf16.msra.mxu0 %v814
        %960 = vmatpush.bf16.msra.mxu0 %v813
        %961 = vmatpush.bf16.msra.mxu0 %v812
        %962 = vmatpush.bf16.msra.mxu0 %v811
        %963 = vmatpush.bf16.msra.mxu0 %v810
        %964 = vmatmul.bf16.gmra.mxu0 %v604
        %v965 = vpop.f32.mrf.mxu0
        %v966 = vadd.f32 %v917, %v965
        %v967 = vpop.f32.mrf.mxu0
        %v968 = vadd.f32 %v919, %v967
        %969 = vmatmul.bf16.gmra.mxu0 %v608
        %v970 = vpop.f32.mrf.mxu0
        %v971 = vadd.f32 %v922, %v970
        %v972 = vpop.f32.mrf.mxu0
        %v973 = vadd.f32 %v924, %v972
        %974 = vmatmul.bf16.gmra.mxu0 %v612
        %v975 = vpop.f32.mrf.mxu0
        %v976 = vadd.f32 %v927, %v975
        %v977 = vpop.f32.mrf.mxu0
        %v978 = vadd.f32 %v929, %v977
        %979 = vmatmul.bf16.gmra.mxu0 %v616
        %v980 = vpop.f32.mrf.mxu0
        %v981 = vadd.f32 %v932, %v980
        %v982 = vpop.f32.mrf.mxu0
        %v983 = vadd.f32 %v934, %v982
        %984 = vmatmul.bf16.gmra.mxu0 %v620
        %v985 = vpop.f32.mrf.mxu0
        %v986 = vadd.f32 %v937, %v985
        %v987 = vpop.f32.mrf.mxu0
        %v988 = vadd.f32 %v939, %v987
        %989 = vmatmul.bf16.gmra.mxu0 %v624
        %v990 = vpop.f32.mrf.mxu0
        %v991 = vadd.f32 %v942, %v990
        %v992 = vpop.f32.mrf.mxu0
        %v993 = vadd.f32 %v944, %v992
        %994 = vmatmul.bf16.gmra.mxu0 %v628
        %v995 = vpop.f32.mrf.mxu0
        %v996 = vadd.f32 %v947, %v995
        %v997 = vpop.f32.mrf.mxu0
        %v998 = vadd.f32 %v949, %v997
        %999 = vmatmul.bf16.gmra.mxu0 %v632
        %v1000 = vpop.f32.mrf.mxu0
        %v1001 = vadd.f32 %v952, %v1000
        %v1002 = vpop.f32.mrf.mxu0
        %v1003 = vadd.f32 %v954, %v1002
        %1004 = vdwg.mxu0
        %1005 = vmatpush.bf16.msra.mxu0 %v825
        %1006 = vmatpush.bf16.msra.mxu0 %v824
        %1007 = vmatpush.bf16.msra.mxu0 %v823
        %1008 = vmatpush.bf16.msra.mxu0 %v822
        %1009 = vmatpush.bf16.msra.mxu0 %v821
        %1010 = vmatpush.bf16.msra.mxu0 %v820
        %1011 = vmatpush.bf16.msra.mxu0 %v819
        %1012 = vmatpush.bf16.msra.mxu0 %v818
        %1013 = vmatmul.bf16.gmra.mxu0 %v605
        %v1014 = vpop.f32.mrf.mxu0
        %v1015 = vadd.f32 %v966, %v1014
        %v1016 = vpop.f32.mrf.mxu0
        %v1017 = vadd.f32 %v968, %v1016
        %1018 = vmatmul.bf16.gmra.mxu0 %v609
        %v1019 = vpop.f32.mrf.mxu0
        %v1020 = vadd.f32 %v971, %v1019
        %v1021 = vpop.f32.mrf.mxu0
        %v1022 = vadd.f32 %v973, %v1021
        %1023 = vmatmul.bf16.gmra.mxu0 %v613
        %v1024 = vpop.f32.mrf.mxu0
        %v1025 = vadd.f32 %v976, %v1024
        %v1026 = vpop.f32.mrf.mxu0
        %v1027 = vadd.f32 %v978, %v1026
        %1028 = vmatmul.bf16.gmra.mxu0 %v617
        %v1029 = vpop.f32.mrf.mxu0
        %v1030 = vadd.f32 %v981, %v1029
        %v1031 = vpop.f32.mrf.mxu0
        %v1032 = vadd.f32 %v983, %v1031
        %1033 = vmatmul.bf16.gmra.mxu0 %v621
        %v1034 = vpop.f32.mrf.mxu0
        %v1035 = vadd.f32 %v986, %v1034
        %v1036 = vpop.f32.mrf.mxu0
        %v1037 = vadd.f32 %v988, %v1036
        %1038 = vmatmul.bf16.gmra.mxu0 %v625
        %v1039 = vpop.f32.mrf.mxu0
        %v1040 = vadd.f32 %v991, %v1039
        %v1041 = vpop.f32.mrf.mxu0
        %v1042 = vadd.f32 %v993, %v1041
        %1043 = vmatmul.bf16.gmra.mxu0 %v629
        %v1044 = vpop.f32.mrf.mxu0
        %v1045 = vadd.f32 %v996, %v1044
        %v1046 = vpop.f32.mrf.mxu0
        %v1047 = vadd.f32 %v998, %v1046
        %1048 = vmatmul.bf16.gmra.mxu0 %v633
        %v1049 = vpop.f32.mrf.mxu0
        %v1050 = vadd.f32 %v1001, %v1049
        %v1051 = vpop.f32.mrf.mxu0
        %v1052 = vadd.f32 %v1003, %v1051
        %1053 = vdwg.mxu0
        %v1054 = vadd.f32 %v394, %v1015
        %v1055 = vadd.f32 %v395, %v1017
        %v1056 = vadd.f32 %v396, %v1020
        %v1057 = vadd.f32 %v397, %v1022
        %v1058 = vadd.f32 %v398, %v1025
        %v1059 = vadd.f32 %v399, %v1027
        %v1060 = vadd.f32 %v400, %v1030
        %v1061 = vadd.f32 %v401, %v1032
        %v1062 = vadd.f32 %v402, %v1035
        %v1063 = vadd.f32 %v403, %v1037
        %v1064 = vadd.f32 %v404, %v1040
        %v1065 = vadd.f32 %v405, %v1042
        %v1066 = vadd.f32 %v406, %v1045
        %v1067 = vadd.f32 %v407, %v1047
        %v1068 = vadd.f32 %v408, %v1050
        %v1069 = vadd.f32 %v409, %v1052
        %1070 = vst [vmem:[#allocation2] sm:$0xff] %v1054
        %1071 = vst [vmem:[#allocation2 + $0x8] sm:$0xff] %v1055
        %1072 = vst [vmem:[#allocation2 + $0x10] sm:$0xff] %v1056
        %1073 = vst [vmem:[#allocation2 + $0x18] sm:$0xff] %v1057
        %1074 = vst [vmem:[#allocation2 + $0x20] sm:$0xff] %v1058
        %1075 = vst [vmem:[#allocation2 + $0x28] sm:$0xff] %v1059
        %1076 = vst [vmem:[#allocation2 + $0x30] sm:$0xff] %v1060
        %1077 = vst [vmem:[#allocation2 + $0x38] sm:$0xff] %v1061
        %1078 = vst [vmem:[#allocation2 + $0x40] sm:$0xff] %v1062
        %1079 = vst [vmem:[#allocation2 + $0x48] sm:$0xff] %v1063
        %1080 = vst [vmem:[#allocation2 + $0x50] sm:$0xff] %v1064
        %1081 = vst [vmem:[#allocation2 + $0x58] sm:$0xff] %v1065
        %1082 = vst [vmem:[#allocation2 + $0x60] sm:$0xff] %v1066
        %1083 = vst [vmem:[#allocation2 + $0x68] sm:$0xff] %v1067
        %1084 = vst [vmem:[#allocation2 + $0x70] sm:$0xff] %v1068
        %1085 = vst [vmem:[#allocation2 + $0x78] sm:$0xff] %v1069
        %p1086 = scmp.eq.s32.totalorder %s23, 2
        // Predicated region
        $region60: #{feature_matching_forward.16} parent=50 // pred_check
          %p1087 = pneg %p1086
        $region61: #{feature_matching_forward.16} parent=50 // pred_check_branch
          %1089 = sbr.rel (%p1087) target = $region63
        $region62: #{feature_matching_forward.16} parent=50 // pred_region
          %v1090 = vld [vmem:[#allocation2] sm:$0xff]
          %v1091 = vld [vmem:[#allocation2 + $0x8] sm:$0xff]
          %v1092 = vld [vmem:[#allocation2 + $0x10] sm:$0xff]
          %v1093 = vld [vmem:[#allocation2 + $0x18] sm:$0xff]
          %v1094 = vld [vmem:[#allocation2 + $0x20] sm:$0xff]
          %v1095 = vld [vmem:[#allocation2 + $0x28] sm:$0xff]
          %v1096 = vld [vmem:[#allocation2 + $0x30] sm:$0xff]
          %v1097 = vld [vmem:[#allocation2 + $0x38] sm:$0xff]
          %v1098 = vld [vmem:[#allocation2 + $0x40] sm:$0xff]
          %v1099 = vld [vmem:[#allocation2 + $0x48] sm:$0xff]
          %v1100 = vld [vmem:[#allocation2 + $0x50] sm:$0xff]
          %v1101 = vld [vmem:[#allocation2 + $0x58] sm:$0xff]
          %v1102 = vld [vmem:[#allocation2 + $0x60] sm:$0xff]
          %v1103 = vld [vmem:[#allocation2 + $0x68] sm:$0xff]
          %v1104 = vld [vmem:[#allocation2 + $0x70] sm:$0xff]
          %v1105 = vld [vmem:[#allocation2 + $0x78] sm:$0xff]
          %v1106 = vld [vmem:[%s359] sm:$0xff]
          %v1107 = vld [vmem:[%s359 + $0x8] sm:$0xff]
          %v1108 = vld [vmem:[%s359 + $0x10] sm:$0xff]
          %v1109 = vld [vmem:[%s359 + $0x18] sm:$0xff]
          %v1110 = vld [vmem:[%s359 + $0x20] sm:$0xff]
          %v1111 = vld [vmem:[%s359 + $0x28] sm:$0xff]
          %v1112 = vld [vmem:[%s359 + $0x30] sm:$0xff]
          %v1113 = vld [vmem:[%s359 + $0x38] sm:$0xff]
          %v1114 = vld [vmem:[%s359 + $0x40] sm:$0xff]
          %v1115 = vld [vmem:[%s359 + $0x48] sm:$0xff]
          %v1116 = vld [vmem:[%s359 + $0x50] sm:$0xff]
          %v1117 = vld [vmem:[%s359 + $0x58] sm:$0xff]
          %v1118 = vld [vmem:[%s359 + $0x60] sm:$0xff]
          %v1119 = vld [vmem:[%s359 + $0x68] sm:$0xff]
          %v1120 = vld [vmem:[%s359 + $0x70] sm:$0xff]
          %v1121 = vld [vmem:[%s359 + $0x78] sm:$0xff]
          %1123 = vset.pattern.permute.xlu0 0
          %1124 = vperm.xlu0 %1123, %v1106
          %v1125 = vpop.permute.xlu0 %1124
          %1128 = vset.pattern.permute.xlu0 0
          %1129 = vperm.xlu0 %1128, %v1107
          %v1130 = vpop.permute.xlu0 %1129
          %1133 = vset.pattern.permute.xlu0 0
          %1134 = vperm.xlu0 %1133, %v1108
          %v1135 = vpop.permute.xlu0 %1134
          %1138 = vset.pattern.permute.xlu0 0
          %1139 = vperm.xlu0 %1138, %v1109
          %v1140 = vpop.permute.xlu0 %1139
          %1143 = vset.pattern.permute.xlu0 0
          %1144 = vperm.xlu0 %1143, %v1110
          %v1145 = vpop.permute.xlu0 %1144
          %1148 = vset.pattern.permute.xlu0 0
          %1149 = vperm.xlu0 %1148, %v1111
          %v1150 = vpop.permute.xlu0 %1149
          %1153 = vset.pattern.permute.xlu0 0
          %1154 = vperm.xlu0 %1153, %v1112
          %v1155 = vpop.permute.xlu0 %1154
          %1158 = vset.pattern.permute.xlu0 0
          %1159 = vperm.xlu0 %1158, %v1113
          %v1160 = vpop.permute.xlu0 %1159
          %1163 = vset.pattern.permute.xlu0 0
          %1164 = vperm.xlu0 %1163, %v1114
          %v1165 = vpop.permute.xlu0 %1164
          %1168 = vset.pattern.permute.xlu0 0
          %1169 = vperm.xlu0 %1168, %v1115
          %v1170 = vpop.permute.xlu0 %1169
          %1173 = vset.pattern.permute.xlu0 0
          %1174 = vperm.xlu0 %1173, %v1116
          %v1175 = vpop.permute.xlu0 %1174
          %1178 = vset.pattern.permute.xlu0 0
          %1179 = vperm.xlu0 %1178, %v1117
          %v1180 = vpop.permute.xlu0 %1179
          %1183 = vset.pattern.permute.xlu0 0
          %1184 = vperm.xlu0 %1183, %v1118
          %v1185 = vpop.permute.xlu0 %1184
          %1188 = vset.pattern.permute.xlu0 0
          %1189 = vperm.xlu0 %1188, %v1119
          %v1190 = vpop.permute.xlu0 %1189
          %1193 = vset.pattern.permute.xlu0 0
          %1194 = vperm.xlu0 %1193, %v1120
          %v1195 = vpop.permute.xlu0 %1194
          %1198 = vset.pattern.permute.xlu0 0
          %1199 = vperm.xlu0 %1198, %v1121
          %v1200 = vpop.permute.xlu0 %1199
          %v1202 = vadd.f32 %v1090, %v1125
          %v1203 = vadd.f32 %v1091, %v1130
          %v1204 = vadd.f32 %v1092, %v1135
          %v1205 = vadd.f32 %v1093, %v1140
          %v1206 = vadd.f32 %v1094, %v1145
          %v1207 = vadd.f32 %v1095, %v1150
          %v1208 = vadd.f32 %v1096, %v1155
          %v1209 = vadd.f32 %v1097, %v1160
          %v1210 = vadd.f32 %v1098, %v1165
          %v1211 = vadd.f32 %v1099, %v1170
          %v1212 = vadd.f32 %v1100, %v1175
          %v1213 = vadd.f32 %v1101, %v1180
          %v1214 = vadd.f32 %v1102, %v1185
          %v1215 = vadd.f32 %v1103, %v1190
          %v1216 = vadd.f32 %v1104, %v1195
          %v1217 = vadd.f32 %v1105, %v1200
          %1218 = vst [vmem:[%s372] sm:$0xff] %v1202
          %1219 = vst [vmem:[%s372 + $0x8] sm:$0xff] %v1203
          %1220 = vst [vmem:[%s372 + $0x10] sm:$0xff] %v1204
          %1221 = vst [vmem:[%s372 + $0x18] sm:$0xff] %v1205
          %1222 = vst [vmem:[%s372 + $0x20] sm:$0xff] %v1206
          %1223 = vst [vmem:[%s372 + $0x28] sm:$0xff] %v1207
          %1224 = vst [vmem:[%s372 + $0x30] sm:$0xff] %v1208
          %1225 = vst [vmem:[%s372 + $0x38] sm:$0xff] %v1209
          %1226 = vst [vmem:[%s372 + $0x40] sm:$0xff] %v1210
          %1227 = vst [vmem:[%s372 + $0x48] sm:$0xff] %v1211
          %1228 = vst [vmem:[%s372 + $0x50] sm:$0xff] %v1212
          %1229 = vst [vmem:[%s372 + $0x58] sm:$0xff] %v1213
          %1230 = vst [vmem:[%s372 + $0x60] sm:$0xff] %v1214
          %1231 = vst [vmem:[%s372 + $0x68] sm:$0xff] %v1215
          %1232 = vst [vmem:[%s372 + $0x70] sm:$0xff] %v1216
          %1233 = vst [vmem:[%s372 + $0x78] sm:$0xff] %v1217
        $region63: #{feature_matching_forward.16} parent=50 // pred_fallthru
          _
        %s1234 = smul.u32 16, %s21
        %p1235 = scmp.lt.s32.totalorder %s20, 1
        %s1236 = scalar_select %p1235, %s20, 1
        %p1237 = scmp.lt.s32.totalorder %s1234, 15
        %s1238 = scalar_select %p1237, %s1234, 15
        %p1239 = scmp.lt.s32.totalorder %s22, 0
        %s1240 = scalar_select %p1239, %s22, 0
        %s1241 = sadd.s32 %s1240, %s1238
        %s1242 = smul.addr %s1236, 16
        %s1243 = sadd.s32 %s1241, %s1242
        %s1244 = smul.addr %s1243, 8
        %s1245 = scalar_lea.vmem %s3, %s1244
        // Predicated region
        $region64: #{feature_matching_forward.16} parent=50 // pred_check
          %p1246 = pneg %p146
        $region65: #{feature_matching_forward.16} parent=50 // pred_check_branch
          %1248 = sbr.rel (%p1246) target = $region67
        $region66: #{feature_matching_forward.16} parent=50 // pred_region
          %s1249 = smul.u32 16, %s21
        $region67: #{feature_matching_forward.16} parent=50 // pred_fallthru
          _
      $region51: #{feature_matching_forward.16} parent=5 // pred_fallthru
        _
      %p1250 = scmp.le.s32.totalorder 2, %s9
      // Predicated region
      $region68: #{feature_matching_forward.16} parent=5 // pred_check
        %p1251 = pneg %p1250
      $region69: #{feature_matching_forward.16} parent=5 // pred_check_branch
        %1253 = sbr.rel (%p1251) target = $region71
      $region70: #{feature_matching_forward.16} parent=5 // pred_region
        %s1254 = ssub.s32 %s9, 2
        // Predicated region
        $region72: #{feature_matching_forward.16} parent=70 // pred_check
          %p1255 = pneg %p152
        $region73: #{feature_matching_forward.16} parent=70 // pred_check_branch
          %1257 = sbr.rel (%p1255) target = $region75
        $region74: #{feature_matching_forward.16} parent=70 // pred_region
          %s1258 = smul.u32 16, %s25
          %p1259 = scmp.lt.s32.totalorder %s24, 1
          %s1260 = scalar_select %p1259, %s24, 1
          %p1261 = scmp.lt.s32.totalorder %s1258, 15
          %s1262 = scalar_select %p1261, %s1258, 15
          %p1263 = scmp.lt.s32.totalorder %s26, 0
          %s1264 = scalar_select %p1263, %s26, 0
          %s1265 = sadd.s32 %s1264, %s1262
          %s1266 = smul.addr %s1260, 16
          %s1267 = sadd.s32 %s1265, %s1266
          %s1268 = smul.addr %s1267, 8
          %s1269 = scalar_lea.vmem %s3, %s1268
        $region75: #{feature_matching_forward.16} parent=70 // pred_fallthru
          _
      $region71: #{feature_matching_forward.16} parent=5 // pred_fallthru
        _
    $region6: #{feature_matching_forward.16} parent=1 // loop_footer
      %s13 = sadd.s32 1, %s9
    $region7: #{feature_matching_forward.16} parent=1 // loop_footer_branch
      %8 = sbr.rel target = $region3
    $region8: #{feature_matching_forward.16} parent=1 // loop_exit
      _

// kernel: feature_matching_forward.18
$region0: #{feature_matching_forward.18}
  #allocation0 [shape = 'u32[]', space=smem, size = 0x4, offset = 0x4, fixed_abs, tag = 'smem constant byte address 0x4 - core index']
  #allocation1 [shape = 'u32[72,128]{1,0:T(1,128)}', space=vmem, size = 0x9000, scoped, tag = 'internal scratch']
  #allocation2 [shape = 'f32[16,128]{1,0:T(8,128)}', space=vmem, size = 0x2000, scoped, tag = 'scratch operand']
  %s0 = inlined_call_operand.vmem [shape: bf16[16,256], index: 0, kind: input, shape index: {}]
  %s1 = inlined_call_operand.vmem [shape: bf16[2,256,128], index: 1, kind: input, shape index: {}]
  %s2 = inlined_call_operand.vmem [shape: f32[16,1], index: 2, kind: input, shape index: {}]
  %s3 = inlined_call_operand.vmem [shape: f32[2,16,128], index: 3, kind: output, shape index: {}]
  %s4 = sld [smem:[#allocation0]]
  $region53: #{feature_matching_forward.18} parent=0
    _
  %s6 = ssub.s32 1, %s4
  %s7 = scalar_select 0, %s6, %s4
  loop: start=0, step=1, limit=4
  $region2: #{feature_matching_forward.18} parent=0 // loop_pre_header
    _
  $region3: #{feature_matching_forward.18} parent=0 // loop_header
    %s9 = sphi 0, %s13
    %p10 = scmp.ge.s32.totalorder %s9, 4
    %s16 = sphi 0, %s42
    %s17 = sphi 0, %s38
    %s18 = sphi 0, %s34
    %s19 = sphi 0, %s30
    %s20 = sphi 0, %s16
    %s21 = sphi 0, %s17
    %s22 = sphi 0, %s18
    %s23 = sphi 0, %s19
    %s24 = sphi 0, %s20
    %s25 = sphi 0, %s21
    %s26 = sphi 0, %s22
    %s27 = sphi 0, %s23
    %s47 = sphi 0, %s49
    %s50 = sphi 0, %s47
    %s51 = sphi 0, %s50
    %s67 = sphi 0, %s51
    %s77 = sphi 0, %s79
    %s80 = sphi 0, %s77
    %s81 = sphi 0, %s80
    %s97 = sphi 0, %s81
    %s103 = sphi 0, %s105
    %s106 = sphi 0, %s103
    %s107 = sphi 0, %s106
    %s123 = sphi 0, %s107
    %s133 = sphi 0, %s135
    %s136 = sphi 0, %s133
    %s137 = sphi 0, %s136
    %s153 = sphi 0, %s137
  $region4: #{feature_matching_forward.18} parent=0 // loop_header_branch
    %12 = sbr.rel (%p10) target = $region8
  $region5: #{feature_matching_forward.18} parent=0 // loop_body
    %s14 = ssub.s32 %s9, 1
    %s15 = ssub.s32 %s9, 2
    %s28 = sadd.s32 1, %s19
    %p29 = scmp.ge.s32.totalorder %s28, 1
    %s30 = scalar_select %p29, 0, %s28
    %s31 = sadd.s32 1, %s18
    %s32 = scalar_select %p29, %s31, %s18
    %p33 = scmp.ge.s32.totalorder %s32, 1
    %s34 = scalar_select %p33, 0, %s32
    %s35 = sadd.s32 1, %s17
    %s36 = scalar_select %p33, %s35, %s17
    %p37 = scmp.ge.s32.totalorder %s36, 1
    %s38 = scalar_select %p37, 0, %s36
    %s39 = sadd.s32 1, %s16
    %s40 = scalar_select %p37, %s39, %s16
    %p41 = scmp.ge.s32.totalorder %s40, 2
    %s42 = scalar_select %p41, 0, %s40
    %s43 = ssub.s32 %s17, %s38
    %s44 = ssub.s32 %s19, %s30
    %s45 = sor.u32 %s43, %s44
    %p46 = scmp.eq.s32.totalorder %s45, 0
    %s48 = sadd.s32 %s47, 1
    %s49 = scalar_select %p46, %s47, %s48
    %p52 = pneg %p46
    %p53 = scmp.eq.s32.totalorder %s9, 1
    %p54 = por %p52, %p53
    %p55 = scmp.ne.s32.totalorder %s47, %s50
    %p56 = scmp.eq.s32.totalorder %s9, 0
    %p57 = por %p55, %p56
    %p58 = scmp.ne.s32.totalorder %s47, %s50
    %p59 = scmp.eq.s32.totalorder %s14, 1
    %p60 = por %p58, %p59
    %p61 = scmp.ne.s32.totalorder %s50, %s51
    %p62 = scmp.eq.s32.totalorder %s14, 0
    %p63 = por %p61, %p62
    %p64 = scmp.ne.s32.totalorder %s50, %s51
    %p65 = scmp.eq.s32.totalorder %s15, 1
    %p66 = por %p64, %p65
    %p68 = scmp.ne.s32.totalorder %s51, %s67
    %p69 = scmp.eq.s32.totalorder %s15, 0
    %p70 = por %p68, %p69
    %s71 = ssub.s32 %s16, %s42
    %s72 = ssub.s32 %s19, %s30
    %s73 = sor.u32 %s71, %s72
    %s74 = ssub.s32 %s18, %s34
    %s75 = sor.u32 %s73, %s74
    %p76 = scmp.eq.s32.totalorder %s75, 0
    %s78 = sadd.s32 %s77, 1
    %s79 = scalar_select %p76, %s77, %s78
    %p82 = pneg %p76
    %p83 = scmp.eq.s32.totalorder %s9, 1
    %p84 = por %p82, %p83
    %p85 = scmp.ne.s32.totalorder %s77, %s80
    %p86 = scmp.eq.s32.totalorder %s9, 0
    %p87 = por %p85, %p86
    %p88 = scmp.ne.s32.totalorder %s77, %s80
    %p89 = scmp.eq.s32.totalorder %s14, 1
    %p90 = por %p88, %p89
    %p91 = scmp.ne.s32.totalorder %s80, %s81
    %p92 = scmp.eq.s32.totalorder %s14, 0
    %p93 = por %p91, %p92
    %p94 = scmp.ne.s32.totalorder %s80, %s81
    %p95 = scmp.eq.s32.totalorder %s15, 1
    %p96 = por %p94, %p95
    %p98 = scmp.ne.s32.totalorder %s81, %s97
    %p99 = scmp.eq.s32.totalorder %s15, 0
    %p100 = por %p98, %p99
    %s101 = ssub.s32 %s17, %s38
    %p102 = scmp.eq.s32.totalorder %s101, 0
    %s104 = sadd.s32 %s103, 1
    %s105 = scalar_select %p102, %s103, %s104
    %p108 = pneg %p102
    %p109 = scmp.eq.s32.totalorder %s9, 1
    %p110 = por %p108, %p109
    %p111 = scmp.ne.s32.totalorder %s103, %s106
    %p112 = scmp.eq.s32.totalorder %s9, 0
    %p113 = por %p111, %p112
    %p114 = scmp.ne.s32.totalorder %s103, %s106
    %p115 = scmp.eq.s32.totalorder %s14, 1
    %p116 = por %p114, %p115
    %p117 = scmp.ne.s32.totalorder %s106, %s107
    %p118 = scmp.eq.s32.totalorder %s14, 0
    %p119 = por %p117, %p118
    %p120 = scmp.ne.s32.totalorder %s106, %s107
    %p121 = scmp.eq.s32.totalorder %s15, 1
    %p122 = por %p120, %p121
    %p124 = scmp.ne.s32.totalorder %s107, %s123
    %p125 = scmp.eq.s32.totalorder %s15, 0
    %p126 = por %p124, %p125
    %s127 = ssub.s32 %s16, %s42
    %s128 = ssub.s32 %s17, %s38
    %s129 = sor.u32 %s127, %s128
    %s130 = ssub.s32 %s18, %s34
    %s131 = sor.u32 %s129, %s130
    %p132 = scmp.eq.s32.totalorder %s131, 0
    %s134 = sadd.s32 %s133, 1
    %s135 = scalar_select %p132, %s133, %s134
    %p138 = pneg %p132
    %p139 = scmp.eq.s32.totalorder %s9, 1
    %p140 = por %p138, %p139
    %p141 = scmp.ne.s32.totalorder %s133, %s136
    %p142 = scmp.eq.s32.totalorder %s9, 0
    %p143 = por %p141, %p142
    %p144 = scmp.ne.s32.totalorder %s133, %s136
    %p145 = scmp.eq.s32.totalorder %s14, 1
    %p146 = por %p144, %p145
    %p147 = scmp.ne.s32.totalorder %s136, %s137
    %p148 = scmp.eq.s32.totalorder %s14, 0
    %p149 = por %p147, %p148
    %p150 = scmp.ne.s32.totalorder %s136, %s137
    %p151 = scmp.eq.s32.totalorder %s15, 1
    %p152 = por %p150, %p151
    %p154 = scmp.ne.s32.totalorder %s137, %s153
    %p155 = scmp.eq.s32.totalorder %s15, 0
    %p156 = por %p154, %p155
    %p157 = scmp.le.s32.totalorder 1, %s9
    %p158 = scmp.lt.s32.totalorder %s9, 3
    %p159 = pnand %p157, %p158
    %p160 = pneg %p159
    // Predicated region
    $region9: #{feature_matching_forward.18} parent=5 // pred_check
      _
    $region10: #{feature_matching_forward.18} parent=5 // pred_check_branch
      %162 = sbr.rel (%p159) target = $region12
    $region11: #{feature_matching_forward.18} parent=5 // pred_region
      %s163 = ssub.s32 %s9, 1
      // Predicated region
      $region13: #{feature_matching_forward.18} parent=11 // pred_check
        %p164 = pneg %p63
      $region14: #{feature_matching_forward.18} parent=11 // pred_check_branch
        %166 = sbr.rel (%p164) target = $region16
      $region15: #{feature_matching_forward.18} parent=11 // pred_region
        %s167 = smul.u32 2, %s21
        %s168 = smul.u32 2, %s23
        %p169 = scmp.lt.s32.totalorder %s167, 1
        %s170 = scalar_select %p169, %s167, 1
        %p171 = scmp.lt.s32.totalorder %s168, 1
        %s172 = scalar_select %p171, %s168, 1
        %s173 = smul.addr %s170, 2
        %s174 = sadd.s32 %s172, %s173
        %s175 = smul.addr %s174, 4
        %s176 = scalar_lea.vmem %s0, %s175
        %s177 = smul.u32 2, %s21
        %s178 = smul.u32 2, %s23
      $region16: #{feature_matching_forward.18} parent=11 // pred_fallthru
        _
      // Predicated region
      $region17: #{feature_matching_forward.18} parent=11 // pred_check
        %p179 = pneg %p119
      $region18: #{feature_matching_forward.18} parent=11 // pred_check_branch
        %181 = sbr.rel (%p179) target = $region20
      $region19: #{feature_matching_forward.18} parent=11 // pred_region
        %s182 = smul.u32 2, %s21
        %p183 = scmp.lt.s32.totalorder %s182, 1
        %s184 = scalar_select %p183, %s182, 1
        %s185 = smul.addr %s184, 8
        %s186 = scalar_lea.vmem %s2, %s185
        %s187 = smul.u32 2, %s21
      $region20: #{feature_matching_forward.18} parent=11 // pred_fallthru
        _
    $region12: #{feature_matching_forward.18} parent=5 // pred_fallthru
      _
    %p188 = scmp.lt.s32.totalorder %s9, 2
    // Predicated region
    $region21: #{feature_matching_forward.18} parent=5 // pred_check
      %p189 = pneg %p188
    $region22: #{feature_matching_forward.18} parent=5 // pred_check_branch
      %191 = sbr.rel (%p189) target = $region24
    $region23: #{feature_matching_forward.18} parent=5 // pred_region
      // Predicated region
      $region25: #{feature_matching_forward.18} parent=23 // pred_check
        %p192 = pneg %p87
      $region26: #{feature_matching_forward.18} parent=23 // pred_check_branch
        %194 = sbr.rel (%p192) target = $region28
      $region27: #{feature_matching_forward.18} parent=23 // pred_region
        %s195 = smul.u32 32, %s19
        %p196 = scmp.lt.s32.totalorder %s16, 1
        %s197 = scalar_select %p196, %s16, 1
        %p198 = scmp.lt.s32.totalorder %s195, 31
        %s199 = scalar_select %p198, %s195, 31
        %p200 = scmp.lt.s32.totalorder %s18, 0
        %s201 = scalar_select %p200, %s18, 0
        %s202 = sadd.s32 %s201, %s199
        %s203 = smul.addr %s197, 32
        %s204 = sadd.s32 %s202, %s203
        %s205 = smul.addr %s204, 4
        %s206 = scalar_lea.vmem %s1, %s205
        %s207 = smul.u32 32, %s19
      $region28: #{feature_matching_forward.18} parent=23 // pred_fallthru
        _
    $region24: #{feature_matching_forward.18} parent=5 // pred_fallthru
      _
    %p208 = scmp.le.s32.totalorder 1, %s9
    %p209 = scmp.lt.s32.totalorder %s9, 3
    %p210 = pnand %p208, %p209
    %p211 = pneg %p210
    // Predicated region
    $region29: #{feature_matching_forward.18} parent=5 // pred_check
      _
    $region30: #{feature_matching_forward.18} parent=5 // pred_check_branch
      %213 = sbr.rel (%p210) target = $region32
    $region31: #{feature_matching_forward.18} parent=5 // pred_region
      %s214 = ssub.s32 %s9, 1
      %s215 = smul.u32 2, %s21
      %s216 = smul.u32 2, %s23
      %p217 = scmp.lt.s32.totalorder %s215, 1
      %s218 = scalar_select %p217, %s215, 1
      %p219 = scmp.lt.s32.totalorder %s216, 1
      %s220 = scalar_select %p219, %s216, 1
      %s221 = smul.addr %s218, 2
      %s222 = sadd.s32 %s220, %s221
      %s223 = smul.addr %s222, 4
      %s224 = scalar_lea.vmem %s0, %s223
      %p225 = pneg %p63
      %p226 = pneg %p60
      %s227 = smul.u32 32, %s23
      %p228 = scmp.lt.s32.totalorder %s20, 1
      %s229 = scalar_select %p228, %s20, 1
      %p230 = scmp.lt.s32.totalorder %s227, 31
      %s231 = scalar_select %p230, %s227, 31
      %p232 = scmp.lt.s32.totalorder %s22, 0
      %s233 = scalar_select %p232, %s22, 0
      %s234 = sadd.s32 %s233, %s231
      %s235 = smul.addr %s229, 32
      %s236 = sadd.s32 %s234, %s235
      %s237 = smul.addr %s236, 4
      %s238 = scalar_lea.vmem %s1, %s237
      %p239 = pneg %p93
      %p240 = pneg %p90
      %s241 = smul.u32 2, %s21
      %p242 = scmp.lt.s32.totalorder %s241, 1
      %s243 = scalar_select %p242, %s241, 1
      %s244 = smul.addr %s243, 8
      %s245 = scalar_lea.vmem %s2, %s244
      %p246 = pneg %p119
      %p247 = pneg %p116
      %p248 = pneg %p149
      %p249 = pneg %p146
      %s250 = smul.u32 2, %s21
      %p251 = scmp.lt.s32.totalorder %s20, 1
      %s252 = scalar_select %p251, %s20, 1
      %p253 = scmp.lt.s32.totalorder %s250, 1
      %s254 = scalar_select %p253, %s250, 1
      %p255 = scmp.lt.s32.totalorder %s22, 0
      %s256 = scalar_select %p255, %s22, 0
      %s257 = sadd.s32 %s256, %s254
      %s258 = smul.addr %s252, 2
      %s259 = sadd.s32 %s257, %s258
      %s260 = smul.addr %s259, 8
      %s261 = scalar_lea.vmem %s3, %s260
      %s262 = smul.u32 2, %s21
      %s263 = smul.u32 2, %s23
      %p264 = scmp.lt.s32.totalorder %s262, 1
      %s265 = scalar_select %p264, %s262, 1
      %p266 = scmp.lt.s32.totalorder %s263, 1
      %s267 = scalar_select %p266, %s263, 1
      %s268 = smul.addr %s265, 2
      %s269 = sadd.s32 %s267, %s268
      %s270 = smul.addr %s269, 4
      %s271 = scalar_lea.vmem %s0, %s270
      %s272 = smul.u32 2, %s21
      %s273 = smul.u32 2, %s23
      %s274 = smul.u32 32, %s23
      %p275 = scmp.lt.s32.totalorder %s20, 1
      %s276 = scalar_select %p275, %s20, 1
      %p277 = scmp.lt.s32.totalorder %s274, 31
      %s278 = scalar_select %p277, %s274, 31
      %p279 = scmp.lt.s32.totalorder %s22, 0
      %s280 = scalar_select %p279, %s22, 0
      %s281 = sadd.s32 %s280, %s278
      %s282 = smul.addr %s276, 32
      %s283 = sadd.s32 %s281, %s282
      %s284 = smul.addr %s283, 4
      %s285 = scalar_lea.vmem %s1, %s284
      %s286 = smul.u32 32, %s23
      %s287 = smul.u32 2, %s21
      %p288 = scmp.lt.s32.totalorder %s287, 1
      %s289 = scalar_select %p288, %s287, 1
      %s290 = smul.addr %s289, 8
      %s291 = scalar_lea.vmem %s2, %s290
      %s292 = smul.u32 2, %s21
      %s293 = smul.u32 2, %s21
      %p294 = scmp.lt.s32.totalorder %s20, 1
      %s295 = scalar_select %p294, %s20, 1
      %p296 = scmp.lt.s32.totalorder %s293, 1
      %s297 = scalar_select %p296, %s293, 1
      %p298 = scmp.lt.s32.totalorder %s22, 0
      %s299 = scalar_select %p298, %s22, 0
      %s300 = sadd.s32 %s299, %s297
      %s301 = smul.addr %s295, 2
      %s302 = sadd.s32 %s300, %s301
      %s303 = smul.addr %s302, 8
      %s304 = scalar_lea.vmem %s3, %s303
      %s305 = smul.u32 2, %s21
      %p306 = scmp.eq.s32.totalorder %s23, 0
      // Predicated region
      $region33: #{feature_matching_forward.18} parent=31 // pred_check
        %p307 = pneg %p306
      $region34: #{feature_matching_forward.18} parent=31 // pred_check_branch
        %309 = sbr.rel (%p307) target = $region36
      $region35: #{feature_matching_forward.18} parent=31 // pred_region
        %310 = vst [vmem:[#allocation2] sm:$0xff] 0.0
        %311 = vst [vmem:[#allocation2 + $0x8] sm:$0xff] 0.0
      $region36: #{feature_matching_forward.18} parent=31 // pred_fallthru
        _
      %v312 = vld [vmem:[#allocation2] sm:$0xff]
      %v313 = vld [vmem:[#allocation2 + $0x8] sm:$0xff]
      %v314 = vld [vmem:[%s271] sm:$0xff]
      %v315 = vld [vmem:[%s271 + $0x8] sm:$0xff]
      %v316 = vld [vmem:[%s285] sm:$0xf]
      %v317 = vld [vmem:[%s285 + $0x4] sm:$0xf]
      %v318 = vld [vmem:[%s285 + $0x8] sm:$0xf]
      %v319 = vld [vmem:[%s285 + $0xc] sm:$0xf]
      %v320 = vld [vmem:[%s285 + $0x10] sm:$0xf]
      %v321 = vld [vmem:[%s285 + $0x14] sm:$0xf]
      %v322 = vld [vmem:[%s285 + $0x18] sm:$0xf]
      %v323 = vld [vmem:[%s285 + $0x1c] sm:$0xf]
      %v324 = vld [vmem:[%s285 + $0x20] sm:$0xf]
      %v325 = vld [vmem:[%s285 + $0x24] sm:$0xf]
      %v326 = vld [vmem:[%s285 + $0x28] sm:$0xf]
      %v327 = vld [vmem:[%s285 + $0x2c] sm:$0xf]
      %v328 = vld [vmem:[%s285 + $0x30] sm:$0xf]
      %v329 = vld [vmem:[%s285 + $0x34] sm:$0xf]
      %v330 = vld [vmem:[%s285 + $0x38] sm:$0xf]
      %v331 = vld [vmem:[%s285 + $0x3c] sm:$0xf]
      %v332 = vld [vmem:[%s285 + $0x40] sm:$0xf]
      %v333 = vld [vmem:[%s285 + $0x44] sm:$0xf]
      %v334 = vld [vmem:[%s285 + $0x48] sm:$0xf]
      %v335 = vld [vmem:[%s285 + $0x4c] sm:$0xf]
      %v336 = vld [vmem:[%s285 + $0x50] sm:$0xf]
      %v337 = vld [vmem:[%s285 + $0x54] sm:$0xf]
      %v338 = vld [vmem:[%s285 + $0x58] sm:$0xf]
      %v339 = vld [vmem:[%s285 + $0x5c] sm:$0xf]
      %v340 = vld [vmem:[%s285 + $0x60] sm:$0xf]
      %v341 = vld [vmem:[%s285 + $0x64] sm:$0xf]
      %v342 = vld [vmem:[%s285 + $0x68] sm:$0xf]
      %v343 = vld [vmem:[%s285 + $0x6c] sm:$0xf]
      %v344 = vld [vmem:[%s285 + $0x70] sm:$0xf]
      %v345 = vld [vmem:[%s285 + $0x74] sm:$0xf]
      %v346 = vld [vmem:[%s285 + $0x78] sm:$0xf]
      %v347 = vld [vmem:[%s285 + $0x7c] sm:$0xf]
      %v350 = vunpack.c.l.b16 %v314
      %v351 = vunpack.c.h.b16 %v314
      %v352 = vunpack.c.l.b16 %v315
      %v353 = vunpack.c.h.b16 %v315
      %v354 = vpack.c.b16 %v352, %v350
      %v355 = vpack.c.b16 %v353, %v351
      %v390 = vunpack.c.l.b16 %v316
      %v391 = vunpack.c.l.b16 %v317
      %v392 = vunpack.c.l.b16 %v318
      %v393 = vunpack.c.l.b16 %v319
      %v394 = vunpack.c.l.b16 %v320
      %v395 = vunpack.c.l.b16 %v321
      %v396 = vunpack.c.l.b16 %v322
      %v397 = vunpack.c.l.b16 %v323
      %v398 = vunpack.c.l.b16 %v324
      %v399 = vunpack.c.l.b16 %v325
      %v400 = vunpack.c.l.b16 %v326
      %v401 = vunpack.c.l.b16 %v327
      %v402 = vunpack.c.l.b16 %v328
      %v403 = vunpack.c.l.b16 %v329
      %v404 = vunpack.c.l.b16 %v330
      %v405 = vunpack.c.l.b16 %v331
      %v406 = vunpack.c.l.b16 %v332
      %v407 = vunpack.c.l.b16 %v333
      %v408 = vunpack.c.l.b16 %v334
      %v409 = vunpack.c.l.b16 %v335
      %v410 = vunpack.c.l.b16 %v336
      %v411 = vunpack.c.l.b16 %v337
      %v412 = vunpack.c.l.b16 %v338
      %v413 = vunpack.c.l.b16 %v339
      %v414 = vunpack.c.l.b16 %v340
      %v415 = vunpack.c.l.b16 %v341
      %v416 = vunpack.c.l.b16 %v342
      %v417 = vunpack.c.l.b16 %v343
      %v418 = vunpack.c.l.b16 %v344
      %v419 = vunpack.c.l.b16 %v345
      %v420 = vunpack.c.l.b16 %v346
      %v421 = vunpack.c.l.b16 %v347
      %v422 = vpack.c.b16 %v391, %v390
      %v423 = vpack.c.b16 %v393, %v392
      %v424 = vpack.c.b16 %v395, %v394
      %v425 = vpack.c.b16 %v397, %v396
      %v426 = vpack.c.b16 %v399, %v398
      %v427 = vpack.c.b16 %v401, %v400
      %v428 = vpack.c.b16 %v403, %v402
      %v429 = vpack.c.b16 %v405, %v404
      %v430 = vpack.c.b16 %v407, %v406
      %v431 = vpack.c.b16 %v409, %v408
      %v432 = vpack.c.b16 %v411, %v410
      %v433 = vpack.c.b16 %v413, %v412
      %v434 = vpack.c.b16 %v415, %v414
      %v435 = vpack.c.b16 %v417, %v416
      %v436 = vpack.c.b16 %v419, %v418
      %v437 = vpack.c.b16 %v421, %v420
      %454 = vmatpush.bf16.msra.mxu0 %v429
      %455 = vmatpush.bf16.msra.mxu0 %v428
      %456 = vmatpush.bf16.msra.mxu0 %v427
      %457 = vmatpush.bf16.msra.mxu0 %v426
      %458 = vmatpush.bf16.msra.mxu0 %v425
      %459 = vmatpush.bf16.msra.mxu0 %v424
      %460 = vmatpush.bf16.msra.mxu0 %v423
      %461 = vmatpush.bf16.msra.mxu0 %v422
      %462 = vmatmul.bf16.gmra.mxu0 %v354
      %v463 = vpop.f32.mrf.mxu0
      %v464 = vadd.f32 0.0, %v463
      %v465 = vpop.f32.mrf.mxu0
      %v466 = vadd.f32 0.0, %v465
      %467 = vdwg.mxu0
      %468 = vmatpush.bf16.msra.mxu0 %v437
      %469 = vmatpush.bf16.msra.mxu0 %v436
      %470 = vmatpush.bf16.msra.mxu0 %v435
      %471 = vmatpush.bf16.msra.mxu0 %v434
      %472 = vmatpush.bf16.msra.mxu0 %v433
      %473 = vmatpush.bf16.msra.mxu0 %v432
      %474 = vmatpush.bf16.msra.mxu0 %v431
      %475 = vmatpush.bf16.msra.mxu0 %v430
      %476 = vmatmul.bf16.gmra.mxu0 %v355
      %v477 = vpop.f32.mrf.mxu0
      %v478 = vadd.f32 %v464, %v477
      %v479 = vpop.f32.mrf.mxu0
      %v480 = vadd.f32 %v466, %v479
      %481 = vdwg.mxu0
      %v482 = vadd.f32 %v312, %v478
      %v483 = vadd.f32 %v313, %v480
      %484 = vst [vmem:[#allocation2] sm:$0xff] %v482
      %485 = vst [vmem:[#allocation2 + $0x8] sm:$0xff] %v483
      // Predicated region
      $region37: #{feature_matching_forward.18} parent=31 // pred_check
        %p486 = pneg %p306
      $region38: #{feature_matching_forward.18} parent=31 // pred_check_branch
        %488 = sbr.rel (%p486) target = $region40
      $region39: #{feature_matching_forward.18} parent=31 // pred_region
        %v489 = vld [vmem:[#allocation2] sm:$0xff]
        %v490 = vld [vmem:[#allocation2 + $0x8] sm:$0xff]
        %v491 = vld [vmem:[%s291] sm:$0xff]
        %v492 = vld [vmem:[%s291 + $0x8] sm:$0xff]
        %494 = vset.pattern.permute.xlu0 0
        %495 = vperm.xlu0 %494, %v491
        %v496 = vpop.permute.xlu0 %495
        %499 = vset.pattern.permute.xlu0 0
        %500 = vperm.xlu0 %499, %v492
        %v501 = vpop.permute.xlu0 %500
        %v503 = vadd.f32 %v489, %v496
        %v504 = vadd.f32 %v490, %v501
        %505 = vst [vmem:[%s304] sm:$0xff] %v503
        %506 = vst [vmem:[%s304 + $0x8] sm:$0xff] %v504
      $region40: #{feature_matching_forward.18} parent=31 // pred_fallthru
        _
      %s507 = smul.u32 2, %s21
      %p508 = scmp.lt.s32.totalorder %s20, 1
      %s509 = scalar_select %p508, %s20, 1
      %p510 = scmp.lt.s32.totalorder %s507, 1
      %s511 = scalar_select %p510, %s507, 1
      %p512 = scmp.lt.s32.totalorder %s22, 0
      %s513 = scalar_select %p512, %s22, 0
      %s514 = sadd.s32 %s513, %s511
      %s515 = smul.addr %s509, 2
      %s516 = sadd.s32 %s514, %s515
      %s517 = smul.addr %s516, 8
      %s518 = scalar_lea.vmem %s3, %s517
      // Predicated region
      $region41: #{feature_matching_forward.18} parent=31 // pred_check
        %p519 = pneg %p146
      $region42: #{feature_matching_forward.18} parent=31 // pred_check_branch
        %521 = sbr.rel (%p519) target = $region44
      $region43: #{feature_matching_forward.18} parent=31 // pred_region
        %s522 = smul.u32 2, %s21
      $region44: #{feature_matching_forward.18} parent=31 // pred_fallthru
        _
    $region32: #{feature_matching_forward.18} parent=5 // pred_fallthru
      _
    %p523 = scmp.le.s32.totalorder 2, %s9
    // Predicated region
    $region45: #{feature_matching_forward.18} parent=5 // pred_check
      %p524 = pneg %p523
    $region46: #{feature_matching_forward.18} parent=5 // pred_check_branch
      %526 = sbr.rel (%p524) target = $region48
    $region47: #{feature_matching_forward.18} parent=5 // pred_region
      %s527 = ssub.s32 %s9, 2
      // Predicated region
      $region49: #{feature_matching_forward.18} parent=47 // pred_check
        %p528 = pneg %p152
      $region50: #{feature_matching_forward.18} parent=47 // pred_check_branch
        %530 = sbr.rel (%p528) target = $region52
      $region51: #{feature_matching_forward.18} parent=47 // pred_region
        %s531 = smul.u32 2, %s25
        %p532 = scmp.lt.s32.totalorder %s24, 1
        %s533 = scalar_select %p532, %s24, 1
        %p534 = scmp.lt.s32.totalorder %s531, 1
        %s535 = scalar_select %p534, %s531, 1
        %p536 = scmp.lt.s32.totalorder %s26, 0
        %s537 = scalar_select %p536, %s26, 0
        %s538 = sadd.s32 %s537, %s535
        %s539 = smul.addr %s533, 2
        %s540 = sadd.s32 %s538, %s539
        %s541 = smul.addr %s540, 8
        %s542 = scalar_lea.vmem %s3, %s541
      $region52: #{feature_matching_forward.18} parent=47 // pred_fallthru
        _
    $region48: #{feature_matching_forward.18} parent=5 // pred_fallthru
      _
  $region6: #{feature_matching_forward.18} parent=0 // loop_footer
    %s13 = sadd.s32 1, %s9
  $region7: #{feature_matching_forward.18} parent=0 // loop_footer_branch
    %8 = sbr.rel target = $region3
  $region8: #{feature_matching_forward.18} parent=0 // loop_exit
    _

// kernel: feature_matching_forward.17
$region0: #{feature_matching_forward.17}
  #allocation0 [shape = 'u32[]', space=smem, size = 0x4, offset = 0x4, fixed_abs, tag = 'smem constant byte address 0x4 - core index']
  #allocation1 [shape = 'u32[72,128]{1,0:T(1,128)}', space=vmem, size = 0x9000, scoped, tag = 'internal scratch']
  #allocation2 [shape = 'f32[256,128]{1,0:T(8,128)}', space=vmem, size = 0x20000, scoped, tag = 'scratch operand']
  %s0 = inlined_call_operand.vmem [shape: bf16[256,1536], index: 0, kind: input, shape index: {}]
  %s1 = inlined_call_operand.vmem [shape: bf16[2,1536,128], index: 1, kind: input, shape index: {}]
  %s2 = inlined_call_operand.vmem [shape: f32[256,1], index: 2, kind: input, shape index: {}]
  %s3 = inlined_call_operand.vmem [shape: f32[2,256,128], index: 3, kind: output, shape index: {}]
  %s4 = sld [smem:[#allocation0]]
  $region76: #{feature_matching_forward.17} parent=0
    _
  %s6 = ssub.s32 1, %s4
  %s7 = scalar_select 0, %s6, %s4
  $region1: #{feature_matching_forward.17} parent=0
    #allocation3 [shape = 'u8[524288]{0}', space=vmem, size = 0x80000, scoped, tag = 'input window, operand 0']
    loop: start=0, step=1, limit=8
    $region2: #{feature_matching_forward.17} parent=1 // loop_pre_header
      _
    $region3: #{feature_matching_forward.17} parent=1 // loop_header
      %s9 = sphi 0, %s13
      %p10 = scmp.ge.s32.totalorder %s9, 8
      %s16 = sphi 0, %s42
      %s17 = sphi 0, %s38
      %s18 = sphi 0, %s34
      %s19 = sphi 0, %s30
      %s20 = sphi 0, %s16
      %s21 = sphi 0, %s17
      %s22 = sphi 0, %s18
      %s23 = sphi 0, %s19
      %s24 = sphi 0, %s20
      %s25 = sphi 0, %s21
      %s26 = sphi 0, %s22
      %s27 = sphi 0, %s23
      %s47 = sphi 0, %s49
      %s50 = sphi 0, %s47
      %s51 = sphi 0, %s50
      %s67 = sphi 0, %s51
      %s77 = sphi 0, %s79
      %s80 = sphi 0, %s77
      %s81 = sphi 0, %s80
      %s97 = sphi 0, %s81
      %s103 = sphi 0, %s105
      %s106 = sphi 0, %s103
      %s107 = sphi 0, %s106
      %s123 = sphi 0, %s107
      %s133 = sphi 0, %s135
      %s136 = sphi 0, %s133
      %s137 = sphi 0, %s136
      %s153 = sphi 0, %s137
    $region4: #{feature_matching_forward.17} parent=1 // loop_header_branch
      %12 = sbr.rel (%p10) target = $region8
    $region5: #{feature_matching_forward.17} parent=1 // loop_body
      %s14 = ssub.s32 %s9, 1
      %s15 = ssub.s32 %s9, 2
      %s28 = sadd.s32 1, %s19
      %p29 = scmp.ge.s32.totalorder %s28, 3
      %s30 = scalar_select %p29, 0, %s28
      %s31 = sadd.s32 1, %s18
      %s32 = scalar_select %p29, %s31, %s18
      %p33 = scmp.ge.s32.totalorder %s32, 1
      %s34 = scalar_select %p33, 0, %s32
      %s35 = sadd.s32 1, %s17
      %s36 = scalar_select %p33, %s35, %s17
      %p37 = scmp.ge.s32.totalorder %s36, 1
      %s38 = scalar_select %p37, 0, %s36
      %s39 = sadd.s32 1, %s16
      %s40 = scalar_select %p37, %s39, %s16
      %p41 = scmp.ge.s32.totalorder %s40, 2
      %s42 = scalar_select %p41, 0, %s40
      %s43 = ssub.s32 %s17, %s38
      %s44 = ssub.s32 %s19, %s30
      %s45 = sor.u32 %s43, %s44
      %p46 = scmp.eq.s32.totalorder %s45, 0
      %s48 = sadd.s32 %s47, 1
      %s49 = scalar_select %p46, %s47, %s48
      %p52 = pneg %p46
      %p53 = scmp.eq.s32.totalorder %s9, 5
      %p54 = por %p52, %p53
      %p55 = scmp.ne.s32.totalorder %s47, %s50
      %p56 = scmp.eq.s32.totalorder %s9, 0
      %p57 = por %p55, %p56
      %p58 = scmp.ne.s32.totalorder %s47, %s50
      %p59 = scmp.eq.s32.totalorder %s14, 5
      %p60 = por %p58, %p59
      %p61 = scmp.ne.s32.totalorder %s50, %s51
      %p62 = scmp.eq.s32.totalorder %s14, 0
      %p63 = por %p61, %p62
      %p64 = scmp.ne.s32.totalorder %s50, %s51
      %p65 = scmp.eq.s32.totalorder %s15, 5
      %p66 = por %p64, %p65
      %p68 = scmp.ne.s32.totalorder %s51, %s67
      %p69 = scmp.eq.s32.totalorder %s15, 0
      %p70 = por %p68, %p69
      %s71 = ssub.s32 %s16, %s42
      %s72 = ssub.s32 %s19, %s30
      %s73 = sor.u32 %s71, %s72
      %s74 = ssub.s32 %s18, %s34
      %s75 = sor.u32 %s73, %s74
      %p76 = scmp.eq.s32.totalorder %s75, 0
      %s78 = sadd.s32 %s77, 1
      %s79 = scalar_select %p76, %s77, %s78
      %p82 = pneg %p76
      %p83 = scmp.eq.s32.totalorder %s9, 5
      %p84 = por %p82, %p83
      %p85 = scmp.ne.s32.totalorder %s77, %s80
      %p86 = scmp.eq.s32.totalorder %s9, 0
      %p87 = por %p85, %p86
      %p88 = scmp.ne.s32.totalorder %s77, %s80
      %p89 = scmp.eq.s32.totalorder %s14, 5
      %p90 = por %p88, %p89
      %p91 = scmp.ne.s32.totalorder %s80, %s81
      %p92 = scmp.eq.s32.totalorder %s14, 0
      %p93 = por %p91, %p92
      %p94 = scmp.ne.s32.totalorder %s80, %s81
      %p95 = scmp.eq.s32.totalorder %s15, 5
      %p96 = por %p94, %p95
      %p98 = scmp.ne.s32.totalorder %s81, %s97
      %p99 = scmp.eq.s32.totalorder %s15, 0
      %p100 = por %p98, %p99
      %s101 = ssub.s32 %s17, %s38
      %p102 = scmp.eq.s32.totalorder %s101, 0
      %s104 = sadd.s32 %s103, 1
      %s105 = scalar_select %p102, %s103, %s104
      %p108 = pneg %p102
      %p109 = scmp.eq.s32.totalorder %s9, 5
      %p110 = por %p108, %p109
      %p111 = scmp.ne.s32.totalorder %s103, %s106
      %p112 = scmp.eq.s32.totalorder %s9, 0
      %p113 = por %p111, %p112
      %p114 = scmp.ne.s32.totalorder %s103, %s106
      %p115 = scmp.eq.s32.totalorder %s14, 5
      %p116 = por %p114, %p115
      %p117 = scmp.ne.s32.totalorder %s106, %s107
      %p118 = scmp.eq.s32.totalorder %s14, 0
      %p119 = por %p117, %p118
      %p120 = scmp.ne.s32.totalorder %s106, %s107
      %p121 = scmp.eq.s32.totalorder %s15, 5
      %p122 = por %p120, %p121
      %p124 = scmp.ne.s32.totalorder %s107, %s123
      %p125 = scmp.eq.s32.totalorder %s15, 0
      %p126 = por %p124, %p125
      %s127 = ssub.s32 %s16, %s42
      %s128 = ssub.s32 %s17, %s38
      %s129 = sor.u32 %s127, %s128
      %s130 = ssub.s32 %s18, %s34
      %s131 = sor.u32 %s129, %s130
      %p132 = scmp.eq.s32.totalorder %s131, 0
      %s134 = sadd.s32 %s133, 1
      %s135 = scalar_select %p132, %s133, %s134
      %p138 = pneg %p132
      %p139 = scmp.eq.s32.totalorder %s9, 5
      %p140 = por %p138, %p139
      %p141 = scmp.ne.s32.totalorder %s133, %s136
      %p142 = scmp.eq.s32.totalorder %s9, 0
      %p143 = por %p141, %p142
      %p144 = scmp.ne.s32.totalorder %s133, %s136
      %p145 = scmp.eq.s32.totalorder %s14, 5
      %p146 = por %p144, %p145
      %p147 = scmp.ne.s32.totalorder %s136, %s137
      %p148 = scmp.eq.s32.totalorder %s14, 0
      %p149 = por %p147, %p148
      %p150 = scmp.ne.s32.totalorder %s136, %s137
      %p151 = scmp.eq.s32.totalorder %s15, 5
      %p152 = por %p150, %p151
      %p154 = scmp.ne.s32.totalorder %s137, %s153
      %p155 = scmp.eq.s32.totalorder %s15, 0
      %p156 = por %p154, %p155
      %p157 = scmp.le.s32.totalorder 1, %s9
      %p158 = scmp.lt.s32.totalorder %s9, 7
      %p159 = pnand %p157, %p158
      %p160 = pneg %p159
      // Predicated region
      $region9: #{feature_matching_forward.17} parent=5 // pred_check
        _
      $region10: #{feature_matching_forward.17} parent=5 // pred_check_branch
        %162 = sbr.rel (%p159) target = $region12
      $region11: #{feature_matching_forward.17} parent=5 // pred_region
        %s163 = ssub.s32 %s9, 1
        // Predicated region
        $region13: #{feature_matching_forward.17} parent=11 // pred_check
          %p164 = pneg %p119
        $region14: #{feature_matching_forward.17} parent=11 // pred_check_branch
          %166 = sbr.rel (%p164) target = $region16
        $region15: #{feature_matching_forward.17} parent=11 // pred_region
          %s167 = smul.u32 32, %s21
          %p168 = scmp.lt.s32.totalorder %s167, 31
          %s169 = scalar_select %p168, %s167, 31
          %s170 = smul.addr %s169, 8
          %s171 = scalar_lea.vmem %s2, %s170
          %s172 = smul.u32 32, %s21
        $region16: #{feature_matching_forward.17} parent=11 // pred_fallthru
          _
      $region12: #{feature_matching_forward.17} parent=5 // pred_fallthru
        _
      %p173 = scmp.lt.s32.totalorder %s9, 6
      // Predicated region
      $region17: #{feature_matching_forward.17} parent=5 // pred_check
        %p174 = pneg %p173
      $region18: #{feature_matching_forward.17} parent=5 // pred_check_branch
        %176 = sbr.rel (%p174) target = $region20
      $region19: #{feature_matching_forward.17} parent=5 // pred_region
        // Predicated region
        $region21: #{feature_matching_forward.17} parent=19 // pred_check
          %p177 = pneg %p57
        $region22: #{feature_matching_forward.17} parent=19 // pred_check_branch
          %179 = sbr.rel (%p177) target = $region24
        $region23: #{feature_matching_forward.17} parent=19 // pred_region
          %s180 = sand.u32 %s47, 1
          %s181 = sand.u32 %s47, 1
          %s182 = smul.addr %s181, 512
          %s183 = scalar_lea.vmem [#allocation3], %s182
          %s184 = smul.u32 32, %s17
          %s185 = smul.u32 4, %s19
          %s186 = smul.addr %s184, 12
          %s187 = sadd.s32 %s185, %s186
          %s188 = smul.addr %s187, 4
          %s189 = scalar_lea.vmem %s0, %s188
          // Predicated region
          $region25: #{feature_matching_forward.17} parent=23 // pred_check
            _
          $region26: #{feature_matching_forward.17} parent=23 // pred_check_branch
            %191 = sbr.rel (0) target = $region28
          $region27: #{feature_matching_forward.17} parent=23 // pred_region
            // Predicated region
            $region29: #{feature_matching_forward.17} parent=27 // pred_check
              _
            $region30: #{feature_matching_forward.17} parent=27 // pred_check_branch
              %193 = sbr.rel (0) target = $region32
            $region31: #{feature_matching_forward.17} parent=27 // pred_region
              loop: start=0, step=1, limit=1
              $region33: #{feature_matching_forward.17} parent=31 // loop_pre_header
                _
              $region34: #{feature_matching_forward.17} parent=31 // loop_header
                %s195 = sphi 0, %s199
                %p196 = scmp.ge.s32.totalorder %s195, 1
                %s200 = sphi %s189, %s189
                %s201 = sphi %s183, %s183
              $region35: #{feature_matching_forward.17} parent=31 // loop_header_branch
                %198 = sbr.rel (%p196) target = $region39
              $region36: #{feature_matching_forward.17} parent=31 // loop_body
                %v202 = vld [vmem:[%s200] sm:$0xff]
                %203 = vst [vmem:[%s201] sm:$0xff] %v202
                %v204 = vld [vmem:[%s200 + $0x8] sm:$0xff]
                %205 = vst [vmem:[%s201 + $0x8] sm:$0xff] %v204
                %v206 = vld [vmem:[%s200 + $0x30] sm:$0xff]
                %207 = vst [vmem:[%s201 + $0x10] sm:$0xff] %v206
                %v208 = vld [vmem:[%s200 + $0x38] sm:$0xff]
                %209 = vst [vmem:[%s201 + $0x18] sm:$0xff] %v208
                %v210 = vld [vmem:[%s200 + $0x60] sm:$0xff]
                %211 = vst [vmem:[%s201 + $0x20] sm:$0xff] %v210
                %v212 = vld [vmem:[%s200 + $0x68] sm:$0xff]
                %213 = vst [vmem:[%s201 + $0x28] sm:$0xff] %v212
                %v214 = vld [vmem:[%s200 + $0x90] sm:$0xff]
                %215 = vst [vmem:[%s201 + $0x30] sm:$0xff] %v214
                %v216 = vld [vmem:[%s200 + $0x98] sm:$0xff]
                %217 = vst [vmem:[%s201 + $0x38] sm:$0xff] %v216
                %v218 = vld [vmem:[%s200 + $0xc0] sm:$0xff]
                %219 = vst [vmem:[%s201 + $0x40] sm:$0xff] %v218
                %v220 = vld [vmem:[%s200 + $0xc8] sm:$0xff]
                %221 = vst [vmem:[%s201 + $0x48] sm:$0xff] %v220
                %v222 = vld [vmem:[%s200 + $0xf0] sm:$0xff]
                %223 = vst [vmem:[%s201 + $0x50] sm:$0xff] %v222
                %v224 = vld [vmem:[%s200 + $0xf8] sm:$0xff]
                %225 = vst [vmem:[%s201 + $0x58] sm:$0xff] %v224
                %v226 = vld [vmem:[%s200 + $0x120] sm:$0xff]
                %227 = vst [vmem:[%s201 + $0x60] sm:$0xff] %v226
                %v228 = vld [vmem:[%s200 + $0x128] sm:$0xff]
                %229 = vst [vmem:[%s201 + $0x68] sm:$0xff] %v228
                %v230 = vld [vmem:[%s200 + $0x150] sm:$0xff]
                %231 = vst [vmem:[%s201 + $0x70] sm:$0xff] %v230
                %v232 = vld [vmem:[%s200 + $0x158] sm:$0xff]
                %233 = vst [vmem:[%s201 + $0x78] sm:$0xff] %v232
                %v234 = vld [vmem:[%s200 + $0x180] sm:$0xff]
                %235 = vst [vmem:[%s201 + $0x80] sm:$0xff] %v234
                %v236 = vld [vmem:[%s200 + $0x188] sm:$0xff]
                %237 = vst [vmem:[%s201 + $0x88] sm:$0xff] %v236
                %v238 = vld [vmem:[%s200 + $0x1b0] sm:$0xff]
                %239 = vst [vmem:[%s201 + $0x90] sm:$0xff] %v238
                %v240 = vld [vmem:[%s200 + $0x1b8] sm:$0xff]
                %241 = vst [vmem:[%s201 + $0x98] sm:$0xff] %v240
                %v242 = vld [vmem:[%s200 + $0x1e0] sm:$0xff]
                %243 = vst [vmem:[%s201 + $0xa0] sm:$0xff] %v242
                %v244 = vld [vmem:[%s200 + $0x1e8] sm:$0xff]
                %245 = vst [vmem:[%s201 + $0xa8] sm:$0xff] %v244
                %v246 = vld [vmem:[%s200 + $0x210] sm:$0xff]
                %247 = vst [vmem:[%s201 + $0xb0] sm:$0xff] %v246
                %v248 = vld [vmem:[%s200 + $0x218] sm:$0xff]
                %249 = vst [vmem:[%s201 + $0xb8] sm:$0xff] %v248
                %v250 = vld [vmem:[%s200 + $0x240] sm:$0xff]
                %251 = vst [vmem:[%s201 + $0xc0] sm:$0xff] %v250
                %v252 = vld [vmem:[%s200 + $0x248] sm:$0xff]
                %253 = vst [vmem:[%s201 + $0xc8] sm:$0xff] %v252
                %v254 = vld [vmem:[%s200 + $0x270] sm:$0xff]
                %255 = vst [vmem:[%s201 + $0xd0] sm:$0xff] %v254
                %v256 = vld [vmem:[%s200 + $0x278] sm:$0xff]
                %257 = vst [vmem:[%s201 + $0xd8] sm:$0xff] %v256
                %v258 = vld [vmem:[%s200 + $0x2a0] sm:$0xff]
                %259 = vst [vmem:[%s201 + $0xe0] sm:$0xff] %v258
                %v260 = vld [vmem:[%s200 + $0x2a8] sm:$0xff]
                %261 = vst [vmem:[%s201 + $0xe8] sm:$0xff] %v260
                %v262 = vld [vmem:[%s200 + $0x2d0] sm:$0xff]
                %263 = vst [vmem:[%s201 + $0xf0] sm:$0xff] %v262
                %v264 = vld [vmem:[%s200 + $0x2d8] sm:$0xff]
                %265 = vst [vmem:[%s201 + $0xf8] sm:$0xff] %v264
                %v266 = vld [vmem:[%s200 + $0x300] sm:$0xff]
                %267 = vst [vmem:[%s201 + $0x100] sm:$0xff] %v266
                %v268 = vld [vmem:[%s200 + $0x308] sm:$0xff]
                %269 = vst [vmem:[%s201 + $0x108] sm:$0xff] %v268
                %v270 = vld [vmem:[%s200 + $0x330] sm:$0xff]
                %271 = vst [vmem:[%s201 + $0x110] sm:$0xff] %v270
                %v272 = vld [vmem:[%s200 + $0x338] sm:$0xff]
                %273 = vst [vmem:[%s201 + $0x118] sm:$0xff] %v272
                %v274 = vld [vmem:[%s200 + $0x360] sm:$0xff]
                %275 = vst [vmem:[%s201 + $0x120] sm:$0xff] %v274
                %v276 = vld [vmem:[%s200 + $0x368] sm:$0xff]
                %277 = vst [vmem:[%s201 + $0x128] sm:$0xff] %v276
                %v278 = vld [vmem:[%s200 + $0x390] sm:$0xff]
                %279 = vst [vmem:[%s201 + $0x130] sm:$0xff] %v278
                %v280 = vld [vmem:[%s200 + $0x398] sm:$0xff]
                %281 = vst [vmem:[%s201 + $0x138] sm:$0xff] %v280
                %v282 = vld [vmem:[%s200 + $0x3c0] sm:$0xff]
                %283 = vst [vmem:[%s201 + $0x140] sm:$0xff] %v282
                %v284 = vld [vmem:[%s200 + $0x3c8] sm:$0xff]
                %285 = vst [vmem:[%s201 + $0x148] sm:$0xff] %v284
                %v286 = vld [vmem:[%s200 + $0x3f0] sm:$0xff]
                %287 = vst [vmem:[%s201 + $0x150] sm:$0xff] %v286
                %v288 = vld [vmem:[%s200 + $0x3f8] sm:$0xff]
                %289 = vst [vmem:[%s201 + $0x158] sm:$0xff] %v288
                %v290 = vld [vmem:[%s200 + $0x420] sm:$0xff]
                %291 = vst [vmem:[%s201 + $0x160] sm:$0xff] %v290
                %v292 = vld [vmem:[%s200 + $0x428] sm:$0xff]
                %293 = vst [vmem:[%s201 + $0x168] sm:$0xff] %v292
                %v294 = vld [vmem:[%s200 + $0x450] sm:$0xff]
                %295 = vst [vmem:[%s201 + $0x170] sm:$0xff] %v294
                %v296 = vld [vmem:[%s200 + $0x458] sm:$0xff]
                %297 = vst [vmem:[%s201 + $0x178] sm:$0xff] %v296
                %v298 = vld [vmem:[%s200 + $0x480] sm:$0xff]
                %299 = vst [vmem:[%s201 + $0x180] sm:$0xff] %v298
                %v300 = vld [vmem:[%s200 + $0x488] sm:$0xff]
                %301 = vst [vmem:[%s201 + $0x188] sm:$0xff] %v300
                %v302 = vld [vmem:[%s200 + $0x4b0] sm:$0xff]
                %303 = vst [vmem:[%s201 + $0x190] sm:$0xff] %v302
                %v304 = vld [vmem:[%s200 + $0x4b8] sm:$0xff]
                %305 = vst [vmem:[%s201 + $0x198] sm:$0xff] %v304
                %v306 = vld [vmem:[%s200 + $0x4e0] sm:$0xff]
                %307 = vst [vmem:[%s201 + $0x1a0] sm:$0xff] %v306
                %v308 = vld [vmem:[%s200 + $0x4e8] sm:$0xff]
                %309 = vst [vmem:[%s201 + $0x1a8] sm:$0xff] %v308
                %v310 = vld [vmem:[%s200 + $0x510] sm:$0xff]
                %311 = vst [vmem:[%s201 + $0x1b0] sm:$0xff] %v310
                %v312 = vld [vmem:[%s200 + $0x518] sm:$0xff]
                %313 = vst [vmem:[%s201 + $0x1b8] sm:$0xff] %v312
                %v314 = vld [vmem:[%s200 + $0x540] sm:$0xff]
                %315 = vst [vmem:[%s201 + $0x1c0] sm:$0xff] %v314
                %v316 = vld [vmem:[%s200 + $0x548] sm:$0xff]
                %317 = vst [vmem:[%s201 + $0x1c8] sm:$0xff] %v316
                %v318 = vld [vmem:[%s200 + $0x570] sm:$0xff]
                %319 = vst [vmem:[%s201 + $0x1d0] sm:$0xff] %v318
                %v320 = vld [vmem:[%s200 + $0x578] sm:$0xff]
                %321 = vst [vmem:[%s201 + $0x1d8] sm:$0xff] %v320
                %v322 = vld [vmem:[%s200 + $0x5a0] sm:$0xff]
                %323 = vst [vmem:[%s201 + $0x1e0] sm:$0xff] %v322
                %v324 = vld [vmem:[%s200 + $0x5a8] sm:$0xff]
                %325 = vst [vmem:[%s201 + $0x1e8] sm:$0xff] %v324
                %v326 = vld [vmem:[%s200 + $0x5d0] sm:$0xff]
                %327 = vst [vmem:[%s201 + $0x1f0] sm:$0xff] %v326
                %v328 = vld [vmem:[%s200 + $0x5d8] sm:$0xff]
                %329 = vst [vmem:[%s201 + $0x1f8] sm:$0xff] %v328
              $region37: #{feature_matching_forward.17} parent=31 // loop_footer
                %s199 = sadd.s32 1, %s195
              $region38: #{feature_matching_forward.17} parent=31 // loop_footer_branch
                %194 = sbr.rel target = $region34
              $region39: #{feature_matching_forward.17} parent=31 // loop_exit
                _
            $region32: #{feature_matching_forward.17} parent=27 // pred_fallthru
              _
            // Predicated region
            $region40: #{feature_matching_forward.17} parent=27 // pred_check
              _
            $region41: #{feature_matching_forward.17} parent=27 // pred_check_branch
              %331 = sbr.rel target = $region43
            $region42: #{feature_matching_forward.17} parent=27 // pred_region
              _
            $region43: #{feature_matching_forward.17} parent=27 // pred_fallthru
              _
          $region28: #{feature_matching_forward.17} parent=23 // pred_fallthru
            _
          %332 = vnop
        $region24: #{feature_matching_forward.17} parent=19 // pred_fallthru
          _
        // Predicated region
        $region44: #{feature_matching_forward.17} parent=19 // pred_check
          %p333 = pneg %p87
        $region45: #{feature_matching_forward.17} parent=19 // pred_check_branch
          %335 = sbr.rel (%p333) target = $region47
        $region46: #{feature_matching_forward.17} parent=19 // pred_region
          %s336 = smul.u32 64, %s19
          %p337 = scmp.lt.s32.totalorder %s16, 1
          %s338 = scalar_select %p337, %s16, 1
          %p339 = scmp.lt.s32.totalorder %s336, 191
          %s340 = scalar_select %p339, %s336, 191
          %p341 = scmp.lt.s32.totalorder %s18, 0
          %s342 = scalar_select %p341, %s18, 0
          %s343 = sadd.s32 %s342, %s340
          %s344 = smul.addr %s338, 192
          %s345 = sadd.s32 %s343, %s344
          %s346 = smul.addr %s345, 4
          %s347 = scalar_lea.vmem %s1, %s346
          %s348 = smul.u32 64, %s19
        $region47: #{feature_matching_forward.17} parent=19 // pred_fallthru
          _
      $region20: #{feature_matching_forward.17} parent=5 // pred_fallthru
        _
      %p349 = scmp.le.s32.totalorder 1, %s9
      %p350 = scmp.lt.s32.totalorder %s9, 7
      %p351 = pnand %p349, %p350
      %p352 = pneg %p351
      // Predicated region
      $region48: #{feature_matching_forward.17} parent=5 // pred_check
        _
      $region49: #{feature_matching_forward.17} parent=5 // pred_check_branch
        %354 = sbr.rel (%p351) target = $region51
      $region50: #{feature_matching_forward.17} parent=5 // pred_region
        %s355 = ssub.s32 %s9, 1
        %s356 = sand.u32 %s50, 1
        %s357 = sand.u32 %s50, 1
        %s358 = smul.addr %s357, 512
        %s359 = scalar_lea.vmem [#allocation3], %s358
        // Predicated region
        $region52: #{feature_matching_forward.17} parent=50 // pred_check
          %p360 = pneg %p63
        $region53: #{feature_matching_forward.17} parent=50 // pred_check_branch
          %362 = sbr.rel (%p360) target = $region55
        $region54: #{feature_matching_forward.17} parent=50 // pred_region
          _
        $region55: #{feature_matching_forward.17} parent=50 // pred_fallthru
          _
        %s363 = sand.u32 %s50, 1
        %s364 = sand.u32 %s50, 1
        %s365 = smul.addr %s364, 512
        %s366 = scalar_lea.vmem [#allocation3], %s365
        %p367 = pneg %p63
        %p368 = pneg %p60
        %s369 = smul.u32 64, %s23
        %p370 = scmp.lt.s32.totalorder %s20, 1
        %s371 = scalar_select %p370, %s20, 1
        %p372 = scmp.lt.s32.totalorder %s369, 191
        %s373 = scalar_select %p372, %s369, 191
        %p374 = scmp.lt.s32.totalorder %s22, 0
        %s375 = scalar_select %p374, %s22, 0
        %s376 = sadd.s32 %s375, %s373
        %s377 = smul.addr %s371, 192
        %s378 = sadd.s32 %s376, %s377
        %s379 = smul.addr %s378, 4
        %s380 = scalar_lea.vmem %s1, %s379
        %p381 = pneg %p93
        %p382 = pneg %p90
        %s383 = smul.u32 32, %s21
        %p384 = scmp.lt.s32.totalorder %s383, 31
        %s385 = scalar_select %p384, %s383, 31
        %s386 = smul.addr %s385, 8
        %s387 = scalar_lea.vmem %s2, %s386
        %p388 = pneg %p119
        %p389 = pneg %p116
        %p390 = pneg %p149
        %p391 = pneg %p146
        %s392 = smul.u32 32, %s21
        %p393 = scmp.lt.s32.totalorder %s20, 1
        %s394 = scalar_select %p393, %s20, 1
        %p395 = scmp.lt.s32.totalorder %s392, 31
        %s396 = scalar_select %p395, %s392, 31
        %p397 = scmp.lt.s32.totalorder %s22, 0
        %s398 = scalar_select %p397, %s22, 0
        %s399 = sadd.s32 %s398, %s396
        %s400 = smul.addr %s394, 32
        %s401 = sadd.s32 %s399, %s400
        %s402 = smul.addr %s401, 8
        %s403 = scalar_lea.vmem %s3, %s402
        %s404 = smul.u32 32, %s21
        %s405 = smul.u32 4, %s23
        %s406 = smul.u32 64, %s23
        %p407 = scmp.lt.s32.totalorder %s20, 1
        %s408 = scalar_select %p407, %s20, 1
        %p409 = scmp.lt.s32.totalorder %s406, 191
        %s410 = scalar_select %p409, %s406, 191
        %p411 = scmp.lt.s32.totalorder %s22, 0
        %s412 = scalar_select %p411, %s22, 0
        %s413 = sadd.s32 %s412, %s410
        %s414 = smul.addr %s408, 192
        %s415 = sadd.s32 %s413, %s414
        %s416 = smul.addr %s415, 4
        %s417 = scalar_lea.vmem %s1, %s416
        %s418 = smul.u32 64, %s23
        %s419 = smul.u32 32, %s21
        %p420 = scmp.lt.s32.totalorder %s419, 31
        %s421 = scalar_select %p420, %s419, 31
        %s422 = smul.addr %s421, 8
        %s423 = scalar_lea.vmem %s2, %s422
        %s424 = smul.u32 32, %s21
        %s425 = smul.u32 32, %s21
        %p426 = scmp.lt.s32.totalorder %s20, 1
        %s427 = scalar_select %p426, %s20, 1
        %p428 = scmp.lt.s32.totalorder %s425, 31
        %s429 = scalar_select %p428, %s425, 31
        %p430 = scmp.lt.s32.totalorder %s22, 0
        %s431 = scalar_select %p430, %s22, 0
        %s432 = sadd.s32 %s431, %s429
        %s433 = smul.addr %s427, 32
        %s434 = sadd.s32 %s432, %s433
        %s435 = smul.addr %s434, 8
        %s436 = scalar_lea.vmem %s3, %s435
        %s437 = smul.u32 32, %s21
        %p438 = scmp.eq.s32.totalorder %s23, 0
        // Predicated region
        $region56: #{feature_matching_forward.17} parent=50 // pred_check
          %p439 = pneg %p438
        $region57: #{feature_matching_forward.17} parent=50 // pred_check_branch
          %441 = sbr.rel (%p439) target = $region59
        $region58: #{feature_matching_forward.17} parent=50 // pred_region
          %442 = vst [vmem:[#allocation2] sm:$0xff] 0.0
          %443 = vst [vmem:[#allocation2 + $0x8] sm:$0xff] 0.0
          %444 = vst [vmem:[#allocation2 + $0x10] sm:$0xff] 0.0
          %445 = vst [vmem:[#allocation2 + $0x18] sm:$0xff] 0.0
          %446 = vst [vmem:[#allocation2 + $0x20] sm:$0xff] 0.0
          %447 = vst [vmem:[#allocation2 + $0x28] sm:$0xff] 0.0
          %448 = vst [vmem:[#allocation2 + $0x30] sm:$0xff] 0.0
          %449 = vst [vmem:[#allocation2 + $0x38] sm:$0xff] 0.0
          %450 = vst [vmem:[#allocation2 + $0x40] sm:$0xff] 0.0
          %451 = vst [vmem:[#allocation2 + $0x48] sm:$0xff] 0.0
          %452 = vst [vmem:[#allocation2 + $0x50] sm:$0xff] 0.0
          %453 = vst [vmem:[#allocation2 + $0x58] sm:$0xff] 0.0
          %454 = vst [vmem:[#allocation2 + $0x60] sm:$0xff] 0.0
          %455 = vst [vmem:[#allocation2 + $0x68] sm:$0xff] 0.0
          %456 = vst [vmem:[#allocation2 + $0x70] sm:$0xff] 0.0
          %457 = vst [vmem:[#allocation2 + $0x78] sm:$0xff] 0.0
          %458 = vst [vmem:[#allocation2 + $0x80] sm:$0xff] 0.0
          %459 = vst [vmem:[#allocation2 + $0x88] sm:$0xff] 0.0
          %460 = vst [vmem:[#allocation2 + $0x90] sm:$0xff] 0.0
          %461 = vst [vmem:[#allocation2 + $0x98] sm:$0xff] 0.0
          %462 = vst [vmem:[#allocation2 + $0xa0] sm:$0xff] 0.0
          %463 = vst [vmem:[#allocation2 + $0xa8] sm:$0xff] 0.0
          %464 = vst [vmem:[#allocation2 + $0xb0] sm:$0xff] 0.0
          %465 = vst [vmem:[#allocation2 + $0xb8] sm:$0xff] 0.0
          %466 = vst [vmem:[#allocation2 + $0xc0] sm:$0xff] 0.0
          %467 = vst [vmem:[#allocation2 + $0xc8] sm:$0xff] 0.0
          %468 = vst [vmem:[#allocation2 + $0xd0] sm:$0xff] 0.0
          %469 = vst [vmem:[#allocation2 + $0xd8] sm:$0xff] 0.0
          %470 = vst [vmem:[#allocation2 + $0xe0] sm:$0xff] 0.0
          %471 = vst [vmem:[#allocation2 + $0xe8] sm:$0xff] 0.0
          %472 = vst [vmem:[#allocation2 + $0xf0] sm:$0xff] 0.0
          %473 = vst [vmem:[#allocation2 + $0xf8] sm:$0xff] 0.0
        $region59: #{feature_matching_forward.17} parent=50 // pred_fallthru
          _
        %v474 = vld [vmem:[#allocation2] sm:$0xff]
        %v475 = vld [vmem:[#allocation2 + $0x8] sm:$0xff]
        %v476 = vld [vmem:[#allocation2 + $0x10] sm:$0xff]
        %v477 = vld [vmem:[#allocation2 + $0x18] sm:$0xff]
        %v478 = vld [vmem:[#allocation2 + $0x20] sm:$0xff]
        %v479 = vld [vmem:[#allocation2 + $0x28] sm:$0xff]
        %v480 = vld [vmem:[#allocation2 + $0x30] sm:$0xff]
        %v481 = vld [vmem:[#allocation2 + $0x38] sm:$0xff]
        %v482 = vld [vmem:[#allocation2 + $0x40] sm:$0xff]
        %v483 = vld [vmem:[#allocation2 + $0x48] sm:$0xff]
        %v484 = vld [vmem:[#allocation2 + $0x50] sm:$0xff]
        %v485 = vld [vmem:[#allocation2 + $0x58] sm:$0xff]
        %v486 = vld [vmem:[#allocation2 + $0x60] sm:$0xff]
        %v487 = vld [vmem:[#allocation2 + $0x68] sm:$0xff]
        %v488 = vld [vmem:[#allocation2 + $0x70] sm:$0xff]
        %v489 = vld [vmem:[#allocation2 + $0x78] sm:$0xff]
        %v490 = vld [vmem:[#allocation2 + $0x80] sm:$0xff]
        %v491 = vld [vmem:[#allocation2 + $0x88] sm:$0xff]
        %v492 = vld [vmem:[#allocation2 + $0x90] sm:$0xff]
        %v493 = vld [vmem:[#allocation2 + $0x98] sm:$0xff]
        %v494 = vld [vmem:[#allocation2 + $0xa0] sm:$0xff]
        %v495 = vld [vmem:[#allocation2 + $0xa8] sm:$0xff]
        %v496 = vld [vmem:[#allocation2 + $0xb0] sm:$0xff]
        %v497 = vld [vmem:[#allocation2 + $0xb8] sm:$0xff]
        %v498 = vld [vmem:[#allocation2 + $0xc0] sm:$0xff]
        %v499 = vld [vmem:[#allocation2 + $0xc8] sm:$0xff]
        %v500 = vld [vmem:[#allocation2 + $0xd0] sm:$0xff]
        %v501 = vld [vmem:[#allocation2 + $0xd8] sm:$0xff]
        %v502 = vld [vmem:[#allocation2 + $0xe0] sm:$0xff]
        %v503 = vld [vmem:[#allocation2 + $0xe8] sm:$0xff]
        %v504 = vld [vmem:[#allocation2 + $0xf0] sm:$0xff]
        %v505 = vld [vmem:[#allocation2 + $0xf8] sm:$0xff]
        %v506 = vld [vmem:[%s359] sm:$0xff]
        %v507 = vld [vmem:[%s359 + $0x8] sm:$0xff]
        %v508 = vld [vmem:[%s359 + $0x10] sm:$0xff]
        %v509 = vld [vmem:[%s359 + $0x18] sm:$0xff]
        %v510 = vld [vmem:[%s359 + $0x20] sm:$0xff]
        %v511 = vld [vmem:[%s359 + $0x28] sm:$0xff]
        %v512 = vld [vmem:[%s359 + $0x30] sm:$0xff]
        %v513 = vld [vmem:[%s359 + $0x38] sm:$0xff]
        %v514 = vld [vmem:[%s359 + $0x40] sm:$0xff]
        %v515 = vld [vmem:[%s359 + $0x48] sm:$0xff]
        %v516 = vld [vmem:[%s359 + $0x50] sm:$0xff]
        %v517 = vld [vmem:[%s359 + $0x58] sm:$0xff]
        %v518 = vld [vmem:[%s359 + $0x60] sm:$0xff]
        %v519 = vld [vmem:[%s359 + $0x68] sm:$0xff]
        %v520 = vld [vmem:[%s359 + $0x70] sm:$0xff]
        %v521 = vld [vmem:[%s359 + $0x78] sm:$0xff]
        %v522 = vld [vmem:[%s359 + $0x80] sm:$0xff]
        %v523 = vld [vmem:[%s359 + $0x88] sm:$0xff]
        %v524 = vld [vmem:[%s359 + $0x90] sm:$0xff]
        %v525 = vld [vmem:[%s359 + $0x98] sm:$0xff]
        %v526 = vld [vmem:[%s359 + $0xa0] sm:$0xff]
        %v527 = vld [vmem:[%s359 + $0xa8] sm:$0xff]
        %v528 = vld [vmem:[%s359 + $0xb0] sm:$0xff]
        %v529 = vld [vmem:[%s359 + $0xb8] sm:$0xff]
        %v530 = vld [vmem:[%s359 + $0xc0] sm:$0xff]
        %v531 = vld [vmem:[%s359 + $0xc8] sm:$0xff]
        %v532 = vld [vmem:[%s359 + $0xd0] sm:$0xff]
        %v533 = vld [vmem:[%s359 + $0xd8] sm:$0xff]
        %v534 = vld [vmem:[%s359 + $0xe0] sm:$0xff]
        %v535 = vld [vmem:[%s359 + $0xe8] sm:$0xff]
        %v536 = vld [vmem:[%s359 + $0xf0] sm:$0xff]
        %v537 = vld [vmem:[%s359 + $0xf8] sm:$0xff]
        %v538 = vld [vmem:[%s359 + $0x100] sm:$0xff]
        %v539 = vld [vmem:[%s359 + $0x108] sm:$0xff]
        %v540 = vld [vmem:[%s359 + $0x110] sm:$0xff]
        %v541 = vld [vmem:[%s359 + $0x118] sm:$0xff]
        %v542 = vld [vmem:[%s359 + $0x120] sm:$0xff]
        %v543 = vld [vmem:[%s359 + $0x128] sm:$0xff]
        %v544 = vld [vmem:[%s359 + $0x130] sm:$0xff]
        %v545 = vld [vmem:[%s359 + $0x138] sm:$0xff]
        %v546 = vld [vmem:[%s359 + $0x140] sm:$0xff]
        %v547 = vld [vmem:[%s359 + $0x148] sm:$0xff]
        %v548 = vld [vmem:[%s359 + $0x150] sm:$0xff]
        %v549 = vld [vmem:[%s359 + $0x158] sm:$0xff]
        %v550 = vld [vmem:[%s359 + $0x160] sm:$0xff]
        %v551 = vld [vmem:[%s359 + $0x168] sm:$0xff]
        %v552 = vld [vmem:[%s359 + $0x170] sm:$0xff]
        %v553 = vld [vmem:[%s359 + $0x178] sm:$0xff]
        %v554 = vld [vmem:[%s359 + $0x180] sm:$0xff]
        %v555 = vld [vmem:[%s359 + $0x188] sm:$0xff]
        %v556 = vld [vmem:[%s359 + $0x190] sm:$0xff]
        %v557 = vld [vmem:[%s359 + $0x198] sm:$0xff]
        %v558 = vld [vmem:[%s359 + $0x1a0] sm:$0xff]
        %v559 = vld [vmem:[%s359 + $0x1a8] sm:$0xff]
        %v560 = vld [vmem:[%s359 + $0x1b0] sm:$0xff]
        %v561 = vld [vmem:[%s359 + $0x1b8] sm:$0xff]
        %v562 = vld [vmem:[%s359 + $0x1c0] sm:$0xff]
        %v563 = vld [vmem:[%s359 + $0x1c8] sm:$0xff]
        %v564 = vld [vmem:[%s359 + $0x1d0] sm:$0xff]
        %v565 = vld [vmem:[%s359 + $0x1d8] sm:$0xff]
        %v566 = vld [vmem:[%s359 + $0x1e0] sm:$0xff]
        %v567 = vld [vmem:[%s359 + $0x1e8] sm:$0xff]
        %v568 = vld [vmem:[%s359 + $0x1f0] sm:$0xff]
        %v569 = vld [vmem:[%s359 + $0x1f8] sm:$0xff]
        %v570 = vld [vmem:[%s417] sm:$0xf]
        %v571 = vld [vmem:[%s417 + $0x4] sm:$0xf]
        %v572 = vld [vmem:[%s417 + $0x8] sm:$0xf]
        %v573 = vld [vmem:[%s417 + $0xc] sm:$0xf]
        %v574 = vld [vmem:[%s417 + $0x10] sm:$0xf]
        %v575 = vld [vmem:[%s417 + $0x14] sm:$0xf]
        %v576 = vld [vmem:[%s417 + $0x18] sm:$0xf]
        %v577 = vld [vmem:[%s417 + $0x1c] sm:$0xf]
        %v578 = vld [vmem:[%s417 + $0x20] sm:$0xf]
        %v579 = vld [vmem:[%s417 + $0x24] sm:$0xf]
        %v580 = vld [vmem:[%s417 + $0x28] sm:$0xf]
        %v581 = vld [vmem:[%s417 + $0x2c] sm:$0xf]
        %v582 = vld [vmem:[%s417 + $0x30] sm:$0xf]
        %v583 = vld [vmem:[%s417 + $0x34] sm:$0xf]
        %v584 = vld [vmem:[%s417 + $0x38] sm:$0xf]
        %v585 = vld [vmem:[%s417 + $0x3c] sm:$0xf]
        %v586 = vld [vmem:[%s417 + $0x40] sm:$0xf]
        %v587 = vld [vmem:[%s417 + $0x44] sm:$0xf]
        %v588 = vld [vmem:[%s417 + $0x48] sm:$0xf]
        %v589 = vld [vmem:[%s417 + $0x4c] sm:$0xf]
        %v590 = vld [vmem:[%s417 + $0x50] sm:$0xf]
        %v591 = vld [vmem:[%s417 + $0x54] sm:$0xf]
        %v592 = vld [vmem:[%s417 + $0x58] sm:$0xf]
        %v593 = vld [vmem:[%s417 + $0x5c] sm:$0xf]
        %v594 = vld [vmem:[%s417 + $0x60] sm:$0xf]
        %v595 = vld [vmem:[%s417 + $0x64] sm:$0xf]
        %v596 = vld [vmem:[%s417 + $0x68] sm:$0xf]
        %v597 = vld [vmem:[%s417 + $0x6c] sm:$0xf]
        %v598 = vld [vmem:[%s417 + $0x70] sm:$0xf]
        %v599 = vld [vmem:[%s417 + $0x74] sm:$0xf]
        %v600 = vld [vmem:[%s417 + $0x78] sm:$0xf]
        %v601 = vld [vmem:[%s417 + $0x7c] sm:$0xf]
        %v602 = vld [vmem:[%s417 + $0x80] sm:$0xf]
        %v603 = vld [vmem:[%s417 + $0x84] sm:$0xf]
        %v604 = vld [vmem:[%s417 + $0x88] sm:$0xf]
        %v605 = vld [vmem:[%s417 + $0x8c] sm:$0xf]
        %v606 = vld [vmem:[%s417 + $0x90] sm:$0xf]
        %v607 = vld [vmem:[%s417 + $0x94] sm:$0xf]
        %v608 = vld [vmem:[%s417 + $0x98] sm:$0xf]
        %v609 = vld [vmem:[%s417 + $0x9c] sm:$0xf]
        %v610 = vld [vmem:[%s417 + $0xa0] sm:$0xf]
        %v611 = vld [vmem:[%s417 + $0xa4] sm:$0xf]
        %v612 = vld [vmem:[%s417 + $0xa8] sm:$0xf]
        %v613 = vld [vmem:[%s417 + $0xac] sm:$0xf]
        %v614 = vld [vmem:[%s417 + $0xb0] sm:$0xf]
        %v615 = vld [vmem:[%s417 + $0xb4] sm:$0xf]
        %v616 = vld [vmem:[%s417 + $0xb8] sm:$0xf]
        %v617 = vld [vmem:[%s417 + $0xbc] sm:$0xf]
        %v618 = vld [vmem:[%s417 + $0xc0] sm:$0xf]
        %v619 = vld [vmem:[%s417 + $0xc4] sm:$0xf]
        %v620 = vld [vmem:[%s417 + $0xc8] sm:$0xf]
        %v621 = vld [vmem:[%s417 + $0xcc] sm:$0xf]
        %v622 = vld [vmem:[%s417 + $0xd0] sm:$0xf]
        %v623 = vld [vmem:[%s417 + $0xd4] sm:$0xf]
        %v624 = vld [vmem:[%s417 + $0xd8] sm:$0xf]
        %v625 = vld [vmem:[%s417 + $0xdc] sm:$0xf]
        %v626 = vld [vmem:[%s417 + $0xe0] sm:$0xf]
        %v627 = vld [vmem:[%s417 + $0xe4] sm:$0xf]
        %v628 = vld [vmem:[%s417 + $0xe8] sm:$0xf]
        %v629 = vld [vmem:[%s417 + $0xec] sm:$0xf]
        %v630 = vld [vmem:[%s417 + $0xf0] sm:$0xf]
        %v631 = vld [vmem:[%s417 + $0xf4] sm:$0xf]
        %v632 = vld [vmem:[%s417 + $0xf8] sm:$0xf]
        %v633 = vld [vmem:[%s417 + $0xfc] sm:$0xf]
        %v698 = vunpack.c.l.b16 %v506
        %v699 = vunpack.c.h.b16 %v506
        %v700 = vunpack.c.l.b16 %v507
        %v701 = vunpack.c.h.b16 %v507
        %v702 = vunpack.c.l.b16 %v508
        %v703 = vunpack.c.h.b16 %v508
        %v704 = vunpack.c.l.b16 %v509
        %v705 = vunpack.c.h.b16 %v509
        %v706 = vunpack.c.l.b16 %v510
        %v707 = vunpack.c.h.b16 %v510
        %v708 = vunpack.c.l.b16 %v511
        %v709 = vunpack.c.h.b16 %v511
        %v710 = vunpack.c.l.b16 %v512
        %v711 = vunpack.c.h.b16 %v512
        %v712 = vunpack.c.l.b16 %v513
        %v713 = vunpack.c.h.b16 %v513
        %v714 = vunpack.c.l.b16 %v514
        %v715 = vunpack.c.h.b16 %v514
        %v716 = vunpack.c.l.b16 %v515
        %v717 = vunpack.c.h.b16 %v515
        %v718 = vunpack.c.l.b16 %v516
        %v719 = vunpack.c.h.b16 %v516
        %v720 = vunpack.c.l.b16 %v517
        %v721 = vunpack.c.h.b16 %v517
        %v722 = vunpack.c.l.b16 %v518
        %v723 = vunpack.c.h.b16 %v518
        %v724 = vunpack.c.l.b16 %v519
        %v725 = vunpack.c.h.b16 %v519
        %v726 = vunpack.c.l.b16 %v520
        %v727 = vunpack.c.h.b16 %v520
        %v728 = vunpack.c.l.b16 %v521
        %v729 = vunpack.c.h.b16 %v521
        %v730 = vunpack.c.l.b16 %v522
        %v731 = vunpack.c.h.b16 %v522
        %v732 = vunpack.c.l.b16 %v523
        %v733 = vunpack.c.h.b16 %v523
        %v734 = vunpack.c.l.b16 %v524
        %v735 = vunpack.c.h.b16 %v524
        %v736 = vunpack.c.l.b16 %v525
        %v737 = vunpack.c.h.b16 %v525
        %v738 = vunpack.c.l.b16 %v526
        %v739 = vunpack.c.h.b16 %v526
        %v740 = vunpack.c.l.b16 %v527
        %v741 = vunpack.c.h.b16 %v527
        %v742 = vunpack.c.l.b16 %v528
        %v743 = vunpack.c.h.b16 %v528
        %v744 = vunpack.c.l.b16 %v529
        %v745 = vunpack.c.h.b16 %v529
        %v746 = vunpack.c.l.b16 %v530
        %v747 = vunpack.c.h.b16 %v530
        %v748 = vunpack.c.l.b16 %v531
        %v749 = vunpack.c.h.b16 %v531
        %v750 = vunpack.c.l.b16 %v532
        %v751 = vunpack.c.h.b16 %v532
        %v752 = vunpack.c.l.b16 %v533
        %v753 = vunpack.c.h.b16 %v533
        %v754 = vunpack.c.l.b16 %v534
        %v755 = vunpack.c.h.b16 %v534
        %v756 = vunpack.c.l.b16 %v535
        %v757 = vunpack.c.h.b16 %v535
        %v758 = vunpack.c.l.b16 %v536
        %v759 = vunpack.c.h.b16 %v536
        %v760 = vunpack.c.l.b16 %v537
        %v761 = vunpack.c.h.b16 %v537
        %v762 = vunpack.c.l.b16 %v538
        %v763 = vunpack.c.h.b16 %v538
        %v764 = vunpack.c.l.b16 %v539
        %v765 = vunpack.c.h.b16 %v539
        %v766 = vunpack.c.l.b16 %v540
        %v767 = vunpack.c.h.b16 %v540
        %v768 = vunpack.c.l.b16 %v541
        %v769 = vunpack.c.h.b16 %v541
        %v770 = vunpack.c.l.b16 %v542
        %v771 = vunpack.c.h.b16 %v542
        %v772 = vunpack.c.l.b16 %v543
        %v773 = vunpack.c.h.b16 %v543
        %v774 = vunpack.c.l.b16 %v544
        %v775 = vunpack.c.h.b16 %v544
        %v776 = vunpack.c.l.b16 %v545
        %v777 = vunpack.c.h.b16 %v545
        %v778 = vunpack.c.l.b16 %v546
        %v779 = vunpack.c.h.b16 %v546
        %v780 = vunpack.c.l.b16 %v547
        %v781 = vunpack.c.h.b16 %v547
        %v782 = vunpack.c.l.b16 %v548
        %v783 = vunpack.c.h.b16 %v548
        %v784 = vunpack.c.l.b16 %v549
        %v785 = vunpack.c.h.b16 %v549
        %v786 = vunpack.c.l.b16 %v550
        %v787 = vunpack.c.h.b16 %v550
        %v788 = vunpack.c.l.b16 %v551
        %v789 = vunpack.c.h.b16 %v551
        %v790 = vunpack.c.l.b16 %v552
        %v791 = vunpack.c.h.b16 %v552
        %v792 = vunpack.c.l.b16 %v553
        %v793 = vunpack.c.h.b16 %v553
        %v794 = vunpack.c.l.b16 %v554
        %v795 = vunpack.c.h.b16 %v554
        %v796 = vunpack.c.l.b16 %v555
        %v797 = vunpack.c.h.b16 %v555
        %v798 = vunpack.c.l.b16 %v556
        %v799 = vunpack.c.h.b16 %v556
        %v800 = vunpack.c.l.b16 %v557
        %v801 = vunpack.c.h.b16 %v557
        %v802 = vunpack.c.l.b16 %v558
        %v803 = vunpack.c.h.b16 %v558
        %v804 = vunpack.c.l.b16 %v559
        %v805 = vunpack.c.h.b16 %v559
        %v806 = vunpack.c.l.b16 %v560
        %v807 = vunpack.c.h.b16 %v560
        %v808 = vunpack.c.l.b16 %v561
        %v809 = vunpack.c.h.b16 %v561
        %v810 = vunpack.c.l.b16 %v562
        %v811 = vunpack.c.h.b16 %v562
        %v812 = vunpack.c.l.b16 %v563
        %v813 = vunpack.c.h.b16 %v563
        %v814 = vunpack.c.l.b16 %v564
        %v815 = vunpack.c.h.b16 %v564
        %v816 = vunpack.c.l.b16 %v565
        %v817 = vunpack.c.h.b16 %v565
        %v818 = vunpack.c.l.b16 %v566
        %v819 = vunpack.c.h.b16 %v566
        %v820 = vunpack.c.l.b16 %v567
        %v821 = vunpack.c.h.b16 %v567
        %v822 = vunpack.c.l.b16 %v568
        %v823 = vunpack.c.h.b16 %v568
        %v824 = vunpack.c.l.b16 %v569
        %v825 = vunpack.c.h.b16 %v569
        %v826 = vpack.c.b16 %v702, %v698
        %v827 = vpack.c.b16 %v703, %v699
        %v828 = vpack.c.b16 %v704, %v700
        %v829 = vpack.c.b16 %v705, %v701
        %v830 = vpack.c.b16 %v710, %v706
        %v831 = vpack.c.b16 %v711, %v707
        %v832 = vpack.c.b16 %v712, %v708
        %v833 = vpack.c.b16 %v713, %v709
        %v834 = vpack.c.b16 %v718, %v714
        %v835 = vpack.c.b16 %v719, %v715
        %v836 = vpack.c.b16 %v720, %v716
        %v837 = vpack.c.b16 %v721, %v717
        %v838 = vpack.c.b16 %v726, %v722
        %v839 = vpack.c.b16 %v727, %v723
        %v840 = vpack.c.b16 %v728, %v724
        %v841 = vpack.c.b16 %v729, %v725
        %v842 = vpack.c.b16 %v734, %v730
        %v843 = vpack.c.b16 %v735, %v731
        %v844 = vpack.c.b16 %v736, %v732
        %v845 = vpack.c.b16 %v737, %v733
        %v846 = vpack.c.b16 %v742, %v738
        %v847 = vpack.c.b16 %v743, %v739
        %v848 = vpack.c.b16 %v744, %v740
        %v849 = vpack.c.b16 %v745, %v741
        %v850 = vpack.c.b16 %v750, %v746
        %v851 = vpack.c.b16 %v751, %v747
        %v852 = vpack.c.b16 %v752, %v748
        %v853 = vpack.c.b16 %v753, %v749
        %v854 = vpack.c.b16 %v758, %v754
        %v855 = vpack.c.b16 %v759, %v755
        %v856 = vpack.c.b16 %v760, %v756
        %v857 = vpack.c.b16 %v761, %v757
        %v858 = vpack.c.b16 %v766, %v762
        %v859 = vpack.c.b16 %v767, %v763
        %v860 = vpack.c.b16 %v768, %v764
        %v861 = vpack.c.b16 %v769, %v765
        %v862 = vpack.c.b16 %v774, %v770
        %v863 = vpack.c.b16 %v775, %v771
        %v864 = vpack.c.b16 %v776, %v772
        %v865 = vpack.c.b16 %v777, %v773
        %v866 = vpack.c.b16 %v782, %v778
        %v867 = vpack.c.b16 %v783, %v779
        %v868 = vpack.c.b16 %v784, %v780
        %v869 = vpack.c.b16 %v785, %v781
        %v870 = vpack.c.b16 %v790, %v786
        %v871 = vpack.c.b16 %v791, %v787
        %v872 = vpack.c.b16 %v792, %v788
        %v873 = vpack.c.b16 %v793, %v789
        %v874 = vpack.c.b16 %v798, %v794
        %v875 = vpack.c.b16 %v799, %v795
        %v876 = vpack.c.b16 %v800, %v796
        %v877 = vpack.c.b16 %v801, %v797
        %v878 = vpack.c.b16 %v806, %v802
        %v879 = vpack.c.b16 %v807, %v803
        %v880 = vpack.c.b16 %v808, %v804
        %v881 = vpack.c.b16 %v809, %v805
        %v882 = vpack.c.b16 %v814, %v810
        %v883 = vpack.c.b16 %v815, %v811
        %v884 = vpack.c.b16 %v816, %v812
        %v885 = vpack.c.b16 %v817, %v813
        %v886 = vpack.c.b16 %v822, %v818
        %v887 = vpack.c.b16 %v823, %v819
        %v888 = vpack.c.b16 %v824, %v820
        %v889 = vpack.c.b16 %v825, %v821
        %v1018 = vunpack.c.l.b16 %v570
        %v1019 = vunpack.c.l.b16 %v571
        %v1020 = vunpack.c.l.b16 %v572
        %v1021 = vunpack.c.l.b16 %v573
        %v1022 = vunpack.c.l.b16 %v574
        %v1023 = vunpack.c.l.b16 %v575
        %v1024 = vunpack.c.l.b16 %v576
        %v1025 = vunpack.c.l.b16 %v577
        %v1026 = vunpack.c.l.b16 %v578
        %v1027 = vunpack.c.l.b16 %v579
        %v1028 = vunpack.c.l.b16 %v580
        %v1029 = vunpack.c.l.b16 %v581
        %v1030 = vunpack.c.l.b16 %v582
        %v1031 = vunpack.c.l.b16 %v583
        %v1032 = vunpack.c.l.b16 %v584
        %v1033 = vunpack.c.l.b16 %v585
        %v1034 = vunpack.c.l.b16 %v586
        %v1035 = vunpack.c.l.b16 %v587
        %v1036 = vunpack.c.l.b16 %v588
        %v1037 = vunpack.c.l.b16 %v589
        %v1038 = vunpack.c.l.b16 %v590
        %v1039 = vunpack.c.l.b16 %v591
        %v1040 = vunpack.c.l.b16 %v592
        %v1041 = vunpack.c.l.b16 %v593
        %v1042 = vunpack.c.l.b16 %v594
        %v1043 = vunpack.c.l.b16 %v595
        %v1044 = vunpack.c.l.b16 %v596
        %v1045 = vunpack.c.l.b16 %v597
        %v1046 = vunpack.c.l.b16 %v598
        %v1047 = vunpack.c.l.b16 %v599
        %v1048 = vunpack.c.l.b16 %v600
        %v1049 = vunpack.c.l.b16 %v601
        %v1050 = vunpack.c.l.b16 %v602
        %v1051 = vunpack.c.l.b16 %v603
        %v1052 = vunpack.c.l.b16 %v604
        %v1053 = vunpack.c.l.b16 %v605
        %v1054 = vunpack.c.l.b16 %v606
        %v1055 = vunpack.c.l.b16 %v607
        %v1056 = vunpack.c.l.b16 %v608
        %v1057 = vunpack.c.l.b16 %v609
        %v1058 = vunpack.c.l.b16 %v610
        %v1059 = vunpack.c.l.b16 %v611
        %v1060 = vunpack.c.l.b16 %v612
        %v1061 = vunpack.c.l.b16 %v613
        %v1062 = vunpack.c.l.b16 %v614
        %v1063 = vunpack.c.l.b16 %v615
        %v1064 = vunpack.c.l.b16 %v616
        %v1065 = vunpack.c.l.b16 %v617
        %v1066 = vunpack.c.l.b16 %v618
        %v1067 = vunpack.c.l.b16 %v619
        %v1068 = vunpack.c.l.b16 %v620
        %v1069 = vunpack.c.l.b16 %v621
        %v1070 = vunpack.c.l.b16 %v622
        %v1071 = vunpack.c.l.b16 %v623
        %v1072 = vunpack.c.l.b16 %v624
        %v1073 = vunpack.c.l.b16 %v625
        %v1074 = vunpack.c.l.b16 %v626
        %v1075 = vunpack.c.l.b16 %v627
        %v1076 = vunpack.c.l.b16 %v628
        %v1077 = vunpack.c.l.b16 %v629
        %v1078 = vunpack.c.l.b16 %v630
        %v1079 = vunpack.c.l.b16 %v631
        %v1080 = vunpack.c.l.b16 %v632
        %v1081 = vunpack.c.l.b16 %v633
        %v1082 = vpack.c.b16 %v1019, %v1018
        %v1083 = vpack.c.b16 %v1021, %v1020
        %v1084 = vpack.c.b16 %v1023, %v1022
        %v1085 = vpack.c.b16 %v1025, %v1024
        %v1086 = vpack.c.b16 %v1027, %v1026
        %v1087 = vpack.c.b16 %v1029, %v1028
        %v1088 = vpack.c.b16 %v1031, %v1030
        %v1089 = vpack.c.b16 %v1033, %v1032
        %v1090 = vpack.c.b16 %v1035, %v1034
        %v1091 = vpack.c.b16 %v1037, %v1036
        %v1092 = vpack.c.b16 %v1039, %v1038
        %v1093 = vpack.c.b16 %v1041, %v1040
        %v1094 = vpack.c.b16 %v1043, %v1042
        %v1095 = vpack.c.b16 %v1045, %v1044
        %v1096 = vpack.c.b16 %v1047, %v1046
        %v1097 = vpack.c.b16 %v1049, %v1048
        %v1098 = vpack.c.b16 %v1051, %v1050
        %v1099 = vpack.c.b16 %v1053, %v1052
        %v1100 = vpack.c.b16 %v1055, %v1054
        %v1101 = vpack.c.b16 %v1057, %v1056
        %v1102 = vpack.c.b16 %v1059, %v1058
        %v1103 = vpack.c.b16 %v1061, %v1060
        %v1104 = vpack.c.b16 %v1063, %v1062
        %v1105 = vpack.c.b16 %v1065, %v1064
        %v1106 = vpack.c.b16 %v1067, %v1066
        %v1107 = vpack.c.b16 %v1069, %v1068
        %v1108 = vpack.c.b16 %v1071, %v1070
        %v1109 = vpack.c.b16 %v1073, %v1072
        %v1110 = vpack.c.b16 %v1075, %v1074
        %v1111 = vpack.c.b16 %v1077, %v1076
        %v1112 = vpack.c.b16 %v1079, %v1078
        %v1113 = vpack.c.b16 %v1081, %v1080
        %1146 = vmatpush.bf16.msra.mxu0 %v1089
        %1147 = vmatpush.bf16.msra.mxu0 %v1088
        %1148 = vmatpush.bf16.msra.mxu0 %v1087
        %1149 = vmatpush.bf16.msra.mxu0 %v1086
        %1150 = vmatpush.bf16.msra.mxu0 %v1085
        %1151 = vmatpush.bf16.msra.mxu0 %v1084
        %1152 = vmatpush.bf16.msra.mxu0 %v1083
        %1153 = vmatpush.bf16.msra.mxu0 %v1082
        %1154 = vmatmul.bf16.gmra.mxu0 %v826
        %v1155 = vpop.f32.mrf.mxu0
        %v1156 = vadd.f32 0.0, %v1155
        %v1157 = vpop.f32.mrf.mxu0
        %v1158 = vadd.f32 0.0, %v1157
        %1159 = vmatmul.bf16.gmra.mxu0 %v830
        %v1160 = vpop.f32.mrf.mxu0
        %v1161 = vadd.f32 0.0, %v1160
        %v1162 = vpop.f32.mrf.mxu0
        %v1163 = vadd.f32 0.0, %v1162
        %1164 = vmatmul.bf16.gmra.mxu0 %v834
        %v1165 = vpop.f32.mrf.mxu0
        %v1166 = vadd.f32 0.0, %v1165
        %v1167 = vpop.f32.mrf.mxu0
        %v1168 = vadd.f32 0.0, %v1167
        %1169 = vmatmul.bf16.gmra.mxu0 %v838
        %v1170 = vpop.f32.mrf.mxu0
        %v1171 = vadd.f32 0.0, %v1170
        %v1172 = vpop.f32.mrf.mxu0
        %v1173 = vadd.f32 0.0, %v1172
        %1174 = vmatmul.bf16.gmra.mxu0 %v842
        %v1175 = vpop.f32.mrf.mxu0
        %v1176 = vadd.f32 0.0, %v1175
        %v1177 = vpop.f32.mrf.mxu0
        %v1178 = vadd.f32 0.0, %v1177
        %1179 = vmatmul.bf16.gmra.mxu0 %v846
        %v1180 = vpop.f32.mrf.mxu0
        %v1181 = vadd.f32 0.0, %v1180
        %v1182 = vpop.f32.mrf.mxu0
        %v1183 = vadd.f32 0.0, %v1182
        %1184 = vmatmul.bf16.gmra.mxu0 %v850
        %v1185 = vpop.f32.mrf.mxu0
        %v1186 = vadd.f32 0.0, %v1185
        %v1187 = vpop.f32.mrf.mxu0
        %v1188 = vadd.f32 0.0, %v1187
        %1189 = vmatmul.bf16.gmra.mxu0 %v854
        %v1190 = vpop.f32.mrf.mxu0
        %v1191 = vadd.f32 0.0, %v1190
        %v1192 = vpop.f32.mrf.mxu0
        %v1193 = vadd.f32 0.0, %v1192
        %1194 = vmatmul.bf16.gmra.mxu0 %v858
        %v1195 = vpop.f32.mrf.mxu0
        %v1196 = vadd.f32 0.0, %v1195
        %v1197 = vpop.f32.mrf.mxu0
        %v1198 = vadd.f32 0.0, %v1197
        %1199 = vmatmul.bf16.gmra.mxu0 %v862
        %v1200 = vpop.f32.mrf.mxu0
        %v1201 = vadd.f32 0.0, %v1200
        %v1202 = vpop.f32.mrf.mxu0
        %v1203 = vadd.f32 0.0, %v1202
        %1204 = vmatmul.bf16.gmra.mxu0 %v866
        %v1205 = vpop.f32.mrf.mxu0
        %v1206 = vadd.f32 0.0, %v1205
        %v1207 = vpop.f32.mrf.mxu0
        %v1208 = vadd.f32 0.0, %v1207
        %1209 = vmatmul.bf16.gmra.mxu0 %v870
        %v1210 = vpop.f32.mrf.mxu0
        %v1211 = vadd.f32 0.0, %v1210
        %v1212 = vpop.f32.mrf.mxu0
        %v1213 = vadd.f32 0.0, %v1212
        %1214 = vmatmul.bf16.gmra.mxu0 %v874
        %v1215 = vpop.f32.mrf.mxu0
        %v1216 = vadd.f32 0.0, %v1215
        %v1217 = vpop.f32.mrf.mxu0
        %v1218 = vadd.f32 0.0, %v1217
        %1219 = vmatmul.bf16.gmra.mxu0 %v878
        %v1220 = vpop.f32.mrf.mxu0
        %v1221 = vadd.f32 0.0, %v1220
        %v1222 = vpop.f32.mrf.mxu0
        %v1223 = vadd.f32 0.0, %v1222
        %1224 = vmatmul.bf16.gmra.mxu0 %v882
        %v1225 = vpop.f32.mrf.mxu0
        %v1226 = vadd.f32 0.0, %v1225
        %v1227 = vpop.f32.mrf.mxu0
        %v1228 = vadd.f32 0.0, %v1227
        %1229 = vmatmul.bf16.gmra.mxu0 %v886
        %v1230 = vpop.f32.mrf.mxu0
        %v1231 = vadd.f32 0.0, %v1230
        %v1232 = vpop.f32.mrf.mxu0
        %v1233 = vadd.f32 0.0, %v1232
        %1234 = vdwg.mxu0
        %1235 = vmatpush.bf16.msra.mxu0 %v1097
        %1236 = vmatpush.bf16.msra.mxu0 %v1096
        %1237 = vmatpush.bf16.msra.mxu0 %v1095
        %1238 = vmatpush.bf16.msra.mxu0 %v1094
        %1239 = vmatpush.bf16.msra.mxu0 %v1093
        %1240 = vmatpush.bf16.msra.mxu0 %v1092
        %1241 = vmatpush.bf16.msra.mxu0 %v1091
        %1242 = vmatpush.bf16.msra.mxu0 %v1090
        %1243 = vmatmul.bf16.gmra.mxu0 %v827
        %v1244 = vpop.f32.mrf.mxu0
        %v1245 = vadd.f32 %v1156, %v1244
        %v1246 = vpop.f32.mrf.mxu0
        %v1247 = vadd.f32 %v1158, %v1246
        %1248 = vmatmul.bf16.gmra.mxu0 %v831
        %v1249 = vpop.f32.mrf.mxu0
        %v1250 = vadd.f32 %v1161, %v1249
        %v1251 = vpop.f32.mrf.mxu0
        %v1252 = vadd.f32 %v1163, %v1251
        %1253 = vmatmul.bf16.gmra.mxu0 %v835
        %v1254 = vpop.f32.mrf.mxu0
        %v1255 = vadd.f32 %v1166, %v1254
        %v1256 = vpop.f32.mrf.mxu0
        %v1257 = vadd.f32 %v1168, %v1256
        %1258 = vmatmul.bf16.gmra.mxu0 %v839
        %v1259 = vpop.f32.mrf.mxu0
        %v1260 = vadd.f32 %v1171, %v1259
        %v1261 = vpop.f32.mrf.mxu0
        %v1262 = vadd.f32 %v1173, %v1261
        %1263 = vmatmul.bf16.gmra.mxu0 %v843
        %v1264 = vpop.f32.mrf.mxu0
        %v1265 = vadd.f32 %v1176, %v1264
        %v1266 = vpop.f32.mrf.mxu0
        %v1267 = vadd.f32 %v1178, %v1266
        %1268 = vmatmul.bf16.gmra.mxu0 %v847
        %v1269 = vpop.f32.mrf.mxu0
        %v1270 = vadd.f32 %v1181, %v1269
        %v1271 = vpop.f32.mrf.mxu0
        %v1272 = vadd.f32 %v1183, %v1271
        %1273 = vmatmul.bf16.gmra.mxu0 %v851
        %v1274 = vpop.f32.mrf.mxu0
        %v1275 = vadd.f32 %v1186, %v1274
        %v1276 = vpop.f32.mrf.mxu0
        %v1277 = vadd.f32 %v1188, %v1276
        %1278 = vmatmul.bf16.gmra.mxu0 %v855
        %v1279 = vpop.f32.mrf.mxu0
        %v1280 = vadd.f32 %v1191, %v1279
        %v1281 = vpop.f32.mrf.mxu0
        %v1282 = vadd.f32 %v1193, %v1281
        %1283 = vmatmul.bf16.gmra.mxu0 %v859
        %v1284 = vpop.f32.mrf.mxu0
        %v1285 = vadd.f32 %v1196, %v1284
        %v1286 = vpop.f32.mrf.mxu0
        %v1287 = vadd.f32 %v1198, %v1286
        %1288 = vmatmul.bf16.gmra.mxu0 %v863
        %v1289 = vpop.f32.mrf.mxu0
        %v1290 = vadd.f32 %v1201, %v1289
        %v1291 = vpop.f32.mrf.mxu0
        %v1292 = vadd.f32 %v1203, %v1291
        %1293 = vmatmul.bf16.gmra.mxu0 %v867
        %v1294 = vpop.f32.mrf.mxu0
        %v1295 = vadd.f32 %v1206, %v1294
        %v1296 = vpop.f32.mrf.mxu0
        %v1297 = vadd.f32 %v1208, %v1296
        %1298 = vmatmul.bf16.gmra.mxu0 %v871
        %v1299 = vpop.f32.mrf.mxu0
        %v1300 = vadd.f32 %v1211, %v1299
        %v1301 = vpop.f32.mrf.mxu0
        %v1302 = vadd.f32 %v1213, %v1301
        %1303 = vmatmul.bf16.gmra.mxu0 %v875
        %v1304 = vpop.f32.mrf.mxu0
        %v1305 = vadd.f32 %v1216, %v1304
        %v1306 = vpop.f32.mrf.mxu0
        %v1307 = vadd.f32 %v1218, %v1306
        %1308 = vmatmul.bf16.gmra.mxu0 %v879
        %v1309 = vpop.f32.mrf.mxu0
        %v1310 = vadd.f32 %v1221, %v1309
        %v1311 = vpop.f32.mrf.mxu0
        %v1312 = vadd.f32 %v1223, %v1311
        %1313 = vmatmul.bf16.gmra.mxu0 %v883
        %v1314 = vpop.f32.mrf.mxu0
        %v1315 = vadd.f32 %v1226, %v1314
        %v1316 = vpop.f32.mrf.mxu0
        %v1317 = vadd.f32 %v1228, %v1316
        %1318 = vmatmul.bf16.gmra.mxu0 %v887
        %v1319 = vpop.f32.mrf.mxu0
        %v1320 = vadd.f32 %v1231, %v1319
        %v1321 = vpop.f32.mrf.mxu0
        %v1322 = vadd.f32 %v1233, %v1321
        %1323 = vdwg.mxu0
        %1324 = vmatpush.bf16.msra.mxu0 %v1105
        %1325 = vmatpush.bf16.msra.mxu0 %v1104
        %1326 = vmatpush.bf16.msra.mxu0 %v1103
        %1327 = vmatpush.bf16.msra.mxu0 %v1102
        %1328 = vmatpush.bf16.msra.mxu0 %v1101
        %1329 = vmatpush.bf16.msra.mxu0 %v1100
        %1330 = vmatpush.bf16.msra.mxu0 %v1099
        %1331 = vmatpush.bf16.msra.mxu0 %v1098
        %1332 = vmatmul.bf16.gmra.mxu0 %v828
        %v1333 = vpop.f32.mrf.mxu0
        %v1334 = vadd.f32 %v1245, %v1333
        %v1335 = vpop.f32.mrf.mxu0
        %v1336 = vadd.f32 %v1247, %v1335
        %1337 = vmatmul.bf16.gmra.mxu0 %v832
        %v1338 = vpop.f32.mrf.mxu0
        %v1339 = vadd.f32 %v1250, %v1338
        %v1340 = vpop.f32.mrf.mxu0
        %v1341 = vadd.f32 %v1252, %v1340
        %1342 = vmatmul.bf16.gmra.mxu0 %v836
        %v1343 = vpop.f32.mrf.mxu0
        %v1344 = vadd.f32 %v1255, %v1343
        %v1345 = vpop.f32.mrf.mxu0
        %v1346 = vadd.f32 %v1257, %v1345
        %1347 = vmatmul.bf16.gmra.mxu0 %v840
        %v1348 = vpop.f32.mrf.mxu0
        %v1349 = vadd.f32 %v1260, %v1348
        %v1350 = vpop.f32.mrf.mxu0
        %v1351 = vadd.f32 %v1262, %v1350
        %1352 = vmatmul.bf16.gmra.mxu0 %v844
        %v1353 = vpop.f32.mrf.mxu0
        %v1354 = vadd.f32 %v1265, %v1353
        %v1355 = vpop.f32.mrf.mxu0
        %v1356 = vadd.f32 %v1267, %v1355
        %1357 = vmatmul.bf16.gmra.mxu0 %v848
        %v1358 = vpop.f32.mrf.mxu0
        %v1359 = vadd.f32 %v1270, %v1358
        %v1360 = vpop.f32.mrf.mxu0
        %v1361 = vadd.f32 %v1272, %v1360
        %1362 = vmatmul.bf16.gmra.mxu0 %v852
        %v1363 = vpop.f32.mrf.mxu0
        %v1364 = vadd.f32 %v1275, %v1363
        %v1365 = vpop.f32.mrf.mxu0
        %v1366 = vadd.f32 %v1277, %v1365
        %1367 = vmatmul.bf16.gmra.mxu0 %v856
        %v1368 = vpop.f32.mrf.mxu0
        %v1369 = vadd.f32 %v1280, %v1368
        %v1370 = vpop.f32.mrf.mxu0
        %v1371 = vadd.f32 %v1282, %v1370
        %1372 = vmatmul.bf16.gmra.mxu0 %v860
        %v1373 = vpop.f32.mrf.mxu0
        %v1374 = vadd.f32 %v1285, %v1373
        %v1375 = vpop.f32.mrf.mxu0
        %v1376 = vadd.f32 %v1287, %v1375
        %1377 = vmatmul.bf16.gmra.mxu0 %v864
        %v1378 = vpop.f32.mrf.mxu0
        %v1379 = vadd.f32 %v1290, %v1378
        %v1380 = vpop.f32.mrf.mxu0
        %v1381 = vadd.f32 %v1292, %v1380
        %1382 = vmatmul.bf16.gmra.mxu0 %v868
        %v1383 = vpop.f32.mrf.mxu0
        %v1384 = vadd.f32 %v1295, %v1383
        %v1385 = vpop.f32.mrf.mxu0
        %v1386 = vadd.f32 %v1297, %v1385
        %1387 = vmatmul.bf16.gmra.mxu0 %v872
        %v1388 = vpop.f32.mrf.mxu0
        %v1389 = vadd.f32 %v1300, %v1388
        %v1390 = vpop.f32.mrf.mxu0
        %v1391 = vadd.f32 %v1302, %v1390
        %1392 = vmatmul.bf16.gmra.mxu0 %v876
        %v1393 = vpop.f32.mrf.mxu0
        %v1394 = vadd.f32 %v1305, %v1393
        %v1395 = vpop.f32.mrf.mxu0
        %v1396 = vadd.f32 %v1307, %v1395
        %1397 = vmatmul.bf16.gmra.mxu0 %v880
        %v1398 = vpop.f32.mrf.mxu0
        %v1399 = vadd.f32 %v1310, %v1398
        %v1400 = vpop.f32.mrf.mxu0
        %v1401 = vadd.f32 %v1312, %v1400
        %1402 = vmatmul.bf16.gmra.mxu0 %v884
        %v1403 = vpop.f32.mrf.mxu0
        %v1404 = vadd.f32 %v1315, %v1403
        %v1405 = vpop.f32.mrf.mxu0
        %v1406 = vadd.f32 %v1317, %v1405
        %1407 = vmatmul.bf16.gmra.mxu0 %v888
        %v1408 = vpop.f32.mrf.mxu0
        %v1409 = vadd.f32 %v1320, %v1408
        %v1410 = vpop.f32.mrf.mxu0
        %v1411 = vadd.f32 %v1322, %v1410
        %1412 = vdwg.mxu0
        %1413 = vmatpush.bf16.msra.mxu0 %v1113
        %1414 = vmatpush.bf16.msra.mxu0 %v1112
        %1415 = vmatpush.bf16.msra.mxu0 %v1111
        %1416 = vmatpush.bf16.msra.mxu0 %v1110
        %1417 = vmatpush.bf16.msra.mxu0 %v1109
        %1418 = vmatpush.bf16.msra.mxu0 %v1108
        %1419 = vmatpush.bf16.msra.mxu0 %v1107
        %1420 = vmatpush.bf16.msra.mxu0 %v1106
        %1421 = vmatmul.bf16.gmra.mxu0 %v829
        %v1422 = vpop.f32.mrf.mxu0
        %v1423 = vadd.f32 %v1334, %v1422
        %v1424 = vpop.f32.mrf.mxu0
        %v1425 = vadd.f32 %v1336, %v1424
        %1426 = vmatmul.bf16.gmra.mxu0 %v833
        %v1427 = vpop.f32.mrf.mxu0
        %v1428 = vadd.f32 %v1339, %v1427
        %v1429 = vpop.f32.mrf.mxu0
        %v1430 = vadd.f32 %v1341, %v1429
        %1431 = vmatmul.bf16.gmra.mxu0 %v837
        %v1432 = vpop.f32.mrf.mxu0
        %v1433 = vadd.f32 %v1344, %v1432
        %v1434 = vpop.f32.mrf.mxu0
        %v1435 = vadd.f32 %v1346, %v1434
        %1436 = vmatmul.bf16.gmra.mxu0 %v841
        %v1437 = vpop.f32.mrf.mxu0
        %v1438 = vadd.f32 %v1349, %v1437
        %v1439 = vpop.f32.mrf.mxu0
        %v1440 = vadd.f32 %v1351, %v1439
        %1441 = vmatmul.bf16.gmra.mxu0 %v845
        %v1442 = vpop.f32.mrf.mxu0
        %v1443 = vadd.f32 %v1354, %v1442
        %v1444 = vpop.f32.mrf.mxu0
        %v1445 = vadd.f32 %v1356, %v1444
        %1446 = vmatmul.bf16.gmra.mxu0 %v849
        %v1447 = vpop.f32.mrf.mxu0
        %v1448 = vadd.f32 %v1359, %v1447
        %v1449 = vpop.f32.mrf.mxu0
        %v1450 = vadd.f32 %v1361, %v1449
        %1451 = vmatmul.bf16.gmra.mxu0 %v853
        %v1452 = vpop.f32.mrf.mxu0
        %v1453 = vadd.f32 %v1364, %v1452
        %v1454 = vpop.f32.mrf.mxu0
        %v1455 = vadd.f32 %v1366, %v1454
        %1456 = vmatmul.bf16.gmra.mxu0 %v857
        %v1457 = vpop.f32.mrf.mxu0
        %v1458 = vadd.f32 %v1369, %v1457
        %v1459 = vpop.f32.mrf.mxu0
        %v1460 = vadd.f32 %v1371, %v1459
        %1461 = vmatmul.bf16.gmra.mxu0 %v861
        %v1462 = vpop.f32.mrf.mxu0
        %v1463 = vadd.f32 %v1374, %v1462
        %v1464 = vpop.f32.mrf.mxu0
        %v1465 = vadd.f32 %v1376, %v1464
        %1466 = vmatmul.bf16.gmra.mxu0 %v865
        %v1467 = vpop.f32.mrf.mxu0
        %v1468 = vadd.f32 %v1379, %v1467
        %v1469 = vpop.f32.mrf.mxu0
        %v1470 = vadd.f32 %v1381, %v1469
        %1471 = vmatmul.bf16.gmra.mxu0 %v869
        %v1472 = vpop.f32.mrf.mxu0
        %v1473 = vadd.f32 %v1384, %v1472
        %v1474 = vpop.f32.mrf.mxu0
        %v1475 = vadd.f32 %v1386, %v1474
        %1476 = vmatmul.bf16.gmra.mxu0 %v873
        %v1477 = vpop.f32.mrf.mxu0
        %v1478 = vadd.f32 %v1389, %v1477
        %v1479 = vpop.f32.mrf.mxu0
        %v1480 = vadd.f32 %v1391, %v1479
        %1481 = vmatmul.bf16.gmra.mxu0 %v877
        %v1482 = vpop.f32.mrf.mxu0
        %v1483 = vadd.f32 %v1394, %v1482
        %v1484 = vpop.f32.mrf.mxu0
        %v1485 = vadd.f32 %v1396, %v1484
        %1486 = vmatmul.bf16.gmra.mxu0 %v881
        %v1487 = vpop.f32.mrf.mxu0
        %v1488 = vadd.f32 %v1399, %v1487
        %v1489 = vpop.f32.mrf.mxu0
        %v1490 = vadd.f32 %v1401, %v1489
        %1491 = vmatmul.bf16.gmra.mxu0 %v885
        %v1492 = vpop.f32.mrf.mxu0
        %v1493 = vadd.f32 %v1404, %v1492
        %v1494 = vpop.f32.mrf.mxu0
        %v1495 = vadd.f32 %v1406, %v1494
        %1496 = vmatmul.bf16.gmra.mxu0 %v889
        %v1497 = vpop.f32.mrf.mxu0
        %v1498 = vadd.f32 %v1409, %v1497
        %v1499 = vpop.f32.mrf.mxu0
        %v1500 = vadd.f32 %v1411, %v1499
        %1501 = vdwg.mxu0
        %v1502 = vadd.f32 %v474, %v1423
        %v1503 = vadd.f32 %v475, %v1425
        %v1504 = vadd.f32 %v476, %v1428
        %v1505 = vadd.f32 %v477, %v1430
        %v1506 = vadd.f32 %v478, %v1433
        %v1507 = vadd.f32 %v479, %v1435
        %v1508 = vadd.f32 %v480, %v1438
        %v1509 = vadd.f32 %v481, %v1440
        %v1510 = vadd.f32 %v482, %v1443
        %v1511 = vadd.f32 %v483, %v1445
        %v1512 = vadd.f32 %v484, %v1448
        %v1513 = vadd.f32 %v485, %v1450
        %v1514 = vadd.f32 %v486, %v1453
        %v1515 = vadd.f32 %v487, %v1455
        %v1516 = vadd.f32 %v488, %v1458
        %v1517 = vadd.f32 %v489, %v1460
        %v1518 = vadd.f32 %v490, %v1463
        %v1519 = vadd.f32 %v491, %v1465
        %v1520 = vadd.f32 %v492, %v1468
        %v1521 = vadd.f32 %v493, %v1470
        %v1522 = vadd.f32 %v494, %v1473
        %v1523 = vadd.f32 %v495, %v1475
        %v1524 = vadd.f32 %v496, %v1478
        %v1525 = vadd.f32 %v497, %v1480
        %v1526 = vadd.f32 %v498, %v1483
        %v1527 = vadd.f32 %v499, %v1485
        %v1528 = vadd.f32 %v500, %v1488
        %v1529 = vadd.f32 %v501, %v1490
        %v1530 = vadd.f32 %v502, %v1493
        %v1531 = vadd.f32 %v503, %v1495
        %v1532 = vadd.f32 %v504, %v1498
        %v1533 = vadd.f32 %v505, %v1500
        %1534 = vst [vmem:[#allocation2] sm:$0xff] %v1502
        %1535 = vst [vmem:[#allocation2 + $0x8] sm:$0xff] %v1503
        %1536 = vst [vmem:[#allocation2 + $0x10] sm:$0xff] %v1504
        %1537 = vst [vmem:[#allocation2 + $0x18] sm:$0xff] %v1505
        %1538 = vst [vmem:[#allocation2 + $0x20] sm:$0xff] %v1506
        %1539 = vst [vmem:[#allocation2 + $0x28] sm:$0xff] %v1507
        %1540 = vst [vmem:[#allocation2 + $0x30] sm:$0xff] %v1508
        %1541 = vst [vmem:[#allocation2 + $0x38] sm:$0xff] %v1509
        %1542 = vst [vmem:[#allocation2 + $0x40] sm:$0xff] %v1510
        %1543 = vst [vmem:[#allocation2 + $0x48] sm:$0xff] %v1511
        %1544 = vst [vmem:[#allocation2 + $0x50] sm:$0xff] %v1512
        %1545 = vst [vmem:[#allocation2 + $0x58] sm:$0xff] %v1513
        %1546 = vst [vmem:[#allocation2 + $0x60] sm:$0xff] %v1514
        %1547 = vst [vmem:[#allocation2 + $0x68] sm:$0xff] %v1515
        %1548 = vst [vmem:[#allocation2 + $0x70] sm:$0xff] %v1516
        %1549 = vst [vmem:[#allocation2 + $0x78] sm:$0xff] %v1517
        %1550 = vst [vmem:[#allocation2 + $0x80] sm:$0xff] %v1518
        %1551 = vst [vmem:[#allocation2 + $0x88] sm:$0xff] %v1519
        %1552 = vst [vmem:[#allocation2 + $0x90] sm:$0xff] %v1520
        %1553 = vst [vmem:[#allocation2 + $0x98] sm:$0xff] %v1521
        %1554 = vst [vmem:[#allocation2 + $0xa0] sm:$0xff] %v1522
        %1555 = vst [vmem:[#allocation2 + $0xa8] sm:$0xff] %v1523
        %1556 = vst [vmem:[#allocation2 + $0xb0] sm:$0xff] %v1524
        %1557 = vst [vmem:[#allocation2 + $0xb8] sm:$0xff] %v1525
        %1558 = vst [vmem:[#allocation2 + $0xc0] sm:$0xff] %v1526
        %1559 = vst [vmem:[#allocation2 + $0xc8] sm:$0xff] %v1527
        %1560 = vst [vmem:[#allocation2 + $0xd0] sm:$0xff] %v1528
        %1561 = vst [vmem:[#allocation2 + $0xd8] sm:$0xff] %v1529
        %1562 = vst [vmem:[#allocation2 + $0xe0] sm:$0xff] %v1530
        %1563 = vst [vmem:[#allocation2 + $0xe8] sm:$0xff] %v1531
        %1564 = vst [vmem:[#allocation2 + $0xf0] sm:$0xff] %v1532
        %1565 = vst [vmem:[#allocation2 + $0xf8] sm:$0xff] %v1533
        %p1566 = scmp.eq.s32.totalorder %s23, 2
        // Predicated region
        $region60: #{feature_matching_forward.17} parent=50 // pred_check
          %p1567 = pneg %p1566
        $region61: #{feature_matching_forward.17} parent=50 // pred_check_branch
          %1569 = sbr.rel (%p1567) target = $region63
        $region62: #{feature_matching_forward.17} parent=50 // pred_region
          %v1570 = vld [vmem:[#allocation2] sm:$0xff]
          %v1571 = vld [vmem:[#allocation2 + $0x8] sm:$0xff]
          %v1572 = vld [vmem:[#allocation2 + $0x10] sm:$0xff]
          %v1573 = vld [vmem:[#allocation2 + $0x18] sm:$0xff]
          %v1574 = vld [vmem:[#allocation2 + $0x20] sm:$0xff]
          %v1575 = vld [vmem:[#allocation2 + $0x28] sm:$0xff]
          %v1576 = vld [vmem:[#allocation2 + $0x30] sm:$0xff]
          %v1577 = vld [vmem:[#allocation2 + $0x38] sm:$0xff]
          %v1578 = vld [vmem:[#allocation2 + $0x40] sm:$0xff]
          %v1579 = vld [vmem:[#allocation2 + $0x48] sm:$0xff]
          %v1580 = vld [vmem:[#allocation2 + $0x50] sm:$0xff]
          %v1581 = vld [vmem:[#allocation2 + $0x58] sm:$0xff]
          %v1582 = vld [vmem:[#allocation2 + $0x60] sm:$0xff]
          %v1583 = vld [vmem:[#allocation2 + $0x68] sm:$0xff]
          %v1584 = vld [vmem:[#allocation2 + $0x70] sm:$0xff]
          %v1585 = vld [vmem:[#allocation2 + $0x78] sm:$0xff]
          %v1586 = vld [vmem:[#allocation2 + $0x80] sm:$0xff]
          %v1587 = vld [vmem:[#allocation2 + $0x88] sm:$0xff]
          %v1588 = vld [vmem:[#allocation2 + $0x90] sm:$0xff]
          %v1589 = vld [vmem:[#allocation2 + $0x98] sm:$0xff]
          %v1590 = vld [vmem:[#allocation2 + $0xa0] sm:$0xff]
          %v1591 = vld [vmem:[#allocation2 + $0xa8] sm:$0xff]
          %v1592 = vld [vmem:[#allocation2 + $0xb0] sm:$0xff]
          %v1593 = vld [vmem:[#allocation2 + $0xb8] sm:$0xff]
          %v1594 = vld [vmem:[#allocation2 + $0xc0] sm:$0xff]
          %v1595 = vld [vmem:[#allocation2 + $0xc8] sm:$0xff]
          %v1596 = vld [vmem:[#allocation2 + $0xd0] sm:$0xff]
          %v1597 = vld [vmem:[#allocation2 + $0xd8] sm:$0xff]
          %v1598 = vld [vmem:[#allocation2 + $0xe0] sm:$0xff]
          %v1599 = vld [vmem:[#allocation2 + $0xe8] sm:$0xff]
          %v1600 = vld [vmem:[#allocation2 + $0xf0] sm:$0xff]
          %v1601 = vld [vmem:[#allocation2 + $0xf8] sm:$0xff]
          %v1602 = vld [vmem:[%s423] sm:$0xff]
          %v1603 = vld [vmem:[%s423 + $0x8] sm:$0xff]
          %v1604 = vld [vmem:[%s423 + $0x10] sm:$0xff]
          %v1605 = vld [vmem:[%s423 + $0x18] sm:$0xff]
          %v1606 = vld [vmem:[%s423 + $0x20] sm:$0xff]
          %v1607 = vld [vmem:[%s423 + $0x28] sm:$0xff]
          %v1608 = vld [vmem:[%s423 + $0x30] sm:$0xff]
          %v1609 = vld [vmem:[%s423 + $0x38] sm:$0xff]
          %v1610 = vld [vmem:[%s423 + $0x40] sm:$0xff]
          %v1611 = vld [vmem:[%s423 + $0x48] sm:$0xff]
          %v1612 = vld [vmem:[%s423 + $0x50] sm:$0xff]
          %v1613 = vld [vmem:[%s423 + $0x58] sm:$0xff]
          %v1614 = vld [vmem:[%s423 + $0x60] sm:$0xff]
          %v1615 = vld [vmem:[%s423 + $0x68] sm:$0xff]
          %v1616 = vld [vmem:[%s423 + $0x70] sm:$0xff]
          %v1617 = vld [vmem:[%s423 + $0x78] sm:$0xff]
          %v1618 = vld [vmem:[%s423 + $0x80] sm:$0xff]
          %v1619 = vld [vmem:[%s423 + $0x88] sm:$0xff]
          %v1620 = vld [vmem:[%s423 + $0x90] sm:$0xff]
          %v1621 = vld [vmem:[%s423 + $0x98] sm:$0xff]
          %v1622 = vld [vmem:[%s423 + $0xa0] sm:$0xff]
          %v1623 = vld [vmem:[%s423 + $0xa8] sm:$0xff]
          %v1624 = vld [vmem:[%s423 + $0xb0] sm:$0xff]
          %v1625 = vld [vmem:[%s423 + $0xb8] sm:$0xff]
          %v1626 = vld [vmem:[%s423 + $0xc0] sm:$0xff]
          %v1627 = vld [vmem:[%s423 + $0xc8] sm:$0xff]
          %v1628 = vld [vmem:[%s423 + $0xd0] sm:$0xff]
          %v1629 = vld [vmem:[%s423 + $0xd8] sm:$0xff]
          %v1630 = vld [vmem:[%s423 + $0xe0] sm:$0xff]
          %v1631 = vld [vmem:[%s423 + $0xe8] sm:$0xff]
          %v1632 = vld [vmem:[%s423 + $0xf0] sm:$0xff]
          %v1633 = vld [vmem:[%s423 + $0xf8] sm:$0xff]
          %1635 = vset.pattern.permute.xlu0 0
          %1636 = vperm.xlu0 %1635, %v1602
          %v1637 = vpop.permute.xlu0 %1636
          %1640 = vset.pattern.permute.xlu0 0
          %1641 = vperm.xlu0 %1640, %v1603
          %v1642 = vpop.permute.xlu0 %1641
          %1645 = vset.pattern.permute.xlu0 0
          %1646 = vperm.xlu0 %1645, %v1604
          %v1647 = vpop.permute.xlu0 %1646
          %1650 = vset.pattern.permute.xlu0 0
          %1651 = vperm.xlu0 %1650, %v1605
          %v1652 = vpop.permute.xlu0 %1651
          %1655 = vset.pattern.permute.xlu0 0
          %1656 = vperm.xlu0 %1655, %v1606
          %v1657 = vpop.permute.xlu0 %1656
          %1660 = vset.pattern.permute.xlu0 0
          %1661 = vperm.xlu0 %1660, %v1607
          %v1662 = vpop.permute.xlu0 %1661
          %1665 = vset.pattern.permute.xlu0 0
          %1666 = vperm.xlu0 %1665, %v1608
          %v1667 = vpop.permute.xlu0 %1666
          %1670 = vset.pattern.permute.xlu0 0
          %1671 = vperm.xlu0 %1670, %v1609
          %v1672 = vpop.permute.xlu0 %1671
          %1675 = vset.pattern.permute.xlu0 0
          %1676 = vperm.xlu0 %1675, %v1610
          %v1677 = vpop.permute.xlu0 %1676
          %1680 = vset.pattern.permute.xlu0 0
          %1681 = vperm.xlu0 %1680, %v1611
          %v1682 = vpop.permute.xlu0 %1681
          %1685 = vset.pattern.permute.xlu0 0
          %1686 = vperm.xlu0 %1685, %v1612
          %v1687 = vpop.permute.xlu0 %1686
          %1690 = vset.pattern.permute.xlu0 0
          %1691 = vperm.xlu0 %1690, %v1613
          %v1692 = vpop.permute.xlu0 %1691
          %1695 = vset.pattern.permute.xlu0 0
          %1696 = vperm.xlu0 %1695, %v1614
          %v1697 = vpop.permute.xlu0 %1696
          %1700 = vset.pattern.permute.xlu0 0
          %1701 = vperm.xlu0 %1700, %v1615
          %v1702 = vpop.permute.xlu0 %1701
          %1705 = vset.pattern.permute.xlu0 0
          %1706 = vperm.xlu0 %1705, %v1616
          %v1707 = vpop.permute.xlu0 %1706
          %1710 = vset.pattern.permute.xlu0 0
          %1711 = vperm.xlu0 %1710, %v1617
          %v1712 = vpop.permute.xlu0 %1711
          %1715 = vset.pattern.permute.xlu0 0
          %1716 = vperm.xlu0 %1715, %v1618
          %v1717 = vpop.permute.xlu0 %1716
          %1720 = vset.pattern.permute.xlu0 0
          %1721 = vperm.xlu0 %1720, %v1619
          %v1722 = vpop.permute.xlu0 %1721
          %1725 = vset.pattern.permute.xlu0 0
          %1726 = vperm.xlu0 %1725, %v1620
          %v1727 = vpop.permute.xlu0 %1726
          %1730 = vset.pattern.permute.xlu0 0
          %1731 = vperm.xlu0 %1730, %v1621
          %v1732 = vpop.permute.xlu0 %1731
          %1735 = vset.pattern.permute.xlu0 0
          %1736 = vperm.xlu0 %1735, %v1622
          %v1737 = vpop.permute.xlu0 %1736
          %1740 = vset.pattern.permute.xlu0 0
          %1741 = vperm.xlu0 %1740, %v1623
          %v1742 = vpop.permute.xlu0 %1741
          %1745 = vset.pattern.permute.xlu0 0
          %1746 = vperm.xlu0 %1745, %v1624
          %v1747 = vpop.permute.xlu0 %1746
          %1750 = vset.pattern.permute.xlu0 0
          %1751 = vperm.xlu0 %1750, %v1625
          %v1752 = vpop.permute.xlu0 %1751
          %1755 = vset.pattern.permute.xlu0 0
          %1756 = vperm.xlu0 %1755, %v1626
          %v1757 = vpop.permute.xlu0 %1756
          %1760 = vset.pattern.permute.xlu0 0
          %1761 = vperm.xlu0 %1760, %v1627
          %v1762 = vpop.permute.xlu0 %1761
          %1765 = vset.pattern.permute.xlu0 0
          %1766 = vperm.xlu0 %1765, %v1628
          %v1767 = vpop.permute.xlu0 %1766
          %1770 = vset.pattern.permute.xlu0 0
          %1771 = vperm.xlu0 %1770, %v1629
          %v1772 = vpop.permute.xlu0 %1771
          %1775 = vset.pattern.permute.xlu0 0
          %1776 = vperm.xlu0 %1775, %v1630
          %v1777 = vpop.permute.xlu0 %1776
          %1780 = vset.pattern.permute.xlu0 0
          %1781 = vperm.xlu0 %1780, %v1631
          %v1782 = vpop.permute.xlu0 %1781
          %1785 = vset.pattern.permute.xlu0 0
          %1786 = vperm.xlu0 %1785, %v1632
          %v1787 = vpop.permute.xlu0 %1786
          %1790 = vset.pattern.permute.xlu0 0
          %1791 = vperm.xlu0 %1790, %v1633
          %v1792 = vpop.permute.xlu0 %1791
          %v1794 = vadd.f32 %v1570, %v1637
          %v1795 = vadd.f32 %v1571, %v1642
          %v1796 = vadd.f32 %v1572, %v1647
          %v1797 = vadd.f32 %v1573, %v1652
          %v1798 = vadd.f32 %v1574, %v1657
          %v1799 = vadd.f32 %v1575, %v1662
          %v1800 = vadd.f32 %v1576, %v1667
          %v1801 = vadd.f32 %v1577, %v1672
          %v1802 = vadd.f32 %v1578, %v1677
          %v1803 = vadd.f32 %v1579, %v1682
          %v1804 = vadd.f32 %v1580, %v1687
          %v1805 = vadd.f32 %v1581, %v1692
          %v1806 = vadd.f32 %v1582, %v1697
          %v1807 = vadd.f32 %v1583, %v1702
          %v1808 = vadd.f32 %v1584, %v1707
          %v1809 = vadd.f32 %v1585, %v1712
          %v1810 = vadd.f32 %v1586, %v1717
          %v1811 = vadd.f32 %v1587, %v1722
          %v1812 = vadd.f32 %v1588, %v1727
          %v1813 = vadd.f32 %v1589, %v1732
          %v1814 = vadd.f32 %v1590, %v1737
          %v1815 = vadd.f32 %v1591, %v1742
          %v1816 = vadd.f32 %v1592, %v1747
          %v1817 = vadd.f32 %v1593, %v1752
          %v1818 = vadd.f32 %v1594, %v1757
          %v1819 = vadd.f32 %v1595, %v1762
          %v1820 = vadd.f32 %v1596, %v1767
          %v1821 = vadd.f32 %v1597, %v1772
          %v1822 = vadd.f32 %v1598, %v1777
          %v1823 = vadd.f32 %v1599, %v1782
          %v1824 = vadd.f32 %v1600, %v1787
          %v1825 = vadd.f32 %v1601, %v1792
          %1826 = vst [vmem:[%s436] sm:$0xff] %v1794
          %1827 = vst [vmem:[%s436 + $0x8] sm:$0xff] %v1795
          %1828 = vst [vmem:[%s436 + $0x10] sm:$0xff] %v1796
          %1829 = vst [vmem:[%s436 + $0x18] sm:$0xff] %v1797
          %1830 = vst [vmem:[%s436 + $0x20] sm:$0xff] %v1798
          %1831 = vst [vmem:[%s436 + $0x28] sm:$0xff] %v1799
          %1832 = vst [vmem:[%s436 + $0x30] sm:$0xff] %v1800
          %1833 = vst [vmem:[%s436 + $0x38] sm:$0xff] %v1801
          %1834 = vst [vmem:[%s436 + $0x40] sm:$0xff] %v1802
          %1835 = vst [vmem:[%s436 + $0x48] sm:$0xff] %v1803
          %1836 = vst [vmem:[%s436 + $0x50] sm:$0xff] %v1804
          %1837 = vst [vmem:[%s436 + $0x58] sm:$0xff] %v1805
          %1838 = vst [vmem:[%s436 + $0x60] sm:$0xff] %v1806
          %1839 = vst [vmem:[%s436 + $0x68] sm:$0xff] %v1807
          %1840 = vst [vmem:[%s436 + $0x70] sm:$0xff] %v1808
          %1841 = vst [vmem:[%s436 + $0x78] sm:$0xff] %v1809
          %1842 = vst [vmem:[%s436 + $0x80] sm:$0xff] %v1810
          %1843 = vst [vmem:[%s436 + $0x88] sm:$0xff] %v1811
          %1844 = vst [vmem:[%s436 + $0x90] sm:$0xff] %v1812
          %1845 = vst [vmem:[%s436 + $0x98] sm:$0xff] %v1813
          %1846 = vst [vmem:[%s436 + $0xa0] sm:$0xff] %v1814
          %1847 = vst [vmem:[%s436 + $0xa8] sm:$0xff] %v1815
          %1848 = vst [vmem:[%s436 + $0xb0] sm:$0xff] %v1816
          %1849 = vst [vmem:[%s436 + $0xb8] sm:$0xff] %v1817
          %1850 = vst [vmem:[%s436 + $0xc0] sm:$0xff] %v1818
          %1851 = vst [vmem:[%s436 + $0xc8] sm:$0xff] %v1819
          %1852 = vst [vmem:[%s436 + $0xd0] sm:$0xff] %v1820
          %1853 = vst [vmem:[%s436 + $0xd8] sm:$0xff] %v1821
          %1854 = vst [vmem:[%s436 + $0xe0] sm:$0xff] %v1822
          %1855 = vst [vmem:[%s436 + $0xe8] sm:$0xff] %v1823
          %1856 = vst [vmem:[%s436 + $0xf0] sm:$0xff] %v1824
          %1857 = vst [vmem:[%s436 + $0xf8] sm:$0xff] %v1825
        $region63: #{feature_matching_forward.17} parent=50 // pred_fallthru
          _
        %s1858 = smul.u32 32, %s21
        %p1859 = scmp.lt.s32.totalorder %s20, 1
        %s1860 = scalar_select %p1859, %s20, 1
        %p1861 = scmp.lt.s32.totalorder %s1858, 31
        %s1862 = scalar_select %p1861, %s1858, 31
        %p1863 = scmp.lt.s32.totalorder %s22, 0
        %s1864 = scalar_select %p1863, %s22, 0
        %s1865 = sadd.s32 %s1864, %s1862
        %s1866 = smul.addr %s1860, 32
        %s1867 = sadd.s32 %s1865, %s1866
        %s1868 = smul.addr %s1867, 8
        %s1869 = scalar_lea.vmem %s3, %s1868
        // Predicated region
        $region64: #{feature_matching_forward.17} parent=50 // pred_check
          %p1870 = pneg %p146
        $region65: #{feature_matching_forward.17} parent=50 // pred_check_branch
          %1872 = sbr.rel (%p1870) target = $region67
        $region66: #{feature_matching_forward.17} parent=50 // pred_region
          %s1873 = smul.u32 32, %s21
        $region67: #{feature_matching_forward.17} parent=50 // pred_fallthru
          _
      $region51: #{feature_matching_forward.17} parent=5 // pred_fallthru
        _
      %p1874 = scmp.le.s32.totalorder 2, %s9
      // Predicated region
      $region68: #{feature_matching_forward.17} parent=5 // pred_check
        %p1875 = pneg %p1874
      $region69: #{feature_matching_forward.17} parent=5 // pred_check_branch
        %1877 = sbr.rel (%p1875) target = $region71
      $region70: #{feature_matching_forward.17} parent=5 // pred_region
        %s1878 = ssub.s32 %s9, 2
        // Predicated region
        $region72: #{feature_matching_forward.17} parent=70 // pred_check
          %p1879 = pneg %p152
        $region73: #{feature_matching_forward.17} parent=70 // pred_check_branch
          %1881 = sbr.rel (%p1879) target = $region75
        $region74: #{feature_matching_forward.17} parent=70 // pred_region
          %s1882 = smul.u32 32, %s25
          %p1883 = scmp.lt.s32.totalorder %s24, 1
          %s1884 = scalar_select %p1883, %s24, 1
          %p1885 = scmp.lt.s32.totalorder %s1882, 31
          %s1886 = scalar_select %p1885, %s1882, 31
          %p1887 = scmp.lt.s32.totalorder %s26, 0
          %s1888 = scalar_select %p1887, %s26, 0
          %s1889 = sadd.s32 %s1888, %s1886
          %s1890 = smul.addr %s1884, 32
          %s1891 = sadd.s32 %s1889, %s1890
          %s1892 = smul.addr %s1891, 8
          %s1893 = scalar_lea.vmem %s3, %s1892
        $region75: #{feature_matching_forward.17} parent=70 // pred_fallthru
          _
      $region71: #{feature_matching_forward.17} parent=5 // pred_fallthru
        _
    $region6: #{feature_matching_forward.17} parent=1 // loop_footer
      %s13 = sadd.s32 1, %s9
    $region7: #{feature_matching_forward.17} parent=1 // loop_footer_branch
      %8 = sbr.rel target = $region3
    $region8: #{feature_matching_forward.17} parent=1 // loop_exit
      _

// kernel: feature_matching_forward.25
$region0: #{feature_matching_forward.25}
  #allocation0 [shape = 'u32[]', space=smem, size = 0x4, offset = 0x4, fixed_abs, tag = 'smem constant byte address 0x4 - core index']
  #allocation1 [shape = 'u32[72,128]{1,0:T(1,128)}', space=vmem, size = 0x9000, scoped, tag = 'internal scratch']
  #allocation2 [shape = 'f32[1,128]{1,0:T(1,128)}', space=vmem, size = 0x200, scoped, tag = 'scratch operand']
  #allocation3 [shape = 's32[1,128]{1,0:T(1,128)}', space=vmem, size = 0x200, scoped, tag = 'scratch operand']
  %s0 = inlined_call_operand.vmem [shape: f32[2,144,128], index: 0, kind: input, shape index: {}]
  %s1 = inlined_call_operand.vmem [shape: f32[2,144,128], index: 1, kind: input, shape index: {}]
  %s2 = inlined_call_operand.vmem [shape: f32[2,1,128], index: 2, kind: output, shape index: {0}]
  %s3 = inlined_call_operand.hbm [shape: s32[2,1,128], index: 3, kind: output, shape index: {1}]
  %4 = xla_tuple %s2, %s3
  %s5 = sld [smem:[#allocation0]]
  $region57: #{feature_matching_forward.25} parent=0
    _
  %s7 = ssub.s32 1, %s5
  %s8 = scalar_select 0, %s7, %s5
  $region1: #{feature_matching_forward.25} parent=0
    #allocation4 [shape = 'u8[1024]{0}', space=vmem, size = 0x400, scoped, tag = 'output window, operand 1']
    #allocation5 [shape = 's32[2]{0}', space=sflag, size = 0x8, scoped, tag = 'scoped memory for feature_matching_forward.25']
    %9 = vsyncpa [#allocation5], 0
    %s10 = scalar_lea.sflag [#allocation5], 1
    %11 = vsyncpa %s10, 0
    loop: start=0, step=1, limit=4
    $region2: #{feature_matching_forward.25} parent=1 // loop_pre_header
      _
    $region3: #{feature_matching_forward.25} parent=1 // loop_header
      %s13 = sphi 0, %s17
      %p14 = scmp.ge.s32.totalorder %s13, 4
      %s20 = sphi 0, %s39
      %s21 = sphi 0, %s35
      %s22 = sphi 0, %s31
      %s23 = sphi 0, %s20
      %s24 = sphi 0, %s21
      %s25 = sphi 0, %s22
      %s26 = sphi 0, %s23
      %s27 = sphi 0, %s24
      %s28 = sphi 0, %s25
      %s44 = sphi 0, %s46
      %s47 = sphi 0, %s44
      %s48 = sphi 0, %s47
      %s64 = sphi 0, %s48
      %s72 = sphi 0, %s74
      %s75 = sphi 0, %s72
      %s76 = sphi 0, %s75
      %s92 = sphi 0, %s76
      %s100 = sphi 0, %s102
      %s103 = sphi 0, %s100
      %s104 = sphi 0, %s103
      %s120 = sphi 0, %s104
      %s128 = sphi 0, %s130
      %s131 = sphi 0, %s128
      %s132 = sphi 0, %s131
      %s148 = sphi 0, %s132
    $region4: #{feature_matching_forward.25} parent=1 // loop_header_branch
      %16 = sbr.rel (%p14) target = $region8
    $region5: #{feature_matching_forward.25} parent=1 // loop_body
      %s18 = ssub.s32 %s13, 1
      %s19 = ssub.s32 %s13, 2
      %s29 = sadd.s32 1, %s22
      %p30 = scmp.ge.s32.totalorder %s29, 1
      %s31 = scalar_select %p30, 0, %s29
      %s32 = sadd.s32 1, %s21
      %s33 = scalar_select %p30, %s32, %s21
      %p34 = scmp.ge.s32.totalorder %s33, 1
      %s35 = scalar_select %p34, 0, %s33
      %s36 = sadd.s32 1, %s20
      %s37 = scalar_select %p34, %s36, %s20
      %p38 = scmp.ge.s32.totalorder %s37, 2
      %s39 = scalar_select %p38, 0, %s37
      %s40 = ssub.s32 %s20, %s39
      %s41 = ssub.s32 %s22, %s31
      %s42 = sor.u32 %s40, %s41
      %p43 = scmp.eq.s32.totalorder %s42, 0
      %s45 = sadd.s32 %s44, 1
      %s46 = scalar_select %p43, %s44, %s45
      %p49 = pneg %p43
      %p50 = scmp.eq.s32.totalorder %s13, 1
      %p51 = por %p49, %p50
      %p52 = scmp.ne.s32.totalorder %s44, %s47
      %p53 = scmp.eq.s32.totalorder %s13, 0
      %p54 = por %p52, %p53
      %p55 = scmp.ne.s32.totalorder %s44, %s47
      %p56 = scmp.eq.s32.totalorder %s18, 1
      %p57 = por %p55, %p56
      %p58 = scmp.ne.s32.totalorder %s47, %s48
      %p59 = scmp.eq.s32.totalorder %s18, 0
      %p60 = por %p58, %p59
      %p61 = scmp.ne.s32.totalorder %s47, %s48
      %p62 = scmp.eq.s32.totalorder %s19, 1
      %p63 = por %p61, %p62
      %p65 = scmp.ne.s32.totalorder %s48, %s64
      %p66 = scmp.eq.s32.totalorder %s19, 0
      %p67 = por %p65, %p66
      %s68 = ssub.s32 %s20, %s39
      %s69 = ssub.s32 %s21, %s35
      %s70 = sor.u32 %s68, %s69
      %p71 = scmp.eq.s32.totalorder %s70, 0
      %s73 = sadd.s32 %s72, 1
      %s74 = scalar_select %p71, %s72, %s73
      %p77 = pneg %p71
      %p78 = scmp.eq.s32.totalorder %s13, 1
      %p79 = por %p77, %p78
      %p80 = scmp.ne.s32.totalorder %s72, %s75
      %p81 = scmp.eq.s32.totalorder %s13, 0
      %p82 = por %p80, %p81
      %p83 = scmp.ne.s32.totalorder %s72, %s75
      %p84 = scmp.eq.s32.totalorder %s18, 1
      %p85 = por %p83, %p84
      %p86 = scmp.ne.s32.totalorder %s75, %s76
      %p87 = scmp.eq.s32.totalorder %s18, 0
      %p88 = por %p86, %p87
      %p89 = scmp.ne.s32.totalorder %s75, %s76
      %p90 = scmp.eq.s32.totalorder %s19, 1
      %p91 = por %p89, %p90
      %p93 = scmp.ne.s32.totalorder %s76, %s92
      %p94 = scmp.eq.s32.totalorder %s19, 0
      %p95 = por %p93, %p94
      %s96 = ssub.s32 %s20, %s39
      %s97 = ssub.s32 %s21, %s35
      %s98 = sor.u32 %s96, %s97
      %p99 = scmp.eq.s32.totalorder %s98, 0
      %s101 = sadd.s32 %s100, 1
      %s102 = scalar_select %p99, %s100, %s101
      %p105 = pneg %p99
      %p106 = scmp.eq.s32.totalorder %s13, 1
      %p107 = por %p105, %p106
      %p108 = scmp.ne.s32.totalorder %s100, %s103
      %p109 = scmp.eq.s32.totalorder %s13, 0
      %p110 = por %p108, %p109
      %p111 = scmp.ne.s32.totalorder %s100, %s103
      %p112 = scmp.eq.s32.totalorder %s18, 1
      %p113 = por %p111, %p112
      %p114 = scmp.ne.s32.totalorder %s103, %s104
      %p115 = scmp.eq.s32.totalorder %s18, 0
      %p116 = por %p114, %p115
      %p117 = scmp.ne.s32.totalorder %s103, %s104
      %p118 = scmp.eq.s32.totalorder %s19, 1
      %p119 = por %p117, %p118
      %p121 = scmp.ne.s32.totalorder %s104, %s120
      %p122 = scmp.eq.s32.totalorder %s19, 0
      %p123 = por %p121, %p122
      %s124 = ssub.s32 %s20, %s39
      %s125 = ssub.s32 %s21, %s35
      %s126 = sor.u32 %s124, %s125
      %p127 = scmp.eq.s32.totalorder %s126, 0
      %s129 = sadd.s32 %s128, 1
      %s130 = scalar_select %p127, %s128, %s129
      %p133 = pneg %p127
      %p134 = scmp.eq.s32.totalorder %s13, 1
      %p135 = por %p133, %p134
      %p136 = scmp.ne.s32.totalorder %s128, %s131
      %p137 = scmp.eq.s32.totalorder %s13, 0
      %p138 = por %p136, %p137
      %p139 = scmp.ne.s32.totalorder %s128, %s131
      %p140 = scmp.eq.s32.totalorder %s18, 1
      %p141 = por %p139, %p140
      %p142 = scmp.ne.s32.totalorder %s131, %s132
      %p143 = scmp.eq.s32.totalorder %s18, 0
      %p144 = por %p142, %p143
      %p145 = scmp.ne.s32.totalorder %s131, %s132
      %p146 = scmp.eq.s32.totalorder %s19, 1
      %p147 = por %p145, %p146
      %p149 = scmp.ne.s32.totalorder %s132, %s148
      %p150 = scmp.eq.s32.totalorder %s19, 0
      %p151 = por %p149, %p150
      %p152 = scmp.le.s32.totalorder 1, %s13
      %p153 = scmp.lt.s32.totalorder %s13, 3
      %p154 = pnand %p152, %p153
      %p155 = pneg %p154
      // Predicated region
      $region9: #{feature_matching_forward.25} parent=5 // pred_check
        _
      $region10: #{feature_matching_forward.25} parent=5 // pred_check_branch
        %157 = sbr.rel (%p154) target = $region12
      $region11: #{feature_matching_forward.25} parent=5 // pred_region
        %s158 = ssub.s32 %s13, 1
      $region12: #{feature_matching_forward.25} parent=5 // pred_fallthru
        _
      %p159 = scmp.lt.s32.totalorder %s13, 2
      // Predicated region
      $region13: #{feature_matching_forward.25} parent=5 // pred_check
        %p160 = pneg %p159
      $region14: #{feature_matching_forward.25} parent=5 // pred_check_branch
        %162 = sbr.rel (%p160) target = $region16
      $region15: #{feature_matching_forward.25} parent=5 // pred_region
        // Predicated region
        $region17: #{feature_matching_forward.25} parent=15 // pred_check
          %p163 = pneg %p54
        $region18: #{feature_matching_forward.25} parent=15 // pred_check_branch
          %165 = sbr.rel (%p163) target = $region20
        $region19: #{feature_matching_forward.25} parent=15 // pred_region
          %p166 = scmp.lt.s32.totalorder %s20, 1
          %s167 = scalar_select %p166, %s20, 1
          %p168 = scmp.lt.s32.totalorder %s22, 0
          %s169 = scalar_select %p168, %s22, 0
          %s170 = smul.addr %s167, 18
          %s171 = sadd.s32 %s169, %s170
          %s172 = smul.addr %s171, 8
          %s173 = scalar_lea.vmem %s0, %s172
        $region20: #{feature_matching_forward.25} parent=15 // pred_fallthru
          _
        // Predicated region
        $region21: #{feature_matching_forward.25} parent=15 // pred_check
          %p174 = pneg %p82
        $region22: #{feature_matching_forward.25} parent=15 // pred_check_branch
          %176 = sbr.rel (%p174) target = $region24
        $region23: #{feature_matching_forward.25} parent=15 // pred_region
          %p177 = scmp.lt.s32.totalorder %s20, 1
          %s178 = scalar_select %p177, %s20, 1
          %p179 = scmp.lt.s32.totalorder %s21, 0
          %s180 = scalar_select %p179, %s21, 0
          %s181 = smul.addr %s178, 18
          %s182 = sadd.s32 %s180, %s181
          %s183 = smul.addr %s182, 8
          %s184 = scalar_lea.vmem %s1, %s183
        $region24: #{feature_matching_forward.25} parent=15 // pred_fallthru
          _
      $region16: #{feature_matching_forward.25} parent=5 // pred_fallthru
        _
      %p185 = scmp.le.s32.totalorder 1, %s13
      %p186 = scmp.lt.s32.totalorder %s13, 3
      %p187 = pnand %p185, %p186
      %p188 = pneg %p187
      // Predicated region
      $region25: #{feature_matching_forward.25} parent=5 // pred_check
        _
      $region26: #{feature_matching_forward.25} parent=5 // pred_check_branch
        %190 = sbr.rel (%p187) target = $region28
      $region27: #{feature_matching_forward.25} parent=5 // pred_region
        %s191 = ssub.s32 %s13, 1
        %p192 = scmp.lt.s32.totalorder %s23, 1
        %s193 = scalar_select %p192, %s23, 1
        %p194 = scmp.lt.s32.totalorder %s25, 0
        %s195 = scalar_select %p194, %s25, 0
        %s196 = smul.addr %s193, 18
        %s197 = sadd.s32 %s195, %s196
        %s198 = smul.addr %s197, 8
        %s199 = scalar_lea.vmem %s0, %s198
        %p200 = pneg %p60
        %p201 = pneg %p57
        %p202 = scmp.lt.s32.totalorder %s23, 1
        %s203 = scalar_select %p202, %s23, 1
        %p204 = scmp.lt.s32.totalorder %s24, 0
        %s205 = scalar_select %p204, %s24, 0
        %s206 = smul.addr %s203, 18
        %s207 = sadd.s32 %s205, %s206
        %s208 = smul.addr %s207, 8
        %s209 = scalar_lea.vmem %s1, %s208
        %p210 = pneg %p88
        %p211 = pneg %p85
        %p212 = pneg %p116
        %p213 = pneg %p113
        %p214 = scmp.lt.s32.totalorder %s23, 1
        %s215 = scalar_select %p214, %s23, 1
        %p216 = scmp.lt.s32.totalorder %s24, 0
        %s217 = scalar_select %p216, %s24, 0
        %s218 = sadd.s32 %s217, %s215
        %s219 = scalar_lea.vmem %s2, %s218
        %p220 = pneg %p144
        %p221 = pneg %p141
        %s222 = sand.u32 %s131, 1
        %s223 = scalar_lea.sflag [#allocation5], %s222
        %s224 = sand.u32 %s131, 1
        %s225 = scalar_lea.vmem [#allocation4], %s224
        %p226 = scmp.lt.s32.totalorder %s23, 1
        %s227 = scalar_select %p226, %s23, 1
        %p228 = scmp.lt.s32.totalorder %s25, 0
        %s229 = scalar_select %p228, %s25, 0
        %s230 = smul.addr %s227, 18
        %s231 = sadd.s32 %s229, %s230
        %s232 = smul.addr %s231, 8
        %s233 = scalar_lea.vmem %s0, %s232
        %p234 = scmp.lt.s32.totalorder %s23, 1
        %s235 = scalar_select %p234, %s23, 1
        %p236 = scmp.lt.s32.totalorder %s24, 0
        %s237 = scalar_select %p236, %s24, 0
        %s238 = smul.addr %s235, 18
        %s239 = sadd.s32 %s237, %s238
        %s240 = smul.addr %s239, 8
        %s241 = scalar_lea.vmem %s1, %s240
        %p242 = scmp.lt.s32.totalorder %s23, 1
        %s243 = scalar_select %p242, %s23, 1
        %p244 = scmp.lt.s32.totalorder %s24, 0
        %s245 = scalar_select %p244, %s24, 0
        %s246 = sadd.s32 %s245, %s243
        %s247 = scalar_lea.vmem %s2, %s246
        %p249 = scmp.eq.s32.totalorder %s25, 0
        // Predicated region
        $region29: #{feature_matching_forward.25} parent=27 // pred_check
          %p250 = pneg %p249
        $region30: #{feature_matching_forward.25} parent=27 // pred_check_branch
          %252 = sbr.rel (%p250) target = $region32
        $region31: #{feature_matching_forward.25} parent=27 // pred_region
          %253 = vst [vmem:[#allocation2] sm:$0x1] -inf
          %254 = vst [vmem:[#allocation3] sm:$0x1] 0
        $region32: #{feature_matching_forward.25} parent=27 // pred_fallthru
          _
        %v255 = vld [vmem:[%s233] sm:$0xff]
        %v256 = vld [vmem:[%s233 + $0x8] sm:$0xff]
        %v257 = vld [vmem:[%s233 + $0x10] sm:$0xff]
        %v258 = vld [vmem:[%s233 + $0x18] sm:$0xff]
        %v259 = vld [vmem:[%s233 + $0x20] sm:$0xff]
        %v260 = vld [vmem:[%s233 + $0x28] sm:$0xff]
        %v261 = vld [vmem:[%s233 + $0x30] sm:$0xff]
        %v262 = vld [vmem:[%s233 + $0x38] sm:$0xff]
        %v263 = vld [vmem:[%s233 + $0x40] sm:$0xff]
        %v264 = vld [vmem:[%s233 + $0x48] sm:$0xff]
        %v265 = vld [vmem:[%s233 + $0x50] sm:$0xff]
        %v266 = vld [vmem:[%s233 + $0x58] sm:$0xff]
        %v267 = vld [vmem:[%s233 + $0x60] sm:$0xff]
        %v268 = vld [vmem:[%s233 + $0x68] sm:$0xff]
        %v269 = vld [vmem:[%s233 + $0x70] sm:$0xff]
        %v270 = vld [vmem:[%s233 + $0x78] sm:$0xff]
        %v271 = vld [vmem:[%s233 + $0x80] sm:$0xff]
        %v272 = vld [vmem:[%s233 + $0x88] sm:$0xff]
        %v273 = vld [vmem:[%s241] sm:$0xff]
        %v274 = vld [vmem:[%s241 + $0x8] sm:$0xff]
        %v275 = vld [vmem:[%s241 + $0x10] sm:$0xff]
        %v276 = vld [vmem:[%s241 + $0x18] sm:$0xff]
        %v277 = vld [vmem:[%s241 + $0x20] sm:$0xff]
        %v278 = vld [vmem:[%s241 + $0x28] sm:$0xff]
        %v279 = vld [vmem:[%s241 + $0x30] sm:$0xff]
        %v280 = vld [vmem:[%s241 + $0x38] sm:$0xff]
        %v281 = vld [vmem:[%s241 + $0x40] sm:$0xff]
        %v282 = vld [vmem:[%s241 + $0x48] sm:$0xff]
        %v283 = vld [vmem:[%s241 + $0x50] sm:$0xff]
        %v284 = vld [vmem:[%s241 + $0x58] sm:$0xff]
        %v285 = vld [vmem:[%s241 + $0x60] sm:$0xff]
        %v286 = vld [vmem:[%s241 + $0x68] sm:$0xff]
        %v287 = vld [vmem:[%s241 + $0x70] sm:$0xff]
        %v288 = vld [vmem:[%s241 + $0x78] sm:$0xff]
        %v289 = vld [vmem:[%s241 + $0x80] sm:$0xff]
        %v290 = vld [vmem:[%s241 + $0x88] sm:$0xff]
        %v291 = vmul.f32 %v255, %v255
        %v292 = vmul.f32 %v256, %v256
        %v293 = vmul.f32 %v257, %v257
        %v294 = vmul.f32 %v258, %v258
        %v295 = vmul.f32 %v259, %v259
        %v296 = vmul.f32 %v260, %v260
        %v297 = vmul.f32 %v261, %v261
        %v298 = vmul.f32 %v262, %v262
        %v299 = vmul.f32 %v263, %v263
        %v300 = vmul.f32 %v264, %v264
        %v301 = vmul.f32 %v265, %v265
        %v302 = vmul.f32 %v266, %v266
        %v303 = vmul.f32 %v267, %v267
        %v304 = vmul.f32 %v268, %v268
        %v305 = vmul.f32 %v269, %v269
        %v306 = vmul.f32 %v270, %v270
        %v307 = vmul.f32 %v271, %v271
        %v308 = vmul.f32 %v272, %v272
        %v309 = vadd.f32 %v291, %v292
        %v310 = vadd.f32 %v309, %v293
        %v311 = vadd.f32 %v310, %v294
        %v312 = vadd.f32 %v311, %v295
        %v313 = vadd.f32 %v312, %v296
        %v314 = vadd.f32 %v313, %v297
        %v315 = vadd.f32 %v314, %v298
        %v316 = vadd.f32 %v315, %v299
        %v317 = vadd.f32 %v316, %v300
        %v318 = vadd.f32 %v317, %v301
        %v319 = vadd.f32 %v318, %v302
        %v320 = vadd.f32 %v319, %v303
        %v321 = vadd.f32 %v320, %v304
        %v322 = vadd.f32 %v321, %v305
        %v323 = vadd.f32 %v322, %v306
        %v324 = vadd.f32 %v323, %v307
        %v325 = vadd.f32 %v324, %v308
        %v326 = vrot.slane %v325, 4
        %v327 = vadd.f32 %v325, %v326
        %v328 = vrot.slane %v327, 2
        %v329 = vadd.f32 %v327, %v328
        %v330 = vrot.slane %v329, 1
        %v331 = vadd.f32 %v329, %v330
        %v332 = vmax.f32 %v331, 1e-24
        %v333 = vrsqrt.pop %v332
        %v334 = vmul.f32 %v333, %v332
        %v335 = vmul.f32 %v334, %v333
        %v336 = vmul.f32 0.5, %v335
        %v337 = vsub.f32 1.5, %v336
        %v338 = vmul.f32 %v333, %v337
        %vm339 = vweird.f32 %v332
        %vm340 = vweird.f32 %v333
        %vm341 = vmor %vm339, %vm340
        %v342 = vsel %vm341, %v333, %v338
        %v343 = vmul.f32 %v255, %v342
        %v344 = vmul.f32 %v256, %v342
        %v345 = vmul.f32 %v257, %v342
        %v346 = vmul.f32 %v258, %v342
        %v347 = vmul.f32 %v259, %v342
        %v348 = vmul.f32 %v260, %v342
        %v349 = vmul.f32 %v261, %v342
        %v350 = vmul.f32 %v262, %v342
        %v351 = vmul.f32 %v263, %v342
        %v352 = vmul.f32 %v264, %v342
        %v353 = vmul.f32 %v265, %v342
        %v354 = vmul.f32 %v266, %v342
        %v355 = vmul.f32 %v267, %v342
        %v356 = vmul.f32 %v268, %v342
        %v357 = vmul.f32 %v269, %v342
        %v358 = vmul.f32 %v270, %v342
        %v359 = vmul.f32 %v271, %v342
        %v360 = vmul.f32 %v272, %v342
        %v361 = vpack.c.bf16 %v344, %v343
        %v362 = vpack.c.bf16 %v346, %v345
        %v363 = vpack.c.bf16 %v348, %v347
        %v364 = vpack.c.bf16 %v350, %v349
        %v365 = vpack.c.bf16 %v352, %v351
        %v366 = vpack.c.bf16 %v354, %v353
        %v367 = vpack.c.bf16 %v356, %v355
        %v368 = vpack.c.bf16 %v358, %v357
        %v369 = vpack.c.bf16 %v360, %v359
        %v370 = vpack.c.bf16 %v274, %v273
        %v371 = vpack.c.bf16 %v276, %v275
        %v372 = vpack.c.bf16 %v278, %v277
        %v373 = vpack.c.bf16 %v280, %v279
        %v374 = vpack.c.bf16 %v282, %v281
        %v375 = vpack.c.bf16 %v284, %v283
        %v376 = vpack.c.bf16 %v286, %v285
        %v377 = vpack.c.bf16 %v288, %v287
        %v378 = vpack.c.bf16 %v290, %v289
        %379 = vxpose.xlu0.c.b16.start [1/8] %v361, 128
        %380 = vxpose.xlu0.c.b16.cont [2/8] %v362, 128
        %381 = vxpose.xlu0.c.b16.cont [3/8] %v363, 128
        %382 = vxpose.xlu0.c.b16.cont [4/8] %v364, 128
        %383 = vxpose.xlu0.c.b16.cont [5/8] %v365, 128
        %384 = vxpose.xlu0.c.b16.cont [6/8] %v366, 128
        %385 = vxpose.xlu0.c.b16.cont [7/8] %v367, 128
        %386 = vxpose.xlu0.c.b16.end [8/8] %v368, 128
        %v387 = vpop.trf.xlu0
        %v388 = vpop.trf.xlu0
        %v389 = vpop.trf.xlu0
        %v390 = vpop.trf.xlu0
        %v391 = vpop.trf.xlu0
        %v392 = vpop.trf.xlu0
        %v393 = vpop.trf.xlu0
        %v394 = vpop.trf.xlu0
        %395 = vxpose.xlu0.c.b16.start [1/8] %v369, 128
        %396 = vxpose.xlu0.c.b16.cont [2/8] 0, 128
        %397 = vxpose.xlu0.c.b16.cont [3/8] 0, 128
        %398 = vxpose.xlu0.c.b16.cont [4/8] 0, 128
        %399 = vxpose.xlu0.c.b16.cont [5/8] 0, 128
        %400 = vxpose.xlu0.c.b16.cont [6/8] 0, 128
        %401 = vxpose.xlu0.c.b16.cont [7/8] 0, 128
        %402 = vxpose.xlu0.c.b16.end [8/8] 0, 128
        %v403 = vpop.trf.xlu0
        %v404 = vpop.trf.xlu0
        %v405 = vpop.trf.xlu0
        %v406 = vpop.trf.xlu0
        %v407 = vpop.trf.xlu0
        %v408 = vpop.trf.xlu0
        %v409 = vpop.trf.xlu0
        %v410 = vpop.trf.xlu0
        %vm411 = vcmask 130048
        %v413 = vsel %vm411, %v403, 0
        %v416 = vsel %vm411, %v404, 0
        %v419 = vsel %vm411, %v405, 0
        %v422 = vsel %vm411, %v406, 0
        %v425 = vsel %vm411, %v407, 0
        %v428 = vsel %vm411, %v408, 0
        %v431 = vsel %vm411, %v409, 0
        %v434 = vsel %vm411, %v410, 0
        %436 = vmatpush.bf16.msra.mxu0 %v377
        %437 = vmatpush.bf16.msra.mxu0 %v376
        %438 = vmatpush.bf16.msra.mxu0 %v375
        %439 = vmatpush.bf16.msra.mxu0 %v374
        %440 = vmatpush.bf16.msra.mxu0 %v373
        %441 = vmatpush.bf16.msra.mxu0 %v372
        %442 = vmatpush.bf16.msra.mxu0 %v371
        %443 = vmatpush.bf16.msra.mxu0 %v370
        %444 = vmatmul.bf16.gmra.mxu0 %v387
        %v445 = vpop.f32.mrf.mxu0
        %v446 = vadd.f32 0.0, %v445
        %v447 = vpop.f32.mrf.mxu0
        %v448 = vadd.f32 0.0, %v447
        %449 = vmatmul.bf16.gmra.mxu0 %v388
        %v450 = vpop.f32.mrf.mxu0
        %v451 = vadd.f32 0.0, %v450
        %v452 = vpop.f32.mrf.mxu0
        %v453 = vadd.f32 0.0, %v452
        %454 = vmatmul.bf16.gmra.mxu0 %v389
        %v455 = vpop.f32.mrf.mxu0
        %v456 = vadd.f32 0.0, %v455
        %v457 = vpop.f32.mrf.mxu0
        %v458 = vadd.f32 0.0, %v457
        %459 = vmatmul.bf16.gmra.mxu0 %v390
        %v460 = vpop.f32.mrf.mxu0
        %v461 = vadd.f32 0.0, %v460
        %v462 = vpop.f32.mrf.mxu0
        %v463 = vadd.f32 0.0, %v462
        %464 = vmatmul.bf16.gmra.mxu0 %v391
        %v465 = vpop.f32.mrf.mxu0
        %v466 = vadd.f32 0.0, %v465
        %v467 = vpop.f32.mrf.mxu0
        %v468 = vadd.f32 0.0, %v467
        %469 = vmatmul.bf16.gmra.mxu0 %v392
        %v470 = vpop.f32.mrf.mxu0
        %v471 = vadd.f32 0.0, %v470
        %v472 = vpop.f32.mrf.mxu0
        %v473 = vadd.f32 0.0, %v472
        %474 = vmatmul.bf16.gmra.mxu0 %v393
        %v475 = vpop.f32.mrf.mxu0
        %v476 = vadd.f32 0.0, %v475
        %v477 = vpop.f32.mrf.mxu0
        %v478 = vadd.f32 0.0, %v477
        %479 = vmatmul.bf16.gmra.mxu0 %v394
        %v480 = vpop.f32.mrf.mxu0
        %v481 = vadd.f32 0.0, %v480
        %v482 = vpop.f32.mrf.mxu0
        %v483 = vadd.f32 0.0, %v482
        %484 = vdwg.mxu0
        %485 = vmatpush.bf16.msra.mxu0 0
        %486 = vmatpush.bf16.msra.mxu0 0
        %487 = vmatpush.bf16.msra.mxu0 0
        %488 = vmatpush.bf16.msra.mxu0 0
        %489 = vmatpush.bf16.msra.mxu0 0
        %490 = vmatpush.bf16.msra.mxu0 0
        %491 = vmatpush.bf16.msra.mxu0 0
        %492 = vmatpush.bf16.msra.mxu0 %v378
        %493 = vmatmul.bf16.gmra.mxu0 %v413
        %v494 = vpop.f32.mrf.mxu0
        %v495 = vadd.f32 %v446, %v494
        %v496 = vpop.f32.mrf.mxu0
        %v497 = vadd.f32 %v448, %v496
        %498 = vmatmul.bf16.gmra.mxu0 %v416
        %v499 = vpop.f32.mrf.mxu0
        %v500 = vadd.f32 %v451, %v499
        %v501 = vpop.f32.mrf.mxu0
        %v502 = vadd.f32 %v453, %v501
        %503 = vmatmul.bf16.gmra.mxu0 %v419
        %v504 = vpop.f32.mrf.mxu0
        %v505 = vadd.f32 %v456, %v504
        %v506 = vpop.f32.mrf.mxu0
        %v507 = vadd.f32 %v458, %v506
        %508 = vmatmul.bf16.gmra.mxu0 %v422
        %v509 = vpop.f32.mrf.mxu0
        %v510 = vadd.f32 %v461, %v509
        %v511 = vpop.f32.mrf.mxu0
        %v512 = vadd.f32 %v463, %v511
        %513 = vmatmul.bf16.gmra.mxu0 %v425
        %v514 = vpop.f32.mrf.mxu0
        %v515 = vadd.f32 %v466, %v514
        %v516 = vpop.f32.mrf.mxu0
        %v517 = vadd.f32 %v468, %v516
        %518 = vmatmul.bf16.gmra.mxu0 %v428
        %v519 = vpop.f32.mrf.mxu0
        %v520 = vadd.f32 %v471, %v519
        %v521 = vpop.f32.mrf.mxu0
        %v522 = vadd.f32 %v473, %v521
        %523 = vmatmul.bf16.gmra.mxu0 %v431
        %v524 = vpop.f32.mrf.mxu0
        %v525 = vadd.f32 %v476, %v524
        %v526 = vpop.f32.mrf.mxu0
        %v527 = vadd.f32 %v478, %v526
        %528 = vmatmul.bf16.gmra.mxu0 %v434
        %v529 = vpop.f32.mrf.mxu0
        %v530 = vadd.f32 %v481, %v529
        %v531 = vpop.f32.mrf.mxu0
        %v532 = vadd.f32 %v483, %v531
        %533 = vdwg.mxu0
        %v534 = vlaneseq
        %v535 = vshrl.u32 %v534, 7
        %v536 = vadd.s32 %v535, 8
        %v537 = vadd.s32 %v535, 16
        %v538 = vadd.s32 %v535, 24
        %v539 = vadd.s32 %v535, 32
        %v540 = vadd.s32 %v535, 40
        %v541 = vadd.s32 %v535, 48
        %v542 = vadd.s32 %v535, 56
        %v543 = vadd.s32 %v535, 64
        %v544 = vadd.s32 %v535, 72
        %v545 = vadd.s32 %v535, 80
        %v546 = vadd.s32 %v535, 88
        %v547 = vadd.s32 %v535, 96
        %v548 = vadd.s32 %v535, 104
        %v549 = vadd.s32 %v535, 112
        %v550 = vadd.s32 %v535, 120
        %s551 = smul.u32 %s25, 128
        %v552 = vstv %s551
        %v553 = vadd.s32 %v535, %v552
        %v554 = vadd.s32 %v536, %v552
        %v555 = vadd.s32 %v537, %v552
        %v556 = vadd.s32 %v538, %v552
        %v557 = vadd.s32 %v539, %v552
        %v558 = vadd.s32 %v540, %v552
        %v559 = vadd.s32 %v541, %v552
        %v560 = vadd.s32 %v542, %v552
        %v561 = vadd.s32 %v543, %v552
        %v562 = vadd.s32 %v544, %v552
        %v563 = vadd.s32 %v545, %v552
        %v564 = vadd.s32 %v546, %v552
        %v565 = vadd.s32 %v547, %v552
        %v566 = vadd.s32 %v548, %v552
        %v567 = vadd.s32 %v549, %v552
        %v568 = vadd.s32 %v550, %v552
        %vm569 = vcmp.lt.s32.totalorder %v553, 16
        %vm570 = vcmp.lt.s32.totalorder %v554, 16
        %vm571 = vcmp.lt.s32.totalorder %v555, 16
        %vm572 = vcmp.lt.s32.totalorder %v556, 16
        %vm573 = vcmp.lt.s32.totalorder %v557, 16
        %vm574 = vcmp.lt.s32.totalorder %v558, 16
        %vm575 = vcmp.lt.s32.totalorder %v559, 16
        %vm576 = vcmp.lt.s32.totalorder %v560, 16
        %vm577 = vcmp.lt.s32.totalorder %v561, 16
        %vm578 = vcmp.lt.s32.totalorder %v562, 16
        %vm579 = vcmp.lt.s32.totalorder %v563, 16
        %vm580 = vcmp.lt.s32.totalorder %v564, 16
        %vm581 = vcmp.lt.s32.totalorder %v565, 16
        %vm582 = vcmp.lt.s32.totalorder %v566, 16
        %vm583 = vcmp.lt.s32.totalorder %v567, 16
        %vm584 = vcmp.lt.s32.totalorder %v568, 16
        %v585 = vsel %vm569, %v495, -inf
        %v586 = vsel %vm570, %v497, -inf
        %v587 = vsel %vm571, %v500, -inf
        %v588 = vsel %vm572, %v502, -inf
        %v589 = vsel %vm573, %v505, -inf
        %v590 = vsel %vm574, %v507, -inf
        %v591 = vsel %vm575, %v510, -inf
        %v592 = vsel %vm576, %v512, -inf
        %v593 = vsel %vm577, %v515, -inf
        %v594 = vsel %vm578, %v517, -inf
        %v595 = vsel %vm579, %v520, -inf
        %v596 = vsel %vm580, %v522, -inf
        %v597 = vsel %vm581, %v525, -inf
        %v598 = vsel %vm582, %v527, -inf
        %v599 = vsel %vm583, %v530, -inf
        %v600 = vsel %vm584, %v532, -inf
        %v601 = vmax.f32 %v585, %v589
        %v602 = vmax.f32 %v586, %v590
        %v603 = vmax.f32 %v587, %v591
        %v604 = vmax.f32 %v588, %v592
        %v605 = vmax.f32 %v601, %v593
        %v606 = vmax.f32 %v602, %v594
        %v607 = vmax.f32 %v603, %v595
        %v608 = vmax.f32 %v604, %v596
        %v609 = vmax.f32 %v605, %v597
        %v610 = vmax.f32 %v606, %v598
        %v611 = vmax.f32 %v607, %v599
        %v612 = vmax.f32 %v608, %v600
        %v613 = vmax.f32 %v609, %v610
        %v614 = vmax.f32 %v611, %v612
        %v615 = vmax.f32 %v613, %v614
        %v616 = vrot.slane %v615, 4
        %v617 = vmax.f32 %v615, %v616
        %v618 = vrot.slane %v617, 2
        %v619 = vmax.f32 %v617, %v618
        %v620 = vrot.slane %v619, 1
        %v621 = vmax.f32 %v619, %v620
        %vm622 = vcmp.eq.f32.partialorder %v585, %v621
        %vm623 = vcmp.eq.f32.partialorder %v586, %v621
        %vm624 = vcmp.eq.f32.partialorder %v587, %v621
        %vm625 = vcmp.eq.f32.partialorder %v588, %v621
        %vm626 = vcmp.eq.f32.partialorder %v589, %v621
        %vm627 = vcmp.eq.f32.partialorder %v590, %v621
        %vm628 = vcmp.eq.f32.partialorder %v591, %v621
        %vm629 = vcmp.eq.f32.partialorder %v592, %v621
        %vm630 = vcmp.eq.f32.partialorder %v593, %v621
        %vm631 = vcmp.eq.f32.partialorder %v594, %v621
        %vm632 = vcmp.eq.f32.partialorder %v595, %v621
        %vm633 = vcmp.eq.f32.partialorder %v596, %v621
        %vm634 = vcmp.eq.f32.partialorder %v597, %v621
        %vm635 = vcmp.eq.f32.partialorder %v598, %v621
        %vm636 = vcmp.eq.f32.partialorder %v599, %v621
        %vm637 = vcmp.eq.f32.partialorder %v600, %v621
        %v638 = vsel %vm622, %v553, 2147483647
        %v639 = vsel %vm623, %v554, 2147483647
        %v640 = vsel %vm624, %v555, 2147483647
        %v641 = vsel %vm625, %v556, 2147483647
        %v642 = vsel %vm626, %v557, 2147483647
        %v643 = vsel %vm627, %v558, 2147483647
        %v644 = vsel %vm628, %v559, 2147483647
        %v645 = vsel %vm629, %v560, 2147483647
        %v646 = vsel %vm630, %v561, 2147483647
        %v647 = vsel %vm631, %v562, 2147483647
        %v648 = vsel %vm632, %v563, 2147483647
        %v649 = vsel %vm633, %v564, 2147483647
        %v650 = vsel %vm634, %v565, 2147483647
        %v651 = vsel %vm635, %v566, 2147483647
        %v652 = vsel %vm636, %v567, 2147483647
        %v653 = vsel %vm637, %v568, 2147483647
        %vm654 = vcmp.lt.s32.totalorder %v638, %v642
        %v655 = vsel %vm654, %v638, %v642
        %vm656 = vcmp.lt.s32.totalorder %v639, %v643
        %v657 = vsel %vm656, %v639, %v643
        %vm658 = vcmp.lt.s32.totalorder %v640, %v644
        %v659 = vsel %vm658, %v640, %v644
        %vm660 = vcmp.lt.s32.totalorder %v641, %v645
        %v661 = vsel %vm660, %v641, %v645
        %vm662 = vcmp.lt.s32.totalorder %v655, %v646
        %v663 = vsel %vm662, %v655, %v646
        %vm664 = vcmp.lt.s32.totalorder %v657, %v647
        %v665 = vsel %vm664, %v657, %v647
        %vm666 = vcmp.lt.s32.totalorder %v659, %v648
        %v667 = vsel %vm666, %v659, %v648
        %vm668 = vcmp.lt.s32.totalorder %v661, %v649
        %v669 = vsel %vm668, %v661, %v649
        %vm670 = vcmp.lt.s32.totalorder %v663, %v650
        %v671 = vsel %vm670, %v663, %v650
        %vm672 = vcmp.lt.s32.totalorder %v665, %v651
        %v673 = vsel %vm672, %v665, %v651
        %vm674 = vcmp.lt.s32.totalorder %v667, %v652
        %v675 = vsel %vm674, %v667, %v652
        %vm676 = vcmp.lt.s32.totalorder %v669, %v653
        %v677 = vsel %vm676, %v669, %v653
        %vm678 = vcmp.lt.s32.totalorder %v671, %v673
        %v679 = vsel %vm678, %v671, %v673
        %vm680 = vcmp.lt.s32.totalorder %v675, %v677
        %v681 = vsel %vm680, %v675, %v677
        %vm682 = vcmp.lt.s32.totalorder %v679, %v681
        %v683 = vsel %vm682, %v679, %v681
        %v684 = vrot.slane %v683, 4
        %vm685 = vcmp.lt.s32.totalorder %v683, %v684
        %v686 = vsel %vm685, %v683, %v684
        %v687 = vrot.slane %v686, 2
        %vm688 = vcmp.lt.s32.totalorder %v686, %v687
        %v689 = vsel %vm688, %v686, %v687
        %v690 = vrot.slane %v689, 1
        %vm691 = vcmp.lt.s32.totalorder %v689, %v690
        %v692 = vsel %vm691, %v689, %v690
        %v693 = vld [vmem:[#allocation2] sm:$0x1]
        %vm694 = vcmp.gt.f32.partialorder %v621, %v693
        %v695 = vld [vmem:[#allocation3] sm:$0x1]
        %v696 = vsel %vm694, %v692, %v695
        %697 = vst [vmem:[#allocation3] sm:$0x1] %v696
        %v698 = vld [vmem:[#allocation2] sm:$0x1]
        %v699 = vsel %vm694, %v621, %v698
        %700 = vst [vmem:[#allocation2] sm:$0x1] %v699
        // Predicated region
        $region33: #{feature_matching_forward.25} parent=27 // pred_check
          %p701 = pneg %p249
        $region34: #{feature_matching_forward.25} parent=27 // pred_check_branch
          %703 = sbr.rel (%p701) target = $region36
        $region35: #{feature_matching_forward.25} parent=27 // pred_region
          %v704 = vmul.f32 %v273, %v273
          %v705 = vmul.f32 %v274, %v274
          %v706 = vmul.f32 %v275, %v275
          %v707 = vmul.f32 %v276, %v276
          %v708 = vmul.f32 %v277, %v277
          %v709 = vmul.f32 %v278, %v278
          %v710 = vmul.f32 %v279, %v279
          %v711 = vmul.f32 %v280, %v280
          %v712 = vmul.f32 %v281, %v281
          %v713 = vmul.f32 %v282, %v282
          %v714 = vmul.f32 %v283, %v283
          %v715 = vmul.f32 %v284, %v284
          %v716 = vmul.f32 %v285, %v285
          %v717 = vmul.f32 %v286, %v286
          %v718 = vmul.f32 %v287, %v287
          %v719 = vmul.f32 %v288, %v288
          %v720 = vmul.f32 %v289, %v289
          %v721 = vmul.f32 %v290, %v290
          %v722 = vadd.f32 %v704, %v705
          %v723 = vadd.f32 %v722, %v706
          %v724 = vadd.f32 %v723, %v707
          %v725 = vadd.f32 %v724, %v708
          %v726 = vadd.f32 %v725, %v709
          %v727 = vadd.f32 %v726, %v710
          %v728 = vadd.f32 %v727, %v711
          %v729 = vadd.f32 %v728, %v712
          %v730 = vadd.f32 %v729, %v713
          %v731 = vadd.f32 %v730, %v714
          %v732 = vadd.f32 %v731, %v715
          %v733 = vadd.f32 %v732, %v716
          %v734 = vadd.f32 %v733, %v717
          %v735 = vadd.f32 %v734, %v718
          %v736 = vadd.f32 %v735, %v719
          %v737 = vadd.f32 %v736, %v720
          %v738 = vadd.f32 %v737, %v721
          %v739 = vrot.slane %v738, 4
          %v740 = vadd.f32 %v738, %v739
          %v741 = vrot.slane %v740, 2
          %v742 = vadd.f32 %v740, %v741
          %v743 = vrot.slane %v742, 1
          %v744 = vadd.f32 %v742, %v743
          %v745 = vmax.f32 %v744, 1e-24
          %v746 = vrsqrt.pop %v745
          %v747 = vmul.f32 %v746, %v745
          %v748 = vmul.f32 %v747, %v746
          %v749 = vmul.f32 0.5, %v748
          %v750 = vsub.f32 1.5, %v749
          %v751 = vmul.f32 %v746, %v750
          %vm752 = vweird.f32 %v745
          %vm753 = vweird.f32 %v746
          %vm754 = vmor %vm752, %vm753
          %v755 = vsel %vm754, %v746, %v751
          %v756 = vld [vmem:[#allocation2] sm:$0x1]
          %v757 = vmul.f32 %v756, %v755
          %758 = vst [vmem:[%s247] sm:$0x1] %v757
          %v759 = vld [vmem:[#allocation3] sm:$0x1]
          %760 = vst [vmem:[%s225] sm:$0x1] %v759
        $region36: #{feature_matching_forward.25} parent=27 // pred_fallthru
          _
        %p761 = scmp.lt.s32.totalorder %s23, 1
        %s762 = scalar_select %p761, %s23, 1
        %p763 = scmp.lt.s32.totalorder %s24, 0
        %s764 = scalar_select %p763, %s24, 0
        %s765 = sadd.s32 %s764, %s762
        %s766 = scalar_lea.vmem %s2, %s765
        %s767 = sand.u32 %s131, 1
        %s768 = scalar_lea.sflag [#allocation5], %s767
        %s769 = sand.u32 %s131, 1
        %s770 = scalar_lea.vmem [#allocation4], %s769
        // Predicated region
        $region37: #{feature_matching_forward.25} parent=27 // pred_check
          %p771 = pneg %p113
        $region38: #{feature_matching_forward.25} parent=27 // pred_check_branch
          %773 = sbr.rel (%p771) target = $region40
        $region39: #{feature_matching_forward.25} parent=27 // pred_region
          _
        $region40: #{feature_matching_forward.25} parent=27 // pred_fallthru
          _
        // Predicated region
        $region41: #{feature_matching_forward.25} parent=27 // pred_check
          %p774 = pneg %p141
        $region42: #{feature_matching_forward.25} parent=27 // pred_check_branch
          %776 = sbr.rel (%p774) target = $region44
        $region43: #{feature_matching_forward.25} parent=27 // pred_region
          %778 = vsyncadd %s768, 0
          %s779 = sadd.s32 %s24, %s23
          %s780 = scalar_lea.hbm %s3, %s779
          %s782 = sshll.u32 %s770, 4
          %s783 = int_to_ptr.vmem [resolvable:$true] %s782
          %s784 = sshll.u32 %s780, 4
          %s785 = int_to_ptr.hbm [resolvable:$true] %s784
          %787 = dma.vmem_to_hbm [thread:$0]  %s783, 16, %s785, %s768
        $region44: #{feature_matching_forward.25} parent=27 // pred_fallthru
          _
      $region28: #{feature_matching_forward.25} parent=5 // pred_fallthru
        _
      %p788 = scmp.le.s32.totalorder 2, %s13
      // Predicated region
      $region45: #{feature_matching_forward.25} parent=5 // pred_check
        %p789 = pneg %p788
      $region46: #{feature_matching_forward.25} parent=5 // pred_check_branch
        %791 = sbr.rel (%p789) target = $region48
      $region47: #{feature_matching_forward.25} parent=5 // pred_region
        %s792 = ssub.s32 %s13, 2
        // Predicated region
        $region49: #{feature_matching_forward.25} parent=47 // pred_check
          %p793 = pneg %p119
        $region50: #{feature_matching_forward.25} parent=47 // pred_check_branch
          %795 = sbr.rel (%p793) target = $region52
        $region51: #{feature_matching_forward.25} parent=47 // pred_region
          %p796 = scmp.lt.s32.totalorder %s26, 1
          %s797 = scalar_select %p796, %s26, 1
          %p798 = scmp.lt.s32.totalorder %s27, 0
          %s799 = scalar_select %p798, %s27, 0
          %s800 = sadd.s32 %s799, %s797
          %s801 = scalar_lea.vmem %s2, %s800
        $region52: #{feature_matching_forward.25} parent=47 // pred_fallthru
          _
        // Predicated region
        $region53: #{feature_matching_forward.25} parent=47 // pred_check
          %p802 = pneg %p147
        $region54: #{feature_matching_forward.25} parent=47 // pred_check_branch
          %804 = sbr.rel (%p802) target = $region56
        $region55: #{feature_matching_forward.25} parent=47 // pred_region
          %s805 = sand.u32 %s132, 1
          %s806 = scalar_lea.sflag [#allocation5], %s805
          %s807 = sand.u32 %s132, 1
          %s808 = scalar_lea.vmem [#allocation4], %s807
          %810 = dma.done %s806, 16
        $region56: #{feature_matching_forward.25} parent=47 // pred_fallthru
          _
      $region48: #{feature_matching_forward.25} parent=5 // pred_fallthru
        _
    $region6: #{feature_matching_forward.25} parent=1 // loop_footer
      %s17 = sadd.s32 1, %s13
    $region7: #{feature_matching_forward.25} parent=1 // loop_footer_branch
      %12 = sbr.rel target = $region3
    $region8: #{feature_matching_forward.25} parent=1 // loop_exit
      _
    %811 = vsyncpa [#allocation5], 1
    %s812 = scalar_lea.sflag [#allocation5], 1
    %813 = vsyncpa %s812, 1

</llo_original>
